<compile_context>
chip_gen: v7x
topology: tpu7x:2x2x1
jax: 0.10.0
libtpu: 0.0.40
codegen_flags: <defaults>
</compile_context>

<pallas_src>
import functools

import numpy as np
import jax
import jax.numpy as jnp
from jax.experimental import pallas as pl
from jax.experimental.pallas import tpu as pltpu

H, W = 7, 28
P = H * W            # 196 pixels per image
PP = 256             # pixel axis padded (lane friendly)
CH = 7 * 28          # 196 hidden channels
CC = 256             # channel axis padded
TAPS = 9             # 3x3 taps
TAPS_PAD = 16        # sublane-friendly padding for tiny-matmul operands
GROUPS = 3           # conv2 stacked-K groups
TPG = TAPS // GROUPS # taps per group
GK = TPG * CC        # stacked-K columns per group (768)
B_TILE_MAX = 8       # pb = B_TILE*256 <= 2048 keeps scratch ~9.4 MB (v7x safe)

# per-tap flat pixel offset: source pixel = p + OFFS[t], with t = ky*3 + kx
OFFS = tuple((ky - 1) * W + (kx - 1) for ky in range(3) for kx in range(3))


def _shift_pixels(v, off):
    # v[..., p] -> v[..., p + off] (cyclic roll on the lane axis).  Invalid
    # lanes (image/padding boundaries, wrap) are zeroed by the per-tap mask,
    # which is applied to the *shifted* result by the caller.
    if off == 0:
        return v
    return jnp.roll(v, -off, axis=-1)


# ----------------------------------------------------------------------------
# Pallas kernel: `levels` chained decoder passes on B_TILE images per step.
# ----------------------------------------------------------------------------
def decoder_kernel(x_ref, mask_ref, w1_ref, b1_ref, w2_ref, b2_ref, w3_ref,
                   b3_ref, o_ref, xs_ref, h1s_ref, *, levels):
    pb = x_ref.shape[-1]                       # B_TILE * PP lanes
    mask_f = mask_ref[...]                     # (TAPS, pb) f32, 0/1
    mask_b = mask_f.astype(jnp.bfloat16)       # exact 0/1 in bf16

    # zero the padded rows of the conv1 staging operand once (scratch is
    # uninitialized VMEM; w1 pad columns are zero but 0*NaN would poison).
    xs_ref[TAPS:, :] = jnp.zeros((TAPS_PAD - TAPS, pb), jnp.float32)

    cur = x_ref[0]                             # (1, pb) f32, lane-dense

    for d in range(levels):
        # ---- conv1: 1 -> CC as one tiny MXU matmul (K = TAPS_PAD = 16) ----
        for t in range(TAPS):
            xs_ref[t:t + 1, :] = _shift_pixels(cur, OFFS[t]) * mask_f[t:t + 1, :]
        h1 = jnp.dot(w1_ref[...], xs_ref[...],
                     preferred_element_type=jnp.float32)       # (CC, pb)
        h1 = jnp.maximum(h1 + b1_ref[...], 0.0).astype(jnp.bfloat16)

        # ---- conv2: CC -> CC, grouped stacked-K bf16 MXU matmuls ----------
        # staging (roll + mask + store, all bf16) of group g+1 has no data
        # dependence on the dot of group g, so the scheduler overlaps them.
        h2 = None
        for g in range(GROUPS):
            for j in range(TPG):
                t = g * TPG + j
                h1s_ref[t * CC:(t + 1) * CC, :] = (
                    _shift_pixels(h1, OFFS[t]) * mask_b[t:t + 1, :])
            part = jnp.dot(w2_ref[:, g * GK:(g + 1) * GK],
                           h1s_ref[g * GK:(g + 1) * GK, :],
                           preferred_element_type=jnp.float32)
            h2 = part if h2 is None else h2 + part
        h2 = jnp.maximum(h2 + b2_ref[...], 0.0)                # (CC, pb) f32

        # ---- conv3: CC -> 1; channel mix (tiny matmul), then 9 rolls ------
        g3 = jnp.dot(w3_ref[...], h2.astype(jnp.bfloat16),
                     preferred_element_type=jnp.float32)       # (TAPS_PAD, pb)
        out = jnp.broadcast_to(b3_ref[...], (1, pb))
        for t in range(TAPS):
            out = out + _shift_pixels(g3[t:t + 1, :], OFFS[t]) * mask_f[t:t + 1, :]

        o_ref[d, 0] = out                                      # lane-dense store
        cur = out                                              # feed next level


# ----------------------------------------------------------------------------
# Host-side wrapper around pallas_call
# ----------------------------------------------------------------------------
def _pick_b_tile(n):
    # Big lane axis to amortize per-step overhead, but keep >= 2 grid steps
    # for small batches so "parallel" can use both v7x TensorCores.
    if n >= 2 * B_TILE_MAX:
        return B_TILE_MAX
    return max(1, -(-n // 2))


def _vmem_limit_bytes(pb, levels):
    scratch = (TAPS * CC + TAPS_PAD) * pb * 2 + TAPS_PAD * pb * 4
    weights = 2 * (CC * TAPS_PAD * 4 + CC * 4 + CC * TAPS * CC * 2 + CC * 4
                   + TAPS_PAD * CC * 2 + 4)
    acts = 2 * (pb * 4 + TAPS * pb * 4 + levels * pb * 4)
    inters = 8 * CC * pb * 4          # h1 / h2 / partial-dot headroom
    est = int((scratch + weights + acts + inters) * 1.3)
    return min(max(est, 32 * 1024 * 1024), 48 * 1024 * 1024)


def decoder_pallas(x_nchw, kp, levels=1, b_tile=None):
    """x_nchw: (N, 1, 7, 28) f32 -> list of `levels` chained decoder outputs,
    each (N, 1, 7, 28) f32 (element k = decoder applied k+1 times)."""
    N = x_nchw.shape[0]
    if b_tile is None:
        b_tile = _pick_b_tile(N)
    steps = -(-N // b_tile)
    n_pad = steps * b_tile
    pb = b_tile * PP

    xf = x_nchw.astype(jnp.float32).reshape(N, P)
    xf = jnp.pad(xf, ((0, n_pad - N), (0, PP - P)))           # (n_pad, PP)
    xf = xf.reshape(steps, 1, pb)                             # lane-dense rows

    mask = jnp.tile(kp["mask"], (1, b_tile))                  # (TAPS, pb) f32

    out = pl.pallas_call(
        functools.partial(decoder_kernel, levels=levels),
        out_shape=jax.ShapeDtypeStruct((levels, steps, 1, pb), jnp.float32),
        grid=(steps,),
        in_specs=[
            pl.BlockSpec((1, 1, pb), lambda i: (i, 0, 0)),        # x
            pl.BlockSpec((TAPS, pb), lambda i: (0, 0)),           # boundary masks
            pl.BlockSpec((CC, TAPS_PAD), lambda i: (0, 0)),       # w1 (f32)
            pl.BlockSpec((CC, 1), lambda i: (0, 0)),              # b1
            pl.BlockSpec((CC, TAPS * CC), lambda i: (0, 0)),      # w2 stacked (bf16)
            pl.BlockSpec((CC, 1), lambda i: (0, 0)),              # b2
            pl.BlockSpec((TAPS_PAD, CC), lambda i: (0, 0)),       # w3^T (bf16)
            pl.BlockSpec((1, 1), lambda i: (0, 0)),               # b3
        ],
        out_specs=pl.BlockSpec((levels, 1, 1, pb), lambda i: (0, i, 0, 0)),
        scratch_shapes=[pltpu.VMEM((TAPS_PAD, pb), jnp.float32),       # conv1 stage
                        pltpu.VMEM((TAPS * CC, pb), jnp.bfloat16)],    # conv2 stage
        compiler_params=pltpu.CompilerParams(
            dimension_semantics=("parallel",),
            vmem_limit_bytes=_vmem_limit_bytes(pb, levels)),
    )(xf, mask, kp["w1"], kp["b1"], kp["w2"], kp["b2"], kp["w3"], kp["b3"])

    out = out.reshape(levels, n_pad, PP)[:, :N, :P]
    out = out.reshape(levels, N, 1, H, W)
    return [out[d] for d in range(levels)]


# ----------------------------------------------------------------------------
# Parameter construction (PyTorch layout) + kernel re-layout
# ----------------------------------------------------------------------------
def init_params(key):
    k1, k2, k3, k4, k5, k6 = jax.random.split(key, 6)
    return dict(
        w1=jax.random.normal(k1, (CH, 1, 3, 3), jnp.float32) * 0.30,
        b1=jax.random.normal(k2, (CH,), jnp.float32) * 0.05,
        w2=jax.random.normal(k3, (CH, CH, 3, 3), jnp.float32) * 0.02,
        b2=jax.random.normal(k4, (CH,), jnp.float32) * 0.05,
        w3=jax.random.normal(k5, (1, CH, 3, 3), jnp.float32) * 0.02,
        b3=jax.random.normal(k6, (1,), jnp.float32) * 0.05,
    )


def build_pixel_masks():
    ys, xs = np.meshgrid(np.arange(H), np.arange(W), indexing="ij")
    m = np.zeros((TAPS, PP), np.float32)
    for ky in range(3):
        for kx in range(3):
            t = ky * 3 + kx
            dy, dx = ky - 1, kx - 1
            ok = (ys + dy >= 0) & (ys + dy < H) & (xs + dx >= 0) & (xs + dx < W)
            m[t, :P] = ok.reshape(-1).astype(np.float32)
    return jnp.asarray(m)    # f32; 0/1 is exact in both f32 and bf16


def to_kernel_params(p):
    cpad = CC - CH
    w1 = jnp.pad(p["w1"].reshape(CH, TAPS),
                 ((0, cpad), (0, TAPS_PAD - TAPS)))                  # (CC, 16) f32
    b1 = jnp.pad(p["b1"], (0, cpad)).reshape(CC, 1)
    w2 = jnp.transpose(p["w2"].reshape(CH, CH, TAPS), (0, 2, 1))     # (co, t, ci)
    w2 = jnp.pad(w2, ((0, cpad), (0, 0), (0, cpad)))
    w2 = w2.reshape(CC, TAPS * CC).astype(jnp.bfloat16)              # (CC, 9*CC)
    b2 = jnp.pad(p["b2"], (0, cpad)).reshape(CC, 1)
    w3 = jnp.transpose(p["w3"].reshape(CH, TAPS), (1, 0))            # (9, CH)
    w3 = jnp.pad(w3, ((0, TAPS_PAD - TAPS), (0, cpad))).astype(jnp.bfloat16)
    b3 = p["b3"].reshape(1, 1)
    return dict(mask=build_pixel_masks(),
                w1=w1, b1=b1, w2=w2, b2=b2, w3=w3, b3=b3)


# ----------------------------------------------------------------------------
# Pure-JAX reference of the decoder (sanity check)
# ----------------------------------------------------------------------------
def decoder_ref(x, p):
    dn = ("NCHW", "OIHW", "NCHW")

    def conv(h, w, b):
        y = jax.lax.conv_general_dilated(h, w, (1, 1), ((1, 1), (1, 1)),
                                         dimension_numbers=dn)
        return y + b[None, :, None, None]

    h = jax.nn.relu(conv(x, p["w1"], p["b1"]))
    h = jax.nn.relu(conv(h, p["w2"], p["b2"]))
    return conv(h, p["w3"], p["b3"])


# ----------------------------------------------------------------------------
# SinDDM.forward semantics
# ----------------------------------------------------------------------------
def sinddm_forward(x, training, depth, kp, key, train_depth=3):
    layers_encode = []
    layers_decode = []
    if training:
        # one launch: stack all train_depth noisy copies along the batch axis
        noises = []
        for i in range(train_depth):
            key, sub = jax.random.split(key)
            noise = x + jax.random.normal(sub, x.shape, x.dtype) * (i / 10.0)
            noises.append(noise.reshape(-1, 1, H, W))
        n_per = noises[0].shape[0]
        dec = decoder_pallas(jnp.concatenate(noises, axis=0), kp, levels=1)[0]
        layers_decode = [dec[i * n_per:(i + 1) * n_per] for i in range(train_depth)]
    else:
        # one launch: chained levels fused inside the kernel (weights resident)
        if depth > 0:
            layers_decode = decoder_pallas(x.reshape(-1, 1, H, W), kp, levels=depth)
    return x, layers_encode, layers_decode


if __name__ == "__main__":
    key = jax.random.PRNGKey(0)
    kx_, kparam, knoise = jax.random.split(key, 3)

    x = jax.random.normal(kx_, (2, 1, H, W), jnp.float32)
    params = init_params(kparam)
    kparams = to_kernel_params(params)

    # --- single decoder pass: Pallas kernel vs. pure-JAX conv reference ---
    y_pallas = decoder_pallas(x, kparams, levels=1)[0]
    y_ref = decoder_ref(x, params)
    jax.block_until_ready((y_pallas, y_ref))
    np.testing.assert_allclose(np.asarray(y_pallas), np.asarray(y_ref),
                               rtol=3e-2, atol=3e-2)

    # --- fused 2-level (inference-style) pass vs. two reference applications ---
    y2_pallas = decoder_pallas(x, kparams, levels=2)
    y2_ref = decoder_ref(decoder_ref(x, params), params)
    jax.block_until_ready(y2_pallas)
    np.testing.assert_allclose(np.asarray(y2_pallas[1]), np.asarray(y2_ref),
                               rtol=6e-2, atol=6e-2)

    # --- full module forward: training branch and inference branch ---
    _, enc_t, dec_t = sinddm_forward(x, training=True, depth=3,
                                     kp=kparams, key=knoise)
    _, enc_e, dec_e = sinddm_forward(x, training=False, depth=2,
                                     kp=kparams, key=knoise)
    jax.block_until_ready(dec_t + dec_e)

    assert len(enc_t) == 0 and len(enc_e) == 0
    assert len(dec_t) == 3 and all(d.shape == (2, 1, H, W) for d in dec_t)
    assert len(dec_e) == 2 and all(d.shape == (2, 1, H, W) for d in dec_e)

    print("KERNEL_OK")
</pallas_src>

<mosaic_0001>
module attributes {stable_mosaic.version = 11 : i64} {
  func.func @decoder_kernel(%arg0: i32, %arg1: memref<1x1x256xf32, #tpu.memory_space<vmem>>, %arg2: memref<9x256xf32, #tpu.memory_space<vmem>>, %arg3: memref<256x16xf32, #tpu.memory_space<vmem>>, %arg4: memref<256x1xf32, #tpu.memory_space<vmem>>, %arg5: memref<256x2304xbf16, #tpu.memory_space<vmem>>, %arg6: memref<256x1xf32, #tpu.memory_space<vmem>>, %arg7: memref<16x256xbf16, #tpu.memory_space<vmem>>, %arg8: memref<1x1xf32, #tpu.memory_space<vmem>>, %arg9: memref<1x1x1x256xf32, #tpu.memory_space<vmem>>, %arg10: memref<16x256xf32, #tpu.memory_space<vmem>>, %arg11: memref<2304x256xbf16, #tpu.memory_space<vmem>>) attributes {dimension_semantics = [#tpu.dimension_semantics<parallel>], iteration_bounds = array<i64: 2>, scalar_prefetch = 0 : i64, scratch_operands = 2 : i64, tpu.core_type = #tpu.core_type<tc>, window_params = [{transform_indices = @transform_0, window_bounds = array<i64: 1, 1, 256>}, {pipeline_mode = #tpu.pipeline_mode<synchronous>, transform_indices = @transform_1, window_bounds = array<i64: 9, 256>}, {pipeline_mode = #tpu.pipeline_mode<synchronous>, transform_indices = @transform_2, window_bounds = array<i64: 256, 16>}, {pipeline_mode = #tpu.pipeline_mode<synchronous>, transform_indices = @transform_3, window_bounds = array<i64: 256, 1>}, {pipeline_mode = #tpu.pipeline_mode<synchronous>, transform_indices = @transform_4, window_bounds = array<i64: 256, 2304>}, {pipeline_mode = #tpu.pipeline_mode<synchronous>, transform_indices = @transform_5, window_bounds = array<i64: 256, 1>}, {pipeline_mode = #tpu.pipeline_mode<synchronous>, transform_indices = @transform_6, window_bounds = array<i64: 16, 256>}, {pipeline_mode = #tpu.pipeline_mode<synchronous>, transform_indices = @transform_7, window_bounds = array<i64: 1, 1>}, {transform_indices = @transform_8, window_bounds = array<i64: 1, 1, 1, 256>}]} {
    %c0 = arith.constant 0 : index
    %c0_0 = arith.constant 0 : index
    %0 = vector.load %arg2[%c0, %c0_0] : memref<9x256xf32, #tpu.memory_space<vmem>>, vector<9x256xf32>
    %1 = arith.truncf %0 : vector<9x256xf32> to vector<9x256xbf16>
    %cst = arith.constant 0.000000e+00 : f32
    %2 = vector.broadcast %cst : f32 to vector<7x256xf32>
    %c9 = arith.constant 9 : index
    %c0_1 = arith.constant 0 : index
    %3 = vector.load %arg10[%c9, %c0_1] : memref<16x256xf32, #tpu.memory_space<vmem>>, vector<7x256xf32>
    tpu.vector_store %arg10[%c9, %c0_1], %2 {strides = array<i32>} : memref<16x256xf32, #tpu.memory_space<vmem>>, vector<7x256xf32>,
    %c0_2 = arith.constant 0 : index
    %c0_3 = arith.constant 0 : index
    %c0_4 = arith.constant 0 : index
    %4 = vector.load %arg1[%c0_2, %c0_3, %c0_4] : memref<1x1x256xf32, #tpu.memory_space<vmem>>, vector<1x1x256xf32>
    %5 = vector.shape_cast %4 : vector<1x1x256xf32> to vector<1x256xf32>
    %6 = vector.extract_strided_slice %5 {offsets = [0, 227], sizes = [1, 29], strides = [1, 1]} : vector<1x256xf32> to vector<1x29xf32>
    %7 = vector.extract_strided_slice %5 {offsets = [0, 0], sizes = [1, 227], strides = [1, 1]} : vector<1x256xf32> to vector<1x227xf32>
    %8 = tpu.concatenate %6, %7 in 1 : vector<1x29xf32>, vector<1x227xf32> -> vector<1x256xf32>
    %9 = vector.extract_strided_slice %0 {offsets = [0, 0], sizes = [1, 256], strides = [1, 1]} : vector<9x256xf32> to vector<1x256xf32>
    %10 = arith.mulf %8, %9 : vector<1x256xf32>
    %c0_5 = arith.constant 0 : index
    %c0_6 = arith.constant 0 : index
    %11 = vector.load %arg10[%c0_5, %c0_6] : memref<16x256xf32, #tpu.memory_space<vmem>>, vector<1x256xf32>
    tpu.vector_store %arg10[%c0_5, %c0_6], %10 {strides = array<i32>} : memref<16x256xf32, #tpu.memory_space<vmem>>, vector<1x256xf32>,
    %12 = vector.extract_strided_slice %5 {offsets = [0, 228], sizes = [1, 28], strides = [1, 1]} : vector<1x256xf32> to vector<1x28xf32>
    %13 = vector.extract_strided_slice %5 {offsets = [0, 0], sizes = [1, 228], strides = [1, 1]} : vector<1x256xf32> to vector<1x228xf32>
    %14 = tpu.concatenate %12, %13 in 1 : vector<1x28xf32>, vector<1x228xf32> -> vector<1x256xf32>
    %15 = vector.extract_strided_slice %0 {offsets = [1, 0], sizes = [1, 256], strides = [1, 1]} : vector<9x256xf32> to vector<1x256xf32>
    %16 = arith.mulf %14, %15 : vector<1x256xf32>
    %c1 = arith.constant 1 : index
    %c0_7 = arith.constant 0 : index
    %17 = vector.load %arg10[%c1, %c0_7] : memref<16x256xf32, #tpu.memory_space<vmem>>, vector<1x256xf32>
    tpu.vector_store %arg10[%c1, %c0_7], %16 {strides = array<i32>} : memref<16x256xf32, #tpu.memory_space<vmem>>, vector<1x256xf32>,
    %18 = vector.extract_strided_slice %5 {offsets = [0, 229], sizes = [1, 27], strides = [1, 1]} : vector<1x256xf32> to vector<1x27xf32>
    %19 = vector.extract_strided_slice %5 {offsets = [0, 0], sizes = [1, 229], strides = [1, 1]} : vector<1x256xf32> to vector<1x229xf32>
    %20 = tpu.concatenate %18, %19 in 1 : vector<1x27xf32>, vector<1x229xf32> -> vector<1x256xf32>
    %21 = vector.extract_strided_slice %0 {offsets = [2, 0], sizes = [1, 256], strides = [1, 1]} : vector<9x256xf32> to vector<1x256xf32>
    %22 = arith.mulf %20, %21 : vector<1x256xf32>
    %c2 = arith.constant 2 : index
    %c0_8 = arith.constant 0 : index
    %23 = vector.load %arg10[%c2, %c0_8] : memref<16x256xf32, #tpu.memory_space<vmem>>, vector<1x256xf32>
    tpu.vector_store %arg10[%c2, %c0_8], %22 {strides = array<i32>} : memref<16x256xf32, #tpu.memory_space<vmem>>, vector<1x256xf32>,
    %24 = vector.extract_strided_slice %5 {offsets = [0, 255], sizes = [1, 1], strides = [1, 1]} : vector<1x256xf32> to vector<1x1xf32>
    %25 = vector.extract_strided_slice %5 {offsets = [0, 0], sizes = [1, 255], strides = [1, 1]} : vector<1x256xf32> to vector<1x255xf32>
    %26 = tpu.concatenate %24, %25 in 1 : vector<1x1xf32>, vector<1x255xf32> -> vector<1x256xf32>
    %27 = vector.extract_strided_slice %0 {offsets = [3, 0], sizes = [1, 256], strides = [1, 1]} : vector<9x256xf32> to vector<1x256xf32>
    %28 = arith.mulf %26, %27 : vector<1x256xf32>
    %c3 = arith.constant 3 : index
    %c0_9 = arith.constant 0 : index
    %29 = vector.load %arg10[%c3, %c0_9] : memref<16x256xf32, #tpu.memory_space<vmem>>, vector<1x256xf32>
    tpu.vector_store %arg10[%c3, %c0_9], %28 {strides = array<i32>} : memref<16x256xf32, #tpu.memory_space<vmem>>, vector<1x256xf32>,
    %30 = vector.extract_strided_slice %0 {offsets = [4, 0], sizes = [1, 256], strides = [1, 1]} : vector<9x256xf32> to vector<1x256xf32>
    %31 = arith.mulf %5, %30 : vector<1x256xf32>
    %c4 = arith.constant 4 : index
    %c0_10 = arith.constant 0 : index
    %32 = vector.load %arg10[%c4, %c0_10] : memref<16x256xf32, #tpu.memory_space<vmem>>, vector<1x256xf32>
    tpu.vector_store %arg10[%c4, %c0_10], %31 {strides = array<i32>} : memref<16x256xf32, #tpu.memory_space<vmem>>, vector<1x256xf32>,
    %33 = vector.extract_strided_slice %5 {offsets = [0, 1], sizes = [1, 255], strides = [1, 1]} : vector<1x256xf32> to vector<1x255xf32>
    %34 = vector.extract_strided_slice %5 {offsets = [0, 0], sizes = [1, 1], strides = [1, 1]} : vector<1x256xf32> to vector<1x1xf32>
    %35 = tpu.concatenate %33, %34 in 1 : vector<1x255xf32>, vector<1x1xf32> -> vector<1x256xf32>
    %36 = vector.extract_strided_slice %0 {offsets = [5, 0], sizes = [1, 256], strides = [1, 1]} : vector<9x256xf32> to vector<1x256xf32>
    %37 = arith.mulf %35, %36 : vector<1x256xf32>
    %c5 = arith.constant 5 : index
    %c0_11 = arith.constant 0 : index
    %38 = vector.load %arg10[%c5, %c0_11] : memref<16x256xf32, #tpu.memory_space<vmem>>, vector<1x256xf32>
    tpu.vector_store %arg10[%c5, %c0_11], %37 {strides = array<i32>} : memref<16x256xf32, #tpu.memory_space<vmem>>, vector<1x256xf32>,
    %39 = vector.extract_strided_slice %5 {offsets = [0, 27], sizes = [1, 229], strides = [1, 1]} : vector<1x256xf32> to vector<1x229xf32>
    %40 = vector.extract_strided_slice %5 {offsets = [0, 0], sizes = [1, 27], strides = [1, 1]} : vector<1x256xf32> to vector<1x27xf32>
    %41 = tpu.concatenate %39, %40 in 1 : vector<1x229xf32>, vector<1x27xf32> -> vector<1x256xf32>
    %42 = vector.extract_strided_slice %0 {offsets = [6, 0], sizes = [1, 256], strides = [1, 1]} : vector<9x256xf32> to vector<1x256xf32>
    %43 = arith.mulf %41, %42 : vector<1x256xf32>
    %c6 = arith.constant 6 : index
    %c0_12 = arith.constant 0 : index
    %44 = vector.load %arg10[%c6, %c0_12] : memref<16x256xf32, #tpu.memory_space<vmem>>, vector<1x256xf32>
    tpu.vector_store %arg10[%c6, %c0_12], %43 {strides = array<i32>} : memref<16x256xf32, #tpu.memory_space<vmem>>, vector<1x256xf32>,
    %45 = vector.extract_strided_slice %5 {offsets = [0, 28], sizes = [1, 228], strides = [1, 1]} : vector<1x256xf32> to vector<1x228xf32>
    %46 = vector.extract_strided_slice %5 {offsets = [0, 0], sizes = [1, 28], strides = [1, 1]} : vector<1x256xf32> to vector<1x28xf32>
    %47 = tpu.concatenate %45, %46 in 1 : vector<1x228xf32>, vector<1x28xf32> -> vector<1x256xf32>
    %48 = vector.extract_strided_slice %0 {offsets = [7, 0], sizes = [1, 256], strides = [1, 1]} : vector<9x256xf32> to vector<1x256xf32>
    %49 = arith.mulf %47, %48 : vector<1x256xf32>
    %c7 = arith.constant 7 : index
    %c0_13 = arith.constant 0 : index
    %50 = vector.load %arg10[%c7, %c0_13] : memref<16x256xf32, #tpu.memory_space<vmem>>, vector<1x256xf32>
    tpu.vector_store %arg10[%c7, %c0_13], %49 {strides = array<i32>} : memref<16x256xf32, #tpu.memory_space<vmem>>, vector<1x256xf32>,
    %51 = vector.extract_strided_slice %5 {offsets = [0, 29], sizes = [1, 227], strides = [1, 1]} : vector<1x256xf32> to vector<1x227xf32>
    %52 = vector.extract_strided_slice %5 {offsets = [0, 0], sizes = [1, 29], strides = [1, 1]} : vector<1x256xf32> to vector<1x29xf32>
    %53 = tpu.concatenate %51, %52 in 1 : vector<1x227xf32>, vector<1x29xf32> -> vector<1x256xf32>
    %54 = vector.extract_strided_slice %0 {offsets = [8, 0], sizes = [1, 256], strides = [1, 1]} : vector<9x256xf32> to vector<1x256xf32>
    %55 = arith.mulf %53, %54 : vector<1x256xf32>
    %c8 = arith.constant 8 : index
    %c0_14 = arith.constant 0 : index
    %56 = vector.load %arg10[%c8, %c0_14] : memref<16x256xf32, #tpu.memory_space<vmem>>, vector<1x256xf32>
    tpu.vector_store %arg10[%c8, %c0_14], %55 {strides = array<i32>} : memref<16x256xf32, #tpu.memory_space<vmem>>, vector<1x256xf32>,
    %c0_15 = arith.constant 0 : index
    %c0_16 = arith.constant 0 : index
    %57 = vector.load %arg3[%c0_15, %c0_16] : memref<256x16xf32, #tpu.memory_space<vmem>>, vector<256x16xf32>
    %c0_17 = arith.constant 0 : index
    %c0_18 = arith.constant 0 : index
    %58 = vector.load %arg10[%c0_17, %c0_18] : memref<16x256xf32, #tpu.memory_space<vmem>>, vector<16x256xf32>
    %cst_19 = arith.constant dense<0.000000e+00> : vector<256x256xf32>
    %59 = tpu.matmul %57, %58, %cst_19 {dimension_numbers = #tpu.dot_dimension_numbers<[1], [0], [0], [1], [0, 0, 1, 1], [], []>} : vector<256x16xf32>, vector<16x256xf32>, vector<256x256xf32> -> vector<256x256xf32>
    %c0_20 = arith.constant 0 : index
    %c0_21 = arith.constant 0 : index
    %60 = vector.load %arg4[%c0_20, %c0_21] : memref<256x1xf32, #tpu.memory_space<vmem>>, vector<256x1xf32>
    %61 = vector.broadcast %60 : vector<256x1xf32> to vector<256x256xf32>
    %62 = arith.addf %59, %61 : vector<256x256xf32>
    %cst_22 = arith.constant 0.000000e+00 : f32
    %63 = vector.broadcast %cst_22 : f32 to vector<256x256xf32>
    %64 = arith.maximumf %62, %63 : vector<256x256xf32>
    %65 = arith.truncf %64 : vector<256x256xf32> to vector<256x256xbf16>
    %66 = vector.extract_strided_slice %65 {offsets = [0, 227], sizes = [256, 29], strides = [1, 1]} : vector<256x256xbf16> to vector<256x29xbf16>
    %67 = vector.extract_strided_slice %65 {offsets = [0, 0], sizes = [256, 227], strides = [1, 1]} : vector<256x256xbf16> to vector<256x227xbf16>
    %68 = tpu.concatenate %66, %67 in 1 : vector<256x29xbf16>, vector<256x227xbf16> -> vector<256x256xbf16>
    %69 = vector.extract_strided_slice %1 {offsets = [0, 0], sizes = [1, 256], strides = [1, 1]} : vector<9x256xbf16> to vector<1x256xbf16>
    %70 = vector.broadcast %69 : vector<1x256xbf16> to vector<256x256xbf16>
    %71 = arith.mulf %68, %70 : vector<256x256xbf16>
    %c0_23 = arith.constant 0 : index
    %c0_24 = arith.constant 0 : index
    %72 = vector.load %arg11[%c0_23, %c0_24] : memref<2304x256xbf16, #tpu.memory_space<vmem>>, vector<256x256xbf16>
    tpu.vector_store %arg11[%c0_23, %c0_24], %71 {strides = array<i32>} : memref<2304x256xbf16, #tpu.memory_space<vmem>>, vector<256x256xbf16>,
    %73 = vector.extract_strided_slice %65 {offsets = [0, 228], sizes = [256, 28], strides = [1, 1]} : vector<256x256xbf16> to vector<256x28xbf16>
    %74 = vector.extract_strided_slice %65 {offsets = [0, 0], sizes = [256, 228], strides = [1, 1]} : vector<256x256xbf16> to vector<256x228xbf16>
    %75 = tpu.concatenate %73, %74 in 1 : vector<256x28xbf16>, vector<256x228xbf16> -> vector<256x256xbf16>
    %76 = vector.extract_strided_slice %1 {offsets = [1, 0], sizes = [1, 256], strides = [1, 1]} : vector<9x256xbf16> to vector<1x256xbf16>
    %77 = vector.broadcast %76 : vector<1x256xbf16> to vector<256x256xbf16>
    %78 = arith.mulf %75, %77 : vector<256x256xbf16>
    %c256 = arith.constant 256 : index
    %c0_25 = arith.constant 0 : index
    %79 = vector.load %arg11[%c256, %c0_25] : memref<2304x256xbf16, #tpu.memory_space<vmem>>, vector<256x256xbf16>
    tpu.vector_store %arg11[%c256, %c0_25], %78 {strides = array<i32>} : memref<2304x256xbf16, #tpu.memory_space<vmem>>, vector<256x256xbf16>,
    %80 = vector.extract_strided_slice %65 {offsets = [0, 229], sizes = [256, 27], strides = [1, 1]} : vector<256x256xbf16> to vector<256x27xbf16>
    %81 = vector.extract_strided_slice %65 {offsets = [0, 0], sizes = [256, 229], strides = [1, 1]} : vector<256x256xbf16> to vector<256x229xbf16>
    %82 = tpu.concatenate %80, %81 in 1 : vector<256x27xbf16>, vector<256x229xbf16> -> vector<256x256xbf16>
    %83 = vector.extract_strided_slice %1 {offsets = [2, 0], sizes = [1, 256], strides = [1, 1]} : vector<9x256xbf16> to vector<1x256xbf16>
    %84 = vector.broadcast %83 : vector<1x256xbf16> to vector<256x256xbf16>
    %85 = arith.mulf %82, %84 : vector<256x256xbf16>
    %c512 = arith.constant 512 : index
    %c0_26 = arith.constant 0 : index
    %86 = vector.load %arg11[%c512, %c0_26] : memref<2304x256xbf16, #tpu.memory_space<vmem>>, vector<256x256xbf16>
    tpu.vector_store %arg11[%c512, %c0_26], %85 {strides = array<i32>} : memref<2304x256xbf16, #tpu.memory_space<vmem>>, vector<256x256xbf16>,
    %c0_27 = arith.constant 0 : index
    %c0_28 = arith.constant 0 : index
    %87 = vector.load %arg5[%c0_27, %c0_28] : memref<256x2304xbf16, #tpu.memory_space<vmem>>, vector<256x768xbf16>
    %c0_29 = arith.constant 0 : index
    %c0_30 = arith.constant 0 : index
    %88 = vector.load %arg11[%c0_29, %c0_30] : memref<2304x256xbf16, #tpu.memory_space<vmem>>, vector<768x256xbf16>
    %cst_31 = arith.constant dense<0.000000e+00> : vector<256x256xf32>
    %89 = tpu.matmul %87, %88, %cst_31 {dimension_numbers = #tpu.dot_dimension_numbers<[1], [0], [0], [1], [0, 0, 1, 1], [], []>} : vector<256x768xbf16>, vector<768x256xbf16>, vector<256x256xf32> -> vector<256x256xf32>
    %90 = vector.extract_strided_slice %65 {offsets = [0, 255], sizes = [256, 1], strides = [1, 1]} : vector<256x256xbf16> to vector<256x1xbf16>
    %91 = vector.extract_strided_slice %65 {offsets = [0, 0], sizes = [256, 255], strides = [1, 1]} : vector<256x256xbf16> to vector<256x255xbf16>
    %92 = tpu.concatenate %90, %91 in 1 : vector<256x1xbf16>, vector<256x255xbf16> -> vector<256x256xbf16>
    %93 = vector.extract_strided_slice %1 {offsets = [3, 0], sizes = [1, 256], strides = [1, 1]} : vector<9x256xbf16> to vector<1x256xbf16>
    %94 = vector.broadcast %93 : vector<1x256xbf16> to vector<256x256xbf16>
    %95 = arith.mulf %92, %94 : vector<256x256xbf16>
    %c768 = arith.constant 768 : index
    %c0_32 = arith.constant 0 : index
    %96 = vector.load %arg11[%c768, %c0_32] : memref<2304x256xbf16, #tpu.memory_space<vmem>>, vector<256x256xbf16>
    tpu.vector_store %arg11[%c768, %c0_32], %95 {strides = array<i32>} : memref<2304x256xbf16, #tpu.memory_space<vmem>>, vector<256x256xbf16>,
    %97 = vector.extract_strided_slice %1 {offsets = [4, 0], sizes = [1, 256], strides = [1, 1]} : vector<9x256xbf16> to vector<1x256xbf16>
    %98 = vector.broadcast %97 : vector<1x256xbf16> to vector<256x256xbf16>
    %99 = arith.mulf %65, %98 : vector<256x256xbf16>
    %c1024 = arith.constant 1024 : index
    %c0_33 = arith.constant 0 : index
    %100 = vector.load %arg11[%c1024, %c0_33] : memref<2304x256xbf16, #tpu.memory_space<vmem>>, vector<256x256xbf16>
    tpu.vector_store %arg11[%c1024, %c0_33], %99 {strides = array<i32>} : memref<2304x256xbf16, #tpu.memory_space<vmem>>, vector<256x256xbf16>,
    %101 = vector.extract_strided_slice %65 {offsets = [0, 1], sizes = [256, 255], strides = [1, 1]} : vector<256x256xbf16> to vector<256x255xbf16>
    %102 = vector.extract_strided_slice %65 {offsets = [0, 0], sizes = [256, 1], strides = [1, 1]} : vector<256x256xbf16> to vector<256x1xbf16>
    %103 = tpu.concatenate %101, %102 in 1 : vector<256x255xbf16>, vector<256x1xbf16> -> vector<256x256xbf16>
    %104 = vector.extract_strided_slice %1 {offsets = [5, 0], sizes = [1, 256], strides = [1, 1]} : vector<9x256xbf16> to vector<1x256xbf16>
    %105 = vector.broadcast %104 : vector<1x256xbf16> to vector<256x256xbf16>
    %106 = arith.mulf %103, %105 : vector<256x256xbf16>
    %c1280 = arith.constant 1280 : index
    %c0_34 = arith.constant 0 : index
    %107 = vector.load %arg11[%c1280, %c0_34] : memref<2304x256xbf16, #tpu.memory_space<vmem>>, vector<256x256xbf16>
    tpu.vector_store %arg11[%c1280, %c0_34], %106 {strides = array<i32>} : memref<2304x256xbf16, #tpu.memory_space<vmem>>, vector<256x256xbf16>,
    %c0_35 = arith.constant 0 : index
    %c768_36 = arith.constant 768 : index
    %108 = vector.load %arg5[%c0_35, %c768_36] : memref<256x2304xbf16, #tpu.memory_space<vmem>>, vector<256x768xbf16>
    %c768_37 = arith.constant 768 : index
    %c0_38 = arith.constant 0 : index
    %109 = vector.load %arg11[%c768_37, %c0_38] : memref<2304x256xbf16, #tpu.memory_space<vmem>>, vector<768x256xbf16>
    %cst_39 = arith.constant dense<0.000000e+00> : vector<256x256xf32>
    %110 = tpu.matmul %108, %109, %cst_39 {dimension_numbers = #tpu.dot_dimension_numbers<[1], [0], [0], [1], [0, 0, 1, 1], [], []>} : vector<256x768xbf16>, vector<768x256xbf16>, vector<256x256xf32> -> vector<256x256xf32>
    %111 = arith.addf %89, %110 : vector<256x256xf32>
    %112 = vector.extract_strided_slice %65 {offsets = [0, 27], sizes = [256, 229], strides = [1, 1]} : vector<256x256xbf16> to vector<256x229xbf16>
    %113 = vector.extract_strided_slice %65 {offsets = [0, 0], sizes = [256, 27], strides = [1, 1]} : vector<256x256xbf16> to vector<256x27xbf16>
    %114 = tpu.concatenate %112, %113 in 1 : vector<256x229xbf16>, vector<256x27xbf16> -> vector<256x256xbf16>
    %115 = vector.extract_strided_slice %1 {offsets = [6, 0], sizes = [1, 256], strides = [1, 1]} : vector<9x256xbf16> to vector<1x256xbf16>
    %116 = vector.broadcast %115 : vector<1x256xbf16> to vector<256x256xbf16>
    %117 = arith.mulf %114, %116 : vector<256x256xbf16>
    %c1536 = arith.constant 1536 : index
    %c0_40 = arith.constant 0 : index
    %118 = vector.load %arg11[%c1536, %c0_40] : memref<2304x256xbf16, #tpu.memory_space<vmem>>, vector<256x256xbf16>
    tpu.vector_store %arg11[%c1536, %c0_40], %117 {strides = array<i32>} : memref<2304x256xbf16, #tpu.memory_space<vmem>>, vector<256x256xbf16>,
    %119 = vector.extract_strided_slice %65 {offsets = [0, 28], sizes = [256, 228], strides = [1, 1]} : vector<256x256xbf16> to vector<256x228xbf16>
    %120 = vector.extract_strided_slice %65 {offsets = [0, 0], sizes = [256, 28], strides = [1, 1]} : vector<256x256xbf16> to vector<256x28xbf16>
    %121 = tpu.concatenate %119, %120 in 1 : vector<256x228xbf16>, vector<256x28xbf16> -> vector<256x256xbf16>
    %122 = vector.extract_strided_slice %1 {offsets = [7, 0], sizes = [1, 256], strides = [1, 1]} : vector<9x256xbf16> to vector<1x256xbf16>
    %123 = vector.broadcast %122 : vector<1x256xbf16> to vector<256x256xbf16>
    %124 = arith.mulf %121, %123 : vector<256x256xbf16>
    %c1792 = arith.constant 1792 : index
    %c0_41 = arith.constant 0 : index
    %125 = vector.load %arg11[%c1792, %c0_41] : memref<2304x256xbf16, #tpu.memory_space<vmem>>, vector<256x256xbf16>
    tpu.vector_store %arg11[%c1792, %c0_41], %124 {strides = array<i32>} : memref<2304x256xbf16, #tpu.memory_space<vmem>>, vector<256x256xbf16>,
    %126 = vector.extract_strided_slice %65 {offsets = [0, 29], sizes = [256, 227], strides = [1, 1]} : vector<256x256xbf16> to vector<256x227xbf16>
    %127 = vector.extract_strided_slice %65 {offsets = [0, 0], sizes = [256, 29], strides = [1, 1]} : vector<256x256xbf16> to vector<256x29xbf16>
    %128 = tpu.concatenate %126, %127 in 1 : vector<256x227xbf16>, vector<256x29xbf16> -> vector<256x256xbf16>
    %129 = vector.extract_strided_slice %1 {offsets = [8, 0], sizes = [1, 256], strides = [1, 1]} : vector<9x256xbf16> to vector<1x256xbf16>
    %130 = vector.broadcast %129 : vector<1x256xbf16> to vector<256x256xbf16>
    %131 = arith.mulf %128, %130 : vector<256x256xbf16>
    %c2048 = arith.constant 2048 : index
    %c0_42 = arith.constant 0 : index
    %132 = vector.load %arg11[%c2048, %c0_42] : memref<2304x256xbf16, #tpu.memory_space<vmem>>, vector<256x256xbf16>
    tpu.vector_store %arg11[%c2048, %c0_42], %131 {strides = array<i32>} : memref<2304x256xbf16, #tpu.memory_space<vmem>>, vector<256x256xbf16>,
    %c0_43 = arith.constant 0 : index
    %c1536_44 = arith.constant 1536 : index
    %133 = vector.load %arg5[%c0_43, %c1536_44] : memref<256x2304xbf16, #tpu.memory_space<vmem>>, vector<256x768xbf16>
    %c1536_45 = arith.constant 1536 : index
    %c0_46 = arith.constant 0 : index
    %134 = vector.load %arg11[%c1536_45, %c0_46] : memref<2304x256xbf16, #tpu.memory_space<vmem>>, vector<768x256xbf16>
    %cst_47 = arith.constant dense<0.000000e+00> : vector<256x256xf32>
    %135 = tpu.matmul %133, %134, %cst_47 {dimension_numbers = #tpu.dot_dimension_numbers<[1], [0], [0], [1], [0, 0, 1, 1], [], []>} : vector<256x768xbf16>, vector<768x256xbf16>, vector<256x256xf32> -> vector<256x256xf32>
    %136 = arith.addf %111, %135 : vector<256x256xf32>
    %c0_48 = arith.constant 0 : index
    %c0_49 = arith.constant 0 : index
    %137 = vector.load %arg6[%c0_48, %c0_49] : memref<256x1xf32, #tpu.memory_space<vmem>>, vector<256x1xf32>
    %138 = vector.broadcast %137 : vector<256x1xf32> to vector<256x256xf32>
    %139 = arith.addf %136, %138 : vector<256x256xf32>
    %cst_50 = arith.constant 0.000000e+00 : f32
    %140 = vector.broadcast %cst_50 : f32 to vector<256x256xf32>
    %141 = arith.maximumf %139, %140 : vector<256x256xf32>
    %c0_51 = arith.constant 0 : index
    %c0_52 = arith.constant 0 : index
    %142 = vector.load %arg7[%c0_51, %c0_52] : memref<16x256xbf16, #tpu.memory_space<vmem>>, vector<16x256xbf16>
    %143 = arith.truncf %141 : vector<256x256xf32> to vector<256x256xbf16>
    %cst_53 = arith.constant dense<0.000000e+00> : vector<16x256xf32>
    %144 = tpu.matmul %142, %143, %cst_53 {dimension_numbers = #tpu.dot_dimension_numbers<[1], [0], [0], [1], [0, 0, 1, 1], [], []>} : vector<16x256xbf16>, vector<256x256xbf16>, vector<16x256xf32> -> vector<16x256xf32>
    %c0_54 = arith.constant 0 : index
    %c0_55 = arith.constant 0 : index
    %145 = vector.load %arg8[%c0_54, %c0_55] : memref<1x1xf32, #tpu.memory_space<vmem>>, vector<1x1xf32>
    %146 = vector.shape_cast %145 : vector<1x1xf32> to vector<1x1xf32>
    %147 = vector.broadcast %146 : vector<1x1xf32> to vector<1x256xf32>
    %148 = vector.extract_strided_slice %144 {offsets = [0, 0], sizes = [1, 256], strides = [1, 1]} : vector<16x256xf32> to vector<1x256xf32>
    %149 = vector.extract_strided_slice %148 {offsets = [0, 227], sizes = [1, 29], strides = [1, 1]} : vector<1x256xf32> to vector<1x29xf32>
    %150 = vector.extract_strided_slice %148 {offsets = [0, 0], sizes = [1, 227], strides = [1, 1]} : vector<1x256xf32> to vector<1x227xf32>
    %151 = tpu.concatenate %149, %150 in 1 : vector<1x29xf32>, vector<1x227xf32> -> vector<1x256xf32>
    %152 = vector.extract_strided_slice %0 {offsets = [0, 0], sizes = [1, 256], strides = [1, 1]} : vector<9x256xf32> to vector<1x256xf32>
    %153 = arith.mulf %151, %152 : vector<1x256xf32>
    %154 = arith.addf %147, %153 : vector<1x256xf32>
    %155 = vector.extract_strided_slice %144 {offsets = [1, 0], sizes = [1, 256], strides = [1, 1]} : vector<16x256xf32> to vector<1x256xf32>
    %156 = vector.extract_strided_slice %155 {offsets = [0, 228], sizes = [1, 28], strides = [1, 1]} : vector<1x256xf32> to vector<1x28xf32>
    %157 = vector.extract_strided_slice %155 {offsets = [0, 0], sizes = [1, 228], strides = [1, 1]} : vector<1x256xf32> to vector<1x228xf32>
    %158 = tpu.concatenate %156, %157 in 1 : vector<1x28xf32>, vector<1x228xf32> -> vector<1x256xf32>
    %159 = vector.extract_strided_slice %0 {offsets = [1, 0], sizes = [1, 256], strides = [1, 1]} : vector<9x256xf32> to vector<1x256xf32>
    %160 = arith.mulf %158, %159 : vector<1x256xf32>
    %161 = arith.addf %154, %160 : vector<1x256xf32>
    %162 = vector.extract_strided_slice %144 {offsets = [2, 0], sizes = [1, 256], strides = [1, 1]} : vector<16x256xf32> to vector<1x256xf32>
    %163 = vector.extract_strided_slice %162 {offsets = [0, 229], sizes = [1, 27], strides = [1, 1]} : vector<1x256xf32> to vector<1x27xf32>
    %164 = vector.extract_strided_slice %162 {offsets = [0, 0], sizes = [1, 229], strides = [1, 1]} : vector<1x256xf32> to vector<1x229xf32>
    %165 = tpu.concatenate %163, %164 in 1 : vector<1x27xf32>, vector<1x229xf32> -> vector<1x256xf32>
    %166 = vector.extract_strided_slice %0 {offsets = [2, 0], sizes = [1, 256], strides = [1, 1]} : vector<9x256xf32> to vector<1x256xf32>
    %167 = arith.mulf %165, %166 : vector<1x256xf32>
    %168 = arith.addf %161, %167 : vector<1x256xf32>
    %169 = vector.extract_strided_slice %144 {offsets = [3, 0], sizes = [1, 256], strides = [1, 1]} : vector<16x256xf32> to vector<1x256xf32>
    %170 = vector.extract_strided_slice %169 {offsets = [0, 255], sizes = [1, 1], strides = [1, 1]} : vector<1x256xf32> to vector<1x1xf32>
    %171 = vector.extract_strided_slice %169 {offsets = [0, 0], sizes = [1, 255], strides = [1, 1]} : vector<1x256xf32> to vector<1x255xf32>
    %172 = tpu.concatenate %170, %171 in 1 : vector<1x1xf32>, vector<1x255xf32> -> vector<1x256xf32>
    %173 = vector.extract_strided_slice %0 {offsets = [3, 0], sizes = [1, 256], strides = [1, 1]} : vector<9x256xf32> to vector<1x256xf32>
    %174 = arith.mulf %172, %173 : vector<1x256xf32>
    %175 = arith.addf %168, %174 : vector<1x256xf32>
    %176 = vector.extract_strided_slice %144 {offsets = [4, 0], sizes = [1, 256], strides = [1, 1]} : vector<16x256xf32> to vector<1x256xf32>
    %177 = vector.extract_strided_slice %0 {offsets = [4, 0], sizes = [1, 256], strides = [1, 1]} : vector<9x256xf32> to vector<1x256xf32>
    %178 = arith.mulf %176, %177 : vector<1x256xf32>
    %179 = arith.addf %175, %178 : vector<1x256xf32>
    %180 = vector.extract_strided_slice %144 {offsets = [5, 0], sizes = [1, 256], strides = [1, 1]} : vector<16x256xf32> to vector<1x256xf32>
    %181 = vector.extract_strided_slice %180 {offsets = [0, 1], sizes = [1, 255], strides = [1, 1]} : vector<1x256xf32> to vector<1x255xf32>
    %182 = vector.extract_strided_slice %180 {offsets = [0, 0], sizes = [1, 1], strides = [1, 1]} : vector<1x256xf32> to vector<1x1xf32>
    %183 = tpu.concatenate %181, %182 in 1 : vector<1x255xf32>, vector<1x1xf32> -> vector<1x256xf32>
    %184 = vector.extract_strided_slice %0 {offsets = [5, 0], sizes = [1, 256], strides = [1, 1]} : vector<9x256xf32> to vector<1x256xf32>
    %185 = arith.mulf %183, %184 : vector<1x256xf32>
    %186 = arith.addf %179, %185 : vector<1x256xf32>
    %187 = vector.extract_strided_slice %144 {offsets = [6, 0], sizes = [1, 256], strides = [1, 1]} : vector<16x256xf32> to vector<1x256xf32>
    %188 = vector.extract_strided_slice %187 {offsets = [0, 27], sizes = [1, 229], strides = [1, 1]} : vector<1x256xf32> to vector<1x229xf32>
    %189 = vector.extract_strided_slice %187 {offsets = [0, 0], sizes = [1, 27], strides = [1, 1]} : vector<1x256xf32> to vector<1x27xf32>
    %190 = tpu.concatenate %188, %189 in 1 : vector<1x229xf32>, vector<1x27xf32> -> vector<1x256xf32>
    %191 = vector.extract_strided_slice %0 {offsets = [6, 0], sizes = [1, 256], strides = [1, 1]} : vector<9x256xf32> to vector<1x256xf32>
    %192 = arith.mulf %190, %191 : vector<1x256xf32>
    %193 = arith.addf %186, %192 : vector<1x256xf32>
    %194 = vector.extract_strided_slice %144 {offsets = [7, 0], sizes = [1, 256], strides = [1, 1]} : vector<16x256xf32> to vector<1x256xf32>
    %195 = vector.extract_strided_slice %194 {offsets = [0, 28], sizes = [1, 228], strides = [1, 1]} : vector<1x256xf32> to vector<1x228xf32>
    %196 = vector.extract_strided_slice %194 {offsets = [0, 0], sizes = [1, 28], strides = [1, 1]} : vector<1x256xf32> to vector<1x28xf32>
    %197 = tpu.concatenate %195, %196 in 1 : vector<1x228xf32>, vector<1x28xf32> -> vector<1x256xf32>
    %198 = vector.extract_strided_slice %0 {offsets = [7, 0], sizes = [1, 256], strides = [1, 1]} : vector<9x256xf32> to vector<1x256xf32>
    %199 = arith.mulf %197, %198 : vector<1x256xf32>
    %200 = arith.addf %193, %199 : vector<1x256xf32>
    %201 = vector.extract_strided_slice %144 {offsets = [8, 0], sizes = [1, 256], strides = [1, 1]} : vector<16x256xf32> to vector<1x256xf32>
    %202 = vector.extract_strided_slice %201 {offsets = [0, 29], sizes = [1, 227], strides = [1, 1]} : vector<1x256xf32> to vector<1x227xf32>
    %203 = vector.extract_strided_slice %201 {offsets = [0, 0], sizes = [1, 29], strides = [1, 1]} : vector<1x256xf32> to vector<1x29xf32>
    %204 = tpu.concatenate %202, %203 in 1 : vector<1x227xf32>, vector<1x29xf32> -> vector<1x256xf32>
    %205 = vector.extract_strided_slice %0 {offsets = [8, 0], sizes = [1, 256], strides = [1, 1]} : vector<9x256xf32> to vector<1x256xf32>
    %206 = arith.mulf %204, %205 : vector<1x256xf32>
    %207 = arith.addf %200, %206 : vector<1x256xf32>
    %c0_56 = arith.constant 0 : index
    %c0_57 = arith.constant 0 : index
    %c0_58 = arith.constant 0 : index
    %c0_59 = arith.constant 0 : index
    %208 = vector.load %arg9[%c0_56, %c0_57, %c0_58, %c0_59] : memref<1x1x1x256xf32, #tpu.memory_space<vmem>>, vector<1x1x1x256xf32>
    %209 = vector.shape_cast %208 : vector<1x1x1x256xf32> to vector<1x256xf32>
    %210 = vector.shape_cast %207 : vector<1x256xf32> to vector<1x1x1x256xf32>
    tpu.vector_store %arg9[%c0_56, %c0_57, %c0_58, %c0_59], %210 {strides = array<i32>} : memref<1x1x1x256xf32, #tpu.memory_space<vmem>>, vector<1x1x1x256xf32>,
    return
  }
  func.func @transform_0(%arg0: i32) -> (i32, i32, i32) {
    %c0_i32 = arith.constant 0 : i32
    %c0_i32_0 = arith.constant 0 : i32
    %c0_i32_1 = arith.constant 0 : i32
    return %arg0, %c0_i32, %c0_i32_0 : i32, i32, i32
  }
  func.func @transform_1(%arg0: i32) -> (i32, i32) {
    %c0_i32 = arith.constant 0 : i32
    %c0_i32_0 = arith.constant 0 : i32
    %c0_i32_1 = arith.constant 0 : i32
    return %c0_i32, %c0_i32_0 : i32, i32
  }
  func.func @transform_2(%arg0: i32) -> (i32, i32) {
    %c0_i32 = arith.constant 0 : i32
    %c0_i32_0 = arith.constant 0 : i32
    %c0_i32_1 = arith.constant 0 : i32
    return %c0_i32, %c0_i32_0 : i32, i32
  }
  func.func @transform_3(%arg0: i32) -> (i32, i32) {
    %c0_i32 = arith.constant 0 : i32
    %c0_i32_0 = arith.constant 0 : i32
    %c0_i32_1 = arith.constant 0 : i32
    return %c0_i32, %c0_i32_0 : i32, i32
  }
  func.func @transform_4(%arg0: i32) -> (i32, i32) {
    %c0_i32 = arith.constant 0 : i32
    %c0_i32_0 = arith.constant 0 : i32
    %c0_i32_1 = arith.constant 0 : i32
    return %c0_i32, %c0_i32_0 : i32, i32
  }
  func.func @transform_5(%arg0: i32) -> (i32, i32) {
    %c0_i32 = arith.constant 0 : i32
    %c0_i32_0 = arith.constant 0 : i32
    %c0_i32_1 = arith.constant 0 : i32
    return %c0_i32, %c0_i32_0 : i32, i32
  }
  func.func @transform_6(%arg0: i32) -> (i32, i32) {
    %c0_i32 = arith.constant 0 : i32
    %c0_i32_0 = arith.constant 0 : i32
    %c0_i32_1 = arith.constant 0 : i32
    return %c0_i32, %c0_i32_0 : i32, i32
  }
  func.func @transform_7(%arg0: i32) -> (i32, i32) {
    %c0_i32 = arith.constant 0 : i32
    %c0_i32_0 = arith.constant 0 : i32
    %c0_i32_1 = arith.constant 0 : i32
    return %c0_i32, %c0_i32_0 : i32, i32
  }
  func.func @transform_8(%arg0: i32) -> (i32, i32, i32, i32) {
    %c0_i32 = arith.constant 0 : i32
    %c0_i32_0 = arith.constant 0 : i32
    %c0_i32_1 = arith.constant 0 : i32
    %c0_i32_2 = arith.constant 0 : i32
    return %c0_i32, %arg0, %c0_i32_0, %c0_i32_1 : i32, i32, i32, i32
  }
}

</mosaic_0001>

<llo_original>
// kernel: tpu_custom_call.1
$region0: #{tpu_custom_call.1}
  #allocation0 [shape = 'u32[]', space=smem, size = 0x4, offset = 0x4, fixed_abs, tag = 'smem constant byte address 0x4 - core index']
  #allocation1 [shape = 'u32[144,128]{1,0:T(1,128)}', space=vmem, size = 0x12000, scoped, tag = 'internal scratch']
  #allocation2 [shape = 'f32[16,256]{1,0:T(8,128)}', space=vmem, size = 0x4000, scoped, tag = 'scratch operand']
  #allocation3 [shape = 'bf16[2304,256]{1,0:T(16,128)(2,1)}', space=vmem, size = 0x120000, scoped, tag = 'scratch operand']
  #allocation4 [shape = 'f32[1,1]{1,0:T(1,128)S(1)}', space=vmem, size = 0x200, scoped, tag = 'scoped memory for tpu_custom_call.1']
  %s0 = inlined_call_operand.hbm [shape: f32[2,1,256], index: 0, kind: input, shape index: {}]
  %s1 = inlined_call_operand.hbm [shape: f32[9,256], index: 1, kind: input, shape index: {}]
  %s2 = inlined_call_operand.vmem [shape: f32[256,16], index: 2, kind: input, shape index: {}]
  %s3 = inlined_call_operand.vmem [shape: f32[256,1], index: 3, kind: input, shape index: {}]
  %s4 = inlined_call_operand.hbm [shape: bf16[256,2304], index: 4, kind: input, shape index: {}]
  %s5 = inlined_call_operand.vmem [shape: f32[256,1], index: 5, kind: input, shape index: {}]
  %s6 = inlined_call_operand.hbm [shape: bf16[16,256], index: 6, kind: input, shape index: {}]
  %s7 = inlined_call_operand.<no memory space> [shape: f32[1,1], index: 7, kind: input, shape index: {}]
  %s8 = inlined_call_operand.hbm [shape: f32[1,2,1,256], index: 8, kind: output, shape index: {}]
  %s9 = sld [smem:[#allocation0]]
  $region81: #{tpu_custom_call.1} parent=0
    _
  %s11 = ssub.s32 1, %s9
  %s12 = scalar_select 0, %s11, %s9
  %v13 = vstv %s7
  %14 = vst [vmem:[#allocation4] sm:$0x1] %v13
  $region1: #{tpu_custom_call.1} parent=0
    #allocation5 [shape = 'u8[2048]{0}', space=vmem, size = 0x800, scoped, tag = 'input window, operand 0']
    #allocation6 [shape = 's32[2]{0}', space=sflag, size = 0x8, scoped, tag = 'scoped memory for tpu_custom_call.1']
    #allocation7 [shape = 's32[2]{0}', space=sflag, size = 0x8, scoped, tag = 'scoped memory for tpu_custom_call.1']
    #allocation8 [shape = 'u8[16384]{0}', space=vmem, size = 0x4000, scoped, tag = 'input window, operand 1, single buffered']
    #allocation9 [shape = 's32[1]{0}', space=sflag, size = 0x4, scoped, tag = 'scoped memory for tpu_custom_call.1']
    #allocation10 [shape = 'u8[1179648]{0}', space=vmem, size = 0x120000, scoped, tag = 'input window, operand 4, single buffered']
    #allocation11 [shape = 'u8[8192]{0}', space=vmem, size = 0x2000, scoped, tag = 'input window, operand 6, single buffered']
    #allocation12 [shape = 's32[1]{0}', space=sflag, size = 0x4, scoped, tag = 'scoped memory for tpu_custom_call.1']
    #allocation13 [shape = 'u8[2048]{0}', space=vmem, size = 0x800, scoped, tag = 'output window, operand 0']
    %15 = vsyncpa [#allocation6], 0
    %s16 = scalar_lea.sflag [#allocation6], 1
    %17 = vsyncpa %s16, 0
    %18 = vsyncpa [#allocation9], 0
    %19 = vsyncpa [#allocation12], 0
    %20 = vsyncpa [#allocation7], 0
    %s21 = scalar_lea.sflag [#allocation7], 1
    %22 = vsyncpa %s21, 0
    loop: start=0, step=1, limit=4
    $region2: #{tpu_custom_call.1} parent=1 // loop_pre_header
      _
    $region3: #{tpu_custom_call.1} parent=1 // loop_header
      %s24 = sphi 0, %s28
      %p25 = scmp.ge.s32.totalorder %s24, 4
      %s34 = sphi 0, %s36
      %s37 = sphi 0, %s34
      %s38 = sphi 0, %s37
      %s54 = sphi 0, %s38
      %s58 = sphi 0, %s58
      %s60 = sphi 0, %s58
      %s61 = sphi 0, %s60
      %s75 = sphi 0, %s61
      %s79 = sphi 0, %s79
      %s81 = sphi 0, %s79
      %s82 = sphi 0, %s81
      %s96 = sphi 0, %s82
      %s100 = sphi 0, %s100
      %s102 = sphi 0, %s100
      %s103 = sphi 0, %s102
      %s117 = sphi 0, %s103
      %s121 = sphi 0, %s121
      %s123 = sphi 0, %s121
      %s124 = sphi 0, %s123
      %s138 = sphi 0, %s124
      %s142 = sphi 0, %s142
      %s144 = sphi 0, %s142
      %s145 = sphi 0, %s144
      %s159 = sphi 0, %s145
      %s163 = sphi 0, %s163
      %s165 = sphi 0, %s163
      %s166 = sphi 0, %s165
      %s180 = sphi 0, %s166
      %s184 = sphi 0, %s184
      %s186 = sphi 0, %s184
      %s187 = sphi 0, %s186
      %s201 = sphi 0, %s187
      %s207 = sphi 0, %s209
      %s210 = sphi 0, %s207
      %s211 = sphi 0, %s210
      %s227 = sphi 0, %s211
    $region4: #{tpu_custom_call.1} parent=1 // loop_header_branch
      %27 = sbr.rel (%p25) target = $region8
    $region5: #{tpu_custom_call.1} parent=1 // loop_body
      %s29 = ssub.s32 %s24, 1
      %s30 = ssub.s32 %s24, 2
      %s31 = sadd.s32 %s24, 1
      %s32 = ssub.s32 %s24, %s31
      %p33 = scmp.eq.s32.totalorder %s32, 0
      %s35 = sadd.s32 %s34, 1
      %s36 = scalar_select %p33, %s34, %s35
      %p39 = pneg %p33
      %p40 = scmp.eq.s32.totalorder %s24, 1
      %p41 = por %p39, %p40
      %p42 = scmp.ne.s32.totalorder %s34, %s37
      %p43 = scmp.eq.s32.totalorder %s24, 0
      %p44 = por %p42, %p43
      %p45 = scmp.ne.s32.totalorder %s34, %s37
      %p46 = scmp.eq.s32.totalorder %s29, 1
      %p47 = por %p45, %p46
      %p48 = scmp.ne.s32.totalorder %s37, %s38
      %p49 = scmp.eq.s32.totalorder %s29, 0
      %p50 = por %p48, %p49
      %p51 = scmp.ne.s32.totalorder %s37, %s38
      %p52 = scmp.eq.s32.totalorder %s30, 1
      %p53 = por %p51, %p52
      %p55 = scmp.ne.s32.totalorder %s38, %s54
      %p56 = scmp.eq.s32.totalorder %s30, 0
      %p57 = por %p55, %p56
      %s59 = sadd.s32 %s58, 1
      %p62 = scmp.eq.s32.totalorder %s24, 1
      %p63 = scmp.ne.s32.totalorder %s58, %s60
      %p64 = scmp.eq.s32.totalorder %s24, 0
      %p65 = por %p63, %p64
      %p66 = scmp.ne.s32.totalorder %s58, %s60
      %p67 = scmp.eq.s32.totalorder %s29, 1
      %p68 = por %p66, %p67
      %p69 = scmp.ne.s32.totalorder %s60, %s61
      %p70 = scmp.eq.s32.totalorder %s29, 0
      %p71 = por %p69, %p70
      %p72 = scmp.ne.s32.totalorder %s60, %s61
      %p73 = scmp.eq.s32.totalorder %s30, 1
      %p74 = por %p72, %p73
      %p76 = scmp.ne.s32.totalorder %s61, %s75
      %p77 = scmp.eq.s32.totalorder %s30, 0
      %p78 = por %p76, %p77
      %s80 = sadd.s32 %s79, 1
      %p83 = scmp.eq.s32.totalorder %s24, 1
      %p84 = scmp.ne.s32.totalorder %s79, %s81
      %p85 = scmp.eq.s32.totalorder %s24, 0
      %p86 = por %p84, %p85
      %p87 = scmp.ne.s32.totalorder %s79, %s81
      %p88 = scmp.eq.s32.totalorder %s29, 1
      %p89 = por %p87, %p88
      %p90 = scmp.ne.s32.totalorder %s81, %s82
      %p91 = scmp.eq.s32.totalorder %s29, 0
      %p92 = por %p90, %p91
      %p93 = scmp.ne.s32.totalorder %s81, %s82
      %p94 = scmp.eq.s32.totalorder %s30, 1
      %p95 = por %p93, %p94
      %p97 = scmp.ne.s32.totalorder %s82, %s96
      %p98 = scmp.eq.s32.totalorder %s30, 0
      %p99 = por %p97, %p98
      %s101 = sadd.s32 %s100, 1
      %p104 = scmp.eq.s32.totalorder %s24, 1
      %p105 = scmp.ne.s32.totalorder %s100, %s102
      %p106 = scmp.eq.s32.totalorder %s24, 0
      %p107 = por %p105, %p106
      %p108 = scmp.ne.s32.totalorder %s100, %s102
      %p109 = scmp.eq.s32.totalorder %s29, 1
      %p110 = por %p108, %p109
      %p111 = scmp.ne.s32.totalorder %s102, %s103
      %p112 = scmp.eq.s32.totalorder %s29, 0
      %p113 = por %p111, %p112
      %p114 = scmp.ne.s32.totalorder %s102, %s103
      %p115 = scmp.eq.s32.totalorder %s30, 1
      %p116 = por %p114, %p115
      %p118 = scmp.ne.s32.totalorder %s103, %s117
      %p119 = scmp.eq.s32.totalorder %s30, 0
      %p120 = por %p118, %p119
      %s122 = sadd.s32 %s121, 1
      %p125 = scmp.eq.s32.totalorder %s24, 1
      %p126 = scmp.ne.s32.totalorder %s121, %s123
      %p127 = scmp.eq.s32.totalorder %s24, 0
      %p128 = por %p126, %p127
      %p129 = scmp.ne.s32.totalorder %s121, %s123
      %p130 = scmp.eq.s32.totalorder %s29, 1
      %p131 = por %p129, %p130
      %p132 = scmp.ne.s32.totalorder %s123, %s124
      %p133 = scmp.eq.s32.totalorder %s29, 0
      %p134 = por %p132, %p133
      %p135 = scmp.ne.s32.totalorder %s123, %s124
      %p136 = scmp.eq.s32.totalorder %s30, 1
      %p137 = por %p135, %p136
      %p139 = scmp.ne.s32.totalorder %s124, %s138
      %p140 = scmp.eq.s32.totalorder %s30, 0
      %p141 = por %p139, %p140
      %s143 = sadd.s32 %s142, 1
      %p146 = scmp.eq.s32.totalorder %s24, 1
      %p147 = scmp.ne.s32.totalorder %s142, %s144
      %p148 = scmp.eq.s32.totalorder %s24, 0
      %p149 = por %p147, %p148
      %p150 = scmp.ne.s32.totalorder %s142, %s144
      %p151 = scmp.eq.s32.totalorder %s29, 1
      %p152 = por %p150, %p151
      %p153 = scmp.ne.s32.totalorder %s144, %s145
      %p154 = scmp.eq.s32.totalorder %s29, 0
      %p155 = por %p153, %p154
      %p156 = scmp.ne.s32.totalorder %s144, %s145
      %p157 = scmp.eq.s32.totalorder %s30, 1
      %p158 = por %p156, %p157
      %p160 = scmp.ne.s32.totalorder %s145, %s159
      %p161 = scmp.eq.s32.totalorder %s30, 0
      %p162 = por %p160, %p161
      %s164 = sadd.s32 %s163, 1
      %p167 = scmp.eq.s32.totalorder %s24, 1
      %p168 = scmp.ne.s32.totalorder %s163, %s165
      %p169 = scmp.eq.s32.totalorder %s24, 0
      %p170 = por %p168, %p169
      %p171 = scmp.ne.s32.totalorder %s163, %s165
      %p172 = scmp.eq.s32.totalorder %s29, 1
      %p173 = por %p171, %p172
      %p174 = scmp.ne.s32.totalorder %s165, %s166
      %p175 = scmp.eq.s32.totalorder %s29, 0
      %p176 = por %p174, %p175
      %p177 = scmp.ne.s32.totalorder %s165, %s166
      %p178 = scmp.eq.s32.totalorder %s30, 1
      %p179 = por %p177, %p178
      %p181 = scmp.ne.s32.totalorder %s166, %s180
      %p182 = scmp.eq.s32.totalorder %s30, 0
      %p183 = por %p181, %p182
      %s185 = sadd.s32 %s184, 1
      %p188 = scmp.eq.s32.totalorder %s24, 1
      %p189 = scmp.ne.s32.totalorder %s184, %s186
      %p190 = scmp.eq.s32.totalorder %s24, 0
      %p191 = por %p189, %p190
      %p192 = scmp.ne.s32.totalorder %s184, %s186
      %p193 = scmp.eq.s32.totalorder %s29, 1
      %p194 = por %p192, %p193
      %p195 = scmp.ne.s32.totalorder %s186, %s187
      %p196 = scmp.eq.s32.totalorder %s29, 0
      %p197 = por %p195, %p196
      %p198 = scmp.ne.s32.totalorder %s186, %s187
      %p199 = scmp.eq.s32.totalorder %s30, 1
      %p200 = por %p198, %p199
      %p202 = scmp.ne.s32.totalorder %s187, %s201
      %p203 = scmp.eq.s32.totalorder %s30, 0
      %p204 = por %p202, %p203
      %s205 = ssub.s32 %s24, %s31
      %p206 = scmp.eq.s32.totalorder %s205, 0
      %s208 = sadd.s32 %s207, 1
      %s209 = scalar_select %p206, %s207, %s208
      %p212 = pneg %p206
      %p213 = scmp.eq.s32.totalorder %s24, 1
      %p214 = por %p212, %p213
      %p215 = scmp.ne.s32.totalorder %s207, %s210
      %p216 = scmp.eq.s32.totalorder %s24, 0
      %p217 = por %p215, %p216
      %p218 = scmp.ne.s32.totalorder %s207, %s210
      %p219 = scmp.eq.s32.totalorder %s29, 1
      %p220 = por %p218, %p219
      %p221 = scmp.ne.s32.totalorder %s210, %s211
      %p222 = scmp.eq.s32.totalorder %s29, 0
      %p223 = por %p221, %p222
      %p224 = scmp.ne.s32.totalorder %s210, %s211
      %p225 = scmp.eq.s32.totalorder %s30, 1
      %p226 = por %p224, %p225
      %p228 = scmp.ne.s32.totalorder %s211, %s227
      %p229 = scmp.eq.s32.totalorder %s30, 0
      %p230 = por %p228, %p229
      %p231 = scmp.le.s32.totalorder 1, %s24
      %p232 = scmp.lt.s32.totalorder %s24, 3
      %p233 = pnand %p231, %p232
      %p234 = pneg %p233
      // Predicated region
      $region9: #{tpu_custom_call.1} parent=5 // pred_check
        _
      $region10: #{tpu_custom_call.1} parent=5 // pred_check_branch
        %236 = sbr.rel (%p233) target = $region12
      $region11: #{tpu_custom_call.1} parent=5 // pred_region
        %s237 = ssub.s32 %s24, 1
        // Predicated region
        $region13: #{tpu_custom_call.1} parent=11 // pred_check
          %p238 = pneg %p71
        $region14: #{tpu_custom_call.1} parent=11 // pred_check_branch
          %240 = sbr.rel (%p238) target = $region16
        $region15: #{tpu_custom_call.1} parent=11 // pred_region
          %s242 = ssub.s32 512, 512
          %243 = vsyncadd [#allocation9], %s242
          %s244 = sshll.u32 [#allocation8], 4
          %s245 = int_to_ptr.vmem [resolvable:$true] %s244
          %250 = dma.hbm_to_vmem [thread:$0]  %s1, 512, %s245, [#allocation9], 256, 256, 16
        $region16: #{tpu_custom_call.1} parent=11 // pred_fallthru
          _
        // Predicated region
        $region17: #{tpu_custom_call.1} parent=11 // pred_check
          %p251 = pneg %p92
        $region18: #{tpu_custom_call.1} parent=11 // pred_check_branch
          %253 = sbr.rel (%p251) target = $region20
        $region19: #{tpu_custom_call.1} parent=11 // pred_region
          _
        $region20: #{tpu_custom_call.1} parent=11 // pred_fallthru
          _
        // Predicated region
        $region21: #{tpu_custom_call.1} parent=11 // pred_check
          %p254 = pneg %p113
        $region22: #{tpu_custom_call.1} parent=11 // pred_check_branch
          %256 = sbr.rel (%p254) target = $region24
        $region23: #{tpu_custom_call.1} parent=11 // pred_region
          _
        $region24: #{tpu_custom_call.1} parent=11 // pred_fallthru
          _
        // Predicated region
        $region25: #{tpu_custom_call.1} parent=11 // pred_check
          %p257 = pneg %p134
        $region26: #{tpu_custom_call.1} parent=11 // pred_check_branch
          %259 = sbr.rel (%p257) target = $region28
        $region27: #{tpu_custom_call.1} parent=11 // pred_region
          %s261 = ssub.s32 36864, 36864
          %262 = vsyncadd [#allocation9], %s261
          %s263 = sshll.u32 [#allocation10], 4
          %s264 = int_to_ptr.vmem [resolvable:$true] %s263
          %269 = dma.hbm_to_vmem [thread:$0]  %s4, 36864, %s264, [#allocation9], 1152, 1152, 72
        $region28: #{tpu_custom_call.1} parent=11 // pred_fallthru
          _
        // Predicated region
        $region29: #{tpu_custom_call.1} parent=11 // pred_check
          %p270 = pneg %p155
        $region30: #{tpu_custom_call.1} parent=11 // pred_check_branch
          %272 = sbr.rel (%p270) target = $region32
        $region31: #{tpu_custom_call.1} parent=11 // pred_region
          _
        $region32: #{tpu_custom_call.1} parent=11 // pred_fallthru
          _
        // Predicated region
        $region33: #{tpu_custom_call.1} parent=11 // pred_check
          %p273 = pneg %p176
        $region34: #{tpu_custom_call.1} parent=11 // pred_check_branch
          %275 = sbr.rel (%p273) target = $region36
        $region35: #{tpu_custom_call.1} parent=11 // pred_region
          %s277 = ssub.s32 256, 256
          %278 = vsyncadd [#allocation12], %s277
          %s279 = sshll.u32 [#allocation11], 4
          %s280 = int_to_ptr.vmem [resolvable:$true] %s279
          %285 = dma.hbm_to_vmem [thread:$0]  %s6, 256, %s280, [#allocation12], 128, 128, 8
        $region36: #{tpu_custom_call.1} parent=11 // pred_fallthru
          _
        // Predicated region
        $region37: #{tpu_custom_call.1} parent=11 // pred_check
          %p286 = pneg %p197
        $region38: #{tpu_custom_call.1} parent=11 // pred_check_branch
          %288 = sbr.rel (%p286) target = $region40
        $region39: #{tpu_custom_call.1} parent=11 // pred_region
          _
        $region40: #{tpu_custom_call.1} parent=11 // pred_fallthru
          _
      $region12: #{tpu_custom_call.1} parent=5 // pred_fallthru
        _
      %p289 = scmp.lt.s32.totalorder %s24, 2
      // Predicated region
      $region41: #{tpu_custom_call.1} parent=5 // pred_check
        %p290 = pneg %p289
      $region42: #{tpu_custom_call.1} parent=5 // pred_check_branch
        %292 = sbr.rel (%p290) target = $region44
      $region43: #{tpu_custom_call.1} parent=5 // pred_region
        // Predicated region
        $region45: #{tpu_custom_call.1} parent=43 // pred_check
          %p293 = pneg %p44
        $region46: #{tpu_custom_call.1} parent=43 // pred_check_branch
          %295 = sbr.rel (%p293) target = $region48
        $region47: #{tpu_custom_call.1} parent=43 // pred_region
          %s296 = sand.u32 %s34, 1
          %s297 = scalar_lea.sflag [#allocation6], %s296
          %s298 = sand.u32 %s34, 1
          %s299 = smul.addr %s298, 2
          %s300 = scalar_lea.vmem [#allocation5], %s299
          %s302 = ssub.s32 32, 32
          %303 = vsyncadd %s297, %s302
          %s304 = smul.addr %s24, 2
          %s305 = smul.addr %s304, 16
          %s306 = scalar_lea.hbm %s0, %s305
          %s308 = sshll.u32 %s300, 4
          %s309 = int_to_ptr.vmem [resolvable:$true] %s308
          %311 = dma.hbm_to_vmem [thread:$0]  %s306, 32, %s309, %s297
        $region48: #{tpu_custom_call.1} parent=43 // pred_fallthru
          _
      $region44: #{tpu_custom_call.1} parent=5 // pred_fallthru
        _
      %p312 = scmp.le.s32.totalorder 1, %s24
      %p313 = scmp.lt.s32.totalorder %s24, 3
      %p314 = pnand %p312, %p313
      %p315 = pneg %p314
      // Predicated region
      $region49: #{tpu_custom_call.1} parent=5 // pred_check
        _
      $region50: #{tpu_custom_call.1} parent=5 // pred_check_branch
        %317 = sbr.rel (%p314) target = $region52
      $region51: #{tpu_custom_call.1} parent=5 // pred_region
        %s318 = ssub.s32 %s24, 1
        %s319 = sand.u32 %s37, 1
        %s320 = scalar_lea.sflag [#allocation6], %s319
        %s321 = sand.u32 %s37, 1
        %s322 = smul.addr %s321, 2
        %s323 = scalar_lea.vmem [#allocation5], %s322
        // Predicated region
        $region53: #{tpu_custom_call.1} parent=51 // pred_check
          %p324 = pneg %p50
        $region54: #{tpu_custom_call.1} parent=51 // pred_check_branch
          %326 = sbr.rel (%p324) target = $region56
        $region55: #{tpu_custom_call.1} parent=51 // pred_region
          %327 = dma.done %s320, 32
        $region56: #{tpu_custom_call.1} parent=51 // pred_fallthru
          _
        // Predicated region
        $region57: #{tpu_custom_call.1} parent=51 // pred_check
          %p328 = pneg %p71
        $region58: #{tpu_custom_call.1} parent=51 // pred_check_branch
          %330 = sbr.rel (%p328) target = $region60
        $region59: #{tpu_custom_call.1} parent=51 // pred_region
          %331 = dma.done [#allocation9], 512
        $region60: #{tpu_custom_call.1} parent=51 // pred_fallthru
          _
        // Predicated region
        $region61: #{tpu_custom_call.1} parent=51 // pred_check
          %p332 = pneg %p134
        $region62: #{tpu_custom_call.1} parent=51 // pred_check_branch
          %334 = sbr.rel (%p332) target = $region64
        $region63: #{tpu_custom_call.1} parent=51 // pred_region
          %335 = dma.done [#allocation9], 36864
        $region64: #{tpu_custom_call.1} parent=51 // pred_fallthru
          _
        // Predicated region
        $region65: #{tpu_custom_call.1} parent=51 // pred_check
          %p336 = pneg %p176
        $region66: #{tpu_custom_call.1} parent=51 // pred_check_branch
          %338 = sbr.rel (%p336) target = $region68
        $region67: #{tpu_custom_call.1} parent=51 // pred_region
          %339 = dma.done [#allocation12], 256
        $region68: #{tpu_custom_call.1} parent=51 // pred_fallthru
          _
        %s340 = sand.u32 %s37, 1
        %s341 = scalar_lea.sflag [#allocation6], %s340
        %s342 = sand.u32 %s37, 1
        %s343 = smul.addr %s342, 2
        %s344 = scalar_lea.vmem [#allocation5], %s343
        %p345 = pneg %p50
        %p346 = pneg %p47
        %p347 = pneg %p71
        %p348 = pneg %p68
        %p349 = pneg %p92
        %p350 = pneg %p89
        %p351 = pneg %p113
        %p352 = pneg %p110
        %p353 = pneg %p134
        %p354 = pneg %p131
        %p355 = pneg %p155
        %p356 = pneg %p152
        %p357 = pneg %p176
        %p358 = pneg %p173
        %p359 = pneg %p197
        %p360 = pneg %p194
        %p361 = pneg %p223
        %p362 = pneg %p220
        %s363 = sand.u32 %s210, 1
        %s364 = scalar_lea.sflag [#allocation7], %s363
        %s365 = sand.u32 %s210, 1
        %s366 = smul.addr %s365, 2
        %s367 = scalar_lea.vmem [#allocation13], %s366
        %v368 = vld [vmem:[#allocation8] sm:$0xff]
        %v369 = vld [vmem:[#allocation8 + $0x8] sm:$0xff]
        %v370 = vld [vmem:[#allocation8 + $0x10] sm:$0x1]
        %v371 = vld [vmem:[#allocation8 + $0x18] sm:$0x1]
        %v372 = vpack.c.bf16 %v370, %v368
        %v373 = vpack.c.bf16 %v371, %v369
        %374 = vst [vmem:[#allocation2 + $0x10] sm:$0xfe] 0.0
        %375 = vst [vmem:[#allocation2 + $0x18] sm:$0xfe] 0.0
        %v376 = vld [vmem:[%s323] sm:$0x3]
        %v378 = vlaneseq
        %v379 = vshrl.u32 %v378, 7
        %v380 = vsub.s32 1, %v379
        %v381 = vrot.slane %v376, %v380
        %382 = vrot.lane.b32.xlu0 %v381, 29
        %v383 = vpop.permute.xlu0 %382
        %v385 = vlaneseq
        %v386 = vshrl.u32 %v385, 7
        %v387 = vsub.s32 0, %v386
        %v388 = vrot.slane %v376, %v387
        %389 = vrot.lane.b32.xlu0 %v388, 29
        %v390 = vpop.permute.xlu0 %389
        %vm391 = vcmask 236544
        %v392 = vsel %vm391, %v390, %v383
        %v395 = vsel %vm391, %v383, %v390
        %v396 = vmul.f32 %v395, %v368
        %v397 = vmul.f32 %v392, %v369
        %v400 = vcombine.low %v396, %v397
        %v402 = vunpack.c.l.s4 1966171168
        %v403 = vunpack.c.0.s8 %v402
        %v404 = vlaneseq
        %v405 = vshrl.u32 %v404, 7
        %v406 = vsub.s32 %v403, %v405
        %v407 = vrot.slane %v400, %v406
        %v409 = vunpack.c.l.s4 1966171168
        %v410 = vunpack.c.0.s8 %v409
        %v411 = vlaneseq
        %v412 = vshrl.u32 %v411, 7
        %v413 = vsub.s32 %v410, %v412
        %v414 = vrot.slane %v407, %v413
        %v416 = vlaneseq
        %vm417 = vcmp.ge.s32.totalorder %v416, 0
        %vm418 = vcmp.lt.s32.totalorder %v416, 256
        %vm419 = vmand %vm417, %vm418
        %420 = vst.msk [vmem:[#allocation2] ss:$8 sm:$0x3] %vm419, %v414
        %421 = vst.msk [vmem:[#allocation2] ss:$8 sm:$0x0] %vm419, %v414
        %422 = vrot.lane.b32.xlu0 %v381, 28
        %v423 = vpop.permute.xlu0 %422
        %425 = vrot.lane.b32.xlu0 %v388, 28
        %v426 = vpop.permute.xlu0 %425
        %vm427 = vcmask 228352
        %v428 = vsel %vm427, %v426, %v423
        %v431 = vsel %vm427, %v423, %v426
        %v434 = vrot.slane %v368, 1
        %v435 = vrot.slane %v369, 1
        %v438 = vmul.f32 %v431, %v434
        %v439 = vmul.f32 %v428, %v435
        %v442 = vcombine.low %v438, %v439
        %v444 = vunpack.c.l.s4 1966171168
        %v445 = vunpack.c.0.s8 %v444
        %v446 = vlaneseq
        %v447 = vshrl.u32 %v446, 7
        %v448 = vsub.s32 %v445, %v447
        %v449 = vrot.slane %v442, %v448
        %v451 = vunpack.c.l.s4 1966171168
        %v452 = vunpack.c.0.s8 %v451
        %v453 = vlaneseq
        %v454 = vshrl.u32 %v453, 7
        %v455 = vsub.s32 %v452, %v454
        %v456 = vrot.slane %v449, %v455
        %s458 = scalar_lea.vmem [#allocation2], 1
        %459 = vst.msk [vmem:[%s458] ss:$8 sm:$0x3] %vm419, %v456
        %460 = vst.msk [vmem:[%s458] ss:$8 sm:$0x0] %vm419, %v456
        %461 = vrot.lane.b32.xlu0 %v381, 27
        %v462 = vpop.permute.xlu0 %461
        %464 = vrot.lane.b32.xlu0 %v388, 27
        %v465 = vpop.permute.xlu0 %464
        %vm466 = vcmask 220160
        %v467 = vsel %vm466, %v465, %v462
        %v470 = vsel %vm466, %v462, %v465
        %v471 = vrot.slane %v368, 2
        %v472 = vrot.slane %v369, 2
        %v475 = vmul.f32 %v470, %v471
        %v476 = vmul.f32 %v467, %v472
        %v479 = vcombine.low %v475, %v476
        %v481 = vunpack.c.l.s4 1966171168
        %v482 = vunpack.c.0.s8 %v481
        %v483 = vlaneseq
        %v484 = vshrl.u32 %v483, 7
        %v485 = vsub.s32 %v482, %v484
        %v486 = vrot.slane %v479, %v485
        %v488 = vunpack.c.l.s4 1966171168
        %v489 = vunpack.c.0.s8 %v488
        %v490 = vlaneseq
        %v491 = vshrl.u32 %v490, 7
        %v492 = vsub.s32 %v489, %v491
        %v493 = vrot.slane %v486, %v492
        %s495 = scalar_lea.vmem [#allocation2], 2
        %496 = vst.msk [vmem:[%s495] ss:$8 sm:$0x3] %vm419, %v493
        %497 = vst.msk [vmem:[%s495] ss:$8 sm:$0x0] %vm419, %v493
        %498 = vrot.lane.b32.xlu0 %v381, 1
        %v499 = vpop.permute.xlu0 %498
        %501 = vrot.lane.b32.xlu0 %v388, 1
        %v502 = vpop.permute.xlu0 %501
        %vm503 = vcmask 7168
        %v504 = vsel %vm503, %v502, %v499
        %v507 = vsel %vm503, %v499, %v502
        %v508 = vrot.slane %v368, 3
        %v509 = vrot.slane %v369, 3
        %v512 = vmul.f32 %v507, %v508
        %v513 = vmul.f32 %v504, %v509
        %v516 = vcombine.low %v512, %v513
        %v518 = vunpack.c.l.s4 1966171168
        %v519 = vunpack.c.0.s8 %v518
        %v520 = vlaneseq
        %v521 = vshrl.u32 %v520, 7
        %v522 = vsub.s32 %v519, %v521
        %v523 = vrot.slane %v516, %v522
        %v525 = vunpack.c.l.s4 1966171168
        %v526 = vunpack.c.0.s8 %v525
        %v527 = vlaneseq
        %v528 = vshrl.u32 %v527, 7
        %v529 = vsub.s32 %v526, %v528
        %v530 = vrot.slane %v523, %v529
        %s532 = scalar_lea.vmem [#allocation2], 3
        %533 = vst.msk [vmem:[%s532] ss:$8 sm:$0x3] %vm419, %v530
        %534 = vst.msk [vmem:[%s532] ss:$8 sm:$0x0] %vm419, %v530
        %v535 = vcombine.high %v368, %v369
        %v537 = vunpack.c.l.s4 1966171168
        %v538 = vunpack.c.0.s8 %v537
        %v539 = vlaneseq
        %v540 = vshrl.u32 %v539, 7
        %v541 = vsub.s32 %v538, %v540
        %v542 = vrot.slane %v535, %v541
        %v544 = vunpack.c.l.s4 1966171168
        %v545 = vunpack.c.0.s8 %v544
        %v546 = vlaneseq
        %v547 = vshrl.u32 %v546, 7
        %v548 = vsub.s32 %v545, %v547
        %v549 = vrot.slane %v542, %v548
        %v551 = vmul.f32 %v376, %v549
        %s552 = scalar_lea.vmem [#allocation2], 4
        %553 = vst.msk [vmem:[%s552] ss:$8 sm:$0x3] %vm419, %v551
        %554 = vst.msk [vmem:[%s552] ss:$8 sm:$0x0] %vm419, %v551
        %555 = vrot.lane.b32.xlu0 %v388, 127
        %v556 = vpop.permute.xlu0 %555
        %557 = vrot.lane.b32.xlu0 %v381, 127
        %v558 = vpop.permute.xlu0 %557
        %vm559 = vcmask 1039360
        %v560 = vsel %vm559, %v556, %v558
        %v564 = vsel %vm559, %v558, %v556
        %v565 = vrot.slane %v368, 5
        %v566 = vrot.slane %v369, 5
        %v569 = vmul.f32 %v560, %v565
        %v570 = vmul.f32 %v564, %v566
        %v573 = vcombine.low %v569, %v570
        %v575 = vunpack.c.l.s4 1966171168
        %v576 = vunpack.c.0.s8 %v575
        %v577 = vlaneseq
        %v578 = vshrl.u32 %v577, 7
        %v579 = vsub.s32 %v576, %v578
        %v580 = vrot.slane %v573, %v579
        %v582 = vunpack.c.l.s4 1966171168
        %v583 = vunpack.c.0.s8 %v582
        %v584 = vlaneseq
        %v585 = vshrl.u32 %v584, 7
        %v586 = vsub.s32 %v583, %v585
        %v587 = vrot.slane %v580, %v586
        %s589 = scalar_lea.vmem [#allocation2], 5
        %590 = vst.msk [vmem:[%s589] ss:$8 sm:$0x3] %vm419, %v587
        %591 = vst.msk [vmem:[%s589] ss:$8 sm:$0x0] %vm419, %v587
        %592 = vrot.lane.b32.xlu0 %v388, 101
        %v593 = vpop.permute.xlu0 %592
        %594 = vrot.lane.b32.xlu0 %v381, 101
        %v595 = vpop.permute.xlu0 %594
        %vm596 = vcmask 826368
        %v597 = vsel %vm596, %v593, %v595
        %v601 = vsel %vm596, %v595, %v593
        %v602 = vrot.slane %v368, 6
        %v603 = vrot.slane %v369, 6
        %v606 = vmul.f32 %v597, %v602
        %v607 = vmul.f32 %v601, %v603
        %v610 = vcombine.low %v606, %v607
        %v612 = vunpack.c.l.s4 1966171168
        %v613 = vunpack.c.0.s8 %v612
        %v614 = vlaneseq
        %v615 = vshrl.u32 %v614, 7
        %v616 = vsub.s32 %v613, %v615
        %v617 = vrot.slane %v610, %v616
        %v619 = vunpack.c.l.s4 1966171168
        %v620 = vunpack.c.0.s8 %v619
        %v621 = vlaneseq
        %v622 = vshrl.u32 %v621, 7
        %v623 = vsub.s32 %v620, %v622
        %v624 = vrot.slane %v617, %v623
        %s626 = scalar_lea.vmem [#allocation2], 6
        %627 = vst.msk [vmem:[%s626] ss:$8 sm:$0x3] %vm419, %v624
        %628 = vst.msk [vmem:[%s626] ss:$8 sm:$0x0] %vm419, %v624
        %629 = vrot.lane.b32.xlu0 %v388, 100
        %v630 = vpop.permute.xlu0 %629
        %631 = vrot.lane.b32.xlu0 %v381, 100
        %v632 = vpop.permute.xlu0 %631
        %vm633 = vcmask 818176
        %v634 = vsel %vm633, %v630, %v632
        %v638 = vsel %vm633, %v632, %v630
        %v639 = vrot.slane %v368, 7
        %v640 = vrot.slane %v369, 7
        %v643 = vmul.f32 %v634, %v639
        %v644 = vmul.f32 %v638, %v640
        %v647 = vcombine.low %v643, %v644
        %v649 = vunpack.c.l.s4 1966171168
        %v650 = vunpack.c.0.s8 %v649
        %v651 = vlaneseq
        %v652 = vshrl.u32 %v651, 7
        %v653 = vsub.s32 %v650, %v652
        %v654 = vrot.slane %v647, %v653
        %v656 = vunpack.c.l.s4 1966171168
        %v657 = vunpack.c.0.s8 %v656
        %v658 = vlaneseq
        %v659 = vshrl.u32 %v658, 7
        %v660 = vsub.s32 %v657, %v659
        %v661 = vrot.slane %v654, %v660
        %s663 = scalar_lea.vmem [#allocation2], 7
        %664 = vst.msk [vmem:[%s663] ss:$8 sm:$0x3] %vm419, %v661
        %665 = vst.msk [vmem:[%s663] ss:$8 sm:$0x0] %vm419, %v661
        %666 = vrot.lane.b32.xlu0 %v388, 99
        %v667 = vpop.permute.xlu0 %666
        %668 = vrot.lane.b32.xlu0 %v381, 99
        %v669 = vpop.permute.xlu0 %668
        %vm670 = vcmask 809984
        %v671 = vsel %vm670, %v667, %v669
        %v675 = vsel %vm670, %v669, %v667
        %v676 = vmul.f32 %v671, %v370
        %v677 = vmul.f32 %v675, %v371
        %v680 = vcombine.low %v676, %v677
        %v682 = vunpack.c.l.s4 1966171168
        %v683 = vunpack.c.0.s8 %v682
        %v684 = vlaneseq
        %v685 = vshrl.u32 %v684, 7
        %v686 = vsub.s32 %v683, %v685
        %v687 = vrot.slane %v680, %v686
        %v689 = vunpack.c.l.s4 1966171168
        %v690 = vunpack.c.0.s8 %v689
        %v691 = vlaneseq
        %v692 = vshrl.u32 %v691, 7
        %v693 = vsub.s32 %v690, %v692
        %v694 = vrot.slane %v687, %v693
        %s696 = scalar_lea.vmem [#allocation2], 16
        %697 = vst.msk [vmem:[%s696] ss:$8 sm:$0x3] %vm419, %v694
        %698 = vst.msk [vmem:[%s696] ss:$8 sm:$0x0] %vm419, %v694
        %v699 = vld [vmem:[%s2] sm:$0xff]
        %v700 = vld [vmem:[%s2 + $0x8] sm:$0xff]
        %v701 = vld [vmem:[%s2 + $0x10] sm:$0xff]
        %v702 = vld [vmem:[%s2 + $0x18] sm:$0xff]
        %v703 = vld [vmem:[%s2 + $0x20] sm:$0xff]
        %v704 = vld [vmem:[%s2 + $0x28] sm:$0xff]
        %v705 = vld [vmem:[%s2 + $0x30] sm:$0xff]
        %v706 = vld [vmem:[%s2 + $0x38] sm:$0xff]
        %v707 = vld [vmem:[%s2 + $0x40] sm:$0xff]
        %v708 = vld [vmem:[%s2 + $0x48] sm:$0xff]
        %v709 = vld [vmem:[%s2 + $0x50] sm:$0xff]
        %v710 = vld [vmem:[%s2 + $0x58] sm:$0xff]
        %v711 = vld [vmem:[%s2 + $0x60] sm:$0xff]
        %v712 = vld [vmem:[%s2 + $0x68] sm:$0xff]
        %v713 = vld [vmem:[%s2 + $0x70] sm:$0xff]
        %v714 = vld [vmem:[%s2 + $0x78] sm:$0xff]
        %v715 = vld [vmem:[%s2 + $0x80] sm:$0xff]
        %v716 = vld [vmem:[%s2 + $0x88] sm:$0xff]
        %v717 = vld [vmem:[%s2 + $0x90] sm:$0xff]
        %v718 = vld [vmem:[%s2 + $0x98] sm:$0xff]
        %v719 = vld [vmem:[%s2 + $0xa0] sm:$0xff]
        %v720 = vld [vmem:[%s2 + $0xa8] sm:$0xff]
        %v721 = vld [vmem:[%s2 + $0xb0] sm:$0xff]
        %v722 = vld [vmem:[%s2 + $0xb8] sm:$0xff]
        %v723 = vld [vmem:[%s2 + $0xc0] sm:$0xff]
        %v724 = vld [vmem:[%s2 + $0xc8] sm:$0xff]
        %v725 = vld [vmem:[%s2 + $0xd0] sm:$0xff]
        %v726 = vld [vmem:[%s2 + $0xd8] sm:$0xff]
        %v727 = vld [vmem:[%s2 + $0xe0] sm:$0xff]
        %v728 = vld [vmem:[%s2 + $0xe8] sm:$0xff]
        %v729 = vld [vmem:[%s2 + $0xf0] sm:$0xff]
        %v730 = vld [vmem:[%s2 + $0xf8] sm:$0xff]
        %v731 = vld [vmem:[#allocation2] sm:$0xff]
        %v732 = vld [vmem:[#allocation2 + $0x8] sm:$0xff]
        %v733 = vld [vmem:[#allocation2 + $0x10] sm:$0xff]
        %v734 = vld [vmem:[#allocation2 + $0x18] sm:$0xff]
        %v735 = vld [vmem:[%s3] sm:$0xff]
        %v736 = vld [vmem:[%s3 + $0x8] sm:$0xff]
        %v737 = vld [vmem:[%s3 + $0x10] sm:$0xff]
        %v738 = vld [vmem:[%s3 + $0x18] sm:$0xff]
        %v739 = vld [vmem:[%s3 + $0x20] sm:$0xff]
        %v740 = vld [vmem:[%s3 + $0x28] sm:$0xff]
        %v741 = vld [vmem:[%s3 + $0x30] sm:$0xff]
        %v742 = vld [vmem:[%s3 + $0x38] sm:$0xff]
        %v743 = vld [vmem:[%s3 + $0x40] sm:$0xff]
        %v744 = vld [vmem:[%s3 + $0x48] sm:$0xff]
        %v745 = vld [vmem:[%s3 + $0x50] sm:$0xff]
        %v746 = vld [vmem:[%s3 + $0x58] sm:$0xff]
        %v747 = vld [vmem:[%s3 + $0x60] sm:$0xff]
        %v748 = vld [vmem:[%s3 + $0x68] sm:$0xff]
        %v749 = vld [vmem:[%s3 + $0x70] sm:$0xff]
        %v750 = vld [vmem:[%s3 + $0x78] sm:$0xff]
        %v751 = vld [vmem:[%s3 + $0x80] sm:$0xff]
        %v752 = vld [vmem:[%s3 + $0x88] sm:$0xff]
        %v753 = vld [vmem:[%s3 + $0x90] sm:$0xff]
        %v754 = vld [vmem:[%s3 + $0x98] sm:$0xff]
        %v755 = vld [vmem:[%s3 + $0xa0] sm:$0xff]
        %v756 = vld [vmem:[%s3 + $0xa8] sm:$0xff]
        %v757 = vld [vmem:[%s3 + $0xb0] sm:$0xff]
        %v758 = vld [vmem:[%s3 + $0xb8] sm:$0xff]
        %v759 = vld [vmem:[%s3 + $0xc0] sm:$0xff]
        %v760 = vld [vmem:[%s3 + $0xc8] sm:$0xff]
        %v761 = vld [vmem:[%s3 + $0xd0] sm:$0xff]
        %v762 = vld [vmem:[%s3 + $0xd8] sm:$0xff]
        %v763 = vld [vmem:[%s3 + $0xe0] sm:$0xff]
        %v764 = vld [vmem:[%s3 + $0xe8] sm:$0xff]
        %v765 = vld [vmem:[%s3 + $0xf0] sm:$0xff]
        %v766 = vld [vmem:[%s3 + $0xf8] sm:$0xff]
        %768 = vset.pattern.permute.xlu0 0
        %769 = vperm.xlu0 %768, %v735
        %v770 = vpop.permute.xlu0 %769
        %773 = vset.pattern.permute.xlu0 0
        %774 = vperm.xlu0 %773, %v736
        %v775 = vpop.permute.xlu0 %774
        %778 = vset.pattern.permute.xlu0 0
        %779 = vperm.xlu0 %778, %v737
        %v780 = vpop.permute.xlu0 %779
        %783 = vset.pattern.permute.xlu0 0
        %784 = vperm.xlu0 %783, %v738
        %v785 = vpop.permute.xlu0 %784
        %788 = vset.pattern.permute.xlu0 0
        %789 = vperm.xlu0 %788, %v739
        %v790 = vpop.permute.xlu0 %789
        %793 = vset.pattern.permute.xlu0 0
        %794 = vperm.xlu0 %793, %v740
        %v795 = vpop.permute.xlu0 %794
        %798 = vset.pattern.permute.xlu0 0
        %799 = vperm.xlu0 %798, %v741
        %v800 = vpop.permute.xlu0 %799
        %803 = vset.pattern.permute.xlu0 0
        %804 = vperm.xlu0 %803, %v742
        %v805 = vpop.permute.xlu0 %804
        %808 = vset.pattern.permute.xlu0 0
        %809 = vperm.xlu0 %808, %v743
        %v810 = vpop.permute.xlu0 %809
        %813 = vset.pattern.permute.xlu0 0
        %814 = vperm.xlu0 %813, %v744
        %v815 = vpop.permute.xlu0 %814
        %818 = vset.pattern.permute.xlu0 0
        %819 = vperm.xlu0 %818, %v745
        %v820 = vpop.permute.xlu0 %819
        %823 = vset.pattern.permute.xlu0 0
        %824 = vperm.xlu0 %823, %v746
        %v825 = vpop.permute.xlu0 %824
        %828 = vset.pattern.permute.xlu0 0
        %829 = vperm.xlu0 %828, %v747
        %v830 = vpop.permute.xlu0 %829
        %833 = vset.pattern.permute.xlu0 0
        %834 = vperm.xlu0 %833, %v748
        %v835 = vpop.permute.xlu0 %834
        %838 = vset.pattern.permute.xlu0 0
        %839 = vperm.xlu0 %838, %v749
        %v840 = vpop.permute.xlu0 %839
        %843 = vset.pattern.permute.xlu0 0
        %844 = vperm.xlu0 %843, %v750
        %v845 = vpop.permute.xlu0 %844
        %848 = vset.pattern.permute.xlu0 0
        %849 = vperm.xlu0 %848, %v751
        %v850 = vpop.permute.xlu0 %849
        %853 = vset.pattern.permute.xlu0 0
        %854 = vperm.xlu0 %853, %v752
        %v855 = vpop.permute.xlu0 %854
        %858 = vset.pattern.permute.xlu0 0
        %859 = vperm.xlu0 %858, %v753
        %v860 = vpop.permute.xlu0 %859
        %863 = vset.pattern.permute.xlu0 0
        %864 = vperm.xlu0 %863, %v754
        %v865 = vpop.permute.xlu0 %864
        %868 = vset.pattern.permute.xlu0 0
        %869 = vperm.xlu0 %868, %v755
        %v870 = vpop.permute.xlu0 %869
        %873 = vset.pattern.permute.xlu0 0
        %874 = vperm.xlu0 %873, %v756
        %v875 = vpop.permute.xlu0 %874
        %878 = vset.pattern.permute.xlu0 0
        %879 = vperm.xlu0 %878, %v757
        %v880 = vpop.permute.xlu0 %879
        %883 = vset.pattern.permute.xlu0 0
        %884 = vperm.xlu0 %883, %v758
        %v885 = vpop.permute.xlu0 %884
        %888 = vset.pattern.permute.xlu0 0
        %889 = vperm.xlu0 %888, %v759
        %v890 = vpop.permute.xlu0 %889
        %893 = vset.pattern.permute.xlu0 0
        %894 = vperm.xlu0 %893, %v760
        %v895 = vpop.permute.xlu0 %894
        %898 = vset.pattern.permute.xlu0 0
        %899 = vperm.xlu0 %898, %v761
        %v900 = vpop.permute.xlu0 %899
        %903 = vset.pattern.permute.xlu0 0
        %904 = vperm.xlu0 %903, %v762
        %v905 = vpop.permute.xlu0 %904
        %908 = vset.pattern.permute.xlu0 0
        %909 = vperm.xlu0 %908, %v763
        %v910 = vpop.permute.xlu0 %909
        %913 = vset.pattern.permute.xlu0 0
        %914 = vperm.xlu0 %913, %v764
        %v915 = vpop.permute.xlu0 %914
        %918 = vset.pattern.permute.xlu0 0
        %919 = vperm.xlu0 %918, %v765
        %v920 = vpop.permute.xlu0 %919
        %923 = vset.pattern.permute.xlu0 0
        %924 = vperm.xlu0 %923, %v766
        %v925 = vpop.permute.xlu0 %924
        %vm927 = vcmask 130048
        %v929 = vsel %vm927, %v699, 0
        %v932 = vsel %vm927, %v700, 0
        %v935 = vsel %vm927, %v701, 0
        %v938 = vsel %vm927, %v702, 0
        %v941 = vsel %vm927, %v703, 0
        %v944 = vsel %vm927, %v704, 0
        %v947 = vsel %vm927, %v705, 0
        %v950 = vsel %vm927, %v706, 0
        %v953 = vsel %vm927, %v707, 0
        %v956 = vsel %vm927, %v708, 0
        %v959 = vsel %vm927, %v709, 0
        %v962 = vsel %vm927, %v710, 0
        %v965 = vsel %vm927, %v711, 0
        %v968 = vsel %vm927, %v712, 0
        %v971 = vsel %vm927, %v713, 0
        %v974 = vsel %vm927, %v714, 0
        %v977 = vsel %vm927, %v715, 0
        %v980 = vsel %vm927, %v716, 0
        %v983 = vsel %vm927, %v717, 0
        %v986 = vsel %vm927, %v718, 0
        %v989 = vsel %vm927, %v719, 0
        %v992 = vsel %vm927, %v720, 0
        %v995 = vsel %vm927, %v721, 0
        %v998 = vsel %vm927, %v722, 0
        %v1001 = vsel %vm927, %v723, 0
        %v1004 = vsel %vm927, %v724, 0
        %v1007 = vsel %vm927, %v725, 0
        %v1010 = vsel %vm927, %v726, 0
        %v1013 = vsel %vm927, %v727, 0
        %v1016 = vsel %vm927, %v728, 0
        %v1019 = vsel %vm927, %v729, 0
        %v1022 = vsel %vm927, %v730, 0
        %1024 = vmatprep.subr.mxu0 %v732
        %1025 = vmatpush1.msra.mxu0 %v731
        %1026 = vmatprep.subr.mxu0 %v734
        %1027 = vmatpush1.msra.mxu0 %v733
        %1028 = vmatprep.subr.mxu0 0.0
        %1029 = vmatpush1.msra.mxu0 0.0
        %1030 = vmatprep.subr.mxu0 0.0
        %1031 = vmatpush1.msra.mxu0 0.0
        %1032 = vmatprep.subr.mxu0 0.0
        %1033 = vmatpush1.msra.mxu0 0.0
        %1034 = vmatprep.subr.mxu0 0.0
        %1035 = vmatpush1.msra.mxu0 0.0
        %1036 = vmatprep.subr.mxu0 0.0
        %1037 = vmatpush1.msra.mxu0 0.0
        %1038 = vmatprep.subr.mxu0 0.0
        %1039 = vmatpush1.msra.mxu0 0.0
        %1040 = vmatprep.subr.mxu0 0.0
        %1041 = vmatpush1.msra.mxu0 0.0
        %1042 = vmatprep.subr.mxu0 0.0
        %1043 = vmatpush1.msra.mxu0 0.0
        %1044 = vmatprep.subr.mxu0 0.0
        %1045 = vmatpush1.msra.mxu0 0.0
        %1046 = vmatprep.subr.mxu0 0.0
        %1047 = vmatpush1.msra.mxu0 0.0
        %1048 = vmatprep.subr.mxu0 0.0
        %1049 = vmatpush1.msra.mxu0 0.0
        %1050 = vmatprep.subr.mxu0 0.0
        %1051 = vmatpush1.msra.mxu0 0.0
        %1052 = vmatprep.subr.mxu0 0.0
        %1053 = vmatpush1.msra.mxu0 0.0
        %1054 = vmatprep.subr.mxu0 0.0
        %1055 = vmatpush1.msra.mxu0 0.0
        %1056 = vmatprep.subr.mxu0 0.0
        %1057 = vmatpush1.msra.mxu0 0.0
        %1058 = vmatprep.subr.mxu0 0.0
        %1059 = vmatpush1.msra.mxu0 0.0
        %1060 = vmatprep.subr.mxu0 0.0
        %1061 = vmatpush1.msra.mxu0 0.0
        %1062 = vmatprep.subr.mxu0 0.0
        %1063 = vmatpush1.msra.mxu0 0.0
        %1064 = vmatprep.subr.mxu0 0.0
        %1065 = vmatpush1.msra.mxu0 0.0
        %1066 = vmatprep.subr.mxu0 0.0
        %1067 = vmatpush1.msra.mxu0 0.0
        %1068 = vmatprep.subr.mxu0 0.0
        %1069 = vmatpush1.msra.mxu0 0.0
        %1070 = vmatprep.subr.mxu0 0.0
        %1071 = vmatpush1.msra.mxu0 0.0
        %1072 = vmatprep.subr.mxu0 0.0
        %1073 = vmatpush1.msra.mxu0 0.0
        %1074 = vmatprep.subr.mxu0 0.0
        %1075 = vmatpush1.msra.mxu0 0.0
        %1076 = vmatprep.subr.mxu0 0.0
        %1077 = vmatpush1.msra.mxu0 0.0
        %1078 = vmatprep.subr.mxu0 0.0
        %1079 = vmatpush1.msra.mxu0 0.0
        %1080 = vmatprep.subr.mxu0 0.0
        %1081 = vmatpush1.msra.mxu0 0.0
        %1082 = vmatprep.subr.mxu0 0.0
        %1083 = vmatpush1.msra.mxu0 0.0
        %1084 = vmatprep.subr.mxu0 0.0
        %1085 = vmatpush1.msra.mxu0 0.0
        %1086 = vmatprep.subr.mxu0 0.0
        %1087 = vmatpush1.msra.mxu0 0.0
        %1088 = vmatprep.mubr.f32.mxu0 0.0
        %1089 = vmatmul.mubr.f32.gmra.mrb[0].mxu0 %v929
        %v1090 = vpop.f32.mrb[0].mxu0
        %v1091 = vadd.f32 %v770, %v1090
        %v1092 = vpop.f32.mrb[0].mxu0
        %v1093 = vadd.f32 %v770, %v1092
        %1094 = vmatprep.mubr.f32.mxu0 0.0
        %1095 = vmatmul.mubr.f32.gmra.mrb[0].mxu0 %v932
        %v1096 = vpop.f32.mrb[0].mxu0
        %v1097 = vadd.f32 %v775, %v1096
        %v1098 = vpop.f32.mrb[0].mxu0
        %v1099 = vadd.f32 %v775, %v1098
        %1100 = vmatprep.mubr.f32.mxu0 0.0
        %1101 = vmatmul.mubr.f32.gmra.mrb[0].mxu0 %v935
        %v1102 = vpop.f32.mrb[0].mxu0
        %v1103 = vadd.f32 %v780, %v1102
        %v1104 = vpop.f32.mrb[0].mxu0
        %v1105 = vadd.f32 %v780, %v1104
        %1106 = vmatprep.mubr.f32.mxu0 0.0
        %1107 = vmatmul.mubr.f32.gmra.mrb[0].mxu0 %v938
        %v1108 = vpop.f32.mrb[0].mxu0
        %v1109 = vadd.f32 %v785, %v1108
        %v1110 = vpop.f32.mrb[0].mxu0
        %v1111 = vadd.f32 %v785, %v1110
        %1112 = vmatprep.mubr.f32.mxu0 0.0
        %1113 = vmatmul.mubr.f32.gmra.mrb[0].mxu0 %v941
        %v1114 = vpop.f32.mrb[0].mxu0
        %v1115 = vadd.f32 %v790, %v1114
        %v1116 = vpop.f32.mrb[0].mxu0
        %v1117 = vadd.f32 %v790, %v1116
        %1118 = vmatprep.mubr.f32.mxu0 0.0
        %1119 = vmatmul.mubr.f32.gmra.mrb[0].mxu0 %v944
        %v1120 = vpop.f32.mrb[0].mxu0
        %v1121 = vadd.f32 %v795, %v1120
        %v1122 = vpop.f32.mrb[0].mxu0
        %v1123 = vadd.f32 %v795, %v1122
        %1124 = vmatprep.mubr.f32.mxu0 0.0
        %1125 = vmatmul.mubr.f32.gmra.mrb[0].mxu0 %v947
        %v1126 = vpop.f32.mrb[0].mxu0
        %v1127 = vadd.f32 %v800, %v1126
        %v1128 = vpop.f32.mrb[0].mxu0
        %v1129 = vadd.f32 %v800, %v1128
        %1130 = vmatprep.mubr.f32.mxu0 0.0
        %1131 = vmatmul.mubr.f32.gmra.mrb[0].mxu0 %v950
        %v1132 = vpop.f32.mrb[0].mxu0
        %v1133 = vadd.f32 %v805, %v1132
        %v1134 = vpop.f32.mrb[0].mxu0
        %v1135 = vadd.f32 %v805, %v1134
        %1136 = vmatprep.mubr.f32.mxu0 0.0
        %1137 = vmatmul.mubr.f32.gmra.mrb[0].mxu0 %v953
        %v1138 = vpop.f32.mrb[0].mxu0
        %v1139 = vadd.f32 %v810, %v1138
        %v1140 = vpop.f32.mrb[0].mxu0
        %v1141 = vadd.f32 %v810, %v1140
        %1142 = vmatprep.mubr.f32.mxu0 0.0
        %1143 = vmatmul.mubr.f32.gmra.mrb[0].mxu0 %v956
        %v1144 = vpop.f32.mrb[0].mxu0
        %v1145 = vadd.f32 %v815, %v1144
        %v1146 = vpop.f32.mrb[0].mxu0
        %v1147 = vadd.f32 %v815, %v1146
        %1148 = vmatprep.mubr.f32.mxu0 0.0
        %1149 = vmatmul.mubr.f32.gmra.mrb[0].mxu0 %v959
        %v1150 = vpop.f32.mrb[0].mxu0
        %v1151 = vadd.f32 %v820, %v1150
        %v1152 = vpop.f32.mrb[0].mxu0
        %v1153 = vadd.f32 %v820, %v1152
        %1154 = vmatprep.mubr.f32.mxu0 0.0
        %1155 = vmatmul.mubr.f32.gmra.mrb[0].mxu0 %v962
        %v1156 = vpop.f32.mrb[0].mxu0
        %v1157 = vadd.f32 %v825, %v1156
        %v1158 = vpop.f32.mrb[0].mxu0
        %v1159 = vadd.f32 %v825, %v1158
        %1160 = vmatprep.mubr.f32.mxu0 0.0
        %1161 = vmatmul.mubr.f32.gmra.mrb[0].mxu0 %v965
        %v1162 = vpop.f32.mrb[0].mxu0
        %v1163 = vadd.f32 %v830, %v1162
        %v1164 = vpop.f32.mrb[0].mxu0
        %v1165 = vadd.f32 %v830, %v1164
        %1166 = vmatprep.mubr.f32.mxu0 0.0
        %1167 = vmatmul.mubr.f32.gmra.mrb[0].mxu0 %v968
        %v1168 = vpop.f32.mrb[0].mxu0
        %v1169 = vadd.f32 %v835, %v1168
        %v1170 = vpop.f32.mrb[0].mxu0
        %v1171 = vadd.f32 %v835, %v1170
        %1172 = vmatprep.mubr.f32.mxu0 0.0
        %1173 = vmatmul.mubr.f32.gmra.mrb[0].mxu0 %v971
        %v1174 = vpop.f32.mrb[0].mxu0
        %v1175 = vadd.f32 %v840, %v1174
        %v1176 = vpop.f32.mrb[0].mxu0
        %v1177 = vadd.f32 %v840, %v1176
        %1178 = vmatprep.mubr.f32.mxu0 0.0
        %1179 = vmatmul.mubr.f32.gmra.mrb[0].mxu0 %v974
        %v1180 = vpop.f32.mrb[0].mxu0
        %v1181 = vadd.f32 %v845, %v1180
        %v1182 = vpop.f32.mrb[0].mxu0
        %v1183 = vadd.f32 %v845, %v1182
        %1184 = vmatprep.mubr.f32.mxu0 0.0
        %1185 = vmatmul.mubr.f32.gmra.mrb[0].mxu0 %v977
        %v1186 = vpop.f32.mrb[0].mxu0
        %v1187 = vadd.f32 %v850, %v1186
        %v1188 = vpop.f32.mrb[0].mxu0
        %v1189 = vadd.f32 %v850, %v1188
        %1190 = vmatprep.mubr.f32.mxu0 0.0
        %1191 = vmatmul.mubr.f32.gmra.mrb[0].mxu0 %v980
        %v1192 = vpop.f32.mrb[0].mxu0
        %v1193 = vadd.f32 %v855, %v1192
        %v1194 = vpop.f32.mrb[0].mxu0
        %v1195 = vadd.f32 %v855, %v1194
        %1196 = vmatprep.mubr.f32.mxu0 0.0
        %1197 = vmatmul.mubr.f32.gmra.mrb[0].mxu0 %v983
        %v1198 = vpop.f32.mrb[0].mxu0
        %v1199 = vadd.f32 %v860, %v1198
        %v1200 = vpop.f32.mrb[0].mxu0
        %v1201 = vadd.f32 %v860, %v1200
        %1202 = vmatprep.mubr.f32.mxu0 0.0
        %1203 = vmatmul.mubr.f32.gmra.mrb[0].mxu0 %v986
        %v1204 = vpop.f32.mrb[0].mxu0
        %v1205 = vadd.f32 %v865, %v1204
        %v1206 = vpop.f32.mrb[0].mxu0
        %v1207 = vadd.f32 %v865, %v1206
        %1208 = vmatprep.mubr.f32.mxu0 0.0
        %1209 = vmatmul.mubr.f32.gmra.mrb[0].mxu0 %v989
        %v1210 = vpop.f32.mrb[0].mxu0
        %v1211 = vadd.f32 %v870, %v1210
        %v1212 = vpop.f32.mrb[0].mxu0
        %v1213 = vadd.f32 %v870, %v1212
        %1214 = vmatprep.mubr.f32.mxu0 0.0
        %1215 = vmatmul.mubr.f32.gmra.mrb[0].mxu0 %v992
        %v1216 = vpop.f32.mrb[0].mxu0
        %v1217 = vadd.f32 %v875, %v1216
        %v1218 = vpop.f32.mrb[0].mxu0
        %v1219 = vadd.f32 %v875, %v1218
        %1220 = vmatprep.mubr.f32.mxu0 0.0
        %1221 = vmatmul.mubr.f32.gmra.mrb[0].mxu0 %v995
        %v1222 = vpop.f32.mrb[0].mxu0
        %v1223 = vadd.f32 %v880, %v1222
        %v1224 = vpop.f32.mrb[0].mxu0
        %v1225 = vadd.f32 %v880, %v1224
        %1226 = vmatprep.mubr.f32.mxu0 0.0
        %1227 = vmatmul.mubr.f32.gmra.mrb[0].mxu0 %v998
        %v1228 = vpop.f32.mrb[0].mxu0
        %v1229 = vadd.f32 %v885, %v1228
        %v1230 = vpop.f32.mrb[0].mxu0
        %v1231 = vadd.f32 %v885, %v1230
        %1232 = vmatprep.mubr.f32.mxu0 0.0
        %1233 = vmatmul.mubr.f32.gmra.mrb[0].mxu0 %v1001
        %v1234 = vpop.f32.mrb[0].mxu0
        %v1235 = vadd.f32 %v890, %v1234
        %v1236 = vpop.f32.mrb[0].mxu0
        %v1237 = vadd.f32 %v890, %v1236
        %1238 = vmatprep.mubr.f32.mxu0 0.0
        %1239 = vmatmul.mubr.f32.gmra.mrb[0].mxu0 %v1004
        %v1240 = vpop.f32.mrb[0].mxu0
        %v1241 = vadd.f32 %v895, %v1240
        %v1242 = vpop.f32.mrb[0].mxu0
        %v1243 = vadd.f32 %v895, %v1242
        %1244 = vmatprep.mubr.f32.mxu0 0.0
        %1245 = vmatmul.mubr.f32.gmra.mrb[0].mxu0 %v1007
        %v1246 = vpop.f32.mrb[0].mxu0
        %v1247 = vadd.f32 %v900, %v1246
        %v1248 = vpop.f32.mrb[0].mxu0
        %v1249 = vadd.f32 %v900, %v1248
        %1250 = vmatprep.mubr.f32.mxu0 0.0
        %1251 = vmatmul.mubr.f32.gmra.mrb[0].mxu0 %v1010
        %v1252 = vpop.f32.mrb[0].mxu0
        %v1253 = vadd.f32 %v905, %v1252
        %v1254 = vpop.f32.mrb[0].mxu0
        %v1255 = vadd.f32 %v905, %v1254
        %1256 = vmatprep.mubr.f32.mxu0 0.0
        %1257 = vmatmul.mubr.f32.gmra.mrb[0].mxu0 %v1013
        %v1258 = vpop.f32.mrb[0].mxu0
        %v1259 = vadd.f32 %v910, %v1258
        %v1260 = vpop.f32.mrb[0].mxu0
        %v1261 = vadd.f32 %v910, %v1260
        %1262 = vmatprep.mubr.f32.mxu0 0.0
        %1263 = vmatmul.mubr.f32.gmra.mrb[0].mxu0 %v1016
        %v1264 = vpop.f32.mrb[0].mxu0
        %v1265 = vadd.f32 %v915, %v1264
        %v1266 = vpop.f32.mrb[0].mxu0
        %v1267 = vadd.f32 %v915, %v1266
        %1268 = vmatprep.mubr.f32.mxu0 0.0
        %1269 = vmatmul.mubr.f32.gmra.mrb[0].mxu0 %v1019
        %v1270 = vpop.f32.mrb[0].mxu0
        %v1271 = vadd.f32 %v920, %v1270
        %v1272 = vpop.f32.mrb[0].mxu0
        %v1273 = vadd.f32 %v920, %v1272
        %1274 = vmatprep.mubr.f32.mxu0 0.0
        %1275 = vmatmul.mubr.f32.gmra.mrb[0].mxu0 %v1022
        %v1276 = vpop.f32.mrb[0].mxu0
        %v1277 = vadd.f32 %v925, %v1276
        %v1278 = vpop.f32.mrb[0].mxu0
        %v1279 = vadd.f32 %v925, %v1278
        %1280 = vdwg.mxu0
        %v1281 = vmax.f32 %v1091, 0.0
        %v1282 = vmax.f32 %v1093, 0.0
        %v1283 = vmax.f32 %v1097, 0.0
        %v1284 = vmax.f32 %v1099, 0.0
        %v1285 = vmax.f32 %v1103, 0.0
        %v1286 = vmax.f32 %v1105, 0.0
        %v1287 = vmax.f32 %v1109, 0.0
        %v1288 = vmax.f32 %v1111, 0.0
        %v1289 = vmax.f32 %v1115, 0.0
        %v1290 = vmax.f32 %v1117, 0.0
        %v1291 = vmax.f32 %v1121, 0.0
        %v1292 = vmax.f32 %v1123, 0.0
        %v1293 = vmax.f32 %v1127, 0.0
        %v1294 = vmax.f32 %v1129, 0.0
        %v1295 = vmax.f32 %v1133, 0.0
        %v1296 = vmax.f32 %v1135, 0.0
        %v1297 = vmax.f32 %v1139, 0.0
        %v1298 = vmax.f32 %v1141, 0.0
        %v1299 = vmax.f32 %v1145, 0.0
        %v1300 = vmax.f32 %v1147, 0.0
        %v1301 = vmax.f32 %v1151, 0.0
        %v1302 = vmax.f32 %v1153, 0.0
        %v1303 = vmax.f32 %v1157, 0.0
        %v1304 = vmax.f32 %v1159, 0.0
        %v1305 = vmax.f32 %v1163, 0.0
        %v1306 = vmax.f32 %v1165, 0.0
        %v1307 = vmax.f32 %v1169, 0.0
        %v1308 = vmax.f32 %v1171, 0.0
        %v1309 = vmax.f32 %v1175, 0.0
        %v1310 = vmax.f32 %v1177, 0.0
        %v1311 = vmax.f32 %v1181, 0.0
        %v1312 = vmax.f32 %v1183, 0.0
        %v1313 = vmax.f32 %v1187, 0.0
        %v1314 = vmax.f32 %v1189, 0.0
        %v1315 = vmax.f32 %v1193, 0.0
        %v1316 = vmax.f32 %v1195, 0.0
        %v1317 = vmax.f32 %v1199, 0.0
        %v1318 = vmax.f32 %v1201, 0.0
        %v1319 = vmax.f32 %v1205, 0.0
        %v1320 = vmax.f32 %v1207, 0.0
        %v1321 = vmax.f32 %v1211, 0.0
        %v1322 = vmax.f32 %v1213, 0.0
        %v1323 = vmax.f32 %v1217, 0.0
        %v1324 = vmax.f32 %v1219, 0.0
        %v1325 = vmax.f32 %v1223, 0.0
        %v1326 = vmax.f32 %v1225, 0.0
        %v1327 = vmax.f32 %v1229, 0.0
        %v1328 = vmax.f32 %v1231, 0.0
        %v1329 = vmax.f32 %v1235, 0.0
        %v1330 = vmax.f32 %v1237, 0.0
        %v1331 = vmax.f32 %v1241, 0.0
        %v1332 = vmax.f32 %v1243, 0.0
        %v1333 = vmax.f32 %v1247, 0.0
        %v1334 = vmax.f32 %v1249, 0.0
        %v1335 = vmax.f32 %v1253, 0.0
        %v1336 = vmax.f32 %v1255, 0.0
        %v1337 = vmax.f32 %v1259, 0.0
        %v1338 = vmax.f32 %v1261, 0.0
        %v1339 = vmax.f32 %v1265, 0.0
        %v1340 = vmax.f32 %v1267, 0.0
        %v1341 = vmax.f32 %v1271, 0.0
        %v1342 = vmax.f32 %v1273, 0.0
        %v1343 = vmax.f32 %v1277, 0.0
        %v1344 = vmax.f32 %v1279, 0.0
        %v1345 = vpack.c.bf16 %v1283, %v1281
        %v1346 = vpack.c.bf16 %v1284, %v1282
        %v1347 = vpack.c.bf16 %v1287, %v1285
        %v1348 = vpack.c.bf16 %v1288, %v1286
        %v1349 = vpack.c.bf16 %v1291, %v1289
        %v1350 = vpack.c.bf16 %v1292, %v1290
        %v1351 = vpack.c.bf16 %v1295, %v1293
        %v1352 = vpack.c.bf16 %v1296, %v1294
        %v1353 = vpack.c.bf16 %v1299, %v1297
        %v1354 = vpack.c.bf16 %v1300, %v1298
        %v1355 = vpack.c.bf16 %v1303, %v1301
        %v1356 = vpack.c.bf16 %v1304, %v1302
        %v1357 = vpack.c.bf16 %v1307, %v1305
        %v1358 = vpack.c.bf16 %v1308, %v1306
        %v1359 = vpack.c.bf16 %v1311, %v1309
        %v1360 = vpack.c.bf16 %v1312, %v1310
        %v1361 = vpack.c.bf16 %v1315, %v1313
        %v1362 = vpack.c.bf16 %v1316, %v1314
        %v1363 = vpack.c.bf16 %v1319, %v1317
        %v1364 = vpack.c.bf16 %v1320, %v1318
        %v1365 = vpack.c.bf16 %v1323, %v1321
        %v1366 = vpack.c.bf16 %v1324, %v1322
        %v1367 = vpack.c.bf16 %v1327, %v1325
        %v1368 = vpack.c.bf16 %v1328, %v1326
        %v1369 = vpack.c.bf16 %v1331, %v1329
        %v1370 = vpack.c.bf16 %v1332, %v1330
        %v1371 = vpack.c.bf16 %v1335, %v1333
        %v1372 = vpack.c.bf16 %v1336, %v1334
        %v1373 = vpack.c.bf16 %v1339, %v1337
        %v1374 = vpack.c.bf16 %v1340, %v1338
        %v1375 = vpack.c.bf16 %v1343, %v1341
        %v1376 = vpack.c.bf16 %v1344, %v1342
        %1393 = vrot.lane.b32.xlu0 %v1346, 29
        %v1394 = vpop.permute.xlu0 %1393
        %1395 = vrot.lane.b32.xlu0 %v1348, 29
        %v1396 = vpop.permute.xlu0 %1395
        %1397 = vrot.lane.b32.xlu0 %v1350, 29
        %v1398 = vpop.permute.xlu0 %1397
        %1399 = vrot.lane.b32.xlu0 %v1352, 29
        %v1400 = vpop.permute.xlu0 %1399
        %1401 = vrot.lane.b32.xlu0 %v1354, 29
        %v1402 = vpop.permute.xlu0 %1401
        %1403 = vrot.lane.b32.xlu0 %v1356, 29
        %v1404 = vpop.permute.xlu0 %1403
        %1405 = vrot.lane.b32.xlu0 %v1358, 29
        %v1406 = vpop.permute.xlu0 %1405
        %1407 = vrot.lane.b32.xlu0 %v1360, 29
        %v1408 = vpop.permute.xlu0 %1407
        %1409 = vrot.lane.b32.xlu0 %v1362, 29
        %v1410 = vpop.permute.xlu0 %1409
        %1411 = vrot.lane.b32.xlu0 %v1364, 29
        %v1412 = vpop.permute.xlu0 %1411
        %1413 = vrot.lane.b32.xlu0 %v1366, 29
        %v1414 = vpop.permute.xlu0 %1413
        %1415 = vrot.lane.b32.xlu0 %v1368, 29
        %v1416 = vpop.permute.xlu0 %1415
        %1417 = vrot.lane.b32.xlu0 %v1370, 29
        %v1418 = vpop.permute.xlu0 %1417
        %1419 = vrot.lane.b32.xlu0 %v1372, 29
        %v1420 = vpop.permute.xlu0 %1419
        %1421 = vrot.lane.b32.xlu0 %v1374, 29
        %v1422 = vpop.permute.xlu0 %1421
        %1423 = vrot.lane.b32.xlu0 %v1376, 29
        %v1424 = vpop.permute.xlu0 %1423
        %1441 = vrot.lane.b32.xlu0 %v1345, 29
        %v1442 = vpop.permute.xlu0 %1441
        %1443 = vrot.lane.b32.xlu0 %v1347, 29
        %v1444 = vpop.permute.xlu0 %1443
        %1445 = vrot.lane.b32.xlu0 %v1349, 29
        %v1446 = vpop.permute.xlu0 %1445
        %1447 = vrot.lane.b32.xlu0 %v1351, 29
        %v1448 = vpop.permute.xlu0 %1447
        %1449 = vrot.lane.b32.xlu0 %v1353, 29
        %v1450 = vpop.permute.xlu0 %1449
        %1451 = vrot.lane.b32.xlu0 %v1355, 29
        %v1452 = vpop.permute.xlu0 %1451
        %1453 = vrot.lane.b32.xlu0 %v1357, 29
        %v1454 = vpop.permute.xlu0 %1453
        %1455 = vrot.lane.b32.xlu0 %v1359, 29
        %v1456 = vpop.permute.xlu0 %1455
        %1457 = vrot.lane.b32.xlu0 %v1361, 29
        %v1458 = vpop.permute.xlu0 %1457
        %1459 = vrot.lane.b32.xlu0 %v1363, 29
        %v1460 = vpop.permute.xlu0 %1459
        %1461 = vrot.lane.b32.xlu0 %v1365, 29
        %v1462 = vpop.permute.xlu0 %1461
        %1463 = vrot.lane.b32.xlu0 %v1367, 29
        %v1464 = vpop.permute.xlu0 %1463
        %1465 = vrot.lane.b32.xlu0 %v1369, 29
        %v1466 = vpop.permute.xlu0 %1465
        %1467 = vrot.lane.b32.xlu0 %v1371, 29
        %v1468 = vpop.permute.xlu0 %1467
        %1469 = vrot.lane.b32.xlu0 %v1373, 29
        %v1470 = vpop.permute.xlu0 %1469
        %1471 = vrot.lane.b32.xlu0 %v1375, 29
        %v1472 = vpop.permute.xlu0 %1471
        %vm1473 = vcmask 236544
        %v1474 = vsel %vm1473, %v1442, %v1394
        %v1475 = vsel %vm1473, %v1444, %v1396
        %v1476 = vsel %vm1473, %v1446, %v1398
        %v1477 = vsel %vm1473, %v1448, %v1400
        %v1478 = vsel %vm1473, %v1450, %v1402
        %v1479 = vsel %vm1473, %v1452, %v1404
        %v1480 = vsel %vm1473, %v1454, %v1406
        %v1481 = vsel %vm1473, %v1456, %v1408
        %v1482 = vsel %vm1473, %v1458, %v1410
        %v1483 = vsel %vm1473, %v1460, %v1412
        %v1484 = vsel %vm1473, %v1462, %v1414
        %v1485 = vsel %vm1473, %v1464, %v1416
        %v1486 = vsel %vm1473, %v1466, %v1418
        %v1487 = vsel %vm1473, %v1468, %v1420
        %v1488 = vsel %vm1473, %v1470, %v1422
        %v1489 = vsel %vm1473, %v1472, %v1424
        %v1508 = vsel %vm391, %v1394, %v1442
        %v1512 = vsel %vm391, %v1396, %v1444
        %v1516 = vsel %vm391, %v1398, %v1446
        %v1520 = vsel %vm391, %v1400, %v1448
        %v1524 = vsel %vm391, %v1402, %v1450
        %v1528 = vsel %vm391, %v1404, %v1452
        %v1532 = vsel %vm391, %v1406, %v1454
        %v1536 = vsel %vm391, %v1408, %v1456
        %v1540 = vsel %vm391, %v1410, %v1458
        %v1544 = vsel %vm391, %v1412, %v1460
        %v1548 = vsel %vm391, %v1414, %v1462
        %v1552 = vsel %vm391, %v1416, %v1464
        %v1556 = vsel %vm391, %v1418, %v1466
        %v1560 = vsel %vm391, %v1420, %v1468
        %v1564 = vsel %vm391, %v1422, %v1470
        %v1568 = vsel %vm391, %v1424, %v1472
        %v1571 = vpack.i.b16 %v372, %v372
        %v1573 = vlaneseq
        %v1574 = vshrl.u32 %v1573, 7
        %v1575 = vsub.s32 0, %v1574
        %v1576 = vrot.slane %v1571, %v1575
        %v1578 = vpack.i.b16 %v373, %v373
        %v1580 = vlaneseq
        %v1581 = vshrl.u32 %v1580, 7
        %v1582 = vsub.s32 0, %v1581
        %v1583 = vrot.slane %v1578, %v1582
        %v1584 = vmul.bf16 %v1508, %v1576
        %v1585 = vmul.bf16 %v1474, %v1583
        %v1586 = vmul.bf16 %v1512, %v1576
        %v1587 = vmul.bf16 %v1475, %v1583
        %v1588 = vmul.bf16 %v1516, %v1576
        %v1589 = vmul.bf16 %v1476, %v1583
        %v1590 = vmul.bf16 %v1520, %v1576
        %v1591 = vmul.bf16 %v1477, %v1583
        %v1592 = vmul.bf16 %v1524, %v1576
        %v1593 = vmul.bf16 %v1478, %v1583
        %v1594 = vmul.bf16 %v1528, %v1576
        %v1595 = vmul.bf16 %v1479, %v1583
        %v1596 = vmul.bf16 %v1532, %v1576
        %v1597 = vmul.bf16 %v1480, %v1583
        %v1598 = vmul.bf16 %v1536, %v1576
        %v1599 = vmul.bf16 %v1481, %v1583
        %v1600 = vmul.bf16 %v1540, %v1576
        %v1601 = vmul.bf16 %v1482, %v1583
        %v1602 = vmul.bf16 %v1544, %v1576
        %v1603 = vmul.bf16 %v1483, %v1583
        %v1604 = vmul.bf16 %v1548, %v1576
        %v1605 = vmul.bf16 %v1484, %v1583
        %v1606 = vmul.bf16 %v1552, %v1576
        %v1607 = vmul.bf16 %v1485, %v1583
        %v1608 = vmul.bf16 %v1556, %v1576
        %v1609 = vmul.bf16 %v1486, %v1583
        %v1610 = vmul.bf16 %v1560, %v1576
        %v1611 = vmul.bf16 %v1487, %v1583
        %v1612 = vmul.bf16 %v1564, %v1576
        %v1613 = vmul.bf16 %v1488, %v1583
        %v1614 = vmul.bf16 %v1568, %v1576
        %v1615 = vmul.bf16 %v1489, %v1583
        %1616 = vst [vmem:[#allocation3] sm:$0xff] %v1584
        %1617 = vst [vmem:[#allocation3 + $0x8] sm:$0xff] %v1585
        %1618 = vst [vmem:[#allocation3 + $0x10] sm:$0xff] %v1586
        %1619 = vst [vmem:[#allocation3 + $0x18] sm:$0xff] %v1587
        %1620 = vst [vmem:[#allocation3 + $0x20] sm:$0xff] %v1588
        %1621 = vst [vmem:[#allocation3 + $0x28] sm:$0xff] %v1589
        %1622 = vst [vmem:[#allocation3 + $0x30] sm:$0xff] %v1590
        %1623 = vst [vmem:[#allocation3 + $0x38] sm:$0xff] %v1591
        %1624 = vst [vmem:[#allocation3 + $0x40] sm:$0xff] %v1592
        %1625 = vst [vmem:[#allocation3 + $0x48] sm:$0xff] %v1593
        %1626 = vst [vmem:[#allocation3 + $0x50] sm:$0xff] %v1594
        %1627 = vst [vmem:[#allocation3 + $0x58] sm:$0xff] %v1595
        %1628 = vst [vmem:[#allocation3 + $0x60] sm:$0xff] %v1596
        %1629 = vst [vmem:[#allocation3 + $0x68] sm:$0xff] %v1597
        %1630 = vst [vmem:[#allocation3 + $0x70] sm:$0xff] %v1598
        %1631 = vst [vmem:[#allocation3 + $0x78] sm:$0xff] %v1599
        %1632 = vst [vmem:[#allocation3 + $0x80] sm:$0xff] %v1600
        %1633 = vst [vmem:[#allocation3 + $0x88] sm:$0xff] %v1601
        %1634 = vst [vmem:[#allocation3 + $0x90] sm:$0xff] %v1602
        %1635 = vst [vmem:[#allocation3 + $0x98] sm:$0xff] %v1603
        %1636 = vst [vmem:[#allocation3 + $0xa0] sm:$0xff] %v1604
        %1637 = vst [vmem:[#allocation3 + $0xa8] sm:$0xff] %v1605
        %1638 = vst [vmem:[#allocation3 + $0xb0] sm:$0xff] %v1606
        %1639 = vst [vmem:[#allocation3 + $0xb8] sm:$0xff] %v1607
        %1640 = vst [vmem:[#allocation3 + $0xc0] sm:$0xff] %v1608
        %1641 = vst [vmem:[#allocation3 + $0xc8] sm:$0xff] %v1609
        %1642 = vst [vmem:[#allocation3 + $0xd0] sm:$0xff] %v1610
        %1643 = vst [vmem:[#allocation3 + $0xd8] sm:$0xff] %v1611
        %1644 = vst [vmem:[#allocation3 + $0xe0] sm:$0xff] %v1612
        %1645 = vst [vmem:[#allocation3 + $0xe8] sm:$0xff] %v1613
        %1646 = vst [vmem:[#allocation3 + $0xf0] sm:$0xff] %v1614
        %1647 = vst [vmem:[#allocation3 + $0xf8] sm:$0xff] %v1615
        %1648 = vrot.lane.b32.xlu0 %v1346, 28
        %v1649 = vpop.permute.xlu0 %1648
        %1650 = vrot.lane.b32.xlu0 %v1348, 28
        %v1651 = vpop.permute.xlu0 %1650
        %1652 = vrot.lane.b32.xlu0 %v1350, 28
        %v1653 = vpop.permute.xlu0 %1652
        %1654 = vrot.lane.b32.xlu0 %v1352, 28
        %v1655 = vpop.permute.xlu0 %1654
        %1656 = vrot.lane.b32.xlu0 %v1354, 28
        %v1657 = vpop.permute.xlu0 %1656
        %1658 = vrot.lane.b32.xlu0 %v1356, 28
        %v1659 = vpop.permute.xlu0 %1658
        %1660 = vrot.lane.b32.xlu0 %v1358, 28
        %v1661 = vpop.permute.xlu0 %1660
        %1662 = vrot.lane.b32.xlu0 %v1360, 28
        %v1663 = vpop.permute.xlu0 %1662
        %1664 = vrot.lane.b32.xlu0 %v1362, 28
        %v1665 = vpop.permute.xlu0 %1664
        %1666 = vrot.lane.b32.xlu0 %v1364, 28
        %v1667 = vpop.permute.xlu0 %1666
        %1668 = vrot.lane.b32.xlu0 %v1366, 28
        %v1669 = vpop.permute.xlu0 %1668
        %1670 = vrot.lane.b32.xlu0 %v1368, 28
        %v1671 = vpop.permute.xlu0 %1670
        %1672 = vrot.lane.b32.xlu0 %v1370, 28
        %v1673 = vpop.permute.xlu0 %1672
        %1674 = vrot.lane.b32.xlu0 %v1372, 28
        %v1675 = vpop.permute.xlu0 %1674
        %1676 = vrot.lane.b32.xlu0 %v1374, 28
        %v1677 = vpop.permute.xlu0 %1676
        %1678 = vrot.lane.b32.xlu0 %v1376, 28
        %v1679 = vpop.permute.xlu0 %1678
        %1680 = vrot.lane.b32.xlu0 %v1345, 28
        %v1681 = vpop.permute.xlu0 %1680
        %1682 = vrot.lane.b32.xlu0 %v1347, 28
        %v1683 = vpop.permute.xlu0 %1682
        %1684 = vrot.lane.b32.xlu0 %v1349, 28
        %v1685 = vpop.permute.xlu0 %1684
        %1686 = vrot.lane.b32.xlu0 %v1351, 28
        %v1687 = vpop.permute.xlu0 %1686
        %1688 = vrot.lane.b32.xlu0 %v1353, 28
        %v1689 = vpop.permute.xlu0 %1688
        %1690 = vrot.lane.b32.xlu0 %v1355, 28
        %v1691 = vpop.permute.xlu0 %1690
        %1692 = vrot.lane.b32.xlu0 %v1357, 28
        %v1693 = vpop.permute.xlu0 %1692
        %1694 = vrot.lane.b32.xlu0 %v1359, 28
        %v1695 = vpop.permute.xlu0 %1694
        %1696 = vrot.lane.b32.xlu0 %v1361, 28
        %v1697 = vpop.permute.xlu0 %1696
        %1698 = vrot.lane.b32.xlu0 %v1363, 28
        %v1699 = vpop.permute.xlu0 %1698
        %1700 = vrot.lane.b32.xlu0 %v1365, 28
        %v1701 = vpop.permute.xlu0 %1700
        %1702 = vrot.lane.b32.xlu0 %v1367, 28
        %v1703 = vpop.permute.xlu0 %1702
        %1704 = vrot.lane.b32.xlu0 %v1369, 28
        %v1705 = vpop.permute.xlu0 %1704
        %1706 = vrot.lane.b32.xlu0 %v1371, 28
        %v1707 = vpop.permute.xlu0 %1706
        %1708 = vrot.lane.b32.xlu0 %v1373, 28
        %v1709 = vpop.permute.xlu0 %1708
        %1710 = vrot.lane.b32.xlu0 %v1375, 28
        %v1711 = vpop.permute.xlu0 %1710
        %vm1712 = vcmask 228352
        %v1713 = vsel %vm1712, %v1681, %v1649
        %v1714 = vsel %vm1712, %v1683, %v1651
        %v1715 = vsel %vm1712, %v1685, %v1653
        %v1716 = vsel %vm1712, %v1687, %v1655
        %v1717 = vsel %vm1712, %v1689, %v1657
        %v1718 = vsel %vm1712, %v1691, %v1659
        %v1719 = vsel %vm1712, %v1693, %v1661
        %v1720 = vsel %vm1712, %v1695, %v1663
        %v1721 = vsel %vm1712, %v1697, %v1665
        %v1722 = vsel %vm1712, %v1699, %v1667
        %v1723 = vsel %vm1712, %v1701, %v1669
        %v1724 = vsel %vm1712, %v1703, %v1671
        %v1725 = vsel %vm1712, %v1705, %v1673
        %v1726 = vsel %vm1712, %v1707, %v1675
        %v1727 = vsel %vm1712, %v1709, %v1677
        %v1728 = vsel %vm1712, %v1711, %v1679
        %v1747 = vsel %vm427, %v1649, %v1681
        %v1751 = vsel %vm427, %v1651, %v1683
        %v1755 = vsel %vm427, %v1653, %v1685
        %v1759 = vsel %vm427, %v1655, %v1687
        %v1763 = vsel %vm427, %v1657, %v1689
        %v1767 = vsel %vm427, %v1659, %v1691
        %v1771 = vsel %vm427, %v1661, %v1693
        %v1775 = vsel %vm427, %v1663, %v1695
        %v1779 = vsel %vm427, %v1665, %v1697
        %v1783 = vsel %vm427, %v1667, %v1699
        %v1787 = vsel %vm427, %v1669, %v1701
        %v1791 = vsel %vm427, %v1671, %v1703
        %v1795 = vsel %vm427, %v1673, %v1705
        %v1799 = vsel %vm427, %v1675, %v1707
        %v1803 = vsel %vm427, %v1677, %v1709
        %v1807 = vsel %vm427, %v1679, %v1711
        %v1809 = vshrl.u32 %v372, 16
        %v1810 = vpack.i.b16 %v1809, %v1809
        %v1812 = vlaneseq
        %v1813 = vshrl.u32 %v1812, 7
        %v1814 = vsub.s32 0, %v1813
        %v1815 = vrot.slane %v1810, %v1814
        %v1816 = vshrl.u32 %v373, 16
        %v1817 = vpack.i.b16 %v1816, %v1816
        %v1819 = vlaneseq
        %v1820 = vshrl.u32 %v1819, 7
        %v1821 = vsub.s32 0, %v1820
        %v1822 = vrot.slane %v1817, %v1821
        %v1823 = vmul.bf16 %v1747, %v1815
        %v1824 = vmul.bf16 %v1713, %v1822
        %v1825 = vmul.bf16 %v1751, %v1815
        %v1826 = vmul.bf16 %v1714, %v1822
        %v1827 = vmul.bf16 %v1755, %v1815
        %v1828 = vmul.bf16 %v1715, %v1822
        %v1829 = vmul.bf16 %v1759, %v1815
        %v1830 = vmul.bf16 %v1716, %v1822
        %v1831 = vmul.bf16 %v1763, %v1815
        %v1832 = vmul.bf16 %v1717, %v1822
        %v1833 = vmul.bf16 %v1767, %v1815
        %v1834 = vmul.bf16 %v1718, %v1822
        %v1835 = vmul.bf16 %v1771, %v1815
        %v1836 = vmul.bf16 %v1719, %v1822
        %v1837 = vmul.bf16 %v1775, %v1815
        %v1838 = vmul.bf16 %v1720, %v1822
        %v1839 = vmul.bf16 %v1779, %v1815
        %v1840 = vmul.bf16 %v1721, %v1822
        %v1841 = vmul.bf16 %v1783, %v1815
        %v1842 = vmul.bf16 %v1722, %v1822
        %v1843 = vmul.bf16 %v1787, %v1815
        %v1844 = vmul.bf16 %v1723, %v1822
        %v1845 = vmul.bf16 %v1791, %v1815
        %v1846 = vmul.bf16 %v1724, %v1822
        %v1847 = vmul.bf16 %v1795, %v1815
        %v1848 = vmul.bf16 %v1725, %v1822
        %v1849 = vmul.bf16 %v1799, %v1815
        %v1850 = vmul.bf16 %v1726, %v1822
        %v1851 = vmul.bf16 %v1803, %v1815
        %v1852 = vmul.bf16 %v1727, %v1822
        %v1853 = vmul.bf16 %v1807, %v1815
        %v1854 = vmul.bf16 %v1728, %v1822
        %1855 = vst [vmem:[#allocation3 + $0x100] sm:$0xff] %v1823
        %1856 = vst [vmem:[#allocation3 + $0x108] sm:$0xff] %v1824
        %1857 = vst [vmem:[#allocation3 + $0x110] sm:$0xff] %v1825
        %1858 = vst [vmem:[#allocation3 + $0x118] sm:$0xff] %v1826
        %1859 = vst [vmem:[#allocation3 + $0x120] sm:$0xff] %v1827
        %1860 = vst [vmem:[#allocation3 + $0x128] sm:$0xff] %v1828
        %1861 = vst [vmem:[#allocation3 + $0x130] sm:$0xff] %v1829
        %1862 = vst [vmem:[#allocation3 + $0x138] sm:$0xff] %v1830
        %1863 = vst [vmem:[#allocation3 + $0x140] sm:$0xff] %v1831
        %1864 = vst [vmem:[#allocation3 + $0x148] sm:$0xff] %v1832
        %1865 = vst [vmem:[#allocation3 + $0x150] sm:$0xff] %v1833
        %1866 = vst [vmem:[#allocation3 + $0x158] sm:$0xff] %v1834
        %1867 = vst [vmem:[#allocation3 + $0x160] sm:$0xff] %v1835
        %1868 = vst [vmem:[#allocation3 + $0x168] sm:$0xff] %v1836
        %1869 = vst [vmem:[#allocation3 + $0x170] sm:$0xff] %v1837
        %1870 = vst [vmem:[#allocation3 + $0x178] sm:$0xff] %v1838
        %1871 = vst [vmem:[#allocation3 + $0x180] sm:$0xff] %v1839
        %1872 = vst [vmem:[#allocation3 + $0x188] sm:$0xff] %v1840
        %1873 = vst [vmem:[#allocation3 + $0x190] sm:$0xff] %v1841
        %1874 = vst [vmem:[#allocation3 + $0x198] sm:$0xff] %v1842
        %1875 = vst [vmem:[#allocation3 + $0x1a0] sm:$0xff] %v1843
        %1876 = vst [vmem:[#allocation3 + $0x1a8] sm:$0xff] %v1844
        %1877 = vst [vmem:[#allocation3 + $0x1b0] sm:$0xff] %v1845
        %1878 = vst [vmem:[#allocation3 + $0x1b8] sm:$0xff] %v1846
        %1879 = vst [vmem:[#allocation3 + $0x1c0] sm:$0xff] %v1847
        %1880 = vst [vmem:[#allocation3 + $0x1c8] sm:$0xff] %v1848
        %1881 = vst [vmem:[#allocation3 + $0x1d0] sm:$0xff] %v1849
        %1882 = vst [vmem:[#allocation3 + $0x1d8] sm:$0xff] %v1850
        %1883 = vst [vmem:[#allocation3 + $0x1e0] sm:$0xff] %v1851
        %1884 = vst [vmem:[#allocation3 + $0x1e8] sm:$0xff] %v1852
        %1885 = vst [vmem:[#allocation3 + $0x1f0] sm:$0xff] %v1853
        %1886 = vst [vmem:[#allocation3 + $0x1f8] sm:$0xff] %v1854
        %1887 = vrot.lane.b32.xlu0 %v1346, 27
        %v1888 = vpop.permute.xlu0 %1887
        %1889 = vrot.lane.b32.xlu0 %v1348, 27
        %v1890 = vpop.permute.xlu0 %1889
        %1891 = vrot.lane.b32.xlu0 %v1350, 27
        %v1892 = vpop.permute.xlu0 %1891
        %1893 = vrot.lane.b32.xlu0 %v1352, 27
        %v1894 = vpop.permute.xlu0 %1893
        %1895 = vrot.lane.b32.xlu0 %v1354, 27
        %v1896 = vpop.permute.xlu0 %1895
        %1897 = vrot.lane.b32.xlu0 %v1356, 27
        %v1898 = vpop.permute.xlu0 %1897
        %1899 = vrot.lane.b32.xlu0 %v1358, 27
        %v1900 = vpop.permute.xlu0 %1899
        %1901 = vrot.lane.b32.xlu0 %v1360, 27
        %v1902 = vpop.permute.xlu0 %1901
        %1903 = vrot.lane.b32.xlu0 %v1362, 27
        %v1904 = vpop.permute.xlu0 %1903
        %1905 = vrot.lane.b32.xlu0 %v1364, 27
        %v1906 = vpop.permute.xlu0 %1905
        %1907 = vrot.lane.b32.xlu0 %v1366, 27
        %v1908 = vpop.permute.xlu0 %1907
        %1909 = vrot.lane.b32.xlu0 %v1368, 27
        %v1910 = vpop.permute.xlu0 %1909
        %1911 = vrot.lane.b32.xlu0 %v1370, 27
        %v1912 = vpop.permute.xlu0 %1911
        %1913 = vrot.lane.b32.xlu0 %v1372, 27
        %v1914 = vpop.permute.xlu0 %1913
        %1915 = vrot.lane.b32.xlu0 %v1374, 27
        %v1916 = vpop.permute.xlu0 %1915
        %1917 = vrot.lane.b32.xlu0 %v1376, 27
        %v1918 = vpop.permute.xlu0 %1917
        %1919 = vrot.lane.b32.xlu0 %v1345, 27
        %v1920 = vpop.permute.xlu0 %1919
        %1921 = vrot.lane.b32.xlu0 %v1347, 27
        %v1922 = vpop.permute.xlu0 %1921
        %1923 = vrot.lane.b32.xlu0 %v1349, 27
        %v1924 = vpop.permute.xlu0 %1923
        %1925 = vrot.lane.b32.xlu0 %v1351, 27
        %v1926 = vpop.permute.xlu0 %1925
        %1927 = vrot.lane.b32.xlu0 %v1353, 27
        %v1928 = vpop.permute.xlu0 %1927
        %1929 = vrot.lane.b32.xlu0 %v1355, 27
        %v1930 = vpop.permute.xlu0 %1929
        %1931 = vrot.lane.b32.xlu0 %v1357, 27
        %v1932 = vpop.permute.xlu0 %1931
        %1933 = vrot.lane.b32.xlu0 %v1359, 27
        %v1934 = vpop.permute.xlu0 %1933
        %1935 = vrot.lane.b32.xlu0 %v1361, 27
        %v1936 = vpop.permute.xlu0 %1935
        %1937 = vrot.lane.b32.xlu0 %v1363, 27
        %v1938 = vpop.permute.xlu0 %1937
        %1939 = vrot.lane.b32.xlu0 %v1365, 27
        %v1940 = vpop.permute.xlu0 %1939
        %1941 = vrot.lane.b32.xlu0 %v1367, 27
        %v1942 = vpop.permute.xlu0 %1941
        %1943 = vrot.lane.b32.xlu0 %v1369, 27
        %v1944 = vpop.permute.xlu0 %1943
        %1945 = vrot.lane.b32.xlu0 %v1371, 27
        %v1946 = vpop.permute.xlu0 %1945
        %1947 = vrot.lane.b32.xlu0 %v1373, 27
        %v1948 = vpop.permute.xlu0 %1947
        %1949 = vrot.lane.b32.xlu0 %v1375, 27
        %v1950 = vpop.permute.xlu0 %1949
        %vm1951 = vcmask 220160
        %v1952 = vsel %vm1951, %v1920, %v1888
        %v1953 = vsel %vm1951, %v1922, %v1890
        %v1954 = vsel %vm1951, %v1924, %v1892
        %v1955 = vsel %vm1951, %v1926, %v1894
        %v1956 = vsel %vm1951, %v1928, %v1896
        %v1957 = vsel %vm1951, %v1930, %v1898
        %v1958 = vsel %vm1951, %v1932, %v1900
        %v1959 = vsel %vm1951, %v1934, %v1902
        %v1960 = vsel %vm1951, %v1936, %v1904
        %v1961 = vsel %vm1951, %v1938, %v1906
        %v1962 = vsel %vm1951, %v1940, %v1908
        %v1963 = vsel %vm1951, %v1942, %v1910
        %v1964 = vsel %vm1951, %v1944, %v1912
        %v1965 = vsel %vm1951, %v1946, %v1914
        %v1966 = vsel %vm1951, %v1948, %v1916
        %v1967 = vsel %vm1951, %v1950, %v1918
        %v1986 = vsel %vm466, %v1888, %v1920
        %v1990 = vsel %vm466, %v1890, %v1922
        %v1994 = vsel %vm466, %v1892, %v1924
        %v1998 = vsel %vm466, %v1894, %v1926
        %v2002 = vsel %vm466, %v1896, %v1928
        %v2006 = vsel %vm466, %v1898, %v1930
        %v2010 = vsel %vm466, %v1900, %v1932
        %v2014 = vsel %vm466, %v1902, %v1934
        %v2018 = vsel %vm466, %v1904, %v1936
        %v2022 = vsel %vm466, %v1906, %v1938
        %v2026 = vsel %vm466, %v1908, %v1940
        %v2030 = vsel %vm466, %v1910, %v1942
        %v2034 = vsel %vm466, %v1912, %v1944
        %v2038 = vsel %vm466, %v1914, %v1946
        %v2042 = vsel %vm466, %v1916, %v1948
        %v2046 = vsel %vm466, %v1918, %v1950
        %v2048 = vlaneseq
        %v2049 = vshrl.u32 %v2048, 7
        %v2050 = vsub.s32 1, %v2049
        %v2051 = vrot.slane %v1571, %v2050
        %v2052 = vlaneseq
        %v2053 = vshrl.u32 %v2052, 7
        %v2054 = vsub.s32 1, %v2053
        %v2055 = vrot.slane %v1578, %v2054
        %v2056 = vmul.bf16 %v1986, %v2051
        %v2057 = vmul.bf16 %v1952, %v2055
        %v2058 = vmul.bf16 %v1990, %v2051
        %v2059 = vmul.bf16 %v1953, %v2055
        %v2060 = vmul.bf16 %v1994, %v2051
        %v2061 = vmul.bf16 %v1954, %v2055
        %v2062 = vmul.bf16 %v1998, %v2051
        %v2063 = vmul.bf16 %v1955, %v2055
        %v2064 = vmul.bf16 %v2002, %v2051
        %v2065 = vmul.bf16 %v1956, %v2055
        %v2066 = vmul.bf16 %v2006, %v2051
        %v2067 = vmul.bf16 %v1957, %v2055
        %v2068 = vmul.bf16 %v2010, %v2051
        %v2069 = vmul.bf16 %v1958, %v2055
        %v2070 = vmul.bf16 %v2014, %v2051
        %v2071 = vmul.bf16 %v1959, %v2055
        %v2072 = vmul.bf16 %v2018, %v2051
        %v2073 = vmul.bf16 %v1960, %v2055
        %v2074 = vmul.bf16 %v2022, %v2051
        %v2075 = vmul.bf16 %v1961, %v2055
        %v2076 = vmul.bf16 %v2026, %v2051
        %v2077 = vmul.bf16 %v1962, %v2055
        %v2078 = vmul.bf16 %v2030, %v2051
        %v2079 = vmul.bf16 %v1963, %v2055
        %v2080 = vmul.bf16 %v2034, %v2051
        %v2081 = vmul.bf16 %v1964, %v2055
        %v2082 = vmul.bf16 %v2038, %v2051
        %v2083 = vmul.bf16 %v1965, %v2055
        %v2084 = vmul.bf16 %v2042, %v2051
        %v2085 = vmul.bf16 %v1966, %v2055
        %v2086 = vmul.bf16 %v2046, %v2051
        %v2087 = vmul.bf16 %v1967, %v2055
        %2088 = vst [vmem:[#allocation3 + $0x200] sm:$0xff] %v2056
        %2089 = vst [vmem:[#allocation3 + $0x208] sm:$0xff] %v2057
        %2090 = vst [vmem:[#allocation3 + $0x210] sm:$0xff] %v2058
        %2091 = vst [vmem:[#allocation3 + $0x218] sm:$0xff] %v2059
        %2092 = vst [vmem:[#allocation3 + $0x220] sm:$0xff] %v2060
        %2093 = vst [vmem:[#allocation3 + $0x228] sm:$0xff] %v2061
        %2094 = vst [vmem:[#allocation3 + $0x230] sm:$0xff] %v2062
        %2095 = vst [vmem:[#allocation3 + $0x238] sm:$0xff] %v2063
        %2096 = vst [vmem:[#allocation3 + $0x240] sm:$0xff] %v2064
        %2097 = vst [vmem:[#allocation3 + $0x248] sm:$0xff] %v2065
        %2098 = vst [vmem:[#allocation3 + $0x250] sm:$0xff] %v2066
        %2099 = vst [vmem:[#allocation3 + $0x258] sm:$0xff] %v2067
        %2100 = vst [vmem:[#allocation3 + $0x260] sm:$0xff] %v2068
        %2101 = vst [vmem:[#allocation3 + $0x268] sm:$0xff] %v2069
        %2102 = vst [vmem:[#allocation3 + $0x270] sm:$0xff] %v2070
        %2103 = vst [vmem:[#allocation3 + $0x278] sm:$0xff] %v2071
        %2104 = vst [vmem:[#allocation3 + $0x280] sm:$0xff] %v2072
        %2105 = vst [vmem:[#allocation3 + $0x288] sm:$0xff] %v2073
        %2106 = vst [vmem:[#allocation3 + $0x290] sm:$0xff] %v2074
        %2107 = vst [vmem:[#allocation3 + $0x298] sm:$0xff] %v2075
        %2108 = vst [vmem:[#allocation3 + $0x2a0] sm:$0xff] %v2076
        %2109 = vst [vmem:[#allocation3 + $0x2a8] sm:$0xff] %v2077
        %2110 = vst [vmem:[#allocation3 + $0x2b0] sm:$0xff] %v2078
        %2111 = vst [vmem:[#allocation3 + $0x2b8] sm:$0xff] %v2079
        %2112 = vst [vmem:[#allocation3 + $0x2c0] sm:$0xff] %v2080
        %2113 = vst [vmem:[#allocation3 + $0x2c8] sm:$0xff] %v2081
        %2114 = vst [vmem:[#allocation3 + $0x2d0] sm:$0xff] %v2082
        %2115 = vst [vmem:[#allocation3 + $0x2d8] sm:$0xff] %v2083
        %2116 = vst [vmem:[#allocation3 + $0x2e0] sm:$0xff] %v2084
        %2117 = vst [vmem:[#allocation3 + $0x2e8] sm:$0xff] %v2085
        %2118 = vst [vmem:[#allocation3 + $0x2f0] sm:$0xff] %v2086
        %2119 = vst [vmem:[#allocation3 + $0x2f8] sm:$0xff] %v2087
        %v2120 = vld [vmem:[#allocation10] sm:$0xff]
        %v2121 = vld [vmem:[#allocation10 + $0x8] sm:$0xff]
        %v2122 = vld [vmem:[#allocation10 + $0x10] sm:$0xff]
        %v2123 = vld [vmem:[#allocation10 + $0x48] sm:$0xff]
        %v2124 = vld [vmem:[#allocation10 + $0x50] sm:$0xff]
        %v2125 = vld [vmem:[#allocation10 + $0x58] sm:$0xff]
        %v2126 = vld [vmem:[#allocation10 + $0x90] sm:$0xff]
        %v2127 = vld [vmem:[#allocation10 + $0x98] sm:$0xff]
        %v2128 = vld [vmem:[#allocation10 + $0xa0] sm:$0xff]
        %v2129 = vld [vmem:[#allocation10 + $0xd8] sm:$0xff]
        %v2130 = vld [vmem:[#allocation10 + $0xe0] sm:$0xff]
        %v2131 = vld [vmem:[#allocation10 + $0xe8] sm:$0xff]
        %v2132 = vld [vmem:[#allocation10 + $0x120] sm:$0xff]
        %v2133 = vld [vmem:[#allocation10 + $0x128] sm:$0xff]
        %v2134 = vld [vmem:[#allocation10 + $0x130] sm:$0xff]
        %v2135 = vld [vmem:[#allocation10 + $0x168] sm:$0xff]
        %v2136 = vld [vmem:[#allocation10 + $0x170] sm:$0xff]
        %v2137 = vld [vmem:[#allocation10 + $0x178] sm:$0xff]
        %v2138 = vld [vmem:[#allocation10 + $0x1b0] sm:$0xff]
        %v2139 = vld [vmem:[#allocation10 + $0x1b8] sm:$0xff]
        %v2140 = vld [vmem:[#allocation10 + $0x1c0] sm:$0xff]
        %v2141 = vld [vmem:[#allocation10 + $0x1f8] sm:$0xff]
        %v2142 = vld [vmem:[#allocation10 + $0x200] sm:$0xff]
        %v2143 = vld [vmem:[#allocation10 + $0x208] sm:$0xff]
        %v2144 = vld [vmem:[#allocation10 + $0x240] sm:$0xff]
        %v2145 = vld [vmem:[#allocation10 + $0x248] sm:$0xff]
        %v2146 = vld [vmem:[#allocation10 + $0x250] sm:$0xff]
        %v2147 = vld [vmem:[#allocation10 + $0x288] sm:$0xff]
        %v2148 = vld [vmem:[#allocation10 + $0x290] sm:$0xff]
        %v2149 = vld [vmem:[#allocation10 + $0x298] sm:$0xff]
        %v2150 = vld [vmem:[#allocation10 + $0x2d0] sm:$0xff]
        %v2151 = vld [vmem:[#allocation10 + $0x2d8] sm:$0xff]
        %v2152 = vld [vmem:[#allocation10 + $0x2e0] sm:$0xff]
        %v2153 = vld [vmem:[#allocation10 + $0x318] sm:$0xff]
        %v2154 = vld [vmem:[#allocation10 + $0x320] sm:$0xff]
        %v2155 = vld [vmem:[#allocation10 + $0x328] sm:$0xff]
        %v2156 = vld [vmem:[#allocation10 + $0x360] sm:$0xff]
        %v2157 = vld [vmem:[#allocation10 + $0x368] sm:$0xff]
        %v2158 = vld [vmem:[#allocation10 + $0x370] sm:$0xff]
        %v2159 = vld [vmem:[#allocation10 + $0x3a8] sm:$0xff]
        %v2160 = vld [vmem:[#allocation10 + $0x3b0] sm:$0xff]
        %v2161 = vld [vmem:[#allocation10 + $0x3b8] sm:$0xff]
        %v2162 = vld [vmem:[#allocation10 + $0x3f0] sm:$0xff]
        %v2163 = vld [vmem:[#allocation10 + $0x3f8] sm:$0xff]
        %v2164 = vld [vmem:[#allocation10 + $0x400] sm:$0xff]
        %v2165 = vld [vmem:[#allocation10 + $0x438] sm:$0xff]
        %v2166 = vld [vmem:[#allocation10 + $0x440] sm:$0xff]
        %v2167 = vld [vmem:[#allocation10 + $0x448] sm:$0xff]
        %v2168 = vld [vmem:[#allocation10 + $0x480] sm:$0xff]
        %v2169 = vld [vmem:[#allocation10 + $0x488] sm:$0xff]
        %v2170 = vld [vmem:[#allocation10 + $0x490] sm:$0xff]
        %v2171 = vld [vmem:[#allocation10 + $0x4c8] sm:$0xff]
        %v2172 = vld [vmem:[#allocation10 + $0x4d0] sm:$0xff]
        %v2173 = vld [vmem:[#allocation10 + $0x4d8] sm:$0xff]
        %v2174 = vld [vmem:[#allocation10 + $0x510] sm:$0xff]
        %v2175 = vld [vmem:[#allocation10 + $0x518] sm:$0xff]
        %v2176 = vld [vmem:[#allocation10 + $0x520] sm:$0xff]
        %v2177 = vld [vmem:[#allocation10 + $0x558] sm:$0xff]
        %v2178 = vld [vmem:[#allocation10 + $0x560] sm:$0xff]
        %v2179 = vld [vmem:[#allocation10 + $0x568] sm:$0xff]
        %v2180 = vld [vmem:[#allocation10 + $0x5a0] sm:$0xff]
        %v2181 = vld [vmem:[#allocation10 + $0x5a8] sm:$0xff]
        %v2182 = vld [vmem:[#allocation10 + $0x5b0] sm:$0xff]
        %v2183 = vld [vmem:[#allocation10 + $0x5e8] sm:$0xff]
        %v2184 = vld [vmem:[#allocation10 + $0x5f0] sm:$0xff]
        %v2185 = vld [vmem:[#allocation10 + $0x5f8] sm:$0xff]
        %v2186 = vld [vmem:[#allocation10 + $0x630] sm:$0xff]
        %v2187 = vld [vmem:[#allocation10 + $0x638] sm:$0xff]
        %v2188 = vld [vmem:[#allocation10 + $0x640] sm:$0xff]
        %v2189 = vld [vmem:[#allocation10 + $0x678] sm:$0xff]
        %v2190 = vld [vmem:[#allocation10 + $0x680] sm:$0xff]
        %v2191 = vld [vmem:[#allocation10 + $0x688] sm:$0xff]
        %v2192 = vld [vmem:[#allocation10 + $0x6c0] sm:$0xff]
        %v2193 = vld [vmem:[#allocation10 + $0x6c8] sm:$0xff]
        %v2194 = vld [vmem:[#allocation10 + $0x6d0] sm:$0xff]
        %v2195 = vld [vmem:[#allocation10 + $0x708] sm:$0xff]
        %v2196 = vld [vmem:[#allocation10 + $0x710] sm:$0xff]
        %v2197 = vld [vmem:[#allocation10 + $0x718] sm:$0xff]
        %v2198 = vld [vmem:[#allocation10 + $0x750] sm:$0xff]
        %v2199 = vld [vmem:[#allocation10 + $0x758] sm:$0xff]
        %v2200 = vld [vmem:[#allocation10 + $0x760] sm:$0xff]
        %v2201 = vld [vmem:[#allocation10 + $0x798] sm:$0xff]
        %v2202 = vld [vmem:[#allocation10 + $0x7a0] sm:$0xff]
        %v2203 = vld [vmem:[#allocation10 + $0x7a8] sm:$0xff]
        %v2204 = vld [vmem:[#allocation10 + $0x7e0] sm:$0xff]
        %v2205 = vld [vmem:[#allocation10 + $0x7e8] sm:$0xff]
        %v2206 = vld [vmem:[#allocation10 + $0x7f0] sm:$0xff]
        %v2207 = vld [vmem:[#allocation10 + $0x828] sm:$0xff]
        %v2208 = vld [vmem:[#allocation10 + $0x830] sm:$0xff]
        %v2209 = vld [vmem:[#allocation10 + $0x838] sm:$0xff]
        %v2210 = vld [vmem:[#allocation10 + $0x870] sm:$0xff]
        %v2211 = vld [vmem:[#allocation10 + $0x878] sm:$0xff]
        %v2212 = vld [vmem:[#allocation10 + $0x880] sm:$0xff]
        %v2213 = vld [vmem:[#allocation10 + $0x8b8] sm:$0xff]
        %v2214 = vld [vmem:[#allocation10 + $0x8c0] sm:$0xff]
        %v2215 = vld [vmem:[#allocation10 + $0x8c8] sm:$0xff]
        %v2216 = vld [vmem:[#allocation3] sm:$0xff]
        %v2217 = vld [vmem:[#allocation3 + $0x8] sm:$0xff]
        %v2218 = vld [vmem:[#allocation3 + $0x10] sm:$0xff]
        %v2219 = vld [vmem:[#allocation3 + $0x18] sm:$0xff]
        %v2220 = vld [vmem:[#allocation3 + $0x20] sm:$0xff]
        %v2221 = vld [vmem:[#allocation3 + $0x28] sm:$0xff]
        %v2222 = vld [vmem:[#allocation3 + $0x30] sm:$0xff]
        %v2223 = vld [vmem:[#allocation3 + $0x38] sm:$0xff]
        %v2224 = vld [vmem:[#allocation3 + $0x40] sm:$0xff]
        %v2225 = vld [vmem:[#allocation3 + $0x48] sm:$0xff]
        %v2226 = vld [vmem:[#allocation3 + $0x50] sm:$0xff]
        %v2227 = vld [vmem:[#allocation3 + $0x58] sm:$0xff]
        %v2228 = vld [vmem:[#allocation3 + $0x60] sm:$0xff]
        %v2229 = vld [vmem:[#allocation3 + $0x68] sm:$0xff]
        %v2230 = vld [vmem:[#allocation3 + $0x70] sm:$0xff]
        %v2231 = vld [vmem:[#allocation3 + $0x78] sm:$0xff]
        %v2232 = vld [vmem:[#allocation3 + $0x80] sm:$0xff]
        %v2233 = vld [vmem:[#allocation3 + $0x88] sm:$0xff]
        %v2234 = vld [vmem:[#allocation3 + $0x90] sm:$0xff]
        %v2235 = vld [vmem:[#allocation3 + $0x98] sm:$0xff]
        %v2236 = vld [vmem:[#allocation3 + $0xa0] sm:$0xff]
        %v2237 = vld [vmem:[#allocation3 + $0xa8] sm:$0xff]
        %v2238 = vld [vmem:[#allocation3 + $0xb0] sm:$0xff]
        %v2239 = vld [vmem:[#allocation3 + $0xb8] sm:$0xff]
        %v2240 = vld [vmem:[#allocation3 + $0xc0] sm:$0xff]
        %v2241 = vld [vmem:[#allocation3 + $0xc8] sm:$0xff]
        %v2242 = vld [vmem:[#allocation3 + $0xd0] sm:$0xff]
        %v2243 = vld [vmem:[#allocation3 + $0xd8] sm:$0xff]
        %v2244 = vld [vmem:[#allocation3 + $0xe0] sm:$0xff]
        %v2245 = vld [vmem:[#allocation3 + $0xe8] sm:$0xff]
        %v2246 = vld [vmem:[#allocation3 + $0xf0] sm:$0xff]
        %v2247 = vld [vmem:[#allocation3 + $0xf8] sm:$0xff]
        %v2248 = vld [vmem:[#allocation3 + $0x100] sm:$0xff]
        %v2249 = vld [vmem:[#allocation3 + $0x108] sm:$0xff]
        %v2250 = vld [vmem:[#allocation3 + $0x110] sm:$0xff]
        %v2251 = vld [vmem:[#allocation3 + $0x118] sm:$0xff]
        %v2252 = vld [vmem:[#allocation3 + $0x120] sm:$0xff]
        %v2253 = vld [vmem:[#allocation3 + $0x128] sm:$0xff]
        %v2254 = vld [vmem:[#allocation3 + $0x130] sm:$0xff]
        %v2255 = vld [vmem:[#allocation3 + $0x138] sm:$0xff]
        %v2256 = vld [vmem:[#allocation3 + $0x140] sm:$0xff]
        %v2257 = vld [vmem:[#allocation3 + $0x148] sm:$0xff]
        %v2258 = vld [vmem:[#allocation3 + $0x150] sm:$0xff]
        %v2259 = vld [vmem:[#allocation3 + $0x158] sm:$0xff]
        %v2260 = vld [vmem:[#allocation3 + $0x160] sm:$0xff]
        %v2261 = vld [vmem:[#allocation3 + $0x168] sm:$0xff]
        %v2262 = vld [vmem:[#allocation3 + $0x170] sm:$0xff]
        %v2263 = vld [vmem:[#allocation3 + $0x178] sm:$0xff]
        %v2264 = vld [vmem:[#allocation3 + $0x180] sm:$0xff]
        %v2265 = vld [vmem:[#allocation3 + $0x188] sm:$0xff]
        %v2266 = vld [vmem:[#allocation3 + $0x190] sm:$0xff]
        %v2267 = vld [vmem:[#allocation3 + $0x198] sm:$0xff]
        %v2268 = vld [vmem:[#allocation3 + $0x1a0] sm:$0xff]
        %v2269 = vld [vmem:[#allocation3 + $0x1a8] sm:$0xff]
        %v2270 = vld [vmem:[#allocation3 + $0x1b0] sm:$0xff]
        %v2271 = vld [vmem:[#allocation3 + $0x1b8] sm:$0xff]
        %v2272 = vld [vmem:[#allocation3 + $0x1c0] sm:$0xff]
        %v2273 = vld [vmem:[#allocation3 + $0x1c8] sm:$0xff]
        %v2274 = vld [vmem:[#allocation3 + $0x1d0] sm:$0xff]
        %v2275 = vld [vmem:[#allocation3 + $0x1d8] sm:$0xff]
        %v2276 = vld [vmem:[#allocation3 + $0x1e0] sm:$0xff]
        %v2277 = vld [vmem:[#allocation3 + $0x1e8] sm:$0xff]
        %v2278 = vld [vmem:[#allocation3 + $0x1f0] sm:$0xff]
        %v2279 = vld [vmem:[#allocation3 + $0x1f8] sm:$0xff]
        %v2280 = vld [vmem:[#allocation3 + $0x200] sm:$0xff]
        %v2281 = vld [vmem:[#allocation3 + $0x208] sm:$0xff]
        %v2282 = vld [vmem:[#allocation3 + $0x210] sm:$0xff]
        %v2283 = vld [vmem:[#allocation3 + $0x218] sm:$0xff]
        %v2284 = vld [vmem:[#allocation3 + $0x220] sm:$0xff]
        %v2285 = vld [vmem:[#allocation3 + $0x228] sm:$0xff]
        %v2286 = vld [vmem:[#allocation3 + $0x230] sm:$0xff]
        %v2287 = vld [vmem:[#allocation3 + $0x238] sm:$0xff]
        %v2288 = vld [vmem:[#allocation3 + $0x240] sm:$0xff]
        %v2289 = vld [vmem:[#allocation3 + $0x248] sm:$0xff]
        %v2290 = vld [vmem:[#allocation3 + $0x250] sm:$0xff]
        %v2291 = vld [vmem:[#allocation3 + $0x258] sm:$0xff]
        %v2292 = vld [vmem:[#allocation3 + $0x260] sm:$0xff]
        %v2293 = vld [vmem:[#allocation3 + $0x268] sm:$0xff]
        %v2294 = vld [vmem:[#allocation3 + $0x270] sm:$0xff]
        %v2295 = vld [vmem:[#allocation3 + $0x278] sm:$0xff]
        %v2296 = vld [vmem:[#allocation3 + $0x280] sm:$0xff]
        %v2297 = vld [vmem:[#allocation3 + $0x288] sm:$0xff]
        %v2298 = vld [vmem:[#allocation3 + $0x290] sm:$0xff]
        %v2299 = vld [vmem:[#allocation3 + $0x298] sm:$0xff]
        %v2300 = vld [vmem:[#allocation3 + $0x2a0] sm:$0xff]
        %v2301 = vld [vmem:[#allocation3 + $0x2a8] sm:$0xff]
        %v2302 = vld [vmem:[#allocation3 + $0x2b0] sm:$0xff]
        %v2303 = vld [vmem:[#allocation3 + $0x2b8] sm:$0xff]
        %v2304 = vld [vmem:[#allocation3 + $0x2c0] sm:$0xff]
        %v2305 = vld [vmem:[#allocation3 + $0x2c8] sm:$0xff]
        %v2306 = vld [vmem:[#allocation3 + $0x2d0] sm:$0xff]
        %v2307 = vld [vmem:[#allocation3 + $0x2d8] sm:$0xff]
        %v2308 = vld [vmem:[#allocation3 + $0x2e0] sm:$0xff]
        %v2309 = vld [vmem:[#allocation3 + $0x2e8] sm:$0xff]
        %v2310 = vld [vmem:[#allocation3 + $0x2f0] sm:$0xff]
        %v2311 = vld [vmem:[#allocation3 + $0x2f8] sm:$0xff]
        %2312 = vrot.lane.b32.xlu0 %v1346, 1
        %v2313 = vpop.permute.xlu0 %2312
        %2314 = vrot.lane.b32.xlu0 %v1348, 1
        %v2315 = vpop.permute.xlu0 %2314
        %2316 = vrot.lane.b32.xlu0 %v1350, 1
        %v2317 = vpop.permute.xlu0 %2316
        %2318 = vrot.lane.b32.xlu0 %v1352, 1
        %v2319 = vpop.permute.xlu0 %2318
        %2320 = vrot.lane.b32.xlu0 %v1354, 1
        %v2321 = vpop.permute.xlu0 %2320
        %2322 = vrot.lane.b32.xlu0 %v1356, 1
        %v2323 = vpop.permute.xlu0 %2322
        %2324 = vrot.lane.b32.xlu0 %v1358, 1
        %v2325 = vpop.permute.xlu0 %2324
        %2326 = vrot.lane.b32.xlu0 %v1360, 1
        %v2327 = vpop.permute.xlu0 %2326
        %2328 = vrot.lane.b32.xlu0 %v1362, 1
        %v2329 = vpop.permute.xlu0 %2328
        %2330 = vrot.lane.b32.xlu0 %v1364, 1
        %v2331 = vpop.permute.xlu0 %2330
        %2332 = vrot.lane.b32.xlu0 %v1366, 1
        %v2333 = vpop.permute.xlu0 %2332
        %2334 = vrot.lane.b32.xlu0 %v1368, 1
        %v2335 = vpop.permute.xlu0 %2334
        %2336 = vrot.lane.b32.xlu0 %v1370, 1
        %v2337 = vpop.permute.xlu0 %2336
        %2338 = vrot.lane.b32.xlu0 %v1372, 1
        %v2339 = vpop.permute.xlu0 %2338
        %2340 = vrot.lane.b32.xlu0 %v1374, 1
        %v2341 = vpop.permute.xlu0 %2340
        %2342 = vrot.lane.b32.xlu0 %v1376, 1
        %v2343 = vpop.permute.xlu0 %2342
        %2344 = vrot.lane.b32.xlu0 %v1345, 1
        %v2345 = vpop.permute.xlu0 %2344
        %2346 = vrot.lane.b32.xlu0 %v1347, 1
        %v2347 = vpop.permute.xlu0 %2346
        %2348 = vrot.lane.b32.xlu0 %v1349, 1
        %v2349 = vpop.permute.xlu0 %2348
        %2350 = vrot.lane.b32.xlu0 %v1351, 1
        %v2351 = vpop.permute.xlu0 %2350
        %2352 = vrot.lane.b32.xlu0 %v1353, 1
        %v2353 = vpop.permute.xlu0 %2352
        %2354 = vrot.lane.b32.xlu0 %v1355, 1
        %v2355 = vpop.permute.xlu0 %2354
        %2356 = vrot.lane.b32.xlu0 %v1357, 1
        %v2357 = vpop.permute.xlu0 %2356
        %2358 = vrot.lane.b32.xlu0 %v1359, 1
        %v2359 = vpop.permute.xlu0 %2358
        %2360 = vrot.lane.b32.xlu0 %v1361, 1
        %v2361 = vpop.permute.xlu0 %2360
        %2362 = vrot.lane.b32.xlu0 %v1363, 1
        %v2363 = vpop.permute.xlu0 %2362
        %2364 = vrot.lane.b32.xlu0 %v1365, 1
        %v2365 = vpop.permute.xlu0 %2364
        %2366 = vrot.lane.b32.xlu0 %v1367, 1
        %v2367 = vpop.permute.xlu0 %2366
        %2368 = vrot.lane.b32.xlu0 %v1369, 1
        %v2369 = vpop.permute.xlu0 %2368
        %2370 = vrot.lane.b32.xlu0 %v1371, 1
        %v2371 = vpop.permute.xlu0 %2370
        %2372 = vrot.lane.b32.xlu0 %v1373, 1
        %v2373 = vpop.permute.xlu0 %2372
        %2374 = vrot.lane.b32.xlu0 %v1375, 1
        %v2375 = vpop.permute.xlu0 %2374
        %vm2376 = vcmask 7168
        %v2377 = vsel %vm2376, %v2345, %v2313
        %v2378 = vsel %vm2376, %v2347, %v2315
        %v2379 = vsel %vm2376, %v2349, %v2317
        %v2380 = vsel %vm2376, %v2351, %v2319
        %v2381 = vsel %vm2376, %v2353, %v2321
        %v2382 = vsel %vm2376, %v2355, %v2323
        %v2383 = vsel %vm2376, %v2357, %v2325
        %v2384 = vsel %vm2376, %v2359, %v2327
        %v2385 = vsel %vm2376, %v2361, %v2329
        %v2386 = vsel %vm2376, %v2363, %v2331
        %v2387 = vsel %vm2376, %v2365, %v2333
        %v2388 = vsel %vm2376, %v2367, %v2335
        %v2389 = vsel %vm2376, %v2369, %v2337
        %v2390 = vsel %vm2376, %v2371, %v2339
        %v2391 = vsel %vm2376, %v2373, %v2341
        %v2392 = vsel %vm2376, %v2375, %v2343
        %v2411 = vsel %vm503, %v2313, %v2345
        %v2415 = vsel %vm503, %v2315, %v2347
        %v2419 = vsel %vm503, %v2317, %v2349
        %v2423 = vsel %vm503, %v2319, %v2351
        %v2427 = vsel %vm503, %v2321, %v2353
        %v2431 = vsel %vm503, %v2323, %v2355
        %v2435 = vsel %vm503, %v2325, %v2357
        %v2439 = vsel %vm503, %v2327, %v2359
        %v2443 = vsel %vm503, %v2329, %v2361
        %v2447 = vsel %vm503, %v2331, %v2363
        %v2451 = vsel %vm503, %v2333, %v2365
        %v2455 = vsel %vm503, %v2335, %v2367
        %v2459 = vsel %vm503, %v2337, %v2369
        %v2463 = vsel %vm503, %v2339, %v2371
        %v2467 = vsel %vm503, %v2341, %v2373
        %v2471 = vsel %vm503, %v2343, %v2375
        %v2473 = vlaneseq
        %v2474 = vshrl.u32 %v2473, 7
        %v2475 = vsub.s32 1, %v2474
        %v2476 = vrot.slane %v1810, %v2475
        %v2477 = vlaneseq
        %v2478 = vshrl.u32 %v2477, 7
        %v2479 = vsub.s32 1, %v2478
        %v2480 = vrot.slane %v1817, %v2479
        %v2481 = vmul.bf16 %v2411, %v2476
        %v2482 = vmul.bf16 %v2377, %v2480
        %v2483 = vmul.bf16 %v2415, %v2476
        %v2484 = vmul.bf16 %v2378, %v2480
        %v2485 = vmul.bf16 %v2419, %v2476
        %v2486 = vmul.bf16 %v2379, %v2480
        %v2487 = vmul.bf16 %v2423, %v2476
        %v2488 = vmul.bf16 %v2380, %v2480
        %v2489 = vmul.bf16 %v2427, %v2476
        %v2490 = vmul.bf16 %v2381, %v2480
        %v2491 = vmul.bf16 %v2431, %v2476
        %v2492 = vmul.bf16 %v2382, %v2480
        %v2493 = vmul.bf16 %v2435, %v2476
        %v2494 = vmul.bf16 %v2383, %v2480
        %v2495 = vmul.bf16 %v2439, %v2476
        %v2496 = vmul.bf16 %v2384, %v2480
        %v2497 = vmul.bf16 %v2443, %v2476
        %v2498 = vmul.bf16 %v2385, %v2480
        %v2499 = vmul.bf16 %v2447, %v2476
        %v2500 = vmul.bf16 %v2386, %v2480
        %v2501 = vmul.bf16 %v2451, %v2476
        %v2502 = vmul.bf16 %v2387, %v2480
        %v2503 = vmul.bf16 %v2455, %v2476
        %v2504 = vmul.bf16 %v2388, %v2480
        %v2505 = vmul.bf16 %v2459, %v2476
        %v2506 = vmul.bf16 %v2389, %v2480
        %v2507 = vmul.bf16 %v2463, %v2476
        %v2508 = vmul.bf16 %v2390, %v2480
        %v2509 = vmul.bf16 %v2467, %v2476
        %v2510 = vmul.bf16 %v2391, %v2480
        %v2511 = vmul.bf16 %v2471, %v2476
        %v2512 = vmul.bf16 %v2392, %v2480
        %2513 = vst [vmem:[#allocation3 + $0x300] sm:$0xff] %v2481
        %2514 = vst [vmem:[#allocation3 + $0x308] sm:$0xff] %v2482
        %2515 = vst [vmem:[#allocation3 + $0x310] sm:$0xff] %v2483
        %2516 = vst [vmem:[#allocation3 + $0x318] sm:$0xff] %v2484
        %2517 = vst [vmem:[#allocation3 + $0x320] sm:$0xff] %v2485
        %2518 = vst [vmem:[#allocation3 + $0x328] sm:$0xff] %v2486
        %2519 = vst [vmem:[#allocation3 + $0x330] sm:$0xff] %v2487
        %2520 = vst [vmem:[#allocation3 + $0x338] sm:$0xff] %v2488
        %2521 = vst [vmem:[#allocation3 + $0x340] sm:$0xff] %v2489
        %2522 = vst [vmem:[#allocation3 + $0x348] sm:$0xff] %v2490
        %2523 = vst [vmem:[#allocation3 + $0x350] sm:$0xff] %v2491
        %2524 = vst [vmem:[#allocation3 + $0x358] sm:$0xff] %v2492
        %2525 = vst [vmem:[#allocation3 + $0x360] sm:$0xff] %v2493
        %2526 = vst [vmem:[#allocation3 + $0x368] sm:$0xff] %v2494
        %2527 = vst [vmem:[#allocation3 + $0x370] sm:$0xff] %v2495
        %2528 = vst [vmem:[#allocation3 + $0x378] sm:$0xff] %v2496
        %2529 = vst [vmem:[#allocation3 + $0x380] sm:$0xff] %v2497
        %2530 = vst [vmem:[#allocation3 + $0x388] sm:$0xff] %v2498
        %2531 = vst [vmem:[#allocation3 + $0x390] sm:$0xff] %v2499
        %2532 = vst [vmem:[#allocation3 + $0x398] sm:$0xff] %v2500
        %2533 = vst [vmem:[#allocation3 + $0x3a0] sm:$0xff] %v2501
        %2534 = vst [vmem:[#allocation3 + $0x3a8] sm:$0xff] %v2502
        %2535 = vst [vmem:[#allocation3 + $0x3b0] sm:$0xff] %v2503
        %2536 = vst [vmem:[#allocation3 + $0x3b8] sm:$0xff] %v2504
        %2537 = vst [vmem:[#allocation3 + $0x3c0] sm:$0xff] %v2505
        %2538 = vst [vmem:[#allocation3 + $0x3c8] sm:$0xff] %v2506
        %2539 = vst [vmem:[#allocation3 + $0x3d0] sm:$0xff] %v2507
        %2540 = vst [vmem:[#allocation3 + $0x3d8] sm:$0xff] %v2508
        %2541 = vst [vmem:[#allocation3 + $0x3e0] sm:$0xff] %v2509
        %2542 = vst [vmem:[#allocation3 + $0x3e8] sm:$0xff] %v2510
        %2543 = vst [vmem:[#allocation3 + $0x3f0] sm:$0xff] %v2511
        %2544 = vst [vmem:[#allocation3 + $0x3f8] sm:$0xff] %v2512
        %v2545 = vlaneseq
        %v2546 = vshrl.u32 %v2545, 7
        %v2547 = vsub.s32 2, %v2546
        %v2548 = vrot.slane %v1571, %v2547
        %v2549 = vlaneseq
        %v2550 = vshrl.u32 %v2549, 7
        %v2551 = vsub.s32 2, %v2550
        %v2552 = vrot.slane %v1578, %v2551
        %v2553 = vmul.bf16 %v1345, %v2548
        %v2554 = vmul.bf16 %v1346, %v2552
        %v2555 = vmul.bf16 %v1347, %v2548
        %v2556 = vmul.bf16 %v1348, %v2552
        %v2557 = vmul.bf16 %v1349, %v2548
        %v2558 = vmul.bf16 %v1350, %v2552
        %v2559 = vmul.bf16 %v1351, %v2548
        %v2560 = vmul.bf16 %v1352, %v2552
        %v2561 = vmul.bf16 %v1353, %v2548
        %v2562 = vmul.bf16 %v1354, %v2552
        %v2563 = vmul.bf16 %v1355, %v2548
        %v2564 = vmul.bf16 %v1356, %v2552
        %v2565 = vmul.bf16 %v1357, %v2548
        %v2566 = vmul.bf16 %v1358, %v2552
        %v2567 = vmul.bf16 %v1359, %v2548
        %v2568 = vmul.bf16 %v1360, %v2552
        %v2569 = vmul.bf16 %v1361, %v2548
        %v2570 = vmul.bf16 %v1362, %v2552
        %v2571 = vmul.bf16 %v1363, %v2548
        %v2572 = vmul.bf16 %v1364, %v2552
        %v2573 = vmul.bf16 %v1365, %v2548
        %v2574 = vmul.bf16 %v1366, %v2552
        %v2575 = vmul.bf16 %v1367, %v2548
        %v2576 = vmul.bf16 %v1368, %v2552
        %v2577 = vmul.bf16 %v1369, %v2548
        %v2578 = vmul.bf16 %v1370, %v2552
        %v2579 = vmul.bf16 %v1371, %v2548
        %v2580 = vmul.bf16 %v1372, %v2552
        %v2581 = vmul.bf16 %v1373, %v2548
        %v2582 = vmul.bf16 %v1374, %v2552
        %v2583 = vmul.bf16 %v1375, %v2548
        %v2584 = vmul.bf16 %v1376, %v2552
        %2585 = vst [vmem:[#allocation3 + $0x400] sm:$0xff] %v2553
        %2586 = vst [vmem:[#allocation3 + $0x408] sm:$0xff] %v2554
        %2587 = vst [vmem:[#allocation3 + $0x410] sm:$0xff] %v2555
        %2588 = vst [vmem:[#allocation3 + $0x418] sm:$0xff] %v2556
        %2589 = vst [vmem:[#allocation3 + $0x420] sm:$0xff] %v2557
        %2590 = vst [vmem:[#allocation3 + $0x428] sm:$0xff] %v2558
        %2591 = vst [vmem:[#allocation3 + $0x430] sm:$0xff] %v2559
        %2592 = vst [vmem:[#allocation3 + $0x438] sm:$0xff] %v2560
        %2593 = vst [vmem:[#allocation3 + $0x440] sm:$0xff] %v2561
        %2594 = vst [vmem:[#allocation3 + $0x448] sm:$0xff] %v2562
        %2595 = vst [vmem:[#allocation3 + $0x450] sm:$0xff] %v2563
        %2596 = vst [vmem:[#allocation3 + $0x458] sm:$0xff] %v2564
        %2597 = vst [vmem:[#allocation3 + $0x460] sm:$0xff] %v2565
        %2598 = vst [vmem:[#allocation3 + $0x468] sm:$0xff] %v2566
        %2599 = vst [vmem:[#allocation3 + $0x470] sm:$0xff] %v2567
        %2600 = vst [vmem:[#allocation3 + $0x478] sm:$0xff] %v2568
        %2601 = vst [vmem:[#allocation3 + $0x480] sm:$0xff] %v2569
        %2602 = vst [vmem:[#allocation3 + $0x488] sm:$0xff] %v2570
        %2603 = vst [vmem:[#allocation3 + $0x490] sm:$0xff] %v2571
        %2604 = vst [vmem:[#allocation3 + $0x498] sm:$0xff] %v2572
        %2605 = vst [vmem:[#allocation3 + $0x4a0] sm:$0xff] %v2573
        %2606 = vst [vmem:[#allocation3 + $0x4a8] sm:$0xff] %v2574
        %2607 = vst [vmem:[#allocation3 + $0x4b0] sm:$0xff] %v2575
        %2608 = vst [vmem:[#allocation3 + $0x4b8] sm:$0xff] %v2576
        %2609 = vst [vmem:[#allocation3 + $0x4c0] sm:$0xff] %v2577
        %2610 = vst [vmem:[#allocation3 + $0x4c8] sm:$0xff] %v2578
        %2611 = vst [vmem:[#allocation3 + $0x4d0] sm:$0xff] %v2579
        %2612 = vst [vmem:[#allocation3 + $0x4d8] sm:$0xff] %v2580
        %2613 = vst [vmem:[#allocation3 + $0x4e0] sm:$0xff] %v2581
        %2614 = vst [vmem:[#allocation3 + $0x4e8] sm:$0xff] %v2582
        %2615 = vst [vmem:[#allocation3 + $0x4f0] sm:$0xff] %v2583
        %2616 = vst [vmem:[#allocation3 + $0x4f8] sm:$0xff] %v2584
        %2617 = vrot.lane.b32.xlu0 %v1345, 127
        %v2618 = vpop.permute.xlu0 %2617
        %2619 = vrot.lane.b32.xlu0 %v1346, 127
        %v2620 = vpop.permute.xlu0 %2619
        %2621 = vrot.lane.b32.xlu0 %v1347, 127
        %v2622 = vpop.permute.xlu0 %2621
        %2623 = vrot.lane.b32.xlu0 %v1348, 127
        %v2624 = vpop.permute.xlu0 %2623
        %2625 = vrot.lane.b32.xlu0 %v1349, 127
        %v2626 = vpop.permute.xlu0 %2625
        %2627 = vrot.lane.b32.xlu0 %v1350, 127
        %v2628 = vpop.permute.xlu0 %2627
        %2629 = vrot.lane.b32.xlu0 %v1351, 127
        %v2630 = vpop.permute.xlu0 %2629
        %2631 = vrot.lane.b32.xlu0 %v1352, 127
        %v2632 = vpop.permute.xlu0 %2631
        %2633 = vrot.lane.b32.xlu0 %v1353, 127
        %v2634 = vpop.permute.xlu0 %2633
        %2635 = vrot.lane.b32.xlu0 %v1354, 127
        %v2636 = vpop.permute.xlu0 %2635
        %2637 = vrot.lane.b32.xlu0 %v1355, 127
        %v2638 = vpop.permute.xlu0 %2637
        %2639 = vrot.lane.b32.xlu0 %v1356, 127
        %v2640 = vpop.permute.xlu0 %2639
        %2641 = vrot.lane.b32.xlu0 %v1357, 127
        %v2642 = vpop.permute.xlu0 %2641
        %2643 = vrot.lane.b32.xlu0 %v1358, 127
        %v2644 = vpop.permute.xlu0 %2643
        %2645 = vrot.lane.b32.xlu0 %v1359, 127
        %v2646 = vpop.permute.xlu0 %2645
        %2647 = vrot.lane.b32.xlu0 %v1360, 127
        %v2648 = vpop.permute.xlu0 %2647
        %2649 = vrot.lane.b32.xlu0 %v1361, 127
        %v2650 = vpop.permute.xlu0 %2649
        %2651 = vrot.lane.b32.xlu0 %v1362, 127
        %v2652 = vpop.permute.xlu0 %2651
        %2653 = vrot.lane.b32.xlu0 %v1363, 127
        %v2654 = vpop.permute.xlu0 %2653
        %2655 = vrot.lane.b32.xlu0 %v1364, 127
        %v2656 = vpop.permute.xlu0 %2655
        %2657 = vrot.lane.b32.xlu0 %v1365, 127
        %v2658 = vpop.permute.xlu0 %2657
        %2659 = vrot.lane.b32.xlu0 %v1366, 127
        %v2660 = vpop.permute.xlu0 %2659
        %2661 = vrot.lane.b32.xlu0 %v1367, 127
        %v2662 = vpop.permute.xlu0 %2661
        %2663 = vrot.lane.b32.xlu0 %v1368, 127
        %v2664 = vpop.permute.xlu0 %2663
        %2665 = vrot.lane.b32.xlu0 %v1369, 127
        %v2666 = vpop.permute.xlu0 %2665
        %2667 = vrot.lane.b32.xlu0 %v1370, 127
        %v2668 = vpop.permute.xlu0 %2667
        %2669 = vrot.lane.b32.xlu0 %v1371, 127
        %v2670 = vpop.permute.xlu0 %2669
        %2671 = vrot.lane.b32.xlu0 %v1372, 127
        %v2672 = vpop.permute.xlu0 %2671
        %2673 = vrot.lane.b32.xlu0 %v1373, 127
        %v2674 = vpop.permute.xlu0 %2673
        %2675 = vrot.lane.b32.xlu0 %v1374, 127
        %v2676 = vpop.permute.xlu0 %2675
        %2677 = vrot.lane.b32.xlu0 %v1375, 127
        %v2678 = vpop.permute.xlu0 %2677
        %2679 = vrot.lane.b32.xlu0 %v1376, 127
        %v2680 = vpop.permute.xlu0 %2679
        %vm2681 = vcmask 1039360
        %v2682 = vsel %vm2681, %v2618, %v2620
        %v2683 = vsel %vm2681, %v2622, %v2624
        %v2684 = vsel %vm2681, %v2626, %v2628
        %v2685 = vsel %vm2681, %v2630, %v2632
        %v2686 = vsel %vm2681, %v2634, %v2636
        %v2687 = vsel %vm2681, %v2638, %v2640
        %v2688 = vsel %vm2681, %v2642, %v2644
        %v2689 = vsel %vm2681, %v2646, %v2648
        %v2690 = vsel %vm2681, %v2650, %v2652
        %v2691 = vsel %vm2681, %v2654, %v2656
        %v2692 = vsel %vm2681, %v2658, %v2660
        %v2693 = vsel %vm2681, %v2662, %v2664
        %v2694 = vsel %vm2681, %v2666, %v2668
        %v2695 = vsel %vm2681, %v2670, %v2672
        %v2696 = vsel %vm2681, %v2674, %v2676
        %v2697 = vsel %vm2681, %v2678, %v2680
        %v2716 = vsel %vm559, %v2620, %v2618
        %v2720 = vsel %vm559, %v2624, %v2622
        %v2724 = vsel %vm559, %v2628, %v2626
        %v2728 = vsel %vm559, %v2632, %v2630
        %v2732 = vsel %vm559, %v2636, %v2634
        %v2736 = vsel %vm559, %v2640, %v2638
        %v2740 = vsel %vm559, %v2644, %v2642
        %v2744 = vsel %vm559, %v2648, %v2646
        %v2748 = vsel %vm559, %v2652, %v2650
        %v2752 = vsel %vm559, %v2656, %v2654
        %v2756 = vsel %vm559, %v2660, %v2658
        %v2760 = vsel %vm559, %v2664, %v2662
        %v2764 = vsel %vm559, %v2668, %v2666
        %v2768 = vsel %vm559, %v2672, %v2670
        %v2772 = vsel %vm559, %v2676, %v2674
        %v2776 = vsel %vm559, %v2680, %v2678
        %v2778 = vlaneseq
        %v2779 = vshrl.u32 %v2778, 7
        %v2780 = vsub.s32 2, %v2779
        %v2781 = vrot.slane %v1810, %v2780
        %v2782 = vlaneseq
        %v2783 = vshrl.u32 %v2782, 7
        %v2784 = vsub.s32 2, %v2783
        %v2785 = vrot.slane %v1817, %v2784
        %v2786 = vmul.bf16 %v2682, %v2781
        %v2787 = vmul.bf16 %v2716, %v2785
        %v2788 = vmul.bf16 %v2683, %v2781
        %v2789 = vmul.bf16 %v2720, %v2785
        %v2790 = vmul.bf16 %v2684, %v2781
        %v2791 = vmul.bf16 %v2724, %v2785
        %v2792 = vmul.bf16 %v2685, %v2781
        %v2793 = vmul.bf16 %v2728, %v2785
        %v2794 = vmul.bf16 %v2686, %v2781
        %v2795 = vmul.bf16 %v2732, %v2785
        %v2796 = vmul.bf16 %v2687, %v2781
        %v2797 = vmul.bf16 %v2736, %v2785
        %v2798 = vmul.bf16 %v2688, %v2781
        %v2799 = vmul.bf16 %v2740, %v2785
        %v2800 = vmul.bf16 %v2689, %v2781
        %v2801 = vmul.bf16 %v2744, %v2785
        %v2802 = vmul.bf16 %v2690, %v2781
        %v2803 = vmul.bf16 %v2748, %v2785
        %v2804 = vmul.bf16 %v2691, %v2781
        %v2805 = vmul.bf16 %v2752, %v2785
        %v2806 = vmul.bf16 %v2692, %v2781
        %v2807 = vmul.bf16 %v2756, %v2785
        %v2808 = vmul.bf16 %v2693, %v2781
        %v2809 = vmul.bf16 %v2760, %v2785
        %v2810 = vmul.bf16 %v2694, %v2781
        %v2811 = vmul.bf16 %v2764, %v2785
        %v2812 = vmul.bf16 %v2695, %v2781
        %v2813 = vmul.bf16 %v2768, %v2785
        %v2814 = vmul.bf16 %v2696, %v2781
        %v2815 = vmul.bf16 %v2772, %v2785
        %v2816 = vmul.bf16 %v2697, %v2781
        %v2817 = vmul.bf16 %v2776, %v2785
        %2818 = vst [vmem:[#allocation3 + $0x500] sm:$0xff] %v2786
        %2819 = vst [vmem:[#allocation3 + $0x508] sm:$0xff] %v2787
        %2820 = vst [vmem:[#allocation3 + $0x510] sm:$0xff] %v2788
        %2821 = vst [vmem:[#allocation3 + $0x518] sm:$0xff] %v2789
        %2822 = vst [vmem:[#allocation3 + $0x520] sm:$0xff] %v2790
        %2823 = vst [vmem:[#allocation3 + $0x528] sm:$0xff] %v2791
        %2824 = vst [vmem:[#allocation3 + $0x530] sm:$0xff] %v2792
        %2825 = vst [vmem:[#allocation3 + $0x538] sm:$0xff] %v2793
        %2826 = vst [vmem:[#allocation3 + $0x540] sm:$0xff] %v2794
        %2827 = vst [vmem:[#allocation3 + $0x548] sm:$0xff] %v2795
        %2828 = vst [vmem:[#allocation3 + $0x550] sm:$0xff] %v2796
        %2829 = vst [vmem:[#allocation3 + $0x558] sm:$0xff] %v2797
        %2830 = vst [vmem:[#allocation3 + $0x560] sm:$0xff] %v2798
        %2831 = vst [vmem:[#allocation3 + $0x568] sm:$0xff] %v2799
        %2832 = vst [vmem:[#allocation3 + $0x570] sm:$0xff] %v2800
        %2833 = vst [vmem:[#allocation3 + $0x578] sm:$0xff] %v2801
        %2834 = vst [vmem:[#allocation3 + $0x580] sm:$0xff] %v2802
        %2835 = vst [vmem:[#allocation3 + $0x588] sm:$0xff] %v2803
        %2836 = vst [vmem:[#allocation3 + $0x590] sm:$0xff] %v2804
        %2837 = vst [vmem:[#allocation3 + $0x598] sm:$0xff] %v2805
        %2838 = vst [vmem:[#allocation3 + $0x5a0] sm:$0xff] %v2806
        %2839 = vst [vmem:[#allocation3 + $0x5a8] sm:$0xff] %v2807
        %2840 = vst [vmem:[#allocation3 + $0x5b0] sm:$0xff] %v2808
        %2841 = vst [vmem:[#allocation3 + $0x5b8] sm:$0xff] %v2809
        %2842 = vst [vmem:[#allocation3 + $0x5c0] sm:$0xff] %v2810
        %2843 = vst [vmem:[#allocation3 + $0x5c8] sm:$0xff] %v2811
        %2844 = vst [vmem:[#allocation3 + $0x5d0] sm:$0xff] %v2812
        %2845 = vst [vmem:[#allocation3 + $0x5d8] sm:$0xff] %v2813
        %2846 = vst [vmem:[#allocation3 + $0x5e0] sm:$0xff] %v2814
        %2847 = vst [vmem:[#allocation3 + $0x5e8] sm:$0xff] %v2815
        %2848 = vst [vmem:[#allocation3 + $0x5f0] sm:$0xff] %v2816
        %2849 = vst [vmem:[#allocation3 + $0x5f8] sm:$0xff] %v2817
        %v2850 = vld [vmem:[#allocation10 + $0x18] sm:$0xff]
        %v2851 = vld [vmem:[#allocation10 + $0x20] sm:$0xff]
        %v2852 = vld [vmem:[#allocation10 + $0x28] sm:$0xff]
        %v2853 = vld [vmem:[#allocation10 + $0x60] sm:$0xff]
        %v2854 = vld [vmem:[#allocation10 + $0x68] sm:$0xff]
        %v2855 = vld [vmem:[#allocation10 + $0x70] sm:$0xff]
        %v2856 = vld [vmem:[#allocation10 + $0xa8] sm:$0xff]
        %v2857 = vld [vmem:[#allocation10 + $0xb0] sm:$0xff]
        %v2858 = vld [vmem:[#allocation10 + $0xb8] sm:$0xff]
        %v2859 = vld [vmem:[#allocation10 + $0xf0] sm:$0xff]
        %v2860 = vld [vmem:[#allocation10 + $0xf8] sm:$0xff]
        %v2861 = vld [vmem:[#allocation10 + $0x100] sm:$0xff]
        %v2862 = vld [vmem:[#allocation10 + $0x138] sm:$0xff]
        %v2863 = vld [vmem:[#allocation10 + $0x140] sm:$0xff]
        %v2864 = vld [vmem:[#allocation10 + $0x148] sm:$0xff]
        %v2865 = vld [vmem:[#allocation10 + $0x180] sm:$0xff]
        %v2866 = vld [vmem:[#allocation10 + $0x188] sm:$0xff]
        %v2867 = vld [vmem:[#allocation10 + $0x190] sm:$0xff]
        %v2868 = vld [vmem:[#allocation10 + $0x1c8] sm:$0xff]
        %v2869 = vld [vmem:[#allocation10 + $0x1d0] sm:$0xff]
        %v2870 = vld [vmem:[#allocation10 + $0x1d8] sm:$0xff]
        %v2871 = vld [vmem:[#allocation10 + $0x210] sm:$0xff]
        %v2872 = vld [vmem:[#allocation10 + $0x218] sm:$0xff]
        %v2873 = vld [vmem:[#allocation10 + $0x220] sm:$0xff]
        %v2874 = vld [vmem:[#allocation10 + $0x258] sm:$0xff]
        %v2875 = vld [vmem:[#allocation10 + $0x260] sm:$0xff]
        %v2876 = vld [vmem:[#allocation10 + $0x268] sm:$0xff]
        %v2877 = vld [vmem:[#allocation10 + $0x2a0] sm:$0xff]
        %v2878 = vld [vmem:[#allocation10 + $0x2a8] sm:$0xff]
        %v2879 = vld [vmem:[#allocation10 + $0x2b0] sm:$0xff]
        %v2880 = vld [vmem:[#allocation10 + $0x2e8] sm:$0xff]
        %v2881 = vld [vmem:[#allocation10 + $0x2f0] sm:$0xff]
        %v2882 = vld [vmem:[#allocation10 + $0x2f8] sm:$0xff]
        %v2883 = vld [vmem:[#allocation10 + $0x330] sm:$0xff]
        %v2884 = vld [vmem:[#allocation10 + $0x338] sm:$0xff]
        %v2885 = vld [vmem:[#allocation10 + $0x340] sm:$0xff]
        %v2886 = vld [vmem:[#allocation10 + $0x378] sm:$0xff]
        %v2887 = vld [vmem:[#allocation10 + $0x380] sm:$0xff]
        %v2888 = vld [vmem:[#allocation10 + $0x388] sm:$0xff]
        %v2889 = vld [vmem:[#allocation10 + $0x3c0] sm:$0xff]
        %v2890 = vld [vmem:[#allocation10 + $0x3c8] sm:$0xff]
        %v2891 = vld [vmem:[#allocation10 + $0x3d0] sm:$0xff]
        %v2892 = vld [vmem:[#allocation10 + $0x408] sm:$0xff]
        %v2893 = vld [vmem:[#allocation10 + $0x410] sm:$0xff]
        %v2894 = vld [vmem:[#allocation10 + $0x418] sm:$0xff]
        %v2895 = vld [vmem:[#allocation10 + $0x450] sm:$0xff]
        %v2896 = vld [vmem:[#allocation10 + $0x458] sm:$0xff]
        %v2897 = vld [vmem:[#allocation10 + $0x460] sm:$0xff]
        %v2898 = vld [vmem:[#allocation10 + $0x498] sm:$0xff]
        %v2899 = vld [vmem:[#allocation10 + $0x4a0] sm:$0xff]
        %v2900 = vld [vmem:[#allocation10 + $0x4a8] sm:$0xff]
        %v2901 = vld [vmem:[#allocation10 + $0x4e0] sm:$0xff]
        %v2902 = vld [vmem:[#allocation10 + $0x4e8] sm:$0xff]
        %v2903 = vld [vmem:[#allocation10 + $0x4f0] sm:$0xff]
        %v2904 = vld [vmem:[#allocation10 + $0x528] sm:$0xff]
        %v2905 = vld [vmem:[#allocation10 + $0x530] sm:$0xff]
        %v2906 = vld [vmem:[#allocation10 + $0x538] sm:$0xff]
        %v2907 = vld [vmem:[#allocation10 + $0x570] sm:$0xff]
        %v2908 = vld [vmem:[#allocation10 + $0x578] sm:$0xff]
        %v2909 = vld [vmem:[#allocation10 + $0x580] sm:$0xff]
        %v2910 = vld [vmem:[#allocation10 + $0x5b8] sm:$0xff]
        %v2911 = vld [vmem:[#allocation10 + $0x5c0] sm:$0xff]
        %v2912 = vld [vmem:[#allocation10 + $0x5c8] sm:$0xff]
        %v2913 = vld [vmem:[#allocation10 + $0x600] sm:$0xff]
        %v2914 = vld [vmem:[#allocation10 + $0x608] sm:$0xff]
        %v2915 = vld [vmem:[#allocation10 + $0x610] sm:$0xff]
        %v2916 = vld [vmem:[#allocation10 + $0x648] sm:$0xff]
        %v2917 = vld [vmem:[#allocation10 + $0x650] sm:$0xff]
        %v2918 = vld [vmem:[#allocation10 + $0x658] sm:$0xff]
        %v2919 = vld [vmem:[#allocation10 + $0x690] sm:$0xff]
        %v2920 = vld [vmem:[#allocation10 + $0x698] sm:$0xff]
        %v2921 = vld [vmem:[#allocation10 + $0x6a0] sm:$0xff]
        %v2922 = vld [vmem:[#allocation10 + $0x6d8] sm:$0xff]
        %v2923 = vld [vmem:[#allocation10 + $0x6e0] sm:$0xff]
        %v2924 = vld [vmem:[#allocation10 + $0x6e8] sm:$0xff]
        %v2925 = vld [vmem:[#allocation10 + $0x720] sm:$0xff]
        %v2926 = vld [vmem:[#allocation10 + $0x728] sm:$0xff]
        %v2927 = vld [vmem:[#allocation10 + $0x730] sm:$0xff]
        %v2928 = vld [vmem:[#allocation10 + $0x768] sm:$0xff]
        %v2929 = vld [vmem:[#allocation10 + $0x770] sm:$0xff]
        %v2930 = vld [vmem:[#allocation10 + $0x778] sm:$0xff]
        %v2931 = vld [vmem:[#allocation10 + $0x7b0] sm:$0xff]
        %v2932 = vld [vmem:[#allocation10 + $0x7b8] sm:$0xff]
        %v2933 = vld [vmem:[#allocation10 + $0x7c0] sm:$0xff]
        %v2934 = vld [vmem:[#allocation10 + $0x7f8] sm:$0xff]
        %v2935 = vld [vmem:[#allocation10 + $0x800] sm:$0xff]
        %v2936 = vld [vmem:[#allocation10 + $0x808] sm:$0xff]
        %v2937 = vld [vmem:[#allocation10 + $0x840] sm:$0xff]
        %v2938 = vld [vmem:[#allocation10 + $0x848] sm:$0xff]
        %v2939 = vld [vmem:[#allocation10 + $0x850] sm:$0xff]
        %v2940 = vld [vmem:[#allocation10 + $0x888] sm:$0xff]
        %v2941 = vld [vmem:[#allocation10 + $0x890] sm:$0xff]
        %v2942 = vld [vmem:[#allocation10 + $0x898] sm:$0xff]
        %v2943 = vld [vmem:[#allocation10 + $0x8d0] sm:$0xff]
        %v2944 = vld [vmem:[#allocation10 + $0x8d8] sm:$0xff]
        %v2945 = vld [vmem:[#allocation10 + $0x8e0] sm:$0xff]
        %v2946 = vld [vmem:[#allocation3 + $0x300] sm:$0xff]
        %v2947 = vld [vmem:[#allocation3 + $0x308] sm:$0xff]
        %v2948 = vld [vmem:[#allocation3 + $0x310] sm:$0xff]
        %v2949 = vld [vmem:[#allocation3 + $0x318] sm:$0xff]
        %v2950 = vld [vmem:[#allocation3 + $0x320] sm:$0xff]
        %v2951 = vld [vmem:[#allocation3 + $0x328] sm:$0xff]
        %v2952 = vld [vmem:[#allocation3 + $0x330] sm:$0xff]
        %v2953 = vld [vmem:[#allocation3 + $0x338] sm:$0xff]
        %v2954 = vld [vmem:[#allocation3 + $0x340] sm:$0xff]
        %v2955 = vld [vmem:[#allocation3 + $0x348] sm:$0xff]
        %v2956 = vld [vmem:[#allocation3 + $0x350] sm:$0xff]
        %v2957 = vld [vmem:[#allocation3 + $0x358] sm:$0xff]
        %v2958 = vld [vmem:[#allocation3 + $0x360] sm:$0xff]
        %v2959 = vld [vmem:[#allocation3 + $0x368] sm:$0xff]
        %v2960 = vld [vmem:[#allocation3 + $0x370] sm:$0xff]
        %v2961 = vld [vmem:[#allocation3 + $0x378] sm:$0xff]
        %v2962 = vld [vmem:[#allocation3 + $0x380] sm:$0xff]
        %v2963 = vld [vmem:[#allocation3 + $0x388] sm:$0xff]
        %v2964 = vld [vmem:[#allocation3 + $0x390] sm:$0xff]
        %v2965 = vld [vmem:[#allocation3 + $0x398] sm:$0xff]
        %v2966 = vld [vmem:[#allocation3 + $0x3a0] sm:$0xff]
        %v2967 = vld [vmem:[#allocation3 + $0x3a8] sm:$0xff]
        %v2968 = vld [vmem:[#allocation3 + $0x3b0] sm:$0xff]
        %v2969 = vld [vmem:[#allocation3 + $0x3b8] sm:$0xff]
        %v2970 = vld [vmem:[#allocation3 + $0x3c0] sm:$0xff]
        %v2971 = vld [vmem:[#allocation3 + $0x3c8] sm:$0xff]
        %v2972 = vld [vmem:[#allocation3 + $0x3d0] sm:$0xff]
        %v2973 = vld [vmem:[#allocation3 + $0x3d8] sm:$0xff]
        %v2974 = vld [vmem:[#allocation3 + $0x3e0] sm:$0xff]
        %v2975 = vld [vmem:[#allocation3 + $0x3e8] sm:$0xff]
        %v2976 = vld [vmem:[#allocation3 + $0x3f0] sm:$0xff]
        %v2977 = vld [vmem:[#allocation3 + $0x3f8] sm:$0xff]
        %v2978 = vld [vmem:[#allocation3 + $0x400] sm:$0xff]
        %v2979 = vld [vmem:[#allocation3 + $0x408] sm:$0xff]
        %v2980 = vld [vmem:[#allocation3 + $0x410] sm:$0xff]
        %v2981 = vld [vmem:[#allocation3 + $0x418] sm:$0xff]
        %v2982 = vld [vmem:[#allocation3 + $0x420] sm:$0xff]
        %v2983 = vld [vmem:[#allocation3 + $0x428] sm:$0xff]
        %v2984 = vld [vmem:[#allocation3 + $0x430] sm:$0xff]
        %v2985 = vld [vmem:[#allocation3 + $0x438] sm:$0xff]
        %v2986 = vld [vmem:[#allocation3 + $0x440] sm:$0xff]
        %v2987 = vld [vmem:[#allocation3 + $0x448] sm:$0xff]
        %v2988 = vld [vmem:[#allocation3 + $0x450] sm:$0xff]
        %v2989 = vld [vmem:[#allocation3 + $0x458] sm:$0xff]
        %v2990 = vld [vmem:[#allocation3 + $0x460] sm:$0xff]
        %v2991 = vld [vmem:[#allocation3 + $0x468] sm:$0xff]
        %v2992 = vld [vmem:[#allocation3 + $0x470] sm:$0xff]
        %v2993 = vld [vmem:[#allocation3 + $0x478] sm:$0xff]
        %v2994 = vld [vmem:[#allocation3 + $0x480] sm:$0xff]
        %v2995 = vld [vmem:[#allocation3 + $0x488] sm:$0xff]
        %v2996 = vld [vmem:[#allocation3 + $0x490] sm:$0xff]
        %v2997 = vld [vmem:[#allocation3 + $0x498] sm:$0xff]
        %v2998 = vld [vmem:[#allocation3 + $0x4a0] sm:$0xff]
        %v2999 = vld [vmem:[#allocation3 + $0x4a8] sm:$0xff]
        %v3000 = vld [vmem:[#allocation3 + $0x4b0] sm:$0xff]
        %v3001 = vld [vmem:[#allocation3 + $0x4b8] sm:$0xff]
        %v3002 = vld [vmem:[#allocation3 + $0x4c0] sm:$0xff]
        %v3003 = vld [vmem:[#allocation3 + $0x4c8] sm:$0xff]
        %v3004 = vld [vmem:[#allocation3 + $0x4d0] sm:$0xff]
        %v3005 = vld [vmem:[#allocation3 + $0x4d8] sm:$0xff]
        %v3006 = vld [vmem:[#allocation3 + $0x4e0] sm:$0xff]
        %v3007 = vld [vmem:[#allocation3 + $0x4e8] sm:$0xff]
        %v3008 = vld [vmem:[#allocation3 + $0x4f0] sm:$0xff]
        %v3009 = vld [vmem:[#allocation3 + $0x4f8] sm:$0xff]
        %v3010 = vld [vmem:[#allocation3 + $0x500] sm:$0xff]
        %v3011 = vld [vmem:[#allocation3 + $0x508] sm:$0xff]
        %v3012 = vld [vmem:[#allocation3 + $0x510] sm:$0xff]
        %v3013 = vld [vmem:[#allocation3 + $0x518] sm:$0xff]
        %v3014 = vld [vmem:[#allocation3 + $0x520] sm:$0xff]
        %v3015 = vld [vmem:[#allocation3 + $0x528] sm:$0xff]
        %v3016 = vld [vmem:[#allocation3 + $0x530] sm:$0xff]
        %v3017 = vld [vmem:[#allocation3 + $0x538] sm:$0xff]
        %v3018 = vld [vmem:[#allocation3 + $0x540] sm:$0xff]
        %v3019 = vld [vmem:[#allocation3 + $0x548] sm:$0xff]
        %v3020 = vld [vmem:[#allocation3 + $0x550] sm:$0xff]
        %v3021 = vld [vmem:[#allocation3 + $0x558] sm:$0xff]
        %v3022 = vld [vmem:[#allocation3 + $0x560] sm:$0xff]
        %v3023 = vld [vmem:[#allocation3 + $0x568] sm:$0xff]
        %v3024 = vld [vmem:[#allocation3 + $0x570] sm:$0xff]
        %v3025 = vld [vmem:[#allocation3 + $0x578] sm:$0xff]
        %v3026 = vld [vmem:[#allocation3 + $0x580] sm:$0xff]
        %v3027 = vld [vmem:[#allocation3 + $0x588] sm:$0xff]
        %v3028 = vld [vmem:[#allocation3 + $0x590] sm:$0xff]
        %v3029 = vld [vmem:[#allocation3 + $0x598] sm:$0xff]
        %v3030 = vld [vmem:[#allocation3 + $0x5a0] sm:$0xff]
        %v3031 = vld [vmem:[#allocation3 + $0x5a8] sm:$0xff]
        %v3032 = vld [vmem:[#allocation3 + $0x5b0] sm:$0xff]
        %v3033 = vld [vmem:[#allocation3 + $0x5b8] sm:$0xff]
        %v3034 = vld [vmem:[#allocation3 + $0x5c0] sm:$0xff]
        %v3035 = vld [vmem:[#allocation3 + $0x5c8] sm:$0xff]
        %v3036 = vld [vmem:[#allocation3 + $0x5d0] sm:$0xff]
        %v3037 = vld [vmem:[#allocation3 + $0x5d8] sm:$0xff]
        %v3038 = vld [vmem:[#allocation3 + $0x5e0] sm:$0xff]
        %v3039 = vld [vmem:[#allocation3 + $0x5e8] sm:$0xff]
        %v3040 = vld [vmem:[#allocation3 + $0x5f0] sm:$0xff]
        %v3041 = vld [vmem:[#allocation3 + $0x5f8] sm:$0xff]
        %v3138 = vunpack.c.l.b16 %v2850
        %v3139 = vunpack.c.h.b16 %v2850
        %v3140 = vunpack.c.l.b16 %v2851
        %v3141 = vunpack.c.h.b16 %v2851
        %v3142 = vunpack.c.l.b16 %v2852
        %v3143 = vunpack.c.h.b16 %v2852
        %v3144 = vunpack.c.l.b16 %v2853
        %v3145 = vunpack.c.h.b16 %v2853
        %v3146 = vunpack.c.l.b16 %v2854
        %v3147 = vunpack.c.h.b16 %v2854
        %v3148 = vunpack.c.l.b16 %v2855
        %v3149 = vunpack.c.h.b16 %v2855
        %v3150 = vunpack.c.l.b16 %v2856
        %v3151 = vunpack.c.h.b16 %v2856
        %v3152 = vunpack.c.l.b16 %v2857
        %v3153 = vunpack.c.h.b16 %v2857
        %v3154 = vunpack.c.l.b16 %v2858
        %v3155 = vunpack.c.h.b16 %v2858
        %v3156 = vunpack.c.l.b16 %v2859
        %v3157 = vunpack.c.h.b16 %v2859
        %v3158 = vunpack.c.l.b16 %v2860
        %v3159 = vunpack.c.h.b16 %v2860
        %v3160 = vunpack.c.l.b16 %v2861
        %v3161 = vunpack.c.h.b16 %v2861
        %v3162 = vunpack.c.l.b16 %v2862
        %v3163 = vunpack.c.h.b16 %v2862
        %v3164 = vunpack.c.l.b16 %v2863
        %v3165 = vunpack.c.h.b16 %v2863
        %v3166 = vunpack.c.l.b16 %v2864
        %v3167 = vunpack.c.h.b16 %v2864
        %v3168 = vunpack.c.l.b16 %v2865
        %v3169 = vunpack.c.h.b16 %v2865
        %v3170 = vunpack.c.l.b16 %v2866
        %v3171 = vunpack.c.h.b16 %v2866
        %v3172 = vunpack.c.l.b16 %v2867
        %v3173 = vunpack.c.h.b16 %v2867
        %v3174 = vunpack.c.l.b16 %v2868
        %v3175 = vunpack.c.h.b16 %v2868
        %v3176 = vunpack.c.l.b16 %v2869
        %v3177 = vunpack.c.h.b16 %v2869
        %v3178 = vunpack.c.l.b16 %v2870
        %v3179 = vunpack.c.h.b16 %v2870
        %v3180 = vunpack.c.l.b16 %v2871
        %v3181 = vunpack.c.h.b16 %v2871
        %v3182 = vunpack.c.l.b16 %v2872
        %v3183 = vunpack.c.h.b16 %v2872
        %v3184 = vunpack.c.l.b16 %v2873
        %v3185 = vunpack.c.h.b16 %v2873
        %v3186 = vunpack.c.l.b16 %v2874
        %v3187 = vunpack.c.h.b16 %v2874
        %v3188 = vunpack.c.l.b16 %v2875
        %v3189 = vunpack.c.h.b16 %v2875
        %v3190 = vunpack.c.l.b16 %v2876
        %v3191 = vunpack.c.h.b16 %v2876
        %v3192 = vunpack.c.l.b16 %v2877
        %v3193 = vunpack.c.h.b16 %v2877
        %v3194 = vunpack.c.l.b16 %v2878
        %v3195 = vunpack.c.h.b16 %v2878
        %v3196 = vunpack.c.l.b16 %v2879
        %v3197 = vunpack.c.h.b16 %v2879
        %v3198 = vunpack.c.l.b16 %v2880
        %v3199 = vunpack.c.h.b16 %v2880
        %v3200 = vunpack.c.l.b16 %v2881
        %v3201 = vunpack.c.h.b16 %v2881
        %v3202 = vunpack.c.l.b16 %v2882
        %v3203 = vunpack.c.h.b16 %v2882
        %v3204 = vunpack.c.l.b16 %v2883
        %v3205 = vunpack.c.h.b16 %v2883
        %v3206 = vunpack.c.l.b16 %v2884
        %v3207 = vunpack.c.h.b16 %v2884
        %v3208 = vunpack.c.l.b16 %v2885
        %v3209 = vunpack.c.h.b16 %v2885
        %v3210 = vunpack.c.l.b16 %v2886
        %v3211 = vunpack.c.h.b16 %v2886
        %v3212 = vunpack.c.l.b16 %v2887
        %v3213 = vunpack.c.h.b16 %v2887
        %v3214 = vunpack.c.l.b16 %v2888
        %v3215 = vunpack.c.h.b16 %v2888
        %v3216 = vunpack.c.l.b16 %v2889
        %v3217 = vunpack.c.h.b16 %v2889
        %v3218 = vunpack.c.l.b16 %v2890
        %v3219 = vunpack.c.h.b16 %v2890
        %v3220 = vunpack.c.l.b16 %v2891
        %v3221 = vunpack.c.h.b16 %v2891
        %v3222 = vunpack.c.l.b16 %v2892
        %v3223 = vunpack.c.h.b16 %v2892
        %v3224 = vunpack.c.l.b16 %v2893
        %v3225 = vunpack.c.h.b16 %v2893
        %v3226 = vunpack.c.l.b16 %v2894
        %v3227 = vunpack.c.h.b16 %v2894
        %v3228 = vunpack.c.l.b16 %v2895
        %v3229 = vunpack.c.h.b16 %v2895
        %v3230 = vunpack.c.l.b16 %v2896
        %v3231 = vunpack.c.h.b16 %v2896
        %v3232 = vunpack.c.l.b16 %v2897
        %v3233 = vunpack.c.h.b16 %v2897
        %v3234 = vunpack.c.l.b16 %v2898
        %v3235 = vunpack.c.h.b16 %v2898
        %v3236 = vunpack.c.l.b16 %v2899
        %v3237 = vunpack.c.h.b16 %v2899
        %v3238 = vunpack.c.l.b16 %v2900
        %v3239 = vunpack.c.h.b16 %v2900
        %v3240 = vunpack.c.l.b16 %v2901
        %v3241 = vunpack.c.h.b16 %v2901
        %v3242 = vunpack.c.l.b16 %v2902
        %v3243 = vunpack.c.h.b16 %v2902
        %v3244 = vunpack.c.l.b16 %v2903
        %v3245 = vunpack.c.h.b16 %v2903
        %v3246 = vunpack.c.l.b16 %v2904
        %v3247 = vunpack.c.h.b16 %v2904
        %v3248 = vunpack.c.l.b16 %v2905
        %v3249 = vunpack.c.h.b16 %v2905
        %v3250 = vunpack.c.l.b16 %v2906
        %v3251 = vunpack.c.h.b16 %v2906
        %v3252 = vunpack.c.l.b16 %v2907
        %v3253 = vunpack.c.h.b16 %v2907
        %v3254 = vunpack.c.l.b16 %v2908
        %v3255 = vunpack.c.h.b16 %v2908
        %v3256 = vunpack.c.l.b16 %v2909
        %v3257 = vunpack.c.h.b16 %v2909
        %v3258 = vunpack.c.l.b16 %v2910
        %v3259 = vunpack.c.h.b16 %v2910
        %v3260 = vunpack.c.l.b16 %v2911
        %v3261 = vunpack.c.h.b16 %v2911
        %v3262 = vunpack.c.l.b16 %v2912
        %v3263 = vunpack.c.h.b16 %v2912
        %v3264 = vunpack.c.l.b16 %v2913
        %v3265 = vunpack.c.h.b16 %v2913
        %v3266 = vunpack.c.l.b16 %v2914
        %v3267 = vunpack.c.h.b16 %v2914
        %v3268 = vunpack.c.l.b16 %v2915
        %v3269 = vunpack.c.h.b16 %v2915
        %v3270 = vunpack.c.l.b16 %v2916
        %v3271 = vunpack.c.h.b16 %v2916
        %v3272 = vunpack.c.l.b16 %v2917
        %v3273 = vunpack.c.h.b16 %v2917
        %v3274 = vunpack.c.l.b16 %v2918
        %v3275 = vunpack.c.h.b16 %v2918
        %v3276 = vunpack.c.l.b16 %v2919
        %v3277 = vunpack.c.h.b16 %v2919
        %v3278 = vunpack.c.l.b16 %v2920
        %v3279 = vunpack.c.h.b16 %v2920
        %v3280 = vunpack.c.l.b16 %v2921
        %v3281 = vunpack.c.h.b16 %v2921
        %v3282 = vunpack.c.l.b16 %v2922
        %v3283 = vunpack.c.h.b16 %v2922
        %v3284 = vunpack.c.l.b16 %v2923
        %v3285 = vunpack.c.h.b16 %v2923
        %v3286 = vunpack.c.l.b16 %v2924
        %v3287 = vunpack.c.h.b16 %v2924
        %v3288 = vunpack.c.l.b16 %v2925
        %v3289 = vunpack.c.h.b16 %v2925
        %v3290 = vunpack.c.l.b16 %v2926
        %v3291 = vunpack.c.h.b16 %v2926
        %v3292 = vunpack.c.l.b16 %v2927
        %v3293 = vunpack.c.h.b16 %v2927
        %v3294 = vunpack.c.l.b16 %v2928
        %v3295 = vunpack.c.h.b16 %v2928
        %v3296 = vunpack.c.l.b16 %v2929
        %v3297 = vunpack.c.h.b16 %v2929
        %v3298 = vunpack.c.l.b16 %v2930
        %v3299 = vunpack.c.h.b16 %v2930
        %v3300 = vunpack.c.l.b16 %v2931
        %v3301 = vunpack.c.h.b16 %v2931
        %v3302 = vunpack.c.l.b16 %v2932
        %v3303 = vunpack.c.h.b16 %v2932
        %v3304 = vunpack.c.l.b16 %v2933
        %v3305 = vunpack.c.h.b16 %v2933
        %v3306 = vunpack.c.l.b16 %v2934
        %v3307 = vunpack.c.h.b16 %v2934
        %v3308 = vunpack.c.l.b16 %v2935
        %v3309 = vunpack.c.h.b16 %v2935
        %v3310 = vunpack.c.l.b16 %v2936
        %v3311 = vunpack.c.h.b16 %v2936
        %v3312 = vunpack.c.l.b16 %v2937
        %v3313 = vunpack.c.h.b16 %v2937
        %v3314 = vunpack.c.l.b16 %v2938
        %v3315 = vunpack.c.h.b16 %v2938
        %v3316 = vunpack.c.l.b16 %v2939
        %v3317 = vunpack.c.h.b16 %v2939
        %v3318 = vunpack.c.l.b16 %v2940
        %v3319 = vunpack.c.h.b16 %v2940
        %v3320 = vunpack.c.l.b16 %v2941
        %v3321 = vunpack.c.h.b16 %v2941
        %v3322 = vunpack.c.l.b16 %v2942
        %v3323 = vunpack.c.h.b16 %v2942
        %v3324 = vunpack.c.l.b16 %v2943
        %v3325 = vunpack.c.h.b16 %v2943
        %v3326 = vunpack.c.l.b16 %v2944
        %v3327 = vunpack.c.h.b16 %v2944
        %v3328 = vunpack.c.l.b16 %v2945
        %v3329 = vunpack.c.h.b16 %v2945
        %v3330 = vpack.c.b16 %v3144, %v3138
        %v3331 = vpack.c.b16 %v3145, %v3139
        %v3332 = vpack.c.b16 %v3146, %v3140
        %v3333 = vpack.c.b16 %v3147, %v3141
        %v3334 = vpack.c.b16 %v3148, %v3142
        %v3335 = vpack.c.b16 %v3149, %v3143
        %v3336 = vpack.c.b16 %v3156, %v3150
        %v3337 = vpack.c.b16 %v3157, %v3151
        %v3338 = vpack.c.b16 %v3158, %v3152
        %v3339 = vpack.c.b16 %v3159, %v3153
        %v3340 = vpack.c.b16 %v3160, %v3154
        %v3341 = vpack.c.b16 %v3161, %v3155
        %v3342 = vpack.c.b16 %v3168, %v3162
        %v3343 = vpack.c.b16 %v3169, %v3163
        %v3344 = vpack.c.b16 %v3170, %v3164
        %v3345 = vpack.c.b16 %v3171, %v3165
        %v3346 = vpack.c.b16 %v3172, %v3166
        %v3347 = vpack.c.b16 %v3173, %v3167
        %v3348 = vpack.c.b16 %v3180, %v3174
        %v3349 = vpack.c.b16 %v3181, %v3175
        %v3350 = vpack.c.b16 %v3182, %v3176
        %v3351 = vpack.c.b16 %v3183, %v3177
        %v3352 = vpack.c.b16 %v3184, %v3178
        %v3353 = vpack.c.b16 %v3185, %v3179
        %v3354 = vpack.c.b16 %v3192, %v3186
        %v3355 = vpack.c.b16 %v3193, %v3187
        %v3356 = vpack.c.b16 %v3194, %v3188
        %v3357 = vpack.c.b16 %v3195, %v3189
        %v3358 = vpack.c.b16 %v3196, %v3190
        %v3359 = vpack.c.b16 %v3197, %v3191
        %v3360 = vpack.c.b16 %v3204, %v3198
        %v3361 = vpack.c.b16 %v3205, %v3199
        %v3362 = vpack.c.b16 %v3206, %v3200
        %v3363 = vpack.c.b16 %v3207, %v3201
        %v3364 = vpack.c.b16 %v3208, %v3202
        %v3365 = vpack.c.b16 %v3209, %v3203
        %v3366 = vpack.c.b16 %v3216, %v3210
        %v3367 = vpack.c.b16 %v3217, %v3211
        %v3368 = vpack.c.b16 %v3218, %v3212
        %v3369 = vpack.c.b16 %v3219, %v3213
        %v3370 = vpack.c.b16 %v3220, %v3214
        %v3371 = vpack.c.b16 %v3221, %v3215
        %v3372 = vpack.c.b16 %v3228, %v3222
        %v3373 = vpack.c.b16 %v3229, %v3223
        %v3374 = vpack.c.b16 %v3230, %v3224
        %v3375 = vpack.c.b16 %v3231, %v3225
        %v3376 = vpack.c.b16 %v3232, %v3226
        %v3377 = vpack.c.b16 %v3233, %v3227
        %v3378 = vpack.c.b16 %v3240, %v3234
        %v3379 = vpack.c.b16 %v3241, %v3235
        %v3380 = vpack.c.b16 %v3242, %v3236
        %v3381 = vpack.c.b16 %v3243, %v3237
        %v3382 = vpack.c.b16 %v3244, %v3238
        %v3383 = vpack.c.b16 %v3245, %v3239
        %v3384 = vpack.c.b16 %v3252, %v3246
        %v3385 = vpack.c.b16 %v3253, %v3247
        %v3386 = vpack.c.b16 %v3254, %v3248
        %v3387 = vpack.c.b16 %v3255, %v3249
        %v3388 = vpack.c.b16 %v3256, %v3250
        %v3389 = vpack.c.b16 %v3257, %v3251
        %v3390 = vpack.c.b16 %v3264, %v3258
        %v3391 = vpack.c.b16 %v3265, %v3259
        %v3392 = vpack.c.b16 %v3266, %v3260
        %v3393 = vpack.c.b16 %v3267, %v3261
        %v3394 = vpack.c.b16 %v3268, %v3262
        %v3395 = vpack.c.b16 %v3269, %v3263
        %v3396 = vpack.c.b16 %v3276, %v3270
        %v3397 = vpack.c.b16 %v3277, %v3271
        %v3398 = vpack.c.b16 %v3278, %v3272
        %v3399 = vpack.c.b16 %v3279, %v3273
        %v3400 = vpack.c.b16 %v3280, %v3274
        %v3401 = vpack.c.b16 %v3281, %v3275
        %v3402 = vpack.c.b16 %v3288, %v3282
        %v3403 = vpack.c.b16 %v3289, %v3283
        %v3404 = vpack.c.b16 %v3290, %v3284
        %v3405 = vpack.c.b16 %v3291, %v3285
        %v3406 = vpack.c.b16 %v3292, %v3286
        %v3407 = vpack.c.b16 %v3293, %v3287
        %v3408 = vpack.c.b16 %v3300, %v3294
        %v3409 = vpack.c.b16 %v3301, %v3295
        %v3410 = vpack.c.b16 %v3302, %v3296
        %v3411 = vpack.c.b16 %v3303, %v3297
        %v3412 = vpack.c.b16 %v3304, %v3298
        %v3413 = vpack.c.b16 %v3305, %v3299
        %v3414 = vpack.c.b16 %v3312, %v3306
        %v3415 = vpack.c.b16 %v3313, %v3307
        %v3416 = vpack.c.b16 %v3314, %v3308
        %v3417 = vpack.c.b16 %v3315, %v3309
        %v3418 = vpack.c.b16 %v3316, %v3310
        %v3419 = vpack.c.b16 %v3317, %v3311
        %v3420 = vpack.c.b16 %v3324, %v3318
        %v3421 = vpack.c.b16 %v3325, %v3319
        %v3422 = vpack.c.b16 %v3326, %v3320
        %v3423 = vpack.c.b16 %v3327, %v3321
        %v3424 = vpack.c.b16 %v3328, %v3322
        %v3425 = vpack.c.b16 %v3329, %v3323
        %3522 = vmatprep.subr.bf16.mxu0 %v2947
        %3523 = vmatpush1.bf16.msra.mxu0 %v2946
        %3524 = vmatprep.subr.bf16.mxu0 %v2949
        %3525 = vmatpush1.bf16.msra.mxu0 %v2948
        %3526 = vmatprep.subr.bf16.mxu0 %v2951
        %3527 = vmatpush1.bf16.msra.mxu0 %v2950
        %3528 = vmatprep.subr.bf16.mxu0 %v2953
        %3529 = vmatpush1.bf16.msra.mxu0 %v2952
        %3530 = vmatprep.subr.bf16.mxu0 %v2955
        %3531 = vmatpush1.bf16.msra.mxu0 %v2954
        %3532 = vmatprep.subr.bf16.mxu0 %v2957
        %3533 = vmatpush1.bf16.msra.mxu0 %v2956
        %3534 = vmatprep.subr.bf16.mxu0 %v2959
        %3535 = vmatpush1.bf16.msra.mxu0 %v2958
        %3536 = vmatprep.subr.bf16.mxu0 %v2961
        %3537 = vmatpush1.bf16.msra.mxu0 %v2960
        %3538 = vmatprep.subr.bf16.mxu0 %v2963
        %3539 = vmatpush1.bf16.msra.mxu0 %v2962
        %3540 = vmatprep.subr.bf16.mxu0 %v2965
        %3541 = vmatpush1.bf16.msra.mxu0 %v2964
        %3542 = vmatprep.subr.bf16.mxu0 %v2967
        %3543 = vmatpush1.bf16.msra.mxu0 %v2966
        %3544 = vmatprep.subr.bf16.mxu0 %v2969
        %3545 = vmatpush1.bf16.msra.mxu0 %v2968
        %3546 = vmatprep.subr.bf16.mxu0 %v2971
        %3547 = vmatpush1.bf16.msra.mxu0 %v2970
        %3548 = vmatprep.subr.bf16.mxu0 %v2973
        %3549 = vmatpush1.bf16.msra.mxu0 %v2972
        %3550 = vmatprep.subr.bf16.mxu0 %v2975
        %3551 = vmatpush1.bf16.msra.mxu0 %v2974
        %3552 = vmatprep.subr.bf16.mxu0 %v2977
        %3553 = vmatpush1.bf16.msra.mxu0 %v2976
        %3554 = vmatprep.mubr.bf16.mxu0 %v3331
        %3555 = vmatmul.mubr.bf16.gmra.mrb[0].mxu0 %v3330
        %v3556 = vpop.f32.mrb[0].mxu0
        %v3557 = vadd.f32 0.0, %v3556
        %v3558 = vpop.f32.mrb[0].mxu0
        %v3559 = vadd.f32 0.0, %v3558
        %v3560 = vpop.f32.mrb[0].mxu0
        %v3561 = vadd.f32 0.0, %v3560
        %v3562 = vpop.f32.mrb[0].mxu0
        %v3563 = vadd.f32 0.0, %v3562
        %3564 = vmatprep.mubr.bf16.mxu0 %v3337
        %3565 = vmatmul.mubr.bf16.gmra.mrb[0].mxu0 %v3336
        %v3566 = vpop.f32.mrb[0].mxu0
        %v3567 = vadd.f32 0.0, %v3566
        %v3568 = vpop.f32.mrb[0].mxu0
        %v3569 = vadd.f32 0.0, %v3568
        %v3570 = vpop.f32.mrb[0].mxu0
        %v3571 = vadd.f32 0.0, %v3570
        %v3572 = vpop.f32.mrb[0].mxu0
        %v3573 = vadd.f32 0.0, %v3572
        %3574 = vmatprep.mubr.bf16.mxu0 %v3343
        %3575 = vmatmul.mubr.bf16.gmra.mrb[0].mxu0 %v3342
        %v3576 = vpop.f32.mrb[0].mxu0
        %v3577 = vadd.f32 0.0, %v3576
        %v3578 = vpop.f32.mrb[0].mxu0
        %v3579 = vadd.f32 0.0, %v3578
        %v3580 = vpop.f32.mrb[0].mxu0
        %v3581 = vadd.f32 0.0, %v3580
        %v3582 = vpop.f32.mrb[0].mxu0
        %v3583 = vadd.f32 0.0, %v3582
        %3584 = vmatprep.mubr.bf16.mxu0 %v3349
        %3585 = vmatmul.mubr.bf16.gmra.mrb[0].mxu0 %v3348
        %v3586 = vpop.f32.mrb[0].mxu0
        %v3587 = vadd.f32 0.0, %v3586
        %v3588 = vpop.f32.mrb[0].mxu0
        %v3589 = vadd.f32 0.0, %v3588
        %v3590 = vpop.f32.mrb[0].mxu0
        %v3591 = vadd.f32 0.0, %v3590
        %v3592 = vpop.f32.mrb[0].mxu0
        %v3593 = vadd.f32 0.0, %v3592
        %3594 = vmatprep.mubr.bf16.mxu0 %v3355
        %3595 = vmatmul.mubr.bf16.gmra.mrb[0].mxu0 %v3354
        %v3596 = vpop.f32.mrb[0].mxu0
        %v3597 = vadd.f32 0.0, %v3596
        %v3598 = vpop.f32.mrb[0].mxu0
        %v3599 = vadd.f32 0.0, %v3598
        %v3600 = vpop.f32.mrb[0].mxu0
        %v3601 = vadd.f32 0.0, %v3600
        %v3602 = vpop.f32.mrb[0].mxu0
        %v3603 = vadd.f32 0.0, %v3602
        %3604 = vmatprep.mubr.bf16.mxu0 %v3361
        %3605 = vmatmul.mubr.bf16.gmra.mrb[0].mxu0 %v3360
        %v3606 = vpop.f32.mrb[0].mxu0
        %v3607 = vadd.f32 0.0, %v3606
        %v3608 = vpop.f32.mrb[0].mxu0
        %v3609 = vadd.f32 0.0, %v3608
        %v3610 = vpop.f32.mrb[0].mxu0
        %v3611 = vadd.f32 0.0, %v3610
        %v3612 = vpop.f32.mrb[0].mxu0
        %v3613 = vadd.f32 0.0, %v3612
        %3614 = vmatprep.mubr.bf16.mxu0 %v3367
        %3615 = vmatmul.mubr.bf16.gmra.mrb[0].mxu0 %v3366
        %v3616 = vpop.f32.mrb[0].mxu0
        %v3617 = vadd.f32 0.0, %v3616
        %v3618 = vpop.f32.mrb[0].mxu0
        %v3619 = vadd.f32 0.0, %v3618
        %v3620 = vpop.f32.mrb[0].mxu0
        %v3621 = vadd.f32 0.0, %v3620
        %v3622 = vpop.f32.mrb[0].mxu0
        %v3623 = vadd.f32 0.0, %v3622
        %3624 = vmatprep.mubr.bf16.mxu0 %v3373
        %3625 = vmatmul.mubr.bf16.gmra.mrb[0].mxu0 %v3372
        %v3626 = vpop.f32.mrb[0].mxu0
        %v3627 = vadd.f32 0.0, %v3626
        %v3628 = vpop.f32.mrb[0].mxu0
        %v3629 = vadd.f32 0.0, %v3628
        %v3630 = vpop.f32.mrb[0].mxu0
        %v3631 = vadd.f32 0.0, %v3630
        %v3632 = vpop.f32.mrb[0].mxu0
        %v3633 = vadd.f32 0.0, %v3632
        %3634 = vmatprep.mubr.bf16.mxu0 %v3379
        %3635 = vmatmul.mubr.bf16.gmra.mrb[0].mxu0 %v3378
        %v3636 = vpop.f32.mrb[0].mxu0
        %v3637 = vadd.f32 0.0, %v3636
        %v3638 = vpop.f32.mrb[0].mxu0
        %v3639 = vadd.f32 0.0, %v3638
        %v3640 = vpop.f32.mrb[0].mxu0
        %v3641 = vadd.f32 0.0, %v3640
        %v3642 = vpop.f32.mrb[0].mxu0
        %v3643 = vadd.f32 0.0, %v3642
        %3644 = vmatprep.mubr.bf16.mxu0 %v3385
        %3645 = vmatmul.mubr.bf16.gmra.mrb[0].mxu0 %v3384
        %v3646 = vpop.f32.mrb[0].mxu0
        %v3647 = vadd.f32 0.0, %v3646
        %v3648 = vpop.f32.mrb[0].mxu0
        %v3649 = vadd.f32 0.0, %v3648
        %v3650 = vpop.f32.mrb[0].mxu0
        %v3651 = vadd.f32 0.0, %v3650
        %v3652 = vpop.f32.mrb[0].mxu0
        %v3653 = vadd.f32 0.0, %v3652
        %3654 = vmatprep.mubr.bf16.mxu0 %v3391
        %3655 = vmatmul.mubr.bf16.gmra.mrb[0].mxu0 %v3390
        %v3656 = vpop.f32.mrb[0].mxu0
        %v3657 = vadd.f32 0.0, %v3656
        %v3658 = vpop.f32.mrb[0].mxu0
        %v3659 = vadd.f32 0.0, %v3658
        %v3660 = vpop.f32.mrb[0].mxu0
        %v3661 = vadd.f32 0.0, %v3660
        %v3662 = vpop.f32.mrb[0].mxu0
        %v3663 = vadd.f32 0.0, %v3662
        %3664 = vmatprep.mubr.bf16.mxu0 %v3397
        %3665 = vmatmul.mubr.bf16.gmra.mrb[0].mxu0 %v3396
        %v3666 = vpop.f32.mrb[0].mxu0
        %v3667 = vadd.f32 0.0, %v3666
        %v3668 = vpop.f32.mrb[0].mxu0
        %v3669 = vadd.f32 0.0, %v3668
        %v3670 = vpop.f32.mrb[0].mxu0
        %v3671 = vadd.f32 0.0, %v3670
        %v3672 = vpop.f32.mrb[0].mxu0
        %v3673 = vadd.f32 0.0, %v3672
        %3674 = vmatprep.mubr.bf16.mxu0 %v3403
        %3675 = vmatmul.mubr.bf16.gmra.mrb[0].mxu0 %v3402
        %v3676 = vpop.f32.mrb[0].mxu0
        %v3677 = vadd.f32 0.0, %v3676
        %v3678 = vpop.f32.mrb[0].mxu0
        %v3679 = vadd.f32 0.0, %v3678
        %v3680 = vpop.f32.mrb[0].mxu0
        %v3681 = vadd.f32 0.0, %v3680
        %v3682 = vpop.f32.mrb[0].mxu0
        %v3683 = vadd.f32 0.0, %v3682
        %3684 = vmatprep.mubr.bf16.mxu0 %v3409
        %3685 = vmatmul.mubr.bf16.gmra.mrb[0].mxu0 %v3408
        %v3686 = vpop.f32.mrb[0].mxu0
        %v3687 = vadd.f32 0.0, %v3686
        %v3688 = vpop.f32.mrb[0].mxu0
        %v3689 = vadd.f32 0.0, %v3688
        %v3690 = vpop.f32.mrb[0].mxu0
        %v3691 = vadd.f32 0.0, %v3690
        %v3692 = vpop.f32.mrb[0].mxu0
        %v3693 = vadd.f32 0.0, %v3692
        %3694 = vmatprep.mubr.bf16.mxu0 %v3415
        %3695 = vmatmul.mubr.bf16.gmra.mrb[0].mxu0 %v3414
        %v3696 = vpop.f32.mrb[0].mxu0
        %v3697 = vadd.f32 0.0, %v3696
        %v3698 = vpop.f32.mrb[0].mxu0
        %v3699 = vadd.f32 0.0, %v3698
        %v3700 = vpop.f32.mrb[0].mxu0
        %v3701 = vadd.f32 0.0, %v3700
        %v3702 = vpop.f32.mrb[0].mxu0
        %v3703 = vadd.f32 0.0, %v3702
        %3704 = vmatprep.mubr.bf16.mxu0 %v3421
        %3705 = vmatmul.mubr.bf16.gmra.mrb[0].mxu0 %v3420
        %v3706 = vpop.f32.mrb[0].mxu0
        %v3707 = vadd.f32 0.0, %v3706
        %v3708 = vpop.f32.mrb[0].mxu0
        %v3709 = vadd.f32 0.0, %v3708
        %v3710 = vpop.f32.mrb[0].mxu0
        %v3711 = vadd.f32 0.0, %v3710
        %v3712 = vpop.f32.mrb[0].mxu0
        %v3713 = vadd.f32 0.0, %v3712
        %3714 = vdwg.mxu0
        %3715 = vmatprep.subr.bf16.mxu0 %v2979
        %3716 = vmatpush1.bf16.msra.mxu0 %v2978
        %3717 = vmatprep.subr.bf16.mxu0 %v2981
        %3718 = vmatpush1.bf16.msra.mxu0 %v2980
        %3719 = vmatprep.subr.bf16.mxu0 %v2983
        %3720 = vmatpush1.bf16.msra.mxu0 %v2982
        %3721 = vmatprep.subr.bf16.mxu0 %v2985
        %3722 = vmatpush1.bf16.msra.mxu0 %v2984
        %3723 = vmatprep.subr.bf16.mxu0 %v2987
        %3724 = vmatpush1.bf16.msra.mxu0 %v2986
        %3725 = vmatprep.subr.bf16.mxu0 %v2989
        %3726 = vmatpush1.bf16.msra.mxu0 %v2988
        %3727 = vmatprep.subr.bf16.mxu0 %v2991
        %3728 = vmatpush1.bf16.msra.mxu0 %v2990
        %3729 = vmatprep.subr.bf16.mxu0 %v2993
        %3730 = vmatpush1.bf16.msra.mxu0 %v2992
        %3731 = vmatprep.subr.bf16.mxu0 %v2995
        %3732 = vmatpush1.bf16.msra.mxu0 %v2994
        %3733 = vmatprep.subr.bf16.mxu0 %v2997
        %3734 = vmatpush1.bf16.msra.mxu0 %v2996
        %3735 = vmatprep.subr.bf16.mxu0 %v2999
        %3736 = vmatpush1.bf16.msra.mxu0 %v2998
        %3737 = vmatprep.subr.bf16.mxu0 %v3001
        %3738 = vmatpush1.bf16.msra.mxu0 %v3000
        %3739 = vmatprep.subr.bf16.mxu0 %v3003
        %3740 = vmatpush1.bf16.msra.mxu0 %v3002
        %3741 = vmatprep.subr.bf16.mxu0 %v3005
        %3742 = vmatpush1.bf16.msra.mxu0 %v3004
        %3743 = vmatprep.subr.bf16.mxu0 %v3007
        %3744 = vmatpush1.bf16.msra.mxu0 %v3006
        %3745 = vmatprep.subr.bf16.mxu0 %v3009
        %3746 = vmatpush1.bf16.msra.mxu0 %v3008
        %3747 = vmatprep.mubr.bf16.mxu0 %v3333
        %3748 = vmatmul.mubr.bf16.gmra.mrb[0].mxu0 %v3332
        %v3749 = vpop.f32.mrb[0].mxu0
        %v3750 = vadd.f32 %v3557, %v3749
        %v3751 = vpop.f32.mrb[0].mxu0
        %v3752 = vadd.f32 %v3559, %v3751
        %v3753 = vpop.f32.mrb[0].mxu0
        %v3754 = vadd.f32 %v3561, %v3753
        %v3755 = vpop.f32.mrb[0].mxu0
        %v3756 = vadd.f32 %v3563, %v3755
        %3757 = vmatprep.mubr.bf16.mxu0 %v3339
        %3758 = vmatmul.mubr.bf16.gmra.mrb[0].mxu0 %v3338
        %v3759 = vpop.f32.mrb[0].mxu0
        %v3760 = vadd.f32 %v3567, %v3759
        %v3761 = vpop.f32.mrb[0].mxu0
        %v3762 = vadd.f32 %v3569, %v3761
        %v3763 = vpop.f32.mrb[0].mxu0
        %v3764 = vadd.f32 %v3571, %v3763
        %v3765 = vpop.f32.mrb[0].mxu0
        %v3766 = vadd.f32 %v3573, %v3765
        %3767 = vmatprep.mubr.bf16.mxu0 %v3345
        %3768 = vmatmul.mubr.bf16.gmra.mrb[0].mxu0 %v3344
        %v3769 = vpop.f32.mrb[0].mxu0
        %v3770 = vadd.f32 %v3577, %v3769
        %v3771 = vpop.f32.mrb[0].mxu0
        %v3772 = vadd.f32 %v3579, %v3771
        %v3773 = vpop.f32.mrb[0].mxu0
        %v3774 = vadd.f32 %v3581, %v3773
        %v3775 = vpop.f32.mrb[0].mxu0
        %v3776 = vadd.f32 %v3583, %v3775
        %3777 = vmatprep.mubr.bf16.mxu0 %v3351
        %3778 = vmatmul.mubr.bf16.gmra.mrb[0].mxu0 %v3350
        %v3779 = vpop.f32.mrb[0].mxu0
        %v3780 = vadd.f32 %v3587, %v3779
        %v3781 = vpop.f32.mrb[0].mxu0
        %v3782 = vadd.f32 %v3589, %v3781
        %v3783 = vpop.f32.mrb[0].mxu0
        %v3784 = vadd.f32 %v3591, %v3783
        %v3785 = vpop.f32.mrb[0].mxu0
        %v3786 = vadd.f32 %v3593, %v3785
        %3787 = vmatprep.mubr.bf16.mxu0 %v3357
        %3788 = vmatmul.mubr.bf16.gmra.mrb[0].mxu0 %v3356
        %v3789 = vpop.f32.mrb[0].mxu0
        %v3790 = vadd.f32 %v3597, %v3789
        %v3791 = vpop.f32.mrb[0].mxu0
        %v3792 = vadd.f32 %v3599, %v3791
        %v3793 = vpop.f32.mrb[0].mxu0
        %v3794 = vadd.f32 %v3601, %v3793
        %v3795 = vpop.f32.mrb[0].mxu0
        %v3796 = vadd.f32 %v3603, %v3795
        %3797 = vmatprep.mubr.bf16.mxu0 %v3363
        %3798 = vmatmul.mubr.bf16.gmra.mrb[0].mxu0 %v3362
        %v3799 = vpop.f32.mrb[0].mxu0
        %v3800 = vadd.f32 %v3607, %v3799
        %v3801 = vpop.f32.mrb[0].mxu0
        %v3802 = vadd.f32 %v3609, %v3801
        %v3803 = vpop.f32.mrb[0].mxu0
        %v3804 = vadd.f32 %v3611, %v3803
        %v3805 = vpop.f32.mrb[0].mxu0
        %v3806 = vadd.f32 %v3613, %v3805
        %3807 = vmatprep.mubr.bf16.mxu0 %v3369
        %3808 = vmatmul.mubr.bf16.gmra.mrb[0].mxu0 %v3368
        %v3809 = vpop.f32.mrb[0].mxu0
        %v3810 = vadd.f32 %v3617, %v3809
        %v3811 = vpop.f32.mrb[0].mxu0
        %v3812 = vadd.f32 %v3619, %v3811
        %v3813 = vpop.f32.mrb[0].mxu0
        %v3814 = vadd.f32 %v3621, %v3813
        %v3815 = vpop.f32.mrb[0].mxu0
        %v3816 = vadd.f32 %v3623, %v3815
        %3817 = vmatprep.mubr.bf16.mxu0 %v3375
        %3818 = vmatmul.mubr.bf16.gmra.mrb[0].mxu0 %v3374
        %v3819 = vpop.f32.mrb[0].mxu0
        %v3820 = vadd.f32 %v3627, %v3819
        %v3821 = vpop.f32.mrb[0].mxu0
        %v3822 = vadd.f32 %v3629, %v3821
        %v3823 = vpop.f32.mrb[0].mxu0
        %v3824 = vadd.f32 %v3631, %v3823
        %v3825 = vpop.f32.mrb[0].mxu0
        %v3826 = vadd.f32 %v3633, %v3825
        %3827 = vmatprep.mubr.bf16.mxu0 %v3381
        %3828 = vmatmul.mubr.bf16.gmra.mrb[0].mxu0 %v3380
        %v3829 = vpop.f32.mrb[0].mxu0
        %v3830 = vadd.f32 %v3637, %v3829
        %v3831 = vpop.f32.mrb[0].mxu0
        %v3832 = vadd.f32 %v3639, %v3831
        %v3833 = vpop.f32.mrb[0].mxu0
        %v3834 = vadd.f32 %v3641, %v3833
        %v3835 = vpop.f32.mrb[0].mxu0
        %v3836 = vadd.f32 %v3643, %v3835
        %3837 = vmatprep.mubr.bf16.mxu0 %v3387
        %3838 = vmatmul.mubr.bf16.gmra.mrb[0].mxu0 %v3386
        %v3839 = vpop.f32.mrb[0].mxu0
        %v3840 = vadd.f32 %v3647, %v3839
        %v3841 = vpop.f32.mrb[0].mxu0
        %v3842 = vadd.f32 %v3649, %v3841
        %v3843 = vpop.f32.mrb[0].mxu0
        %v3844 = vadd.f32 %v3651, %v3843
        %v3845 = vpop.f32.mrb[0].mxu0
        %v3846 = vadd.f32 %v3653, %v3845
        %3847 = vmatprep.mubr.bf16.mxu0 %v3393
        %3848 = vmatmul.mubr.bf16.gmra.mrb[0].mxu0 %v3392
        %v3849 = vpop.f32.mrb[0].mxu0
        %v3850 = vadd.f32 %v3657, %v3849
        %v3851 = vpop.f32.mrb[0].mxu0
        %v3852 = vadd.f32 %v3659, %v3851
        %v3853 = vpop.f32.mrb[0].mxu0
        %v3854 = vadd.f32 %v3661, %v3853
        %v3855 = vpop.f32.mrb[0].mxu0
        %v3856 = vadd.f32 %v3663, %v3855
        %3857 = vmatprep.mubr.bf16.mxu0 %v3399
        %3858 = vmatmul.mubr.bf16.gmra.mrb[0].mxu0 %v3398
        %v3859 = vpop.f32.mrb[0].mxu0
        %v3860 = vadd.f32 %v3667, %v3859
        %v3861 = vpop.f32.mrb[0].mxu0
        %v3862 = vadd.f32 %v3669, %v3861
        %v3863 = vpop.f32.mrb[0].mxu0
        %v3864 = vadd.f32 %v3671, %v3863
        %v3865 = vpop.f32.mrb[0].mxu0
        %v3866 = vadd.f32 %v3673, %v3865
        %3867 = vmatprep.mubr.bf16.mxu0 %v3405
        %3868 = vmatmul.mubr.bf16.gmra.mrb[0].mxu0 %v3404
        %v3869 = vpop.f32.mrb[0].mxu0
        %v3870 = vadd.f32 %v3677, %v3869
        %v3871 = vpop.f32.mrb[0].mxu0
        %v3872 = vadd.f32 %v3679, %v3871
        %v3873 = vpop.f32.mrb[0].mxu0
        %v3874 = vadd.f32 %v3681, %v3873
        %v3875 = vpop.f32.mrb[0].mxu0
        %v3876 = vadd.f32 %v3683, %v3875
        %3877 = vmatprep.mubr.bf16.mxu0 %v3411
        %3878 = vmatmul.mubr.bf16.gmra.mrb[0].mxu0 %v3410
        %v3879 = vpop.f32.mrb[0].mxu0
        %v3880 = vadd.f32 %v3687, %v3879
        %v3881 = vpop.f32.mrb[0].mxu0
        %v3882 = vadd.f32 %v3689, %v3881
        %v3883 = vpop.f32.mrb[0].mxu0
        %v3884 = vadd.f32 %v3691, %v3883
        %v3885 = vpop.f32.mrb[0].mxu0
        %v3886 = vadd.f32 %v3693, %v3885
        %3887 = vmatprep.mubr.bf16.mxu0 %v3417
        %3888 = vmatmul.mubr.bf16.gmra.mrb[0].mxu0 %v3416
        %v3889 = vpop.f32.mrb[0].mxu0
        %v3890 = vadd.f32 %v3697, %v3889
        %v3891 = vpop.f32.mrb[0].mxu0
        %v3892 = vadd.f32 %v3699, %v3891
        %v3893 = vpop.f32.mrb[0].mxu0
        %v3894 = vadd.f32 %v3701, %v3893
        %v3895 = vpop.f32.mrb[0].mxu0
        %v3896 = vadd.f32 %v3703, %v3895
        %3897 = vmatprep.mubr.bf16.mxu0 %v3423
        %3898 = vmatmul.mubr.bf16.gmra.mrb[0].mxu0 %v3422
        %v3899 = vpop.f32.mrb[0].mxu0
        %v3900 = vadd.f32 %v3707, %v3899
        %v3901 = vpop.f32.mrb[0].mxu0
        %v3902 = vadd.f32 %v3709, %v3901
        %v3903 = vpop.f32.mrb[0].mxu0
        %v3904 = vadd.f32 %v3711, %v3903
        %v3905 = vpop.f32.mrb[0].mxu0
        %v3906 = vadd.f32 %v3713, %v3905
        %3907 = vdwg.mxu0
        %3908 = vmatprep.subr.bf16.mxu0 %v3011
        %3909 = vmatpush1.bf16.msra.mxu0 %v3010
        %3910 = vmatprep.subr.bf16.mxu0 %v3013
        %3911 = vmatpush1.bf16.msra.mxu0 %v3012
        %3912 = vmatprep.subr.bf16.mxu0 %v3015
        %3913 = vmatpush1.bf16.msra.mxu0 %v3014
        %3914 = vmatprep.subr.bf16.mxu0 %v3017
        %3915 = vmatpush1.bf16.msra.mxu0 %v3016
        %3916 = vmatprep.subr.bf16.mxu0 %v3019
        %3917 = vmatpush1.bf16.msra.mxu0 %v3018
        %3918 = vmatprep.subr.bf16.mxu0 %v3021
        %3919 = vmatpush1.bf16.msra.mxu0 %v3020
        %3920 = vmatprep.subr.bf16.mxu0 %v3023
        %3921 = vmatpush1.bf16.msra.mxu0 %v3022
        %3922 = vmatprep.subr.bf16.mxu0 %v3025
        %3923 = vmatpush1.bf16.msra.mxu0 %v3024
        %3924 = vmatprep.subr.bf16.mxu0 %v3027
        %3925 = vmatpush1.bf16.msra.mxu0 %v3026
        %3926 = vmatprep.subr.bf16.mxu0 %v3029
        %3927 = vmatpush1.bf16.msra.mxu0 %v3028
        %3928 = vmatprep.subr.bf16.mxu0 %v3031
        %3929 = vmatpush1.bf16.msra.mxu0 %v3030
        %3930 = vmatprep.subr.bf16.mxu0 %v3033
        %3931 = vmatpush1.bf16.msra.mxu0 %v3032
        %3932 = vmatprep.subr.bf16.mxu0 %v3035
        %3933 = vmatpush1.bf16.msra.mxu0 %v3034
        %3934 = vmatprep.subr.bf16.mxu0 %v3037
        %3935 = vmatpush1.bf16.msra.mxu0 %v3036
        %3936 = vmatprep.subr.bf16.mxu0 %v3039
        %3937 = vmatpush1.bf16.msra.mxu0 %v3038
        %3938 = vmatprep.subr.bf16.mxu0 %v3041
        %3939 = vmatpush1.bf16.msra.mxu0 %v3040
        %3940 = vmatprep.mubr.bf16.mxu0 %v3335
        %3941 = vmatmul.mubr.bf16.gmra.mrb[0].mxu0 %v3334
        %v3942 = vpop.f32.mrb[0].mxu0
        %v3943 = vadd.f32 %v3750, %v3942
        %v3944 = vpop.f32.mrb[0].mxu0
        %v3945 = vadd.f32 %v3752, %v3944
        %v3946 = vpop.f32.mrb[0].mxu0
        %v3947 = vadd.f32 %v3754, %v3946
        %v3948 = vpop.f32.mrb[0].mxu0
        %v3949 = vadd.f32 %v3756, %v3948
        %3950 = vmatprep.mubr.bf16.mxu0 %v3341
        %3951 = vmatmul.mubr.bf16.gmra.mrb[0].mxu0 %v3340
        %v3952 = vpop.f32.mrb[0].mxu0
        %v3953 = vadd.f32 %v3760, %v3952
        %v3954 = vpop.f32.mrb[0].mxu0
        %v3955 = vadd.f32 %v3762, %v3954
        %v3956 = vpop.f32.mrb[0].mxu0
        %v3957 = vadd.f32 %v3764, %v3956
        %v3958 = vpop.f32.mrb[0].mxu0
        %v3959 = vadd.f32 %v3766, %v3958
        %3960 = vmatprep.mubr.bf16.mxu0 %v3347
        %3961 = vmatmul.mubr.bf16.gmra.mrb[0].mxu0 %v3346
        %v3962 = vpop.f32.mrb[0].mxu0
        %v3963 = vadd.f32 %v3770, %v3962
        %v3964 = vpop.f32.mrb[0].mxu0
        %v3965 = vadd.f32 %v3772, %v3964
        %v3966 = vpop.f32.mrb[0].mxu0
        %v3967 = vadd.f32 %v3774, %v3966
        %v3968 = vpop.f32.mrb[0].mxu0
        %v3969 = vadd.f32 %v3776, %v3968
        %3970 = vmatprep.mubr.bf16.mxu0 %v3353
        %3971 = vmatmul.mubr.bf16.gmra.mrb[0].mxu0 %v3352
        %v3972 = vpop.f32.mrb[0].mxu0
        %v3973 = vadd.f32 %v3780, %v3972
        %v3974 = vpop.f32.mrb[0].mxu0
        %v3975 = vadd.f32 %v3782, %v3974
        %v3976 = vpop.f32.mrb[0].mxu0
        %v3977 = vadd.f32 %v3784, %v3976
        %v3978 = vpop.f32.mrb[0].mxu0
        %v3979 = vadd.f32 %v3786, %v3978
        %3980 = vmatprep.mubr.bf16.mxu0 %v3359
        %3981 = vmatmul.mubr.bf16.gmra.mrb[0].mxu0 %v3358
        %v3982 = vpop.f32.mrb[0].mxu0
        %v3983 = vadd.f32 %v3790, %v3982
        %v3984 = vpop.f32.mrb[0].mxu0
        %v3985 = vadd.f32 %v3792, %v3984
        %v3986 = vpop.f32.mrb[0].mxu0
        %v3987 = vadd.f32 %v3794, %v3986
        %v3988 = vpop.f32.mrb[0].mxu0
        %v3989 = vadd.f32 %v3796, %v3988
        %3990 = vmatprep.mubr.bf16.mxu0 %v3365
        %3991 = vmatmul.mubr.bf16.gmra.mrb[0].mxu0 %v3364
        %v3992 = vpop.f32.mrb[0].mxu0
        %v3993 = vadd.f32 %v3800, %v3992
        %v3994 = vpop.f32.mrb[0].mxu0
        %v3995 = vadd.f32 %v3802, %v3994
        %v3996 = vpop.f32.mrb[0].mxu0
        %v3997 = vadd.f32 %v3804, %v3996
        %v3998 = vpop.f32.mrb[0].mxu0
        %v3999 = vadd.f32 %v3806, %v3998
        %4000 = vmatprep.mubr.bf16.mxu0 %v3371
        %4001 = vmatmul.mubr.bf16.gmra.mrb[0].mxu0 %v3370
        %v4002 = vpop.f32.mrb[0].mxu0
        %v4003 = vadd.f32 %v3810, %v4002
        %v4004 = vpop.f32.mrb[0].mxu0
        %v4005 = vadd.f32 %v3812, %v4004
        %v4006 = vpop.f32.mrb[0].mxu0
        %v4007 = vadd.f32 %v3814, %v4006
        %v4008 = vpop.f32.mrb[0].mxu0
        %v4009 = vadd.f32 %v3816, %v4008
        %4010 = vmatprep.mubr.bf16.mxu0 %v3377
        %4011 = vmatmul.mubr.bf16.gmra.mrb[0].mxu0 %v3376
        %v4012 = vpop.f32.mrb[0].mxu0
        %v4013 = vadd.f32 %v3820, %v4012
        %v4014 = vpop.f32.mrb[0].mxu0
        %v4015 = vadd.f32 %v3822, %v4014
        %v4016 = vpop.f32.mrb[0].mxu0
        %v4017 = vadd.f32 %v3824, %v4016
        %v4018 = vpop.f32.mrb[0].mxu0
        %v4019 = vadd.f32 %v3826, %v4018
        %4020 = vmatprep.mubr.bf16.mxu0 %v3383
        %4021 = vmatmul.mubr.bf16.gmra.mrb[0].mxu0 %v3382
        %v4022 = vpop.f32.mrb[0].mxu0
        %v4023 = vadd.f32 %v3830, %v4022
        %v4024 = vpop.f32.mrb[0].mxu0
        %v4025 = vadd.f32 %v3832, %v4024
        %v4026 = vpop.f32.mrb[0].mxu0
        %v4027 = vadd.f32 %v3834, %v4026
        %v4028 = vpop.f32.mrb[0].mxu0
        %v4029 = vadd.f32 %v3836, %v4028
        %4030 = vmatprep.mubr.bf16.mxu0 %v3389
        %4031 = vmatmul.mubr.bf16.gmra.mrb[0].mxu0 %v3388
        %v4032 = vpop.f32.mrb[0].mxu0
        %v4033 = vadd.f32 %v3840, %v4032
        %v4034 = vpop.f32.mrb[0].mxu0
        %v4035 = vadd.f32 %v3842, %v4034
        %v4036 = vpop.f32.mrb[0].mxu0
        %v4037 = vadd.f32 %v3844, %v4036
        %v4038 = vpop.f32.mrb[0].mxu0
        %v4039 = vadd.f32 %v3846, %v4038
        %4040 = vmatprep.mubr.bf16.mxu0 %v3395
        %4041 = vmatmul.mubr.bf16.gmra.mrb[0].mxu0 %v3394
        %v4042 = vpop.f32.mrb[0].mxu0
        %v4043 = vadd.f32 %v3850, %v4042
        %v4044 = vpop.f32.mrb[0].mxu0
        %v4045 = vadd.f32 %v3852, %v4044
        %v4046 = vpop.f32.mrb[0].mxu0
        %v4047 = vadd.f32 %v3854, %v4046
        %v4048 = vpop.f32.mrb[0].mxu0
        %v4049 = vadd.f32 %v3856, %v4048
        %4050 = vmatprep.mubr.bf16.mxu0 %v3401
        %4051 = vmatmul.mubr.bf16.gmra.mrb[0].mxu0 %v3400
        %v4052 = vpop.f32.mrb[0].mxu0
        %v4053 = vadd.f32 %v3860, %v4052
        %v4054 = vpop.f32.mrb[0].mxu0
        %v4055 = vadd.f32 %v3862, %v4054
        %v4056 = vpop.f32.mrb[0].mxu0
        %v4057 = vadd.f32 %v3864, %v4056
        %v4058 = vpop.f32.mrb[0].mxu0
        %v4059 = vadd.f32 %v3866, %v4058
        %4060 = vmatprep.mubr.bf16.mxu0 %v3407
        %4061 = vmatmul.mubr.bf16.gmra.mrb[0].mxu0 %v3406
        %v4062 = vpop.f32.mrb[0].mxu0
        %v4063 = vadd.f32 %v3870, %v4062
        %v4064 = vpop.f32.mrb[0].mxu0
        %v4065 = vadd.f32 %v3872, %v4064
        %v4066 = vpop.f32.mrb[0].mxu0
        %v4067 = vadd.f32 %v3874, %v4066
        %v4068 = vpop.f32.mrb[0].mxu0
        %v4069 = vadd.f32 %v3876, %v4068
        %4070 = vmatprep.mubr.bf16.mxu0 %v3413
        %4071 = vmatmul.mubr.bf16.gmra.mrb[0].mxu0 %v3412
        %v4072 = vpop.f32.mrb[0].mxu0
        %v4073 = vadd.f32 %v3880, %v4072
        %v4074 = vpop.f32.mrb[0].mxu0
        %v4075 = vadd.f32 %v3882, %v4074
        %v4076 = vpop.f32.mrb[0].mxu0
        %v4077 = vadd.f32 %v3884, %v4076
        %v4078 = vpop.f32.mrb[0].mxu0
        %v4079 = vadd.f32 %v3886, %v4078
        %4080 = vmatprep.mubr.bf16.mxu0 %v3419
        %4081 = vmatmul.mubr.bf16.gmra.mrb[0].mxu0 %v3418
        %v4082 = vpop.f32.mrb[0].mxu0
        %v4083 = vadd.f32 %v3890, %v4082
        %v4084 = vpop.f32.mrb[0].mxu0
        %v4085 = vadd.f32 %v3892, %v4084
        %v4086 = vpop.f32.mrb[0].mxu0
        %v4087 = vadd.f32 %v3894, %v4086
        %v4088 = vpop.f32.mrb[0].mxu0
        %v4089 = vadd.f32 %v3896, %v4088
        %4090 = vmatprep.mubr.bf16.mxu0 %v3425
        %4091 = vmatmul.mubr.bf16.gmra.mrb[0].mxu0 %v3424
        %v4092 = vpop.f32.mrb[0].mxu0
        %v4093 = vadd.f32 %v3900, %v4092
        %v4094 = vpop.f32.mrb[0].mxu0
        %v4095 = vadd.f32 %v3902, %v4094
        %v4096 = vpop.f32.mrb[0].mxu0
        %v4097 = vadd.f32 %v3904, %v4096
        %v4098 = vpop.f32.mrb[0].mxu0
        %v4099 = vadd.f32 %v3906, %v4098
        %4100 = vdwg.mxu0
        %v4197 = vunpack.c.l.b16 %v2120
        %v4198 = vunpack.c.h.b16 %v2120
        %v4199 = vunpack.c.l.b16 %v2121
        %v4200 = vunpack.c.h.b16 %v2121
        %v4201 = vunpack.c.l.b16 %v2122
        %v4202 = vunpack.c.h.b16 %v2122
        %v4203 = vunpack.c.l.b16 %v2123
        %v4204 = vunpack.c.h.b16 %v2123
        %v4205 = vunpack.c.l.b16 %v2124
        %v4206 = vunpack.c.h.b16 %v2124
        %v4207 = vunpack.c.l.b16 %v2125
        %v4208 = vunpack.c.h.b16 %v2125
        %v4209 = vunpack.c.l.b16 %v2126
        %v4210 = vunpack.c.h.b16 %v2126
        %v4211 = vunpack.c.l.b16 %v2127
        %v4212 = vunpack.c.h.b16 %v2127
        %v4213 = vunpack.c.l.b16 %v2128
        %v4214 = vunpack.c.h.b16 %v2128
        %v4215 = vunpack.c.l.b16 %v2129
        %v4216 = vunpack.c.h.b16 %v2129
        %v4217 = vunpack.c.l.b16 %v2130
        %v4218 = vunpack.c.h.b16 %v2130
        %v4219 = vunpack.c.l.b16 %v2131
        %v4220 = vunpack.c.h.b16 %v2131
        %v4221 = vunpack.c.l.b16 %v2132
        %v4222 = vunpack.c.h.b16 %v2132
        %v4223 = vunpack.c.l.b16 %v2133
        %v4224 = vunpack.c.h.b16 %v2133
        %v4225 = vunpack.c.l.b16 %v2134
        %v4226 = vunpack.c.h.b16 %v2134
        %v4227 = vunpack.c.l.b16 %v2135
        %v4228 = vunpack.c.h.b16 %v2135
        %v4229 = vunpack.c.l.b16 %v2136
        %v4230 = vunpack.c.h.b16 %v2136
        %v4231 = vunpack.c.l.b16 %v2137
        %v4232 = vunpack.c.h.b16 %v2137
        %v4233 = vunpack.c.l.b16 %v2138
        %v4234 = vunpack.c.h.b16 %v2138
        %v4235 = vunpack.c.l.b16 %v2139
        %v4236 = vunpack.c.h.b16 %v2139
        %v4237 = vunpack.c.l.b16 %v2140
        %v4238 = vunpack.c.h.b16 %v2140
        %v4239 = vunpack.c.l.b16 %v2141
        %v4240 = vunpack.c.h.b16 %v2141
        %v4241 = vunpack.c.l.b16 %v2142
        %v4242 = vunpack.c.h.b16 %v2142
        %v4243 = vunpack.c.l.b16 %v2143
        %v4244 = vunpack.c.h.b16 %v2143
        %v4245 = vunpack.c.l.b16 %v2144
        %v4246 = vunpack.c.h.b16 %v2144
        %v4247 = vunpack.c.l.b16 %v2145
        %v4248 = vunpack.c.h.b16 %v2145
        %v4249 = vunpack.c.l.b16 %v2146
        %v4250 = vunpack.c.h.b16 %v2146
        %v4251 = vunpack.c.l.b16 %v2147
        %v4252 = vunpack.c.h.b16 %v2147
        %v4253 = vunpack.c.l.b16 %v2148
        %v4254 = vunpack.c.h.b16 %v2148
        %v4255 = vunpack.c.l.b16 %v2149
        %v4256 = vunpack.c.h.b16 %v2149
        %v4257 = vunpack.c.l.b16 %v2150
        %v4258 = vunpack.c.h.b16 %v2150
        %v4259 = vunpack.c.l.b16 %v2151
        %v4260 = vunpack.c.h.b16 %v2151
        %v4261 = vunpack.c.l.b16 %v2152
        %v4262 = vunpack.c.h.b16 %v2152
        %v4263 = vunpack.c.l.b16 %v2153
        %v4264 = vunpack.c.h.b16 %v2153
        %v4265 = vunpack.c.l.b16 %v2154
        %v4266 = vunpack.c.h.b16 %v2154
        %v4267 = vunpack.c.l.b16 %v2155
        %v4268 = vunpack.c.h.b16 %v2155
        %v4269 = vunpack.c.l.b16 %v2156
        %v4270 = vunpack.c.h.b16 %v2156
        %v4271 = vunpack.c.l.b16 %v2157
        %v4272 = vunpack.c.h.b16 %v2157
        %v4273 = vunpack.c.l.b16 %v2158
        %v4274 = vunpack.c.h.b16 %v2158
        %v4275 = vunpack.c.l.b16 %v2159
        %v4276 = vunpack.c.h.b16 %v2159
        %v4277 = vunpack.c.l.b16 %v2160
        %v4278 = vunpack.c.h.b16 %v2160
        %v4279 = vunpack.c.l.b16 %v2161
        %v4280 = vunpack.c.h.b16 %v2161
        %v4281 = vunpack.c.l.b16 %v2162
        %v4282 = vunpack.c.h.b16 %v2162
        %v4283 = vunpack.c.l.b16 %v2163
        %v4284 = vunpack.c.h.b16 %v2163
        %v4285 = vunpack.c.l.b16 %v2164
        %v4286 = vunpack.c.h.b16 %v2164
        %v4287 = vunpack.c.l.b16 %v2165
        %v4288 = vunpack.c.h.b16 %v2165
        %v4289 = vunpack.c.l.b16 %v2166
        %v4290 = vunpack.c.h.b16 %v2166
        %v4291 = vunpack.c.l.b16 %v2167
        %v4292 = vunpack.c.h.b16 %v2167
        %v4293 = vunpack.c.l.b16 %v2168
        %v4294 = vunpack.c.h.b16 %v2168
        %v4295 = vunpack.c.l.b16 %v2169
        %v4296 = vunpack.c.h.b16 %v2169
        %v4297 = vunpack.c.l.b16 %v2170
        %v4298 = vunpack.c.h.b16 %v2170
        %v4299 = vunpack.c.l.b16 %v2171
        %v4300 = vunpack.c.h.b16 %v2171
        %v4301 = vunpack.c.l.b16 %v2172
        %v4302 = vunpack.c.h.b16 %v2172
        %v4303 = vunpack.c.l.b16 %v2173
        %v4304 = vunpack.c.h.b16 %v2173
        %v4305 = vunpack.c.l.b16 %v2174
        %v4306 = vunpack.c.h.b16 %v2174
        %v4307 = vunpack.c.l.b16 %v2175
        %v4308 = vunpack.c.h.b16 %v2175
        %v4309 = vunpack.c.l.b16 %v2176
        %v4310 = vunpack.c.h.b16 %v2176
        %v4311 = vunpack.c.l.b16 %v2177
        %v4312 = vunpack.c.h.b16 %v2177
        %v4313 = vunpack.c.l.b16 %v2178
        %v4314 = vunpack.c.h.b16 %v2178
        %v4315 = vunpack.c.l.b16 %v2179
        %v4316 = vunpack.c.h.b16 %v2179
        %v4317 = vunpack.c.l.b16 %v2180
        %v4318 = vunpack.c.h.b16 %v2180
        %v4319 = vunpack.c.l.b16 %v2181
        %v4320 = vunpack.c.h.b16 %v2181
        %v4321 = vunpack.c.l.b16 %v2182
        %v4322 = vunpack.c.h.b16 %v2182
        %v4323 = vunpack.c.l.b16 %v2183
        %v4324 = vunpack.c.h.b16 %v2183
        %v4325 = vunpack.c.l.b16 %v2184
        %v4326 = vunpack.c.h.b16 %v2184
        %v4327 = vunpack.c.l.b16 %v2185
        %v4328 = vunpack.c.h.b16 %v2185
        %v4329 = vunpack.c.l.b16 %v2186
        %v4330 = vunpack.c.h.b16 %v2186
        %v4331 = vunpack.c.l.b16 %v2187
        %v4332 = vunpack.c.h.b16 %v2187
        %v4333 = vunpack.c.l.b16 %v2188
        %v4334 = vunpack.c.h.b16 %v2188
        %v4335 = vunpack.c.l.b16 %v2189
        %v4336 = vunpack.c.h.b16 %v2189
        %v4337 = vunpack.c.l.b16 %v2190
        %v4338 = vunpack.c.h.b16 %v2190
        %v4339 = vunpack.c.l.b16 %v2191
        %v4340 = vunpack.c.h.b16 %v2191
        %v4341 = vunpack.c.l.b16 %v2192
        %v4342 = vunpack.c.h.b16 %v2192
        %v4343 = vunpack.c.l.b16 %v2193
        %v4344 = vunpack.c.h.b16 %v2193
        %v4345 = vunpack.c.l.b16 %v2194
        %v4346 = vunpack.c.h.b16 %v2194
        %v4347 = vunpack.c.l.b16 %v2195
        %v4348 = vunpack.c.h.b16 %v2195
        %v4349 = vunpack.c.l.b16 %v2196
        %v4350 = vunpack.c.h.b16 %v2196
        %v4351 = vunpack.c.l.b16 %v2197
        %v4352 = vunpack.c.h.b16 %v2197
        %v4353 = vunpack.c.l.b16 %v2198
        %v4354 = vunpack.c.h.b16 %v2198
        %v4355 = vunpack.c.l.b16 %v2199
        %v4356 = vunpack.c.h.b16 %v2199
        %v4357 = vunpack.c.l.b16 %v2200
        %v4358 = vunpack.c.h.b16 %v2200
        %v4359 = vunpack.c.l.b16 %v2201
        %v4360 = vunpack.c.h.b16 %v2201
        %v4361 = vunpack.c.l.b16 %v2202
        %v4362 = vunpack.c.h.b16 %v2202
        %v4363 = vunpack.c.l.b16 %v2203
        %v4364 = vunpack.c.h.b16 %v2203
        %v4365 = vunpack.c.l.b16 %v2204
        %v4366 = vunpack.c.h.b16 %v2204
        %v4367 = vunpack.c.l.b16 %v2205
        %v4368 = vunpack.c.h.b16 %v2205
        %v4369 = vunpack.c.l.b16 %v2206
        %v4370 = vunpack.c.h.b16 %v2206
        %v4371 = vunpack.c.l.b16 %v2207
        %v4372 = vunpack.c.h.b16 %v2207
        %v4373 = vunpack.c.l.b16 %v2208
        %v4374 = vunpack.c.h.b16 %v2208
        %v4375 = vunpack.c.l.b16 %v2209
        %v4376 = vunpack.c.h.b16 %v2209
        %v4377 = vunpack.c.l.b16 %v2210
        %v4378 = vunpack.c.h.b16 %v2210
        %v4379 = vunpack.c.l.b16 %v2211
        %v4380 = vunpack.c.h.b16 %v2211
        %v4381 = vunpack.c.l.b16 %v2212
        %v4382 = vunpack.c.h.b16 %v2212
        %v4383 = vunpack.c.l.b16 %v2213
        %v4384 = vunpack.c.h.b16 %v2213
        %v4385 = vunpack.c.l.b16 %v2214
        %v4386 = vunpack.c.h.b16 %v2214
        %v4387 = vunpack.c.l.b16 %v2215
        %v4388 = vunpack.c.h.b16 %v2215
        %v4389 = vpack.c.b16 %v4203, %v4197
        %v4390 = vpack.c.b16 %v4204, %v4198
        %v4391 = vpack.c.b16 %v4205, %v4199
        %v4392 = vpack.c.b16 %v4206, %v4200
        %v4393 = vpack.c.b16 %v4207, %v4201
        %v4394 = vpack.c.b16 %v4208, %v4202
        %v4395 = vpack.c.b16 %v4215, %v4209
        %v4396 = vpack.c.b16 %v4216, %v4210
        %v4397 = vpack.c.b16 %v4217, %v4211
        %v4398 = vpack.c.b16 %v4218, %v4212
        %v4399 = vpack.c.b16 %v4219, %v4213
        %v4400 = vpack.c.b16 %v4220, %v4214
        %v4401 = vpack.c.b16 %v4227, %v4221
        %v4402 = vpack.c.b16 %v4228, %v4222
        %v4403 = vpack.c.b16 %v4229, %v4223
        %v4404 = vpack.c.b16 %v4230, %v4224
        %v4405 = vpack.c.b16 %v4231, %v4225
        %v4406 = vpack.c.b16 %v4232, %v4226
        %v4407 = vpack.c.b16 %v4239, %v4233
        %v4408 = vpack.c.b16 %v4240, %v4234
        %v4409 = vpack.c.b16 %v4241, %v4235
        %v4410 = vpack.c.b16 %v4242, %v4236
        %v4411 = vpack.c.b16 %v4243, %v4237
        %v4412 = vpack.c.b16 %v4244, %v4238
        %v4413 = vpack.c.b16 %v4251, %v4245
        %v4414 = vpack.c.b16 %v4252, %v4246
        %v4415 = vpack.c.b16 %v4253, %v4247
        %v4416 = vpack.c.b16 %v4254, %v4248
        %v4417 = vpack.c.b16 %v4255, %v4249
        %v4418 = vpack.c.b16 %v4256, %v4250
        %v4419 = vpack.c.b16 %v4263, %v4257
        %v4420 = vpack.c.b16 %v4264, %v4258
        %v4421 = vpack.c.b16 %v4265, %v4259
        %v4422 = vpack.c.b16 %v4266, %v4260
        %v4423 = vpack.c.b16 %v4267, %v4261
        %v4424 = vpack.c.b16 %v4268, %v4262
        %v4425 = vpack.c.b16 %v4275, %v4269
        %v4426 = vpack.c.b16 %v4276, %v4270
        %v4427 = vpack.c.b16 %v4277, %v4271
        %v4428 = vpack.c.b16 %v4278, %v4272
        %v4429 = vpack.c.b16 %v4279, %v4273
        %v4430 = vpack.c.b16 %v4280, %v4274
        %v4431 = vpack.c.b16 %v4287, %v4281
        %v4432 = vpack.c.b16 %v4288, %v4282
        %v4433 = vpack.c.b16 %v4289, %v4283
        %v4434 = vpack.c.b16 %v4290, %v4284
        %v4435 = vpack.c.b16 %v4291, %v4285
        %v4436 = vpack.c.b16 %v4292, %v4286
        %v4437 = vpack.c.b16 %v4299, %v4293
        %v4438 = vpack.c.b16 %v4300, %v4294
        %v4439 = vpack.c.b16 %v4301, %v4295
        %v4440 = vpack.c.b16 %v4302, %v4296
        %v4441 = vpack.c.b16 %v4303, %v4297
        %v4442 = vpack.c.b16 %v4304, %v4298
        %v4443 = vpack.c.b16 %v4311, %v4305
        %v4444 = vpack.c.b16 %v4312, %v4306
        %v4445 = vpack.c.b16 %v4313, %v4307
        %v4446 = vpack.c.b16 %v4314, %v4308
        %v4447 = vpack.c.b16 %v4315, %v4309
        %v4448 = vpack.c.b16 %v4316, %v4310
        %v4449 = vpack.c.b16 %v4323, %v4317
        %v4450 = vpack.c.b16 %v4324, %v4318
        %v4451 = vpack.c.b16 %v4325, %v4319
        %v4452 = vpack.c.b16 %v4326, %v4320
        %v4453 = vpack.c.b16 %v4327, %v4321
        %v4454 = vpack.c.b16 %v4328, %v4322
        %v4455 = vpack.c.b16 %v4335, %v4329
        %v4456 = vpack.c.b16 %v4336, %v4330
        %v4457 = vpack.c.b16 %v4337, %v4331
        %v4458 = vpack.c.b16 %v4338, %v4332
        %v4459 = vpack.c.b16 %v4339, %v4333
        %v4460 = vpack.c.b16 %v4340, %v4334
        %v4461 = vpack.c.b16 %v4347, %v4341
        %v4462 = vpack.c.b16 %v4348, %v4342
        %v4463 = vpack.c.b16 %v4349, %v4343
        %v4464 = vpack.c.b16 %v4350, %v4344
        %v4465 = vpack.c.b16 %v4351, %v4345
        %v4466 = vpack.c.b16 %v4352, %v4346
        %v4467 = vpack.c.b16 %v4359, %v4353
        %v4468 = vpack.c.b16 %v4360, %v4354
        %v4469 = vpack.c.b16 %v4361, %v4355
        %v4470 = vpack.c.b16 %v4362, %v4356
        %v4471 = vpack.c.b16 %v4363, %v4357
        %v4472 = vpack.c.b16 %v4364, %v4358
        %v4473 = vpack.c.b16 %v4371, %v4365
        %v4474 = vpack.c.b16 %v4372, %v4366
        %v4475 = vpack.c.b16 %v4373, %v4367
        %v4476 = vpack.c.b16 %v4374, %v4368
        %v4477 = vpack.c.b16 %v4375, %v4369
        %v4478 = vpack.c.b16 %v4376, %v4370
        %v4479 = vpack.c.b16 %v4383, %v4377
        %v4480 = vpack.c.b16 %v4384, %v4378
        %v4481 = vpack.c.b16 %v4385, %v4379
        %v4482 = vpack.c.b16 %v4386, %v4380
        %v4483 = vpack.c.b16 %v4387, %v4381
        %v4484 = vpack.c.b16 %v4388, %v4382
        %4581 = vmatprep.subr.bf16.mxu0 %v2217
        %4582 = vmatpush1.bf16.msra.mxu0 %v2216
        %4583 = vmatprep.subr.bf16.mxu0 %v2219
        %4584 = vmatpush1.bf16.msra.mxu0 %v2218
        %4585 = vmatprep.subr.bf16.mxu0 %v2221
        %4586 = vmatpush1.bf16.msra.mxu0 %v2220
        %4587 = vmatprep.subr.bf16.mxu0 %v2223
        %4588 = vmatpush1.bf16.msra.mxu0 %v2222
        %4589 = vmatprep.subr.bf16.mxu0 %v2225
        %4590 = vmatpush1.bf16.msra.mxu0 %v2224
        %4591 = vmatprep.subr.bf16.mxu0 %v2227
        %4592 = vmatpush1.bf16.msra.mxu0 %v2226
        %4593 = vmatprep.subr.bf16.mxu0 %v2229
        %4594 = vmatpush1.bf16.msra.mxu0 %v2228
        %4595 = vmatprep.subr.bf16.mxu0 %v2231
        %4596 = vmatpush1.bf16.msra.mxu0 %v2230
        %4597 = vmatprep.subr.bf16.mxu0 %v2233
        %4598 = vmatpush1.bf16.msra.mxu0 %v2232
        %4599 = vmatprep.subr.bf16.mxu0 %v2235
        %4600 = vmatpush1.bf16.msra.mxu0 %v2234
        %4601 = vmatprep.subr.bf16.mxu0 %v2237
        %4602 = vmatpush1.bf16.msra.mxu0 %v2236
        %4603 = vmatprep.subr.bf16.mxu0 %v2239
        %4604 = vmatpush1.bf16.msra.mxu0 %v2238
        %4605 = vmatprep.subr.bf16.mxu0 %v2241
        %4606 = vmatpush1.bf16.msra.mxu0 %v2240
        %4607 = vmatprep.subr.bf16.mxu0 %v2243
        %4608 = vmatpush1.bf16.msra.mxu0 %v2242
        %4609 = vmatprep.subr.bf16.mxu0 %v2245
        %4610 = vmatpush1.bf16.msra.mxu0 %v2244
        %4611 = vmatprep.subr.bf16.mxu0 %v2247
        %4612 = vmatpush1.bf16.msra.mxu0 %v2246
        %4613 = vmatprep.mubr.bf16.mxu0 %v4390
        %4614 = vmatmul.mubr.bf16.gmra.mrb[0].mxu0 %v4389
        %v4615 = vpop.f32.mrb[0].mxu0
        %v4616 = vadd.f32 %v3943, %v4615
        %v4617 = vpop.f32.mrb[0].mxu0
        %v4618 = vadd.f32 %v3945, %v4617
        %v4619 = vpop.f32.mrb[0].mxu0
        %v4620 = vadd.f32 %v3947, %v4619
        %v4621 = vpop.f32.mrb[0].mxu0
        %v4622 = vadd.f32 %v3949, %v4621
        %4623 = vmatprep.mubr.bf16.mxu0 %v4396
        %4624 = vmatmul.mubr.bf16.gmra.mrb[0].mxu0 %v4395
        %v4625 = vpop.f32.mrb[0].mxu0
        %v4626 = vadd.f32 %v3953, %v4625
        %v4627 = vpop.f32.mrb[0].mxu0
        %v4628 = vadd.f32 %v3955, %v4627
        %v4629 = vpop.f32.mrb[0].mxu0
        %v4630 = vadd.f32 %v3957, %v4629
        %v4631 = vpop.f32.mrb[0].mxu0
        %v4632 = vadd.f32 %v3959, %v4631
        %4633 = vmatprep.mubr.bf16.mxu0 %v4402
        %4634 = vmatmul.mubr.bf16.gmra.mrb[0].mxu0 %v4401
        %v4635 = vpop.f32.mrb[0].mxu0
        %v4636 = vadd.f32 %v3963, %v4635
        %v4637 = vpop.f32.mrb[0].mxu0
        %v4638 = vadd.f32 %v3965, %v4637
        %v4639 = vpop.f32.mrb[0].mxu0
        %v4640 = vadd.f32 %v3967, %v4639
        %v4641 = vpop.f32.mrb[0].mxu0
        %v4642 = vadd.f32 %v3969, %v4641
        %4643 = vmatprep.mubr.bf16.mxu0 %v4408
        %4644 = vmatmul.mubr.bf16.gmra.mrb[0].mxu0 %v4407
        %v4645 = vpop.f32.mrb[0].mxu0
        %v4646 = vadd.f32 %v3973, %v4645
        %v4647 = vpop.f32.mrb[0].mxu0
        %v4648 = vadd.f32 %v3975, %v4647
        %v4649 = vpop.f32.mrb[0].mxu0
        %v4650 = vadd.f32 %v3977, %v4649
        %v4651 = vpop.f32.mrb[0].mxu0
        %v4652 = vadd.f32 %v3979, %v4651
        %4653 = vmatprep.mubr.bf16.mxu0 %v4414
        %4654 = vmatmul.mubr.bf16.gmra.mrb[0].mxu0 %v4413
        %v4655 = vpop.f32.mrb[0].mxu0
        %v4656 = vadd.f32 %v3983, %v4655
        %v4657 = vpop.f32.mrb[0].mxu0
        %v4658 = vadd.f32 %v3985, %v4657
        %v4659 = vpop.f32.mrb[0].mxu0
        %v4660 = vadd.f32 %v3987, %v4659
        %v4661 = vpop.f32.mrb[0].mxu0
        %v4662 = vadd.f32 %v3989, %v4661
        %4663 = vmatprep.mubr.bf16.mxu0 %v4420
        %4664 = vmatmul.mubr.bf16.gmra.mrb[0].mxu0 %v4419
        %v4665 = vpop.f32.mrb[0].mxu0
        %v4666 = vadd.f32 %v3993, %v4665
        %v4667 = vpop.f32.mrb[0].mxu0
        %v4668 = vadd.f32 %v3995, %v4667
        %v4669 = vpop.f32.mrb[0].mxu0
        %v4670 = vadd.f32 %v3997, %v4669
        %v4671 = vpop.f32.mrb[0].mxu0
        %v4672 = vadd.f32 %v3999, %v4671
        %4673 = vmatprep.mubr.bf16.mxu0 %v4426
        %4674 = vmatmul.mubr.bf16.gmra.mrb[0].mxu0 %v4425
        %v4675 = vpop.f32.mrb[0].mxu0
        %v4676 = vadd.f32 %v4003, %v4675
        %v4677 = vpop.f32.mrb[0].mxu0
        %v4678 = vadd.f32 %v4005, %v4677
        %v4679 = vpop.f32.mrb[0].mxu0
        %v4680 = vadd.f32 %v4007, %v4679
        %v4681 = vpop.f32.mrb[0].mxu0
        %v4682 = vadd.f32 %v4009, %v4681
        %4683 = vmatprep.mubr.bf16.mxu0 %v4432
        %4684 = vmatmul.mubr.bf16.gmra.mrb[0].mxu0 %v4431
        %v4685 = vpop.f32.mrb[0].mxu0
        %v4686 = vadd.f32 %v4013, %v4685
        %v4687 = vpop.f32.mrb[0].mxu0
        %v4688 = vadd.f32 %v4015, %v4687
        %v4689 = vpop.f32.mrb[0].mxu0
        %v4690 = vadd.f32 %v4017, %v4689
        %v4691 = vpop.f32.mrb[0].mxu0
        %v4692 = vadd.f32 %v4019, %v4691
        %4693 = vmatprep.mubr.bf16.mxu0 %v4438
        %4694 = vmatmul.mubr.bf16.gmra.mrb[0].mxu0 %v4437
        %v4695 = vpop.f32.mrb[0].mxu0
        %v4696 = vadd.f32 %v4023, %v4695
        %v4697 = vpop.f32.mrb[0].mxu0
        %v4698 = vadd.f32 %v4025, %v4697
        %v4699 = vpop.f32.mrb[0].mxu0
        %v4700 = vadd.f32 %v4027, %v4699
        %v4701 = vpop.f32.mrb[0].mxu0
        %v4702 = vadd.f32 %v4029, %v4701
        %4703 = vmatprep.mubr.bf16.mxu0 %v4444
        %4704 = vmatmul.mubr.bf16.gmra.mrb[0].mxu0 %v4443
        %v4705 = vpop.f32.mrb[0].mxu0
        %v4706 = vadd.f32 %v4033, %v4705
        %v4707 = vpop.f32.mrb[0].mxu0
        %v4708 = vadd.f32 %v4035, %v4707
        %v4709 = vpop.f32.mrb[0].mxu0
        %v4710 = vadd.f32 %v4037, %v4709
        %v4711 = vpop.f32.mrb[0].mxu0
        %v4712 = vadd.f32 %v4039, %v4711
        %4713 = vmatprep.mubr.bf16.mxu0 %v4450
        %4714 = vmatmul.mubr.bf16.gmra.mrb[0].mxu0 %v4449
        %v4715 = vpop.f32.mrb[0].mxu0
        %v4716 = vadd.f32 %v4043, %v4715
        %v4717 = vpop.f32.mrb[0].mxu0
        %v4718 = vadd.f32 %v4045, %v4717
        %v4719 = vpop.f32.mrb[0].mxu0
        %v4720 = vadd.f32 %v4047, %v4719
        %v4721 = vpop.f32.mrb[0].mxu0
        %v4722 = vadd.f32 %v4049, %v4721
        %4723 = vmatprep.mubr.bf16.mxu0 %v4456
        %4724 = vmatmul.mubr.bf16.gmra.mrb[0].mxu0 %v4455
        %v4725 = vpop.f32.mrb[0].mxu0
        %v4726 = vadd.f32 %v4053, %v4725
        %v4727 = vpop.f32.mrb[0].mxu0
        %v4728 = vadd.f32 %v4055, %v4727
        %v4729 = vpop.f32.mrb[0].mxu0
        %v4730 = vadd.f32 %v4057, %v4729
        %v4731 = vpop.f32.mrb[0].mxu0
        %v4732 = vadd.f32 %v4059, %v4731
        %4733 = vmatprep.mubr.bf16.mxu0 %v4462
        %4734 = vmatmul.mubr.bf16.gmra.mrb[0].mxu0 %v4461
        %v4735 = vpop.f32.mrb[0].mxu0
        %v4736 = vadd.f32 %v4063, %v4735
        %v4737 = vpop.f32.mrb[0].mxu0
        %v4738 = vadd.f32 %v4065, %v4737
        %v4739 = vpop.f32.mrb[0].mxu0
        %v4740 = vadd.f32 %v4067, %v4739
        %v4741 = vpop.f32.mrb[0].mxu0
        %v4742 = vadd.f32 %v4069, %v4741
        %4743 = vmatprep.mubr.bf16.mxu0 %v4468
        %4744 = vmatmul.mubr.bf16.gmra.mrb[0].mxu0 %v4467
        %v4745 = vpop.f32.mrb[0].mxu0
        %v4746 = vadd.f32 %v4073, %v4745
        %v4747 = vpop.f32.mrb[0].mxu0
        %v4748 = vadd.f32 %v4075, %v4747
        %v4749 = vpop.f32.mrb[0].mxu0
        %v4750 = vadd.f32 %v4077, %v4749
        %v4751 = vpop.f32.mrb[0].mxu0
        %v4752 = vadd.f32 %v4079, %v4751
        %4753 = vmatprep.mubr.bf16.mxu0 %v4474
        %4754 = vmatmul.mubr.bf16.gmra.mrb[0].mxu0 %v4473
        %v4755 = vpop.f32.mrb[0].mxu0
        %v4756 = vadd.f32 %v4083, %v4755
        %v4757 = vpop.f32.mrb[0].mxu0
        %v4758 = vadd.f32 %v4085, %v4757
        %v4759 = vpop.f32.mrb[0].mxu0
        %v4760 = vadd.f32 %v4087, %v4759
        %v4761 = vpop.f32.mrb[0].mxu0
        %v4762 = vadd.f32 %v4089, %v4761
        %4763 = vmatprep.mubr.bf16.mxu0 %v4480
        %4764 = vmatmul.mubr.bf16.gmra.mrb[0].mxu0 %v4479
        %v4765 = vpop.f32.mrb[0].mxu0
        %v4766 = vadd.f32 %v4093, %v4765
        %v4767 = vpop.f32.mrb[0].mxu0
        %v4768 = vadd.f32 %v4095, %v4767
        %v4769 = vpop.f32.mrb[0].mxu0
        %v4770 = vadd.f32 %v4097, %v4769
        %v4771 = vpop.f32.mrb[0].mxu0
        %v4772 = vadd.f32 %v4099, %v4771
        %4773 = vdwg.mxu0
        %4774 = vmatprep.subr.bf16.mxu0 %v2249
        %4775 = vmatpush1.bf16.msra.mxu0 %v2248
        %4776 = vmatprep.subr.bf16.mxu0 %v2251
        %4777 = vmatpush1.bf16.msra.mxu0 %v2250
        %4778 = vmatprep.subr.bf16.mxu0 %v2253
        %4779 = vmatpush1.bf16.msra.mxu0 %v2252
        %4780 = vmatprep.subr.bf16.mxu0 %v2255
        %4781 = vmatpush1.bf16.msra.mxu0 %v2254
        %4782 = vmatprep.subr.bf16.mxu0 %v2257
        %4783 = vmatpush1.bf16.msra.mxu0 %v2256
        %4784 = vmatprep.subr.bf16.mxu0 %v2259
        %4785 = vmatpush1.bf16.msra.mxu0 %v2258
        %4786 = vmatprep.subr.bf16.mxu0 %v2261
        %4787 = vmatpush1.bf16.msra.mxu0 %v2260
        %4788 = vmatprep.subr.bf16.mxu0 %v2263
        %4789 = vmatpush1.bf16.msra.mxu0 %v2262
        %4790 = vmatprep.subr.bf16.mxu0 %v2265
        %4791 = vmatpush1.bf16.msra.mxu0 %v2264
        %4792 = vmatprep.subr.bf16.mxu0 %v2267
        %4793 = vmatpush1.bf16.msra.mxu0 %v2266
        %4794 = vmatprep.subr.bf16.mxu0 %v2269
        %4795 = vmatpush1.bf16.msra.mxu0 %v2268
        %4796 = vmatprep.subr.bf16.mxu0 %v2271
        %4797 = vmatpush1.bf16.msra.mxu0 %v2270
        %4798 = vmatprep.subr.bf16.mxu0 %v2273
        %4799 = vmatpush1.bf16.msra.mxu0 %v2272
        %4800 = vmatprep.subr.bf16.mxu0 %v2275
        %4801 = vmatpush1.bf16.msra.mxu0 %v2274
        %4802 = vmatprep.subr.bf16.mxu0 %v2277
        %4803 = vmatpush1.bf16.msra.mxu0 %v2276
        %4804 = vmatprep.subr.bf16.mxu0 %v2279
        %4805 = vmatpush1.bf16.msra.mxu0 %v2278
        %4806 = vmatprep.mubr.bf16.mxu0 %v4392
        %4807 = vmatmul.mubr.bf16.gmra.mrb[0].mxu0 %v4391
        %v4808 = vpop.f32.mrb[0].mxu0
        %v4809 = vadd.f32 %v4616, %v4808
        %v4810 = vpop.f32.mrb[0].mxu0
        %v4811 = vadd.f32 %v4618, %v4810
        %v4812 = vpop.f32.mrb[0].mxu0
        %v4813 = vadd.f32 %v4620, %v4812
        %v4814 = vpop.f32.mrb[0].mxu0
        %v4815 = vadd.f32 %v4622, %v4814
        %4816 = vmatprep.mubr.bf16.mxu0 %v4398
        %4817 = vmatmul.mubr.bf16.gmra.mrb[0].mxu0 %v4397
        %v4818 = vpop.f32.mrb[0].mxu0
        %v4819 = vadd.f32 %v4626, %v4818
        %v4820 = vpop.f32.mrb[0].mxu0
        %v4821 = vadd.f32 %v4628, %v4820
        %v4822 = vpop.f32.mrb[0].mxu0
        %v4823 = vadd.f32 %v4630, %v4822
        %v4824 = vpop.f32.mrb[0].mxu0
        %v4825 = vadd.f32 %v4632, %v4824
        %4826 = vmatprep.mubr.bf16.mxu0 %v4404
        %4827 = vmatmul.mubr.bf16.gmra.mrb[0].mxu0 %v4403
        %v4828 = vpop.f32.mrb[0].mxu0
        %v4829 = vadd.f32 %v4636, %v4828
        %v4830 = vpop.f32.mrb[0].mxu0
        %v4831 = vadd.f32 %v4638, %v4830
        %v4832 = vpop.f32.mrb[0].mxu0
        %v4833 = vadd.f32 %v4640, %v4832
        %v4834 = vpop.f32.mrb[0].mxu0
        %v4835 = vadd.f32 %v4642, %v4834
        %4836 = vmatprep.mubr.bf16.mxu0 %v4410
        %4837 = vmatmul.mubr.bf16.gmra.mrb[0].mxu0 %v4409
        %v4838 = vpop.f32.mrb[0].mxu0
        %v4839 = vadd.f32 %v4646, %v4838
        %v4840 = vpop.f32.mrb[0].mxu0
        %v4841 = vadd.f32 %v4648, %v4840
        %v4842 = vpop.f32.mrb[0].mxu0
        %v4843 = vadd.f32 %v4650, %v4842
        %v4844 = vpop.f32.mrb[0].mxu0
        %v4845 = vadd.f32 %v4652, %v4844
        %4846 = vmatprep.mubr.bf16.mxu0 %v4416
        %4847 = vmatmul.mubr.bf16.gmra.mrb[0].mxu0 %v4415
        %v4848 = vpop.f32.mrb[0].mxu0
        %v4849 = vadd.f32 %v4656, %v4848
        %v4850 = vpop.f32.mrb[0].mxu0
        %v4851 = vadd.f32 %v4658, %v4850
        %v4852 = vpop.f32.mrb[0].mxu0
        %v4853 = vadd.f32 %v4660, %v4852
        %v4854 = vpop.f32.mrb[0].mxu0
        %v4855 = vadd.f32 %v4662, %v4854
        %4856 = vmatprep.mubr.bf16.mxu0 %v4422
        %4857 = vmatmul.mubr.bf16.gmra.mrb[0].mxu0 %v4421
        %v4858 = vpop.f32.mrb[0].mxu0
        %v4859 = vadd.f32 %v4666, %v4858
        %v4860 = vpop.f32.mrb[0].mxu0
        %v4861 = vadd.f32 %v4668, %v4860
        %v4862 = vpop.f32.mrb[0].mxu0
        %v4863 = vadd.f32 %v4670, %v4862
        %v4864 = vpop.f32.mrb[0].mxu0
        %v4865 = vadd.f32 %v4672, %v4864
        %4866 = vmatprep.mubr.bf16.mxu0 %v4428
        %4867 = vmatmul.mubr.bf16.gmra.mrb[0].mxu0 %v4427
        %v4868 = vpop.f32.mrb[0].mxu0
        %v4869 = vadd.f32 %v4676, %v4868
        %v4870 = vpop.f32.mrb[0].mxu0
        %v4871 = vadd.f32 %v4678, %v4870
        %v4872 = vpop.f32.mrb[0].mxu0
        %v4873 = vadd.f32 %v4680, %v4872
        %v4874 = vpop.f32.mrb[0].mxu0
        %v4875 = vadd.f32 %v4682, %v4874
        %4876 = vmatprep.mubr.bf16.mxu0 %v4434
        %4877 = vmatmul.mubr.bf16.gmra.mrb[0].mxu0 %v4433
        %v4878 = vpop.f32.mrb[0].mxu0
        %v4879 = vadd.f32 %v4686, %v4878
        %v4880 = vpop.f32.mrb[0].mxu0
        %v4881 = vadd.f32 %v4688, %v4880
        %v4882 = vpop.f32.mrb[0].mxu0
        %v4883 = vadd.f32 %v4690, %v4882
        %v4884 = vpop.f32.mrb[0].mxu0
        %v4885 = vadd.f32 %v4692, %v4884
        %4886 = vmatprep.mubr.bf16.mxu0 %v4440
        %4887 = vmatmul.mubr.bf16.gmra.mrb[0].mxu0 %v4439
        %v4888 = vpop.f32.mrb[0].mxu0
        %v4889 = vadd.f32 %v4696, %v4888
        %v4890 = vpop.f32.mrb[0].mxu0
        %v4891 = vadd.f32 %v4698, %v4890
        %v4892 = vpop.f32.mrb[0].mxu0
        %v4893 = vadd.f32 %v4700, %v4892
        %v4894 = vpop.f32.mrb[0].mxu0
        %v4895 = vadd.f32 %v4702, %v4894
        %4896 = vmatprep.mubr.bf16.mxu0 %v4446
        %4897 = vmatmul.mubr.bf16.gmra.mrb[0].mxu0 %v4445
        %v4898 = vpop.f32.mrb[0].mxu0
        %v4899 = vadd.f32 %v4706, %v4898
        %v4900 = vpop.f32.mrb[0].mxu0
        %v4901 = vadd.f32 %v4708, %v4900
        %v4902 = vpop.f32.mrb[0].mxu0
        %v4903 = vadd.f32 %v4710, %v4902
        %v4904 = vpop.f32.mrb[0].mxu0
        %v4905 = vadd.f32 %v4712, %v4904
        %4906 = vmatprep.mubr.bf16.mxu0 %v4452
        %4907 = vmatmul.mubr.bf16.gmra.mrb[0].mxu0 %v4451
        %v4908 = vpop.f32.mrb[0].mxu0
        %v4909 = vadd.f32 %v4716, %v4908
        %v4910 = vpop.f32.mrb[0].mxu0
        %v4911 = vadd.f32 %v4718, %v4910
        %v4912 = vpop.f32.mrb[0].mxu0
        %v4913 = vadd.f32 %v4720, %v4912
        %v4914 = vpop.f32.mrb[0].mxu0
        %v4915 = vadd.f32 %v4722, %v4914
        %4916 = vmatprep.mubr.bf16.mxu0 %v4458
        %4917 = vmatmul.mubr.bf16.gmra.mrb[0].mxu0 %v4457
        %v4918 = vpop.f32.mrb[0].mxu0
        %v4919 = vadd.f32 %v4726, %v4918
        %v4920 = vpop.f32.mrb[0].mxu0
        %v4921 = vadd.f32 %v4728, %v4920
        %v4922 = vpop.f32.mrb[0].mxu0
        %v4923 = vadd.f32 %v4730, %v4922
        %v4924 = vpop.f32.mrb[0].mxu0
        %v4925 = vadd.f32 %v4732, %v4924
        %4926 = vmatprep.mubr.bf16.mxu0 %v4464
        %4927 = vmatmul.mubr.bf16.gmra.mrb[0].mxu0 %v4463
        %v4928 = vpop.f32.mrb[0].mxu0
        %v4929 = vadd.f32 %v4736, %v4928
        %v4930 = vpop.f32.mrb[0].mxu0
        %v4931 = vadd.f32 %v4738, %v4930
        %v4932 = vpop.f32.mrb[0].mxu0
        %v4933 = vadd.f32 %v4740, %v4932
        %v4934 = vpop.f32.mrb[0].mxu0
        %v4935 = vadd.f32 %v4742, %v4934
        %4936 = vmatprep.mubr.bf16.mxu0 %v4470
        %4937 = vmatmul.mubr.bf16.gmra.mrb[0].mxu0 %v4469
        %v4938 = vpop.f32.mrb[0].mxu0
        %v4939 = vadd.f32 %v4746, %v4938
        %v4940 = vpop.f32.mrb[0].mxu0
        %v4941 = vadd.f32 %v4748, %v4940
        %v4942 = vpop.f32.mrb[0].mxu0
        %v4943 = vadd.f32 %v4750, %v4942
        %v4944 = vpop.f32.mrb[0].mxu0
        %v4945 = vadd.f32 %v4752, %v4944
        %4946 = vmatprep.mubr.bf16.mxu0 %v4476
        %4947 = vmatmul.mubr.bf16.gmra.mrb[0].mxu0 %v4475
        %v4948 = vpop.f32.mrb[0].mxu0
        %v4949 = vadd.f32 %v4756, %v4948
        %v4950 = vpop.f32.mrb[0].mxu0
        %v4951 = vadd.f32 %v4758, %v4950
        %v4952 = vpop.f32.mrb[0].mxu0
        %v4953 = vadd.f32 %v4760, %v4952
        %v4954 = vpop.f32.mrb[0].mxu0
        %v4955 = vadd.f32 %v4762, %v4954
        %4956 = vmatprep.mubr.bf16.mxu0 %v4482
        %4957 = vmatmul.mubr.bf16.gmra.mrb[0].mxu0 %v4481
        %v4958 = vpop.f32.mrb[0].mxu0
        %v4959 = vadd.f32 %v4766, %v4958
        %v4960 = vpop.f32.mrb[0].mxu0
        %v4961 = vadd.f32 %v4768, %v4960
        %v4962 = vpop.f32.mrb[0].mxu0
        %v4963 = vadd.f32 %v4770, %v4962
        %v4964 = vpop.f32.mrb[0].mxu0
        %v4965 = vadd.f32 %v4772, %v4964
        %4966 = vdwg.mxu0
        %4967 = vmatprep.subr.bf16.mxu0 %v2281
        %4968 = vmatpush1.bf16.msra.mxu0 %v2280
        %4969 = vmatprep.subr.bf16.mxu0 %v2283
        %4970 = vmatpush1.bf16.msra.mxu0 %v2282
        %4971 = vmatprep.subr.bf16.mxu0 %v2285
        %4972 = vmatpush1.bf16.msra.mxu0 %v2284
        %4973 = vmatprep.subr.bf16.mxu0 %v2287
        %4974 = vmatpush1.bf16.msra.mxu0 %v2286
        %4975 = vmatprep.subr.bf16.mxu0 %v2289
        %4976 = vmatpush1.bf16.msra.mxu0 %v2288
        %4977 = vmatprep.subr.bf16.mxu0 %v2291
        %4978 = vmatpush1.bf16.msra.mxu0 %v2290
        %4979 = vmatprep.subr.bf16.mxu0 %v2293
        %4980 = vmatpush1.bf16.msra.mxu0 %v2292
        %4981 = vmatprep.subr.bf16.mxu0 %v2295
        %4982 = vmatpush1.bf16.msra.mxu0 %v2294
        %4983 = vmatprep.subr.bf16.mxu0 %v2297
        %4984 = vmatpush1.bf16.msra.mxu0 %v2296
        %4985 = vmatprep.subr.bf16.mxu0 %v2299
        %4986 = vmatpush1.bf16.msra.mxu0 %v2298
        %4987 = vmatprep.subr.bf16.mxu0 %v2301
        %4988 = vmatpush1.bf16.msra.mxu0 %v2300
        %4989 = vmatprep.subr.bf16.mxu0 %v2303
        %4990 = vmatpush1.bf16.msra.mxu0 %v2302
        %4991 = vmatprep.subr.bf16.mxu0 %v2305
        %4992 = vmatpush1.bf16.msra.mxu0 %v2304
        %4993 = vmatprep.subr.bf16.mxu0 %v2307
        %4994 = vmatpush1.bf16.msra.mxu0 %v2306
        %4995 = vmatprep.subr.bf16.mxu0 %v2309
        %4996 = vmatpush1.bf16.msra.mxu0 %v2308
        %4997 = vmatprep.subr.bf16.mxu0 %v2311
        %4998 = vmatpush1.bf16.msra.mxu0 %v2310
        %4999 = vmatprep.mubr.bf16.mxu0 %v4394
        %5000 = vmatmul.mubr.bf16.gmra.mrb[0].mxu0 %v4393
        %v5001 = vpop.f32.mrb[0].mxu0
        %v5002 = vadd.f32 %v4809, %v5001
        %v5003 = vpop.f32.mrb[0].mxu0
        %v5004 = vadd.f32 %v4811, %v5003
        %v5005 = vpop.f32.mrb[0].mxu0
        %v5006 = vadd.f32 %v4813, %v5005
        %v5007 = vpop.f32.mrb[0].mxu0
        %v5008 = vadd.f32 %v4815, %v5007
        %5009 = vmatprep.mubr.bf16.mxu0 %v4400
        %5010 = vmatmul.mubr.bf16.gmra.mrb[0].mxu0 %v4399
        %v5011 = vpop.f32.mrb[0].mxu0
        %v5012 = vadd.f32 %v4819, %v5011
        %v5013 = vpop.f32.mrb[0].mxu0
        %v5014 = vadd.f32 %v4821, %v5013
        %v5015 = vpop.f32.mrb[0].mxu0
        %v5016 = vadd.f32 %v4823, %v5015
        %v5017 = vpop.f32.mrb[0].mxu0
        %v5018 = vadd.f32 %v4825, %v5017
        %5019 = vmatprep.mubr.bf16.mxu0 %v4406
        %5020 = vmatmul.mubr.bf16.gmra.mrb[0].mxu0 %v4405
        %v5021 = vpop.f32.mrb[0].mxu0
        %v5022 = vadd.f32 %v4829, %v5021
        %v5023 = vpop.f32.mrb[0].mxu0
        %v5024 = vadd.f32 %v4831, %v5023
        %v5025 = vpop.f32.mrb[0].mxu0
        %v5026 = vadd.f32 %v4833, %v5025
        %v5027 = vpop.f32.mrb[0].mxu0
        %v5028 = vadd.f32 %v4835, %v5027
        %5029 = vmatprep.mubr.bf16.mxu0 %v4412
        %5030 = vmatmul.mubr.bf16.gmra.mrb[0].mxu0 %v4411
        %v5031 = vpop.f32.mrb[0].mxu0
        %v5032 = vadd.f32 %v4839, %v5031
        %v5033 = vpop.f32.mrb[0].mxu0
        %v5034 = vadd.f32 %v4841, %v5033
        %v5035 = vpop.f32.mrb[0].mxu0
        %v5036 = vadd.f32 %v4843, %v5035
        %v5037 = vpop.f32.mrb[0].mxu0
        %v5038 = vadd.f32 %v4845, %v5037
        %5039 = vmatprep.mubr.bf16.mxu0 %v4418
        %5040 = vmatmul.mubr.bf16.gmra.mrb[0].mxu0 %v4417
        %v5041 = vpop.f32.mrb[0].mxu0
        %v5042 = vadd.f32 %v4849, %v5041
        %v5043 = vpop.f32.mrb[0].mxu0
        %v5044 = vadd.f32 %v4851, %v5043
        %v5045 = vpop.f32.mrb[0].mxu0
        %v5046 = vadd.f32 %v4853, %v5045
        %v5047 = vpop.f32.mrb[0].mxu0
        %v5048 = vadd.f32 %v4855, %v5047
        %5049 = vmatprep.mubr.bf16.mxu0 %v4424
        %5050 = vmatmul.mubr.bf16.gmra.mrb[0].mxu0 %v4423
        %v5051 = vpop.f32.mrb[0].mxu0
        %v5052 = vadd.f32 %v4859, %v5051
        %v5053 = vpop.f32.mrb[0].mxu0
        %v5054 = vadd.f32 %v4861, %v5053
        %v5055 = vpop.f32.mrb[0].mxu0
        %v5056 = vadd.f32 %v4863, %v5055
        %v5057 = vpop.f32.mrb[0].mxu0
        %v5058 = vadd.f32 %v4865, %v5057
        %5059 = vmatprep.mubr.bf16.mxu0 %v4430
        %5060 = vmatmul.mubr.bf16.gmra.mrb[0].mxu0 %v4429
        %v5061 = vpop.f32.mrb[0].mxu0
        %v5062 = vadd.f32 %v4869, %v5061
        %v5063 = vpop.f32.mrb[0].mxu0
        %v5064 = vadd.f32 %v4871, %v5063
        %v5065 = vpop.f32.mrb[0].mxu0
        %v5066 = vadd.f32 %v4873, %v5065
        %v5067 = vpop.f32.mrb[0].mxu0
        %v5068 = vadd.f32 %v4875, %v5067
        %5069 = vmatprep.mubr.bf16.mxu0 %v4436
        %5070 = vmatmul.mubr.bf16.gmra.mrb[0].mxu0 %v4435
        %v5071 = vpop.f32.mrb[0].mxu0
        %v5072 = vadd.f32 %v4879, %v5071
        %v5073 = vpop.f32.mrb[0].mxu0
        %v5074 = vadd.f32 %v4881, %v5073
        %v5075 = vpop.f32.mrb[0].mxu0
        %v5076 = vadd.f32 %v4883, %v5075
        %v5077 = vpop.f32.mrb[0].mxu0
        %v5078 = vadd.f32 %v4885, %v5077
        %5079 = vmatprep.mubr.bf16.mxu0 %v4442
        %5080 = vmatmul.mubr.bf16.gmra.mrb[0].mxu0 %v4441
        %v5081 = vpop.f32.mrb[0].mxu0
        %v5082 = vadd.f32 %v4889, %v5081
        %v5083 = vpop.f32.mrb[0].mxu0
        %v5084 = vadd.f32 %v4891, %v5083
        %v5085 = vpop.f32.mrb[0].mxu0
        %v5086 = vadd.f32 %v4893, %v5085
        %v5087 = vpop.f32.mrb[0].mxu0
        %v5088 = vadd.f32 %v4895, %v5087
        %5089 = vmatprep.mubr.bf16.mxu0 %v4448
        %5090 = vmatmul.mubr.bf16.gmra.mrb[0].mxu0 %v4447
        %v5091 = vpop.f32.mrb[0].mxu0
        %v5092 = vadd.f32 %v4899, %v5091
        %v5093 = vpop.f32.mrb[0].mxu0
        %v5094 = vadd.f32 %v4901, %v5093
        %v5095 = vpop.f32.mrb[0].mxu0
        %v5096 = vadd.f32 %v4903, %v5095
        %v5097 = vpop.f32.mrb[0].mxu0
        %v5098 = vadd.f32 %v4905, %v5097
        %5099 = vmatprep.mubr.bf16.mxu0 %v4454
        %5100 = vmatmul.mubr.bf16.gmra.mrb[0].mxu0 %v4453
        %v5101 = vpop.f32.mrb[0].mxu0
        %v5102 = vadd.f32 %v4909, %v5101
        %v5103 = vpop.f32.mrb[0].mxu0
        %v5104 = vadd.f32 %v4911, %v5103
        %v5105 = vpop.f32.mrb[0].mxu0
        %v5106 = vadd.f32 %v4913, %v5105
        %v5107 = vpop.f32.mrb[0].mxu0
        %v5108 = vadd.f32 %v4915, %v5107
        %5109 = vmatprep.mubr.bf16.mxu0 %v4460
        %5110 = vmatmul.mubr.bf16.gmra.mrb[0].mxu0 %v4459
        %v5111 = vpop.f32.mrb[0].mxu0
        %v5112 = vadd.f32 %v4919, %v5111
        %v5113 = vpop.f32.mrb[0].mxu0
        %v5114 = vadd.f32 %v4921, %v5113
        %v5115 = vpop.f32.mrb[0].mxu0
        %v5116 = vadd.f32 %v4923, %v5115
        %v5117 = vpop.f32.mrb[0].mxu0
        %v5118 = vadd.f32 %v4925, %v5117
        %5119 = vmatprep.mubr.bf16.mxu0 %v4466
        %5120 = vmatmul.mubr.bf16.gmra.mrb[0].mxu0 %v4465
        %v5121 = vpop.f32.mrb[0].mxu0
        %v5122 = vadd.f32 %v4929, %v5121
        %v5123 = vpop.f32.mrb[0].mxu0
        %v5124 = vadd.f32 %v4931, %v5123
        %v5125 = vpop.f32.mrb[0].mxu0
        %v5126 = vadd.f32 %v4933, %v5125
        %v5127 = vpop.f32.mrb[0].mxu0
        %v5128 = vadd.f32 %v4935, %v5127
        %5129 = vmatprep.mubr.bf16.mxu0 %v4472
        %5130 = vmatmul.mubr.bf16.gmra.mrb[0].mxu0 %v4471
        %v5131 = vpop.f32.mrb[0].mxu0
        %v5132 = vadd.f32 %v4939, %v5131
        %v5133 = vpop.f32.mrb[0].mxu0
        %v5134 = vadd.f32 %v4941, %v5133
        %v5135 = vpop.f32.mrb[0].mxu0
        %v5136 = vadd.f32 %v4943, %v5135
        %v5137 = vpop.f32.mrb[0].mxu0
        %v5138 = vadd.f32 %v4945, %v5137
        %5139 = vmatprep.mubr.bf16.mxu0 %v4478
        %5140 = vmatmul.mubr.bf16.gmra.mrb[0].mxu0 %v4477
        %v5141 = vpop.f32.mrb[0].mxu0
        %v5142 = vadd.f32 %v4949, %v5141
        %v5143 = vpop.f32.mrb[0].mxu0
        %v5144 = vadd.f32 %v4951, %v5143
        %v5145 = vpop.f32.mrb[0].mxu0
        %v5146 = vadd.f32 %v4953, %v5145
        %v5147 = vpop.f32.mrb[0].mxu0
        %v5148 = vadd.f32 %v4955, %v5147
        %5149 = vmatprep.mubr.bf16.mxu0 %v4484
        %5150 = vmatmul.mubr.bf16.gmra.mrb[0].mxu0 %v4483
        %v5151 = vpop.f32.mrb[0].mxu0
        %v5152 = vadd.f32 %v4959, %v5151
        %v5153 = vpop.f32.mrb[0].mxu0
        %v5154 = vadd.f32 %v4961, %v5153
        %v5155 = vpop.f32.mrb[0].mxu0
        %v5156 = vadd.f32 %v4963, %v5155
        %v5157 = vpop.f32.mrb[0].mxu0
        %v5158 = vadd.f32 %v4965, %v5157
        %5159 = vdwg.mxu0
        %5160 = vrot.lane.b32.xlu0 %v1345, 101
        %v5161 = vpop.permute.xlu0 %5160
        %5162 = vrot.lane.b32.xlu0 %v1346, 101
        %v5163 = vpop.permute.xlu0 %5162
        %5164 = vrot.lane.b32.xlu0 %v1347, 101
        %v5165 = vpop.permute.xlu0 %5164
        %5166 = vrot.lane.b32.xlu0 %v1348, 101
        %v5167 = vpop.permute.xlu0 %5166
        %5168 = vrot.lane.b32.xlu0 %v1349, 101
        %v5169 = vpop.permute.xlu0 %5168
        %5170 = vrot.lane.b32.xlu0 %v1350, 101
        %v5171 = vpop.permute.xlu0 %5170
        %5172 = vrot.lane.b32.xlu0 %v1351, 101
        %v5173 = vpop.permute.xlu0 %5172
        %5174 = vrot.lane.b32.xlu0 %v1352, 101
        %v5175 = vpop.permute.xlu0 %5174
        %5176 = vrot.lane.b32.xlu0 %v1353, 101
        %v5177 = vpop.permute.xlu0 %5176
        %5178 = vrot.lane.b32.xlu0 %v1354, 101
        %v5179 = vpop.permute.xlu0 %5178
        %5180 = vrot.lane.b32.xlu0 %v1355, 101
        %v5181 = vpop.permute.xlu0 %5180
        %5182 = vrot.lane.b32.xlu0 %v1356, 101
        %v5183 = vpop.permute.xlu0 %5182
        %5184 = vrot.lane.b32.xlu0 %v1357, 101
        %v5185 = vpop.permute.xlu0 %5184
        %5186 = vrot.lane.b32.xlu0 %v1358, 101
        %v5187 = vpop.permute.xlu0 %5186
        %5188 = vrot.lane.b32.xlu0 %v1359, 101
        %v5189 = vpop.permute.xlu0 %5188
        %5190 = vrot.lane.b32.xlu0 %v1360, 101
        %v5191 = vpop.permute.xlu0 %5190
        %5192 = vrot.lane.b32.xlu0 %v1361, 101
        %v5193 = vpop.permute.xlu0 %5192
        %5194 = vrot.lane.b32.xlu0 %v1362, 101
        %v5195 = vpop.permute.xlu0 %5194
        %5196 = vrot.lane.b32.xlu0 %v1363, 101
        %v5197 = vpop.permute.xlu0 %5196
        %5198 = vrot.lane.b32.xlu0 %v1364, 101
        %v5199 = vpop.permute.xlu0 %5198
        %5200 = vrot.lane.b32.xlu0 %v1365, 101
        %v5201 = vpop.permute.xlu0 %5200
        %5202 = vrot.lane.b32.xlu0 %v1366, 101
        %v5203 = vpop.permute.xlu0 %5202
        %5204 = vrot.lane.b32.xlu0 %v1367, 101
        %v5205 = vpop.permute.xlu0 %5204
        %5206 = vrot.lane.b32.xlu0 %v1368, 101
        %v5207 = vpop.permute.xlu0 %5206
        %5208 = vrot.lane.b32.xlu0 %v1369, 101
        %v5209 = vpop.permute.xlu0 %5208
        %5210 = vrot.lane.b32.xlu0 %v1370, 101
        %v5211 = vpop.permute.xlu0 %5210
        %5212 = vrot.lane.b32.xlu0 %v1371, 101
        %v5213 = vpop.permute.xlu0 %5212
        %5214 = vrot.lane.b32.xlu0 %v1372, 101
        %v5215 = vpop.permute.xlu0 %5214
        %5216 = vrot.lane.b32.xlu0 %v1373, 101
        %v5217 = vpop.permute.xlu0 %5216
        %5218 = vrot.lane.b32.xlu0 %v1374, 101
        %v5219 = vpop.permute.xlu0 %5218
        %5220 = vrot.lane.b32.xlu0 %v1375, 101
        %v5221 = vpop.permute.xlu0 %5220
        %5222 = vrot.lane.b32.xlu0 %v1376, 101
        %v5223 = vpop.permute.xlu0 %5222
        %vm5224 = vcmask 826368
        %v5225 = vsel %vm5224, %v5161, %v5163
        %v5226 = vsel %vm5224, %v5165, %v5167
        %v5227 = vsel %vm5224, %v5169, %v5171
        %v5228 = vsel %vm5224, %v5173, %v5175
        %v5229 = vsel %vm5224, %v5177, %v5179
        %v5230 = vsel %vm5224, %v5181, %v5183
        %v5231 = vsel %vm5224, %v5185, %v5187
        %v5232 = vsel %vm5224, %v5189, %v5191
        %v5233 = vsel %vm5224, %v5193, %v5195
        %v5234 = vsel %vm5224, %v5197, %v5199
        %v5235 = vsel %vm5224, %v5201, %v5203
        %v5236 = vsel %vm5224, %v5205, %v5207
        %v5237 = vsel %vm5224, %v5209, %v5211
        %v5238 = vsel %vm5224, %v5213, %v5215
        %v5239 = vsel %vm5224, %v5217, %v5219
        %v5240 = vsel %vm5224, %v5221, %v5223
        %v5259 = vsel %vm596, %v5163, %v5161
        %v5263 = vsel %vm596, %v5167, %v5165
        %v5267 = vsel %vm596, %v5171, %v5169
        %v5271 = vsel %vm596, %v5175, %v5173
        %v5275 = vsel %vm596, %v5179, %v5177
        %v5279 = vsel %vm596, %v5183, %v5181
        %v5283 = vsel %vm596, %v5187, %v5185
        %v5287 = vsel %vm596, %v5191, %v5189
        %v5291 = vsel %vm596, %v5195, %v5193
        %v5295 = vsel %vm596, %v5199, %v5197
        %v5299 = vsel %vm596, %v5203, %v5201
        %v5303 = vsel %vm596, %v5207, %v5205
        %v5307 = vsel %vm596, %v5211, %v5209
        %v5311 = vsel %vm596, %v5215, %v5213
        %v5315 = vsel %vm596, %v5219, %v5217
        %v5319 = vsel %vm596, %v5223, %v5221
        %v5321 = vlaneseq
        %v5322 = vshrl.u32 %v5321, 7
        %v5323 = vsub.s32 3, %v5322
        %v5324 = vrot.slane %v1571, %v5323
        %v5325 = vlaneseq
        %v5326 = vshrl.u32 %v5325, 7
        %v5327 = vsub.s32 3, %v5326
        %v5328 = vrot.slane %v1578, %v5327
        %v5329 = vmul.bf16 %v5225, %v5324
        %v5330 = vmul.bf16 %v5259, %v5328
        %v5331 = vmul.bf16 %v5226, %v5324
        %v5332 = vmul.bf16 %v5263, %v5328
        %v5333 = vmul.bf16 %v5227, %v5324
        %v5334 = vmul.bf16 %v5267, %v5328
        %v5335 = vmul.bf16 %v5228, %v5324
        %v5336 = vmul.bf16 %v5271, %v5328
        %v5337 = vmul.bf16 %v5229, %v5324
        %v5338 = vmul.bf16 %v5275, %v5328
        %v5339 = vmul.bf16 %v5230, %v5324
        %v5340 = vmul.bf16 %v5279, %v5328
        %v5341 = vmul.bf16 %v5231, %v5324
        %v5342 = vmul.bf16 %v5283, %v5328
        %v5343 = vmul.bf16 %v5232, %v5324
        %v5344 = vmul.bf16 %v5287, %v5328
        %v5345 = vmul.bf16 %v5233, %v5324
        %v5346 = vmul.bf16 %v5291, %v5328
        %v5347 = vmul.bf16 %v5234, %v5324
        %v5348 = vmul.bf16 %v5295, %v5328
        %v5349 = vmul.bf16 %v5235, %v5324
        %v5350 = vmul.bf16 %v5299, %v5328
        %v5351 = vmul.bf16 %v5236, %v5324
        %v5352 = vmul.bf16 %v5303, %v5328
        %v5353 = vmul.bf16 %v5237, %v5324
        %v5354 = vmul.bf16 %v5307, %v5328
        %v5355 = vmul.bf16 %v5238, %v5324
        %v5356 = vmul.bf16 %v5311, %v5328
        %v5357 = vmul.bf16 %v5239, %v5324
        %v5358 = vmul.bf16 %v5315, %v5328
        %v5359 = vmul.bf16 %v5240, %v5324
        %v5360 = vmul.bf16 %v5319, %v5328
        %5361 = vst [vmem:[#allocation3 + $0x600] sm:$0xff] %v5329
        %5362 = vst [vmem:[#allocation3 + $0x608] sm:$0xff] %v5330
        %5363 = vst [vmem:[#allocation3 + $0x610] sm:$0xff] %v5331
        %5364 = vst [vmem:[#allocation3 + $0x618] sm:$0xff] %v5332
        %5365 = vst [vmem:[#allocation3 + $0x620] sm:$0xff] %v5333
        %5366 = vst [vmem:[#allocation3 + $0x628] sm:$0xff] %v5334
        %5367 = vst [vmem:[#allocation3 + $0x630] sm:$0xff] %v5335
        %5368 = vst [vmem:[#allocation3 + $0x638] sm:$0xff] %v5336
        %5369 = vst [vmem:[#allocation3 + $0x640] sm:$0xff] %v5337
        %5370 = vst [vmem:[#allocation3 + $0x648] sm:$0xff] %v5338
        %5371 = vst [vmem:[#allocation3 + $0x650] sm:$0xff] %v5339
        %5372 = vst [vmem:[#allocation3 + $0x658] sm:$0xff] %v5340
        %5373 = vst [vmem:[#allocation3 + $0x660] sm:$0xff] %v5341
        %5374 = vst [vmem:[#allocation3 + $0x668] sm:$0xff] %v5342
        %5375 = vst [vmem:[#allocation3 + $0x670] sm:$0xff] %v5343
        %5376 = vst [vmem:[#allocation3 + $0x678] sm:$0xff] %v5344
        %5377 = vst [vmem:[#allocation3 + $0x680] sm:$0xff] %v5345
        %5378 = vst [vmem:[#allocation3 + $0x688] sm:$0xff] %v5346
        %5379 = vst [vmem:[#allocation3 + $0x690] sm:$0xff] %v5347
        %5380 = vst [vmem:[#allocation3 + $0x698] sm:$0xff] %v5348
        %5381 = vst [vmem:[#allocation3 + $0x6a0] sm:$0xff] %v5349
        %5382 = vst [vmem:[#allocation3 + $0x6a8] sm:$0xff] %v5350
        %5383 = vst [vmem:[#allocation3 + $0x6b0] sm:$0xff] %v5351
        %5384 = vst [vmem:[#allocation3 + $0x6b8] sm:$0xff] %v5352
        %5385 = vst [vmem:[#allocation3 + $0x6c0] sm:$0xff] %v5353
        %5386 = vst [vmem:[#allocation3 + $0x6c8] sm:$0xff] %v5354
        %5387 = vst [vmem:[#allocation3 + $0x6d0] sm:$0xff] %v5355
        %5388 = vst [vmem:[#allocation3 + $0x6d8] sm:$0xff] %v5356
        %5389 = vst [vmem:[#allocation3 + $0x6e0] sm:$0xff] %v5357
        %5390 = vst [vmem:[#allocation3 + $0x6e8] sm:$0xff] %v5358
        %5391 = vst [vmem:[#allocation3 + $0x6f0] sm:$0xff] %v5359
        %5392 = vst [vmem:[#allocation3 + $0x6f8] sm:$0xff] %v5360
        %5393 = vrot.lane.b32.xlu0 %v1345, 100
        %v5394 = vpop.permute.xlu0 %5393
        %5395 = vrot.lane.b32.xlu0 %v1346, 100
        %v5396 = vpop.permute.xlu0 %5395
        %5397 = vrot.lane.b32.xlu0 %v1347, 100
        %v5398 = vpop.permute.xlu0 %5397
        %5399 = vrot.lane.b32.xlu0 %v1348, 100
        %v5400 = vpop.permute.xlu0 %5399
        %5401 = vrot.lane.b32.xlu0 %v1349, 100
        %v5402 = vpop.permute.xlu0 %5401
        %5403 = vrot.lane.b32.xlu0 %v1350, 100
        %v5404 = vpop.permute.xlu0 %5403
        %5405 = vrot.lane.b32.xlu0 %v1351, 100
        %v5406 = vpop.permute.xlu0 %5405
        %5407 = vrot.lane.b32.xlu0 %v1352, 100
        %v5408 = vpop.permute.xlu0 %5407
        %5409 = vrot.lane.b32.xlu0 %v1353, 100
        %v5410 = vpop.permute.xlu0 %5409
        %5411 = vrot.lane.b32.xlu0 %v1354, 100
        %v5412 = vpop.permute.xlu0 %5411
        %5413 = vrot.lane.b32.xlu0 %v1355, 100
        %v5414 = vpop.permute.xlu0 %5413
        %5415 = vrot.lane.b32.xlu0 %v1356, 100
        %v5416 = vpop.permute.xlu0 %5415
        %5417 = vrot.lane.b32.xlu0 %v1357, 100
        %v5418 = vpop.permute.xlu0 %5417
        %5419 = vrot.lane.b32.xlu0 %v1358, 100
        %v5420 = vpop.permute.xlu0 %5419
        %5421 = vrot.lane.b32.xlu0 %v1359, 100
        %v5422 = vpop.permute.xlu0 %5421
        %5423 = vrot.lane.b32.xlu0 %v1360, 100
        %v5424 = vpop.permute.xlu0 %5423
        %5425 = vrot.lane.b32.xlu0 %v1361, 100
        %v5426 = vpop.permute.xlu0 %5425
        %5427 = vrot.lane.b32.xlu0 %v1362, 100
        %v5428 = vpop.permute.xlu0 %5427
        %5429 = vrot.lane.b32.xlu0 %v1363, 100
        %v5430 = vpop.permute.xlu0 %5429
        %5431 = vrot.lane.b32.xlu0 %v1364, 100
        %v5432 = vpop.permute.xlu0 %5431
        %5433 = vrot.lane.b32.xlu0 %v1365, 100
        %v5434 = vpop.permute.xlu0 %5433
        %5435 = vrot.lane.b32.xlu0 %v1366, 100
        %v5436 = vpop.permute.xlu0 %5435
        %5437 = vrot.lane.b32.xlu0 %v1367, 100
        %v5438 = vpop.permute.xlu0 %5437
        %5439 = vrot.lane.b32.xlu0 %v1368, 100
        %v5440 = vpop.permute.xlu0 %5439
        %5441 = vrot.lane.b32.xlu0 %v1369, 100
        %v5442 = vpop.permute.xlu0 %5441
        %5443 = vrot.lane.b32.xlu0 %v1370, 100
        %v5444 = vpop.permute.xlu0 %5443
        %5445 = vrot.lane.b32.xlu0 %v1371, 100
        %v5446 = vpop.permute.xlu0 %5445
        %5447 = vrot.lane.b32.xlu0 %v1372, 100
        %v5448 = vpop.permute.xlu0 %5447
        %5449 = vrot.lane.b32.xlu0 %v1373, 100
        %v5450 = vpop.permute.xlu0 %5449
        %5451 = vrot.lane.b32.xlu0 %v1374, 100
        %v5452 = vpop.permute.xlu0 %5451
        %5453 = vrot.lane.b32.xlu0 %v1375, 100
        %v5454 = vpop.permute.xlu0 %5453
        %5455 = vrot.lane.b32.xlu0 %v1376, 100
        %v5456 = vpop.permute.xlu0 %5455
        %vm5457 = vcmask 818176
        %v5458 = vsel %vm5457, %v5394, %v5396
        %v5459 = vsel %vm5457, %v5398, %v5400
        %v5460 = vsel %vm5457, %v5402, %v5404
        %v5461 = vsel %vm5457, %v5406, %v5408
        %v5462 = vsel %vm5457, %v5410, %v5412
        %v5463 = vsel %vm5457, %v5414, %v5416
        %v5464 = vsel %vm5457, %v5418, %v5420
        %v5465 = vsel %vm5457, %v5422, %v5424
        %v5466 = vsel %vm5457, %v5426, %v5428
        %v5467 = vsel %vm5457, %v5430, %v5432
        %v5468 = vsel %vm5457, %v5434, %v5436
        %v5469 = vsel %vm5457, %v5438, %v5440
        %v5470 = vsel %vm5457, %v5442, %v5444
        %v5471 = vsel %vm5457, %v5446, %v5448
        %v5472 = vsel %vm5457, %v5450, %v5452
        %v5473 = vsel %vm5457, %v5454, %v5456
        %v5492 = vsel %vm633, %v5396, %v5394
        %v5496 = vsel %vm633, %v5400, %v5398
        %v5500 = vsel %vm633, %v5404, %v5402
        %v5504 = vsel %vm633, %v5408, %v5406
        %v5508 = vsel %vm633, %v5412, %v5410
        %v5512 = vsel %vm633, %v5416, %v5414
        %v5516 = vsel %vm633, %v5420, %v5418
        %v5520 = vsel %vm633, %v5424, %v5422
        %v5524 = vsel %vm633, %v5428, %v5426
        %v5528 = vsel %vm633, %v5432, %v5430
        %v5532 = vsel %vm633, %v5436, %v5434
        %v5536 = vsel %vm633, %v5440, %v5438
        %v5540 = vsel %vm633, %v5444, %v5442
        %v5544 = vsel %vm633, %v5448, %v5446
        %v5548 = vsel %vm633, %v5452, %v5450
        %v5552 = vsel %vm633, %v5456, %v5454
        %v5554 = vlaneseq
        %v5555 = vshrl.u32 %v5554, 7
        %v5556 = vsub.s32 3, %v5555
        %v5557 = vrot.slane %v1810, %v5556
        %v5558 = vlaneseq
        %v5559 = vshrl.u32 %v5558, 7
        %v5560 = vsub.s32 3, %v5559
        %v5561 = vrot.slane %v1817, %v5560
        %v5562 = vmul.bf16 %v5458, %v5557
        %v5563 = vmul.bf16 %v5492, %v5561
        %v5564 = vmul.bf16 %v5459, %v5557
        %v5565 = vmul.bf16 %v5496, %v5561
        %v5566 = vmul.bf16 %v5460, %v5557
        %v5567 = vmul.bf16 %v5500, %v5561
        %v5568 = vmul.bf16 %v5461, %v5557
        %v5569 = vmul.bf16 %v5504, %v5561
        %v5570 = vmul.bf16 %v5462, %v5557
        %v5571 = vmul.bf16 %v5508, %v5561
        %v5572 = vmul.bf16 %v5463, %v5557
        %v5573 = vmul.bf16 %v5512, %v5561
        %v5574 = vmul.bf16 %v5464, %v5557
        %v5575 = vmul.bf16 %v5516, %v5561
        %v5576 = vmul.bf16 %v5465, %v5557
        %v5577 = vmul.bf16 %v5520, %v5561
        %v5578 = vmul.bf16 %v5466, %v5557
        %v5579 = vmul.bf16 %v5524, %v5561
        %v5580 = vmul.bf16 %v5467, %v5557
        %v5581 = vmul.bf16 %v5528, %v5561
        %v5582 = vmul.bf16 %v5468, %v5557
        %v5583 = vmul.bf16 %v5532, %v5561
        %v5584 = vmul.bf16 %v5469, %v5557
        %v5585 = vmul.bf16 %v5536, %v5561
        %v5586 = vmul.bf16 %v5470, %v5557
        %v5587 = vmul.bf16 %v5540, %v5561
        %v5588 = vmul.bf16 %v5471, %v5557
        %v5589 = vmul.bf16 %v5544, %v5561
        %v5590 = vmul.bf16 %v5472, %v5557
        %v5591 = vmul.bf16 %v5548, %v5561
        %v5592 = vmul.bf16 %v5473, %v5557
        %v5593 = vmul.bf16 %v5552, %v5561
        %5594 = vst [vmem:[#allocation3 + $0x700] sm:$0xff] %v5562
        %5595 = vst [vmem:[#allocation3 + $0x708] sm:$0xff] %v5563
        %5596 = vst [vmem:[#allocation3 + $0x710] sm:$0xff] %v5564
        %5597 = vst [vmem:[#allocation3 + $0x718] sm:$0xff] %v5565
        %5598 = vst [vmem:[#allocation3 + $0x720] sm:$0xff] %v5566
        %5599 = vst [vmem:[#allocation3 + $0x728] sm:$0xff] %v5567
        %5600 = vst [vmem:[#allocation3 + $0x730] sm:$0xff] %v5568
        %5601 = vst [vmem:[#allocation3 + $0x738] sm:$0xff] %v5569
        %5602 = vst [vmem:[#allocation3 + $0x740] sm:$0xff] %v5570
        %5603 = vst [vmem:[#allocation3 + $0x748] sm:$0xff] %v5571
        %5604 = vst [vmem:[#allocation3 + $0x750] sm:$0xff] %v5572
        %5605 = vst [vmem:[#allocation3 + $0x758] sm:$0xff] %v5573
        %5606 = vst [vmem:[#allocation3 + $0x760] sm:$0xff] %v5574
        %5607 = vst [vmem:[#allocation3 + $0x768] sm:$0xff] %v5575
        %5608 = vst [vmem:[#allocation3 + $0x770] sm:$0xff] %v5576
        %5609 = vst [vmem:[#allocation3 + $0x778] sm:$0xff] %v5577
        %5610 = vst [vmem:[#allocation3 + $0x780] sm:$0xff] %v5578
        %5611 = vst [vmem:[#allocation3 + $0x788] sm:$0xff] %v5579
        %5612 = vst [vmem:[#allocation3 + $0x790] sm:$0xff] %v5580
        %5613 = vst [vmem:[#allocation3 + $0x798] sm:$0xff] %v5581
        %5614 = vst [vmem:[#allocation3 + $0x7a0] sm:$0xff] %v5582
        %5615 = vst [vmem:[#allocation3 + $0x7a8] sm:$0xff] %v5583
        %5616 = vst [vmem:[#allocation3 + $0x7b0] sm:$0xff] %v5584
        %5617 = vst [vmem:[#allocation3 + $0x7b8] sm:$0xff] %v5585
        %5618 = vst [vmem:[#allocation3 + $0x7c0] sm:$0xff] %v5586
        %5619 = vst [vmem:[#allocation3 + $0x7c8] sm:$0xff] %v5587
        %5620 = vst [vmem:[#allocation3 + $0x7d0] sm:$0xff] %v5588
        %5621 = vst [vmem:[#allocation3 + $0x7d8] sm:$0xff] %v5589
        %5622 = vst [vmem:[#allocation3 + $0x7e0] sm:$0xff] %v5590
        %5623 = vst [vmem:[#allocation3 + $0x7e8] sm:$0xff] %v5591
        %5624 = vst [vmem:[#allocation3 + $0x7f0] sm:$0xff] %v5592
        %5625 = vst [vmem:[#allocation3 + $0x7f8] sm:$0xff] %v5593
        %5626 = vrot.lane.b32.xlu0 %v1345, 99
        %v5627 = vpop.permute.xlu0 %5626
        %5628 = vrot.lane.b32.xlu0 %v1346, 99
        %v5629 = vpop.permute.xlu0 %5628
        %5630 = vrot.lane.b32.xlu0 %v1347, 99
        %v5631 = vpop.permute.xlu0 %5630
        %5632 = vrot.lane.b32.xlu0 %v1348, 99
        %v5633 = vpop.permute.xlu0 %5632
        %5634 = vrot.lane.b32.xlu0 %v1349, 99
        %v5635 = vpop.permute.xlu0 %5634
        %5636 = vrot.lane.b32.xlu0 %v1350, 99
        %v5637 = vpop.permute.xlu0 %5636
        %5638 = vrot.lane.b32.xlu0 %v1351, 99
        %v5639 = vpop.permute.xlu0 %5638
        %5640 = vrot.lane.b32.xlu0 %v1352, 99
        %v5641 = vpop.permute.xlu0 %5640
        %5642 = vrot.lane.b32.xlu0 %v1353, 99
        %v5643 = vpop.permute.xlu0 %5642
        %5644 = vrot.lane.b32.xlu0 %v1354, 99
        %v5645 = vpop.permute.xlu0 %5644
        %5646 = vrot.lane.b32.xlu0 %v1355, 99
        %v5647 = vpop.permute.xlu0 %5646
        %5648 = vrot.lane.b32.xlu0 %v1356, 99
        %v5649 = vpop.permute.xlu0 %5648
        %5650 = vrot.lane.b32.xlu0 %v1357, 99
        %v5651 = vpop.permute.xlu0 %5650
        %5652 = vrot.lane.b32.xlu0 %v1358, 99
        %v5653 = vpop.permute.xlu0 %5652
        %5654 = vrot.lane.b32.xlu0 %v1359, 99
        %v5655 = vpop.permute.xlu0 %5654
        %5656 = vrot.lane.b32.xlu0 %v1360, 99
        %v5657 = vpop.permute.xlu0 %5656
        %5658 = vrot.lane.b32.xlu0 %v1361, 99
        %v5659 = vpop.permute.xlu0 %5658
        %5660 = vrot.lane.b32.xlu0 %v1362, 99
        %v5661 = vpop.permute.xlu0 %5660
        %5662 = vrot.lane.b32.xlu0 %v1363, 99
        %v5663 = vpop.permute.xlu0 %5662
        %5664 = vrot.lane.b32.xlu0 %v1364, 99
        %v5665 = vpop.permute.xlu0 %5664
        %5666 = vrot.lane.b32.xlu0 %v1365, 99
        %v5667 = vpop.permute.xlu0 %5666
        %5668 = vrot.lane.b32.xlu0 %v1366, 99
        %v5669 = vpop.permute.xlu0 %5668
        %5670 = vrot.lane.b32.xlu0 %v1367, 99
        %v5671 = vpop.permute.xlu0 %5670
        %5672 = vrot.lane.b32.xlu0 %v1368, 99
        %v5673 = vpop.permute.xlu0 %5672
        %5674 = vrot.lane.b32.xlu0 %v1369, 99
        %v5675 = vpop.permute.xlu0 %5674
        %5676 = vrot.lane.b32.xlu0 %v1370, 99
        %v5677 = vpop.permute.xlu0 %5676
        %5678 = vrot.lane.b32.xlu0 %v1371, 99
        %v5679 = vpop.permute.xlu0 %5678
        %5680 = vrot.lane.b32.xlu0 %v1372, 99
        %v5681 = vpop.permute.xlu0 %5680
        %5682 = vrot.lane.b32.xlu0 %v1373, 99
        %v5683 = vpop.permute.xlu0 %5682
        %5684 = vrot.lane.b32.xlu0 %v1374, 99
        %v5685 = vpop.permute.xlu0 %5684
        %5686 = vrot.lane.b32.xlu0 %v1375, 99
        %v5687 = vpop.permute.xlu0 %5686
        %5688 = vrot.lane.b32.xlu0 %v1376, 99
        %v5689 = vpop.permute.xlu0 %5688
        %vm5690 = vcmask 809984
        %v5691 = vsel %vm5690, %v5627, %v5629
        %v5692 = vsel %vm5690, %v5631, %v5633
        %v5693 = vsel %vm5690, %v5635, %v5637
        %v5694 = vsel %vm5690, %v5639, %v5641
        %v5695 = vsel %vm5690, %v5643, %v5645
        %v5696 = vsel %vm5690, %v5647, %v5649
        %v5697 = vsel %vm5690, %v5651, %v5653
        %v5698 = vsel %vm5690, %v5655, %v5657
        %v5699 = vsel %vm5690, %v5659, %v5661
        %v5700 = vsel %vm5690, %v5663, %v5665
        %v5701 = vsel %vm5690, %v5667, %v5669
        %v5702 = vsel %vm5690, %v5671, %v5673
        %v5703 = vsel %vm5690, %v5675, %v5677
        %v5704 = vsel %vm5690, %v5679, %v5681
        %v5705 = vsel %vm5690, %v5683, %v5685
        %v5706 = vsel %vm5690, %v5687, %v5689
        %v5725 = vsel %vm670, %v5629, %v5627
        %v5729 = vsel %vm670, %v5633, %v5631
        %v5733 = vsel %vm670, %v5637, %v5635
        %v5737 = vsel %vm670, %v5641, %v5639
        %v5741 = vsel %vm670, %v5645, %v5643
        %v5745 = vsel %vm670, %v5649, %v5647
        %v5749 = vsel %vm670, %v5653, %v5651
        %v5753 = vsel %vm670, %v5657, %v5655
        %v5757 = vsel %vm670, %v5661, %v5659
        %v5761 = vsel %vm670, %v5665, %v5663
        %v5765 = vsel %vm670, %v5669, %v5667
        %v5769 = vsel %vm670, %v5673, %v5671
        %v5773 = vsel %vm670, %v5677, %v5675
        %v5777 = vsel %vm670, %v5681, %v5679
        %v5781 = vsel %vm670, %v5685, %v5683
        %v5785 = vsel %vm670, %v5689, %v5687
        %v5787 = vlaneseq
        %v5788 = vshrl.u32 %v5787, 7
        %v5789 = vsub.s32 4, %v5788
        %v5790 = vrot.slane %v1571, %v5789
        %v5791 = vlaneseq
        %v5792 = vshrl.u32 %v5791, 7
        %v5793 = vsub.s32 4, %v5792
        %v5794 = vrot.slane %v1578, %v5793
        %v5795 = vmul.bf16 %v5691, %v5790
        %v5796 = vmul.bf16 %v5725, %v5794
        %v5797 = vmul.bf16 %v5692, %v5790
        %v5798 = vmul.bf16 %v5729, %v5794
        %v5799 = vmul.bf16 %v5693, %v5790
        %v5800 = vmul.bf16 %v5733, %v5794
        %v5801 = vmul.bf16 %v5694, %v5790
        %v5802 = vmul.bf16 %v5737, %v5794
        %v5803 = vmul.bf16 %v5695, %v5790
        %v5804 = vmul.bf16 %v5741, %v5794
        %v5805 = vmul.bf16 %v5696, %v5790
        %v5806 = vmul.bf16 %v5745, %v5794
        %v5807 = vmul.bf16 %v5697, %v5790
        %v5808 = vmul.bf16 %v5749, %v5794
        %v5809 = vmul.bf16 %v5698, %v5790
        %v5810 = vmul.bf16 %v5753, %v5794
        %v5811 = vmul.bf16 %v5699, %v5790
        %v5812 = vmul.bf16 %v5757, %v5794
        %v5813 = vmul.bf16 %v5700, %v5790
        %v5814 = vmul.bf16 %v5761, %v5794
        %v5815 = vmul.bf16 %v5701, %v5790
        %v5816 = vmul.bf16 %v5765, %v5794
        %v5817 = vmul.bf16 %v5702, %v5790
        %v5818 = vmul.bf16 %v5769, %v5794
        %v5819 = vmul.bf16 %v5703, %v5790
        %v5820 = vmul.bf16 %v5773, %v5794
        %v5821 = vmul.bf16 %v5704, %v5790
        %v5822 = vmul.bf16 %v5777, %v5794
        %v5823 = vmul.bf16 %v5705, %v5790
        %v5824 = vmul.bf16 %v5781, %v5794
        %v5825 = vmul.bf16 %v5706, %v5790
        %v5826 = vmul.bf16 %v5785, %v5794
        %5827 = vst [vmem:[#allocation3 + $0x800] sm:$0xff] %v5795
        %5828 = vst [vmem:[#allocation3 + $0x808] sm:$0xff] %v5796
        %5829 = vst [vmem:[#allocation3 + $0x810] sm:$0xff] %v5797
        %5830 = vst [vmem:[#allocation3 + $0x818] sm:$0xff] %v5798
        %5831 = vst [vmem:[#allocation3 + $0x820] sm:$0xff] %v5799
        %5832 = vst [vmem:[#allocation3 + $0x828] sm:$0xff] %v5800
        %5833 = vst [vmem:[#allocation3 + $0x830] sm:$0xff] %v5801
        %5834 = vst [vmem:[#allocation3 + $0x838] sm:$0xff] %v5802
        %5835 = vst [vmem:[#allocation3 + $0x840] sm:$0xff] %v5803
        %5836 = vst [vmem:[#allocation3 + $0x848] sm:$0xff] %v5804
        %5837 = vst [vmem:[#allocation3 + $0x850] sm:$0xff] %v5805
        %5838 = vst [vmem:[#allocation3 + $0x858] sm:$0xff] %v5806
        %5839 = vst [vmem:[#allocation3 + $0x860] sm:$0xff] %v5807
        %5840 = vst [vmem:[#allocation3 + $0x868] sm:$0xff] %v5808
        %5841 = vst [vmem:[#allocation3 + $0x870] sm:$0xff] %v5809
        %5842 = vst [vmem:[#allocation3 + $0x878] sm:$0xff] %v5810
        %5843 = vst [vmem:[#allocation3 + $0x880] sm:$0xff] %v5811
        %5844 = vst [vmem:[#allocation3 + $0x888] sm:$0xff] %v5812
        %5845 = vst [vmem:[#allocation3 + $0x890] sm:$0xff] %v5813
        %5846 = vst [vmem:[#allocation3 + $0x898] sm:$0xff] %v5814
        %5847 = vst [vmem:[#allocation3 + $0x8a0] sm:$0xff] %v5815
        %5848 = vst [vmem:[#allocation3 + $0x8a8] sm:$0xff] %v5816
        %5849 = vst [vmem:[#allocation3 + $0x8b0] sm:$0xff] %v5817
        %5850 = vst [vmem:[#allocation3 + $0x8b8] sm:$0xff] %v5818
        %5851 = vst [vmem:[#allocation3 + $0x8c0] sm:$0xff] %v5819
        %5852 = vst [vmem:[#allocation3 + $0x8c8] sm:$0xff] %v5820
        %5853 = vst [vmem:[#allocation3 + $0x8d0] sm:$0xff] %v5821
        %5854 = vst [vmem:[#allocation3 + $0x8d8] sm:$0xff] %v5822
        %5855 = vst [vmem:[#allocation3 + $0x8e0] sm:$0xff] %v5823
        %5856 = vst [vmem:[#allocation3 + $0x8e8] sm:$0xff] %v5824
        %5857 = vst [vmem:[#allocation3 + $0x8f0] sm:$0xff] %v5825
        %5858 = vst [vmem:[#allocation3 + $0x8f8] sm:$0xff] %v5826
        %v5859 = vld [vmem:[#allocation10 + $0x30] sm:$0xff]
        %v5860 = vld [vmem:[#allocation10 + $0x38] sm:$0xff]
        %v5861 = vld [vmem:[#allocation10 + $0x40] sm:$0xff]
        %v5862 = vld [vmem:[#allocation10 + $0x78] sm:$0xff]
        %v5863 = vld [vmem:[#allocation10 + $0x80] sm:$0xff]
        %v5864 = vld [vmem:[#allocation10 + $0x88] sm:$0xff]
        %v5865 = vld [vmem:[#allocation10 + $0xc0] sm:$0xff]
        %v5866 = vld [vmem:[#allocation10 + $0xc8] sm:$0xff]
        %v5867 = vld [vmem:[#allocation10 + $0xd0] sm:$0xff]
        %v5868 = vld [vmem:[#allocation10 + $0x108] sm:$0xff]
        %v5869 = vld [vmem:[#allocation10 + $0x110] sm:$0xff]
        %v5870 = vld [vmem:[#allocation10 + $0x118] sm:$0xff]
        %v5871 = vld [vmem:[#allocation10 + $0x150] sm:$0xff]
        %v5872 = vld [vmem:[#allocation10 + $0x158] sm:$0xff]
        %v5873 = vld [vmem:[#allocation10 + $0x160] sm:$0xff]
        %v5874 = vld [vmem:[#allocation10 + $0x198] sm:$0xff]
        %v5875 = vld [vmem:[#allocation10 + $0x1a0] sm:$0xff]
        %v5876 = vld [vmem:[#allocation10 + $0x1a8] sm:$0xff]
        %v5877 = vld [vmem:[#allocation10 + $0x1e0] sm:$0xff]
        %v5878 = vld [vmem:[#allocation10 + $0x1e8] sm:$0xff]
        %v5879 = vld [vmem:[#allocation10 + $0x1f0] sm:$0xff]
        %v5880 = vld [vmem:[#allocation10 + $0x228] sm:$0xff]
        %v5881 = vld [vmem:[#allocation10 + $0x230] sm:$0xff]
        %v5882 = vld [vmem:[#allocation10 + $0x238] sm:$0xff]
        %v5883 = vld [vmem:[#allocation10 + $0x270] sm:$0xff]
        %v5884 = vld [vmem:[#allocation10 + $0x278] sm:$0xff]
        %v5885 = vld [vmem:[#allocation10 + $0x280] sm:$0xff]
        %v5886 = vld [vmem:[#allocation10 + $0x2b8] sm:$0xff]
        %v5887 = vld [vmem:[#allocation10 + $0x2c0] sm:$0xff]
        %v5888 = vld [vmem:[#allocation10 + $0x2c8] sm:$0xff]
        %v5889 = vld [vmem:[#allocation10 + $0x300] sm:$0xff]
        %v5890 = vld [vmem:[#allocation10 + $0x308] sm:$0xff]
        %v5891 = vld [vmem:[#allocation10 + $0x310] sm:$0xff]
        %v5892 = vld [vmem:[#allocation10 + $0x348] sm:$0xff]
        %v5893 = vld [vmem:[#allocation10 + $0x350] sm:$0xff]
        %v5894 = vld [vmem:[#allocation10 + $0x358] sm:$0xff]
        %v5895 = vld [vmem:[#allocation10 + $0x390] sm:$0xff]
        %v5896 = vld [vmem:[#allocation10 + $0x398] sm:$0xff]
        %v5897 = vld [vmem:[#allocation10 + $0x3a0] sm:$0xff]
        %v5898 = vld [vmem:[#allocation10 + $0x3d8] sm:$0xff]
        %v5899 = vld [vmem:[#allocation10 + $0x3e0] sm:$0xff]
        %v5900 = vld [vmem:[#allocation10 + $0x3e8] sm:$0xff]
        %v5901 = vld [vmem:[#allocation10 + $0x420] sm:$0xff]
        %v5902 = vld [vmem:[#allocation10 + $0x428] sm:$0xff]
        %v5903 = vld [vmem:[#allocation10 + $0x430] sm:$0xff]
        %v5904 = vld [vmem:[#allocation10 + $0x468] sm:$0xff]
        %v5905 = vld [vmem:[#allocation10 + $0x470] sm:$0xff]
        %v5906 = vld [vmem:[#allocation10 + $0x478] sm:$0xff]
        %v5907 = vld [vmem:[#allocation10 + $0x4b0] sm:$0xff]
        %v5908 = vld [vmem:[#allocation10 + $0x4b8] sm:$0xff]
        %v5909 = vld [vmem:[#allocation10 + $0x4c0] sm:$0xff]
        %v5910 = vld [vmem:[#allocation10 + $0x4f8] sm:$0xff]
        %v5911 = vld [vmem:[#allocation10 + $0x500] sm:$0xff]
        %v5912 = vld [vmem:[#allocation10 + $0x508] sm:$0xff]
        %v5913 = vld [vmem:[#allocation10 + $0x540] sm:$0xff]
        %v5914 = vld [vmem:[#allocation10 + $0x548] sm:$0xff]
        %v5915 = vld [vmem:[#allocation10 + $0x550] sm:$0xff]
        %v5916 = vld [vmem:[#allocation10 + $0x588] sm:$0xff]
        %v5917 = vld [vmem:[#allocation10 + $0x590] sm:$0xff]
        %v5918 = vld [vmem:[#allocation10 + $0x598] sm:$0xff]
        %v5919 = vld [vmem:[#allocation10 + $0x5d0] sm:$0xff]
        %v5920 = vld [vmem:[#allocation10 + $0x5d8] sm:$0xff]
        %v5921 = vld [vmem:[#allocation10 + $0x5e0] sm:$0xff]
        %v5922 = vld [vmem:[#allocation10 + $0x618] sm:$0xff]
        %v5923 = vld [vmem:[#allocation10 + $0x620] sm:$0xff]
        %v5924 = vld [vmem:[#allocation10 + $0x628] sm:$0xff]
        %v5925 = vld [vmem:[#allocation10 + $0x660] sm:$0xff]
        %v5926 = vld [vmem:[#allocation10 + $0x668] sm:$0xff]
        %v5927 = vld [vmem:[#allocation10 + $0x670] sm:$0xff]
        %v5928 = vld [vmem:[#allocation10 + $0x6a8] sm:$0xff]
        %v5929 = vld [vmem:[#allocation10 + $0x6b0] sm:$0xff]
        %v5930 = vld [vmem:[#allocation10 + $0x6b8] sm:$0xff]
        %v5931 = vld [vmem:[#allocation10 + $0x6f0] sm:$0xff]
        %v5932 = vld [vmem:[#allocation10 + $0x6f8] sm:$0xff]
        %v5933 = vld [vmem:[#allocation10 + $0x700] sm:$0xff]
        %v5934 = vld [vmem:[#allocation10 + $0x738] sm:$0xff]
        %v5935 = vld [vmem:[#allocation10 + $0x740] sm:$0xff]
        %v5936 = vld [vmem:[#allocation10 + $0x748] sm:$0xff]
        %v5937 = vld [vmem:[#allocation10 + $0x780] sm:$0xff]
        %v5938 = vld [vmem:[#allocation10 + $0x788] sm:$0xff]
        %v5939 = vld [vmem:[#allocation10 + $0x790] sm:$0xff]
        %v5940 = vld [vmem:[#allocation10 + $0x7c8] sm:$0xff]
        %v5941 = vld [vmem:[#allocation10 + $0x7d0] sm:$0xff]
        %v5942 = vld [vmem:[#allocation10 + $0x7d8] sm:$0xff]
        %v5943 = vld [vmem:[#allocation10 + $0x810] sm:$0xff]
        %v5944 = vld [vmem:[#allocation10 + $0x818] sm:$0xff]
        %v5945 = vld [vmem:[#allocation10 + $0x820] sm:$0xff]
        %v5946 = vld [vmem:[#allocation10 + $0x858] sm:$0xff]
        %v5947 = vld [vmem:[#allocation10 + $0x860] sm:$0xff]
        %v5948 = vld [vmem:[#allocation10 + $0x868] sm:$0xff]
        %v5949 = vld [vmem:[#allocation10 + $0x8a0] sm:$0xff]
        %v5950 = vld [vmem:[#allocation10 + $0x8a8] sm:$0xff]
        %v5951 = vld [vmem:[#allocation10 + $0x8b0] sm:$0xff]
        %v5952 = vld [vmem:[#allocation10 + $0x8e8] sm:$0xff]
        %v5953 = vld [vmem:[#allocation10 + $0x8f0] sm:$0xff]
        %v5954 = vld [vmem:[#allocation10 + $0x8f8] sm:$0xff]
        %v5955 = vld [vmem:[#allocation3 + $0x600] sm:$0xff]
        %v5956 = vld [vmem:[#allocation3 + $0x608] sm:$0xff]
        %v5957 = vld [vmem:[#allocation3 + $0x610] sm:$0xff]
        %v5958 = vld [vmem:[#allocation3 + $0x618] sm:$0xff]
        %v5959 = vld [vmem:[#allocation3 + $0x620] sm:$0xff]
        %v5960 = vld [vmem:[#allocation3 + $0x628] sm:$0xff]
        %v5961 = vld [vmem:[#allocation3 + $0x630] sm:$0xff]
        %v5962 = vld [vmem:[#allocation3 + $0x638] sm:$0xff]
        %v5963 = vld [vmem:[#allocation3 + $0x640] sm:$0xff]
        %v5964 = vld [vmem:[#allocation3 + $0x648] sm:$0xff]
        %v5965 = vld [vmem:[#allocation3 + $0x650] sm:$0xff]
        %v5966 = vld [vmem:[#allocation3 + $0x658] sm:$0xff]
        %v5967 = vld [vmem:[#allocation3 + $0x660] sm:$0xff]
        %v5968 = vld [vmem:[#allocation3 + $0x668] sm:$0xff]
        %v5969 = vld [vmem:[#allocation3 + $0x670] sm:$0xff]
        %v5970 = vld [vmem:[#allocation3 + $0x678] sm:$0xff]
        %v5971 = vld [vmem:[#allocation3 + $0x680] sm:$0xff]
        %v5972 = vld [vmem:[#allocation3 + $0x688] sm:$0xff]
        %v5973 = vld [vmem:[#allocation3 + $0x690] sm:$0xff]
        %v5974 = vld [vmem:[#allocation3 + $0x698] sm:$0xff]
        %v5975 = vld [vmem:[#allocation3 + $0x6a0] sm:$0xff]
        %v5976 = vld [vmem:[#allocation3 + $0x6a8] sm:$0xff]
        %v5977 = vld [vmem:[#allocation3 + $0x6b0] sm:$0xff]
        %v5978 = vld [vmem:[#allocation3 + $0x6b8] sm:$0xff]
        %v5979 = vld [vmem:[#allocation3 + $0x6c0] sm:$0xff]
        %v5980 = vld [vmem:[#allocation3 + $0x6c8] sm:$0xff]
        %v5981 = vld [vmem:[#allocation3 + $0x6d0] sm:$0xff]
        %v5982 = vld [vmem:[#allocation3 + $0x6d8] sm:$0xff]
        %v5983 = vld [vmem:[#allocation3 + $0x6e0] sm:$0xff]
        %v5984 = vld [vmem:[#allocation3 + $0x6e8] sm:$0xff]
        %v5985 = vld [vmem:[#allocation3 + $0x6f0] sm:$0xff]
        %v5986 = vld [vmem:[#allocation3 + $0x6f8] sm:$0xff]
        %v5987 = vld [vmem:[#allocation3 + $0x700] sm:$0xff]
        %v5988 = vld [vmem:[#allocation3 + $0x708] sm:$0xff]
        %v5989 = vld [vmem:[#allocation3 + $0x710] sm:$0xff]
        %v5990 = vld [vmem:[#allocation3 + $0x718] sm:$0xff]
        %v5991 = vld [vmem:[#allocation3 + $0x720] sm:$0xff]
        %v5992 = vld [vmem:[#allocation3 + $0x728] sm:$0xff]
        %v5993 = vld [vmem:[#allocation3 + $0x730] sm:$0xff]
        %v5994 = vld [vmem:[#allocation3 + $0x738] sm:$0xff]
        %v5995 = vld [vmem:[#allocation3 + $0x740] sm:$0xff]
        %v5996 = vld [vmem:[#allocation3 + $0x748] sm:$0xff]
        %v5997 = vld [vmem:[#allocation3 + $0x750] sm:$0xff]
        %v5998 = vld [vmem:[#allocation3 + $0x758] sm:$0xff]
        %v5999 = vld [vmem:[#allocation3 + $0x760] sm:$0xff]
        %v6000 = vld [vmem:[#allocation3 + $0x768] sm:$0xff]
        %v6001 = vld [vmem:[#allocation3 + $0x770] sm:$0xff]
        %v6002 = vld [vmem:[#allocation3 + $0x778] sm:$0xff]
        %v6003 = vld [vmem:[#allocation3 + $0x780] sm:$0xff]
        %v6004 = vld [vmem:[#allocation3 + $0x788] sm:$0xff]
        %v6005 = vld [vmem:[#allocation3 + $0x790] sm:$0xff]
        %v6006 = vld [vmem:[#allocation3 + $0x798] sm:$0xff]
        %v6007 = vld [vmem:[#allocation3 + $0x7a0] sm:$0xff]
        %v6008 = vld [vmem:[#allocation3 + $0x7a8] sm:$0xff]
        %v6009 = vld [vmem:[#allocation3 + $0x7b0] sm:$0xff]
        %v6010 = vld [vmem:[#allocation3 + $0x7b8] sm:$0xff]
        %v6011 = vld [vmem:[#allocation3 + $0x7c0] sm:$0xff]
        %v6012 = vld [vmem:[#allocation3 + $0x7c8] sm:$0xff]
        %v6013 = vld [vmem:[#allocation3 + $0x7d0] sm:$0xff]
        %v6014 = vld [vmem:[#allocation3 + $0x7d8] sm:$0xff]
        %v6015 = vld [vmem:[#allocation3 + $0x7e0] sm:$0xff]
        %v6016 = vld [vmem:[#allocation3 + $0x7e8] sm:$0xff]
        %v6017 = vld [vmem:[#allocation3 + $0x7f0] sm:$0xff]
        %v6018 = vld [vmem:[#allocation3 + $0x7f8] sm:$0xff]
        %v6019 = vld [vmem:[#allocation3 + $0x800] sm:$0xff]
        %v6020 = vld [vmem:[#allocation3 + $0x808] sm:$0xff]
        %v6021 = vld [vmem:[#allocation3 + $0x810] sm:$0xff]
        %v6022 = vld [vmem:[#allocation3 + $0x818] sm:$0xff]
        %v6023 = vld [vmem:[#allocation3 + $0x820] sm:$0xff]
        %v6024 = vld [vmem:[#allocation3 + $0x828] sm:$0xff]
        %v6025 = vld [vmem:[#allocation3 + $0x830] sm:$0xff]
        %v6026 = vld [vmem:[#allocation3 + $0x838] sm:$0xff]
        %v6027 = vld [vmem:[#allocation3 + $0x840] sm:$0xff]
        %v6028 = vld [vmem:[#allocation3 + $0x848] sm:$0xff]
        %v6029 = vld [vmem:[#allocation3 + $0x850] sm:$0xff]
        %v6030 = vld [vmem:[#allocation3 + $0x858] sm:$0xff]
        %v6031 = vld [vmem:[#allocation3 + $0x860] sm:$0xff]
        %v6032 = vld [vmem:[#allocation3 + $0x868] sm:$0xff]
        %v6033 = vld [vmem:[#allocation3 + $0x870] sm:$0xff]
        %v6034 = vld [vmem:[#allocation3 + $0x878] sm:$0xff]
        %v6035 = vld [vmem:[#allocation3 + $0x880] sm:$0xff]
        %v6036 = vld [vmem:[#allocation3 + $0x888] sm:$0xff]
        %v6037 = vld [vmem:[#allocation3 + $0x890] sm:$0xff]
        %v6038 = vld [vmem:[#allocation3 + $0x898] sm:$0xff]
        %v6039 = vld [vmem:[#allocation3 + $0x8a0] sm:$0xff]
        %v6040 = vld [vmem:[#allocation3 + $0x8a8] sm:$0xff]
        %v6041 = vld [vmem:[#allocation3 + $0x8b0] sm:$0xff]
        %v6042 = vld [vmem:[#allocation3 + $0x8b8] sm:$0xff]
        %v6043 = vld [vmem:[#allocation3 + $0x8c0] sm:$0xff]
        %v6044 = vld [vmem:[#allocation3 + $0x8c8] sm:$0xff]
        %v6045 = vld [vmem:[#allocation3 + $0x8d0] sm:$0xff]
        %v6046 = vld [vmem:[#allocation3 + $0x8d8] sm:$0xff]
        %v6047 = vld [vmem:[#allocation3 + $0x8e0] sm:$0xff]
        %v6048 = vld [vmem:[#allocation3 + $0x8e8] sm:$0xff]
        %v6049 = vld [vmem:[#allocation3 + $0x8f0] sm:$0xff]
        %v6050 = vld [vmem:[#allocation3 + $0x8f8] sm:$0xff]
        %v6147 = vunpack.c.l.b16 %v5859
        %v6148 = vunpack.c.h.b16 %v5859
        %v6149 = vunpack.c.l.b16 %v5860
        %v6150 = vunpack.c.h.b16 %v5860
        %v6151 = vunpack.c.l.b16 %v5861
        %v6152 = vunpack.c.h.b16 %v5861
        %v6153 = vunpack.c.l.b16 %v5862
        %v6154 = vunpack.c.h.b16 %v5862
        %v6155 = vunpack.c.l.b16 %v5863
        %v6156 = vunpack.c.h.b16 %v5863
        %v6157 = vunpack.c.l.b16 %v5864
        %v6158 = vunpack.c.h.b16 %v5864
        %v6159 = vunpack.c.l.b16 %v5865
        %v6160 = vunpack.c.h.b16 %v5865
        %v6161 = vunpack.c.l.b16 %v5866
        %v6162 = vunpack.c.h.b16 %v5866
        %v6163 = vunpack.c.l.b16 %v5867
        %v6164 = vunpack.c.h.b16 %v5867
        %v6165 = vunpack.c.l.b16 %v5868
        %v6166 = vunpack.c.h.b16 %v5868
        %v6167 = vunpack.c.l.b16 %v5869
        %v6168 = vunpack.c.h.b16 %v5869
        %v6169 = vunpack.c.l.b16 %v5870
        %v6170 = vunpack.c.h.b16 %v5870
        %v6171 = vunpack.c.l.b16 %v5871
        %v6172 = vunpack.c.h.b16 %v5871
        %v6173 = vunpack.c.l.b16 %v5872
        %v6174 = vunpack.c.h.b16 %v5872
        %v6175 = vunpack.c.l.b16 %v5873
        %v6176 = vunpack.c.h.b16 %v5873
        %v6177 = vunpack.c.l.b16 %v5874
        %v6178 = vunpack.c.h.b16 %v5874
        %v6179 = vunpack.c.l.b16 %v5875
        %v6180 = vunpack.c.h.b16 %v5875
        %v6181 = vunpack.c.l.b16 %v5876
        %v6182 = vunpack.c.h.b16 %v5876
        %v6183 = vunpack.c.l.b16 %v5877
        %v6184 = vunpack.c.h.b16 %v5877
        %v6185 = vunpack.c.l.b16 %v5878
        %v6186 = vunpack.c.h.b16 %v5878
        %v6187 = vunpack.c.l.b16 %v5879
        %v6188 = vunpack.c.h.b16 %v5879
        %v6189 = vunpack.c.l.b16 %v5880
        %v6190 = vunpack.c.h.b16 %v5880
        %v6191 = vunpack.c.l.b16 %v5881
        %v6192 = vunpack.c.h.b16 %v5881
        %v6193 = vunpack.c.l.b16 %v5882
        %v6194 = vunpack.c.h.b16 %v5882
        %v6195 = vunpack.c.l.b16 %v5883
        %v6196 = vunpack.c.h.b16 %v5883
        %v6197 = vunpack.c.l.b16 %v5884
        %v6198 = vunpack.c.h.b16 %v5884
        %v6199 = vunpack.c.l.b16 %v5885
        %v6200 = vunpack.c.h.b16 %v5885
        %v6201 = vunpack.c.l.b16 %v5886
        %v6202 = vunpack.c.h.b16 %v5886
        %v6203 = vunpack.c.l.b16 %v5887
        %v6204 = vunpack.c.h.b16 %v5887
        %v6205 = vunpack.c.l.b16 %v5888
        %v6206 = vunpack.c.h.b16 %v5888
        %v6207 = vunpack.c.l.b16 %v5889
        %v6208 = vunpack.c.h.b16 %v5889
        %v6209 = vunpack.c.l.b16 %v5890
        %v6210 = vunpack.c.h.b16 %v5890
        %v6211 = vunpack.c.l.b16 %v5891
        %v6212 = vunpack.c.h.b16 %v5891
        %v6213 = vunpack.c.l.b16 %v5892
        %v6214 = vunpack.c.h.b16 %v5892
        %v6215 = vunpack.c.l.b16 %v5893
        %v6216 = vunpack.c.h.b16 %v5893
        %v6217 = vunpack.c.l.b16 %v5894
        %v6218 = vunpack.c.h.b16 %v5894
        %v6219 = vunpack.c.l.b16 %v5895
        %v6220 = vunpack.c.h.b16 %v5895
        %v6221 = vunpack.c.l.b16 %v5896
        %v6222 = vunpack.c.h.b16 %v5896
        %v6223 = vunpack.c.l.b16 %v5897
        %v6224 = vunpack.c.h.b16 %v5897
        %v6225 = vunpack.c.l.b16 %v5898
        %v6226 = vunpack.c.h.b16 %v5898
        %v6227 = vunpack.c.l.b16 %v5899
        %v6228 = vunpack.c.h.b16 %v5899
        %v6229 = vunpack.c.l.b16 %v5900
        %v6230 = vunpack.c.h.b16 %v5900
        %v6231 = vunpack.c.l.b16 %v5901
        %v6232 = vunpack.c.h.b16 %v5901
        %v6233 = vunpack.c.l.b16 %v5902
        %v6234 = vunpack.c.h.b16 %v5902
        %v6235 = vunpack.c.l.b16 %v5903
        %v6236 = vunpack.c.h.b16 %v5903
        %v6237 = vunpack.c.l.b16 %v5904
        %v6238 = vunpack.c.h.b16 %v5904
        %v6239 = vunpack.c.l.b16 %v5905
        %v6240 = vunpack.c.h.b16 %v5905
        %v6241 = vunpack.c.l.b16 %v5906
        %v6242 = vunpack.c.h.b16 %v5906
        %v6243 = vunpack.c.l.b16 %v5907
        %v6244 = vunpack.c.h.b16 %v5907
        %v6245 = vunpack.c.l.b16 %v5908
        %v6246 = vunpack.c.h.b16 %v5908
        %v6247 = vunpack.c.l.b16 %v5909
        %v6248 = vunpack.c.h.b16 %v5909
        %v6249 = vunpack.c.l.b16 %v5910
        %v6250 = vunpack.c.h.b16 %v5910
        %v6251 = vunpack.c.l.b16 %v5911
        %v6252 = vunpack.c.h.b16 %v5911
        %v6253 = vunpack.c.l.b16 %v5912
        %v6254 = vunpack.c.h.b16 %v5912
        %v6255 = vunpack.c.l.b16 %v5913
        %v6256 = vunpack.c.h.b16 %v5913
        %v6257 = vunpack.c.l.b16 %v5914
        %v6258 = vunpack.c.h.b16 %v5914
        %v6259 = vunpack.c.l.b16 %v5915
        %v6260 = vunpack.c.h.b16 %v5915
        %v6261 = vunpack.c.l.b16 %v5916
        %v6262 = vunpack.c.h.b16 %v5916
        %v6263 = vunpack.c.l.b16 %v5917
        %v6264 = vunpack.c.h.b16 %v5917
        %v6265 = vunpack.c.l.b16 %v5918
        %v6266 = vunpack.c.h.b16 %v5918
        %v6267 = vunpack.c.l.b16 %v5919
        %v6268 = vunpack.c.h.b16 %v5919
        %v6269 = vunpack.c.l.b16 %v5920
        %v6270 = vunpack.c.h.b16 %v5920
        %v6271 = vunpack.c.l.b16 %v5921
        %v6272 = vunpack.c.h.b16 %v5921
        %v6273 = vunpack.c.l.b16 %v5922
        %v6274 = vunpack.c.h.b16 %v5922
        %v6275 = vunpack.c.l.b16 %v5923
        %v6276 = vunpack.c.h.b16 %v5923
        %v6277 = vunpack.c.l.b16 %v5924
        %v6278 = vunpack.c.h.b16 %v5924
        %v6279 = vunpack.c.l.b16 %v5925
        %v6280 = vunpack.c.h.b16 %v5925
        %v6281 = vunpack.c.l.b16 %v5926
        %v6282 = vunpack.c.h.b16 %v5926
        %v6283 = vunpack.c.l.b16 %v5927
        %v6284 = vunpack.c.h.b16 %v5927
        %v6285 = vunpack.c.l.b16 %v5928
        %v6286 = vunpack.c.h.b16 %v5928
        %v6287 = vunpack.c.l.b16 %v5929
        %v6288 = vunpack.c.h.b16 %v5929
        %v6289 = vunpack.c.l.b16 %v5930
        %v6290 = vunpack.c.h.b16 %v5930
        %v6291 = vunpack.c.l.b16 %v5931
        %v6292 = vunpack.c.h.b16 %v5931
        %v6293 = vunpack.c.l.b16 %v5932
        %v6294 = vunpack.c.h.b16 %v5932
        %v6295 = vunpack.c.l.b16 %v5933
        %v6296 = vunpack.c.h.b16 %v5933
        %v6297 = vunpack.c.l.b16 %v5934
        %v6298 = vunpack.c.h.b16 %v5934
        %v6299 = vunpack.c.l.b16 %v5935
        %v6300 = vunpack.c.h.b16 %v5935
        %v6301 = vunpack.c.l.b16 %v5936
        %v6302 = vunpack.c.h.b16 %v5936
        %v6303 = vunpack.c.l.b16 %v5937
        %v6304 = vunpack.c.h.b16 %v5937
        %v6305 = vunpack.c.l.b16 %v5938
        %v6306 = vunpack.c.h.b16 %v5938
        %v6307 = vunpack.c.l.b16 %v5939
        %v6308 = vunpack.c.h.b16 %v5939
        %v6309 = vunpack.c.l.b16 %v5940
        %v6310 = vunpack.c.h.b16 %v5940
        %v6311 = vunpack.c.l.b16 %v5941
        %v6312 = vunpack.c.h.b16 %v5941
        %v6313 = vunpack.c.l.b16 %v5942
        %v6314 = vunpack.c.h.b16 %v5942
        %v6315 = vunpack.c.l.b16 %v5943
        %v6316 = vunpack.c.h.b16 %v5943
        %v6317 = vunpack.c.l.b16 %v5944
        %v6318 = vunpack.c.h.b16 %v5944
        %v6319 = vunpack.c.l.b16 %v5945
        %v6320 = vunpack.c.h.b16 %v5945
        %v6321 = vunpack.c.l.b16 %v5946
        %v6322 = vunpack.c.h.b16 %v5946
        %v6323 = vunpack.c.l.b16 %v5947
        %v6324 = vunpack.c.h.b16 %v5947
        %v6325 = vunpack.c.l.b16 %v5948
        %v6326 = vunpack.c.h.b16 %v5948
        %v6327 = vunpack.c.l.b16 %v5949
        %v6328 = vunpack.c.h.b16 %v5949
        %v6329 = vunpack.c.l.b16 %v5950
        %v6330 = vunpack.c.h.b16 %v5950
        %v6331 = vunpack.c.l.b16 %v5951
        %v6332 = vunpack.c.h.b16 %v5951
        %v6333 = vunpack.c.l.b16 %v5952
        %v6334 = vunpack.c.h.b16 %v5952
        %v6335 = vunpack.c.l.b16 %v5953
        %v6336 = vunpack.c.h.b16 %v5953
        %v6337 = vunpack.c.l.b16 %v5954
        %v6338 = vunpack.c.h.b16 %v5954
        %v6339 = vpack.c.b16 %v6153, %v6147
        %v6340 = vpack.c.b16 %v6154, %v6148
        %v6341 = vpack.c.b16 %v6155, %v6149
        %v6342 = vpack.c.b16 %v6156, %v6150
        %v6343 = vpack.c.b16 %v6157, %v6151
        %v6344 = vpack.c.b16 %v6158, %v6152
        %v6345 = vpack.c.b16 %v6165, %v6159
        %v6346 = vpack.c.b16 %v6166, %v6160
        %v6347 = vpack.c.b16 %v6167, %v6161
        %v6348 = vpack.c.b16 %v6168, %v6162
        %v6349 = vpack.c.b16 %v6169, %v6163
        %v6350 = vpack.c.b16 %v6170, %v6164
        %v6351 = vpack.c.b16 %v6177, %v6171
        %v6352 = vpack.c.b16 %v6178, %v6172
        %v6353 = vpack.c.b16 %v6179, %v6173
        %v6354 = vpack.c.b16 %v6180, %v6174
        %v6355 = vpack.c.b16 %v6181, %v6175
        %v6356 = vpack.c.b16 %v6182, %v6176
        %v6357 = vpack.c.b16 %v6189, %v6183
        %v6358 = vpack.c.b16 %v6190, %v6184
        %v6359 = vpack.c.b16 %v6191, %v6185
        %v6360 = vpack.c.b16 %v6192, %v6186
        %v6361 = vpack.c.b16 %v6193, %v6187
        %v6362 = vpack.c.b16 %v6194, %v6188
        %v6363 = vpack.c.b16 %v6201, %v6195
        %v6364 = vpack.c.b16 %v6202, %v6196
        %v6365 = vpack.c.b16 %v6203, %v6197
        %v6366 = vpack.c.b16 %v6204, %v6198
        %v6367 = vpack.c.b16 %v6205, %v6199
        %v6368 = vpack.c.b16 %v6206, %v6200
        %v6369 = vpack.c.b16 %v6213, %v6207
        %v6370 = vpack.c.b16 %v6214, %v6208
        %v6371 = vpack.c.b16 %v6215, %v6209
        %v6372 = vpack.c.b16 %v6216, %v6210
        %v6373 = vpack.c.b16 %v6217, %v6211
        %v6374 = vpack.c.b16 %v6218, %v6212
        %v6375 = vpack.c.b16 %v6225, %v6219
        %v6376 = vpack.c.b16 %v6226, %v6220
        %v6377 = vpack.c.b16 %v6227, %v6221
        %v6378 = vpack.c.b16 %v6228, %v6222
        %v6379 = vpack.c.b16 %v6229, %v6223
        %v6380 = vpack.c.b16 %v6230, %v6224
        %v6381 = vpack.c.b16 %v6237, %v6231
        %v6382 = vpack.c.b16 %v6238, %v6232
        %v6383 = vpack.c.b16 %v6239, %v6233
        %v6384 = vpack.c.b16 %v6240, %v6234
        %v6385 = vpack.c.b16 %v6241, %v6235
        %v6386 = vpack.c.b16 %v6242, %v6236
        %v6387 = vpack.c.b16 %v6249, %v6243
        %v6388 = vpack.c.b16 %v6250, %v6244
        %v6389 = vpack.c.b16 %v6251, %v6245
        %v6390 = vpack.c.b16 %v6252, %v6246
        %v6391 = vpack.c.b16 %v6253, %v6247
        %v6392 = vpack.c.b16 %v6254, %v6248
        %v6393 = vpack.c.b16 %v6261, %v6255
        %v6394 = vpack.c.b16 %v6262, %v6256
        %v6395 = vpack.c.b16 %v6263, %v6257
        %v6396 = vpack.c.b16 %v6264, %v6258
        %v6397 = vpack.c.b16 %v6265, %v6259
        %v6398 = vpack.c.b16 %v6266, %v6260
        %v6399 = vpack.c.b16 %v6273, %v6267
        %v6400 = vpack.c.b16 %v6274, %v6268
        %v6401 = vpack.c.b16 %v6275, %v6269
        %v6402 = vpack.c.b16 %v6276, %v6270
        %v6403 = vpack.c.b16 %v6277, %v6271
        %v6404 = vpack.c.b16 %v6278, %v6272
        %v6405 = vpack.c.b16 %v6285, %v6279
        %v6406 = vpack.c.b16 %v6286, %v6280
        %v6407 = vpack.c.b16 %v6287, %v6281
        %v6408 = vpack.c.b16 %v6288, %v6282
        %v6409 = vpack.c.b16 %v6289, %v6283
        %v6410 = vpack.c.b16 %v6290, %v6284
        %v6411 = vpack.c.b16 %v6297, %v6291
        %v6412 = vpack.c.b16 %v6298, %v6292
        %v6413 = vpack.c.b16 %v6299, %v6293
        %v6414 = vpack.c.b16 %v6300, %v6294
        %v6415 = vpack.c.b16 %v6301, %v6295
        %v6416 = vpack.c.b16 %v6302, %v6296
        %v6417 = vpack.c.b16 %v6309, %v6303
        %v6418 = vpack.c.b16 %v6310, %v6304
        %v6419 = vpack.c.b16 %v6311, %v6305
        %v6420 = vpack.c.b16 %v6312, %v6306
        %v6421 = vpack.c.b16 %v6313, %v6307
        %v6422 = vpack.c.b16 %v6314, %v6308
        %v6423 = vpack.c.b16 %v6321, %v6315
        %v6424 = vpack.c.b16 %v6322, %v6316
        %v6425 = vpack.c.b16 %v6323, %v6317
        %v6426 = vpack.c.b16 %v6324, %v6318
        %v6427 = vpack.c.b16 %v6325, %v6319
        %v6428 = vpack.c.b16 %v6326, %v6320
        %v6429 = vpack.c.b16 %v6333, %v6327
        %v6430 = vpack.c.b16 %v6334, %v6328
        %v6431 = vpack.c.b16 %v6335, %v6329
        %v6432 = vpack.c.b16 %v6336, %v6330
        %v6433 = vpack.c.b16 %v6337, %v6331
        %v6434 = vpack.c.b16 %v6338, %v6332
        %6531 = vmatprep.subr.bf16.mxu0 %v5956
        %6532 = vmatpush1.bf16.msra.mxu0 %v5955
        %6533 = vmatprep.subr.bf16.mxu0 %v5958
        %6534 = vmatpush1.bf16.msra.mxu0 %v5957
        %6535 = vmatprep.subr.bf16.mxu0 %v5960
        %6536 = vmatpush1.bf16.msra.mxu0 %v5959
        %6537 = vmatprep.subr.bf16.mxu0 %v5962
        %6538 = vmatpush1.bf16.msra.mxu0 %v5961
        %6539 = vmatprep.subr.bf16.mxu0 %v5964
        %6540 = vmatpush1.bf16.msra.mxu0 %v5963
        %6541 = vmatprep.subr.bf16.mxu0 %v5966
        %6542 = vmatpush1.bf16.msra.mxu0 %v5965
        %6543 = vmatprep.subr.bf16.mxu0 %v5968
        %6544 = vmatpush1.bf16.msra.mxu0 %v5967
        %6545 = vmatprep.subr.bf16.mxu0 %v5970
        %6546 = vmatpush1.bf16.msra.mxu0 %v5969
        %6547 = vmatprep.subr.bf16.mxu0 %v5972
        %6548 = vmatpush1.bf16.msra.mxu0 %v5971
        %6549 = vmatprep.subr.bf16.mxu0 %v5974
        %6550 = vmatpush1.bf16.msra.mxu0 %v5973
        %6551 = vmatprep.subr.bf16.mxu0 %v5976
        %6552 = vmatpush1.bf16.msra.mxu0 %v5975
        %6553 = vmatprep.subr.bf16.mxu0 %v5978
        %6554 = vmatpush1.bf16.msra.mxu0 %v5977
        %6555 = vmatprep.subr.bf16.mxu0 %v5980
        %6556 = vmatpush1.bf16.msra.mxu0 %v5979
        %6557 = vmatprep.subr.bf16.mxu0 %v5982
        %6558 = vmatpush1.bf16.msra.mxu0 %v5981
        %6559 = vmatprep.subr.bf16.mxu0 %v5984
        %6560 = vmatpush1.bf16.msra.mxu0 %v5983
        %6561 = vmatprep.subr.bf16.mxu0 %v5986
        %6562 = vmatpush1.bf16.msra.mxu0 %v5985
        %6563 = vmatprep.mubr.bf16.mxu0 %v6340
        %6564 = vmatmul.mubr.bf16.gmra.mrb[0].mxu0 %v6339
        %v6565 = vpop.f32.mrb[0].mxu0
        %v6566 = vadd.f32 0.0, %v6565
        %v6567 = vpop.f32.mrb[0].mxu0
        %v6568 = vadd.f32 0.0, %v6567
        %v6569 = vpop.f32.mrb[0].mxu0
        %v6570 = vadd.f32 0.0, %v6569
        %v6571 = vpop.f32.mrb[0].mxu0
        %v6572 = vadd.f32 0.0, %v6571
        %6573 = vmatprep.mubr.bf16.mxu0 %v6346
        %6574 = vmatmul.mubr.bf16.gmra.mrb[0].mxu0 %v6345
        %v6575 = vpop.f32.mrb[0].mxu0
        %v6576 = vadd.f32 0.0, %v6575
        %v6577 = vpop.f32.mrb[0].mxu0
        %v6578 = vadd.f32 0.0, %v6577
        %v6579 = vpop.f32.mrb[0].mxu0
        %v6580 = vadd.f32 0.0, %v6579
        %v6581 = vpop.f32.mrb[0].mxu0
        %v6582 = vadd.f32 0.0, %v6581
        %6583 = vmatprep.mubr.bf16.mxu0 %v6352
        %6584 = vmatmul.mubr.bf16.gmra.mrb[0].mxu0 %v6351
        %v6585 = vpop.f32.mrb[0].mxu0
        %v6586 = vadd.f32 0.0, %v6585
        %v6587 = vpop.f32.mrb[0].mxu0
        %v6588 = vadd.f32 0.0, %v6587
        %v6589 = vpop.f32.mrb[0].mxu0
        %v6590 = vadd.f32 0.0, %v6589
        %v6591 = vpop.f32.mrb[0].mxu0
        %v6592 = vadd.f32 0.0, %v6591
        %6593 = vmatprep.mubr.bf16.mxu0 %v6358
        %6594 = vmatmul.mubr.bf16.gmra.mrb[0].mxu0 %v6357
        %v6595 = vpop.f32.mrb[0].mxu0
        %v6596 = vadd.f32 0.0, %v6595
        %v6597 = vpop.f32.mrb[0].mxu0
        %v6598 = vadd.f32 0.0, %v6597
        %v6599 = vpop.f32.mrb[0].mxu0
        %v6600 = vadd.f32 0.0, %v6599
        %v6601 = vpop.f32.mrb[0].mxu0
        %v6602 = vadd.f32 0.0, %v6601
        %6603 = vmatprep.mubr.bf16.mxu0 %v6364
        %6604 = vmatmul.mubr.bf16.gmra.mrb[0].mxu0 %v6363
        %v6605 = vpop.f32.mrb[0].mxu0
        %v6606 = vadd.f32 0.0, %v6605
        %v6607 = vpop.f32.mrb[0].mxu0
        %v6608 = vadd.f32 0.0, %v6607
        %v6609 = vpop.f32.mrb[0].mxu0
        %v6610 = vadd.f32 0.0, %v6609
        %v6611 = vpop.f32.mrb[0].mxu0
        %v6612 = vadd.f32 0.0, %v6611
        %6613 = vmatprep.mubr.bf16.mxu0 %v6370
        %6614 = vmatmul.mubr.bf16.gmra.mrb[0].mxu0 %v6369
        %v6615 = vpop.f32.mrb[0].mxu0
        %v6616 = vadd.f32 0.0, %v6615
        %v6617 = vpop.f32.mrb[0].mxu0
        %v6618 = vadd.f32 0.0, %v6617
        %v6619 = vpop.f32.mrb[0].mxu0
        %v6620 = vadd.f32 0.0, %v6619
        %v6621 = vpop.f32.mrb[0].mxu0
        %v6622 = vadd.f32 0.0, %v6621
        %6623 = vmatprep.mubr.bf16.mxu0 %v6376
        %6624 = vmatmul.mubr.bf16.gmra.mrb[0].mxu0 %v6375
        %v6625 = vpop.f32.mrb[0].mxu0
        %v6626 = vadd.f32 0.0, %v6625
        %v6627 = vpop.f32.mrb[0].mxu0
        %v6628 = vadd.f32 0.0, %v6627
        %v6629 = vpop.f32.mrb[0].mxu0
        %v6630 = vadd.f32 0.0, %v6629
        %v6631 = vpop.f32.mrb[0].mxu0
        %v6632 = vadd.f32 0.0, %v6631
        %6633 = vmatprep.mubr.bf16.mxu0 %v6382
        %6634 = vmatmul.mubr.bf16.gmra.mrb[0].mxu0 %v6381
        %v6635 = vpop.f32.mrb[0].mxu0
        %v6636 = vadd.f32 0.0, %v6635
        %v6637 = vpop.f32.mrb[0].mxu0
        %v6638 = vadd.f32 0.0, %v6637
        %v6639 = vpop.f32.mrb[0].mxu0
        %v6640 = vadd.f32 0.0, %v6639
        %v6641 = vpop.f32.mrb[0].mxu0
        %v6642 = vadd.f32 0.0, %v6641
        %6643 = vmatprep.mubr.bf16.mxu0 %v6388
        %6644 = vmatmul.mubr.bf16.gmra.mrb[0].mxu0 %v6387
        %v6645 = vpop.f32.mrb[0].mxu0
        %v6646 = vadd.f32 0.0, %v6645
        %v6647 = vpop.f32.mrb[0].mxu0
        %v6648 = vadd.f32 0.0, %v6647
        %v6649 = vpop.f32.mrb[0].mxu0
        %v6650 = vadd.f32 0.0, %v6649
        %v6651 = vpop.f32.mrb[0].mxu0
        %v6652 = vadd.f32 0.0, %v6651
        %6653 = vmatprep.mubr.bf16.mxu0 %v6394
        %6654 = vmatmul.mubr.bf16.gmra.mrb[0].mxu0 %v6393
        %v6655 = vpop.f32.mrb[0].mxu0
        %v6656 = vadd.f32 0.0, %v6655
        %v6657 = vpop.f32.mrb[0].mxu0
        %v6658 = vadd.f32 0.0, %v6657
        %v6659 = vpop.f32.mrb[0].mxu0
        %v6660 = vadd.f32 0.0, %v6659
        %v6661 = vpop.f32.mrb[0].mxu0
        %v6662 = vadd.f32 0.0, %v6661
        %6663 = vmatprep.mubr.bf16.mxu0 %v6400
        %6664 = vmatmul.mubr.bf16.gmra.mrb[0].mxu0 %v6399
        %v6665 = vpop.f32.mrb[0].mxu0
        %v6666 = vadd.f32 0.0, %v6665
        %v6667 = vpop.f32.mrb[0].mxu0
        %v6668 = vadd.f32 0.0, %v6667
        %v6669 = vpop.f32.mrb[0].mxu0
        %v6670 = vadd.f32 0.0, %v6669
        %v6671 = vpop.f32.mrb[0].mxu0
        %v6672 = vadd.f32 0.0, %v6671
        %6673 = vmatprep.mubr.bf16.mxu0 %v6406
        %6674 = vmatmul.mubr.bf16.gmra.mrb[0].mxu0 %v6405
        %v6675 = vpop.f32.mrb[0].mxu0
        %v6676 = vadd.f32 0.0, %v6675
        %v6677 = vpop.f32.mrb[0].mxu0
        %v6678 = vadd.f32 0.0, %v6677
        %v6679 = vpop.f32.mrb[0].mxu0
        %v6680 = vadd.f32 0.0, %v6679
        %v6681 = vpop.f32.mrb[0].mxu0
        %v6682 = vadd.f32 0.0, %v6681
        %6683 = vmatprep.mubr.bf16.mxu0 %v6412
        %6684 = vmatmul.mubr.bf16.gmra.mrb[0].mxu0 %v6411
        %v6685 = vpop.f32.mrb[0].mxu0
        %v6686 = vadd.f32 0.0, %v6685
        %v6687 = vpop.f32.mrb[0].mxu0
        %v6688 = vadd.f32 0.0, %v6687
        %v6689 = vpop.f32.mrb[0].mxu0
        %v6690 = vadd.f32 0.0, %v6689
        %v6691 = vpop.f32.mrb[0].mxu0
        %v6692 = vadd.f32 0.0, %v6691
        %6693 = vmatprep.mubr.bf16.mxu0 %v6418
        %6694 = vmatmul.mubr.bf16.gmra.mrb[0].mxu0 %v6417
        %v6695 = vpop.f32.mrb[0].mxu0
        %v6696 = vadd.f32 0.0, %v6695
        %v6697 = vpop.f32.mrb[0].mxu0
        %v6698 = vadd.f32 0.0, %v6697
        %v6699 = vpop.f32.mrb[0].mxu0
        %v6700 = vadd.f32 0.0, %v6699
        %v6701 = vpop.f32.mrb[0].mxu0
        %v6702 = vadd.f32 0.0, %v6701
        %6703 = vmatprep.mubr.bf16.mxu0 %v6424
        %6704 = vmatmul.mubr.bf16.gmra.mrb[0].mxu0 %v6423
        %v6705 = vpop.f32.mrb[0].mxu0
        %v6706 = vadd.f32 0.0, %v6705
        %v6707 = vpop.f32.mrb[0].mxu0
        %v6708 = vadd.f32 0.0, %v6707
        %v6709 = vpop.f32.mrb[0].mxu0
        %v6710 = vadd.f32 0.0, %v6709
        %v6711 = vpop.f32.mrb[0].mxu0
        %v6712 = vadd.f32 0.0, %v6711
        %6713 = vmatprep.mubr.bf16.mxu0 %v6430
        %6714 = vmatmul.mubr.bf16.gmra.mrb[0].mxu0 %v6429
        %v6715 = vpop.f32.mrb[0].mxu0
        %v6716 = vadd.f32 0.0, %v6715
        %v6717 = vpop.f32.mrb[0].mxu0
        %v6718 = vadd.f32 0.0, %v6717
        %v6719 = vpop.f32.mrb[0].mxu0
        %v6720 = vadd.f32 0.0, %v6719
        %v6721 = vpop.f32.mrb[0].mxu0
        %v6722 = vadd.f32 0.0, %v6721
        %6723 = vdwg.mxu0
        %6724 = vmatprep.subr.bf16.mxu0 %v5988
        %6725 = vmatpush1.bf16.msra.mxu0 %v5987
        %6726 = vmatprep.subr.bf16.mxu0 %v5990
        %6727 = vmatpush1.bf16.msra.mxu0 %v5989
        %6728 = vmatprep.subr.bf16.mxu0 %v5992
        %6729 = vmatpush1.bf16.msra.mxu0 %v5991
        %6730 = vmatprep.subr.bf16.mxu0 %v5994
        %6731 = vmatpush1.bf16.msra.mxu0 %v5993
        %6732 = vmatprep.subr.bf16.mxu0 %v5996
        %6733 = vmatpush1.bf16.msra.mxu0 %v5995
        %6734 = vmatprep.subr.bf16.mxu0 %v5998
        %6735 = vmatpush1.bf16.msra.mxu0 %v5997
        %6736 = vmatprep.subr.bf16.mxu0 %v6000
        %6737 = vmatpush1.bf16.msra.mxu0 %v5999
        %6738 = vmatprep.subr.bf16.mxu0 %v6002
        %6739 = vmatpush1.bf16.msra.mxu0 %v6001
        %6740 = vmatprep.subr.bf16.mxu0 %v6004
        %6741 = vmatpush1.bf16.msra.mxu0 %v6003
        %6742 = vmatprep.subr.bf16.mxu0 %v6006
        %6743 = vmatpush1.bf16.msra.mxu0 %v6005
        %6744 = vmatprep.subr.bf16.mxu0 %v6008
        %6745 = vmatpush1.bf16.msra.mxu0 %v6007
        %6746 = vmatprep.subr.bf16.mxu0 %v6010
        %6747 = vmatpush1.bf16.msra.mxu0 %v6009
        %6748 = vmatprep.subr.bf16.mxu0 %v6012
        %6749 = vmatpush1.bf16.msra.mxu0 %v6011
        %6750 = vmatprep.subr.bf16.mxu0 %v6014
        %6751 = vmatpush1.bf16.msra.mxu0 %v6013
        %6752 = vmatprep.subr.bf16.mxu0 %v6016
        %6753 = vmatpush1.bf16.msra.mxu0 %v6015
        %6754 = vmatprep.subr.bf16.mxu0 %v6018
        %6755 = vmatpush1.bf16.msra.mxu0 %v6017
        %6756 = vmatprep.mubr.bf16.mxu0 %v6342
        %6757 = vmatmul.mubr.bf16.gmra.mrb[0].mxu0 %v6341
        %v6758 = vpop.f32.mrb[0].mxu0
        %v6759 = vadd.f32 %v6566, %v6758
        %v6760 = vpop.f32.mrb[0].mxu0
        %v6761 = vadd.f32 %v6568, %v6760
        %v6762 = vpop.f32.mrb[0].mxu0
        %v6763 = vadd.f32 %v6570, %v6762
        %v6764 = vpop.f32.mrb[0].mxu0
        %v6765 = vadd.f32 %v6572, %v6764
        %6766 = vmatprep.mubr.bf16.mxu0 %v6348
        %6767 = vmatmul.mubr.bf16.gmra.mrb[0].mxu0 %v6347
        %v6768 = vpop.f32.mrb[0].mxu0
        %v6769 = vadd.f32 %v6576, %v6768
        %v6770 = vpop.f32.mrb[0].mxu0
        %v6771 = vadd.f32 %v6578, %v6770
        %v6772 = vpop.f32.mrb[0].mxu0
        %v6773 = vadd.f32 %v6580, %v6772
        %v6774 = vpop.f32.mrb[0].mxu0
        %v6775 = vadd.f32 %v6582, %v6774
        %6776 = vmatprep.mubr.bf16.mxu0 %v6354
        %6777 = vmatmul.mubr.bf16.gmra.mrb[0].mxu0 %v6353
        %v6778 = vpop.f32.mrb[0].mxu0
        %v6779 = vadd.f32 %v6586, %v6778
        %v6780 = vpop.f32.mrb[0].mxu0
        %v6781 = vadd.f32 %v6588, %v6780
        %v6782 = vpop.f32.mrb[0].mxu0
        %v6783 = vadd.f32 %v6590, %v6782
        %v6784 = vpop.f32.mrb[0].mxu0
        %v6785 = vadd.f32 %v6592, %v6784
        %6786 = vmatprep.mubr.bf16.mxu0 %v6360
        %6787 = vmatmul.mubr.bf16.gmra.mrb[0].mxu0 %v6359
        %v6788 = vpop.f32.mrb[0].mxu0
        %v6789 = vadd.f32 %v6596, %v6788
        %v6790 = vpop.f32.mrb[0].mxu0
        %v6791 = vadd.f32 %v6598, %v6790
        %v6792 = vpop.f32.mrb[0].mxu0
        %v6793 = vadd.f32 %v6600, %v6792
        %v6794 = vpop.f32.mrb[0].mxu0
        %v6795 = vadd.f32 %v6602, %v6794
        %6796 = vmatprep.mubr.bf16.mxu0 %v6366
        %6797 = vmatmul.mubr.bf16.gmra.mrb[0].mxu0 %v6365
        %v6798 = vpop.f32.mrb[0].mxu0
        %v6799 = vadd.f32 %v6606, %v6798
        %v6800 = vpop.f32.mrb[0].mxu0
        %v6801 = vadd.f32 %v6608, %v6800
        %v6802 = vpop.f32.mrb[0].mxu0
        %v6803 = vadd.f32 %v6610, %v6802
        %v6804 = vpop.f32.mrb[0].mxu0
        %v6805 = vadd.f32 %v6612, %v6804
        %6806 = vmatprep.mubr.bf16.mxu0 %v6372
        %6807 = vmatmul.mubr.bf16.gmra.mrb[0].mxu0 %v6371
        %v6808 = vpop.f32.mrb[0].mxu0
        %v6809 = vadd.f32 %v6616, %v6808
        %v6810 = vpop.f32.mrb[0].mxu0
        %v6811 = vadd.f32 %v6618, %v6810
        %v6812 = vpop.f32.mrb[0].mxu0
        %v6813 = vadd.f32 %v6620, %v6812
        %v6814 = vpop.f32.mrb[0].mxu0
        %v6815 = vadd.f32 %v6622, %v6814
        %6816 = vmatprep.mubr.bf16.mxu0 %v6378
        %6817 = vmatmul.mubr.bf16.gmra.mrb[0].mxu0 %v6377
        %v6818 = vpop.f32.mrb[0].mxu0
        %v6819 = vadd.f32 %v6626, %v6818
        %v6820 = vpop.f32.mrb[0].mxu0
        %v6821 = vadd.f32 %v6628, %v6820
        %v6822 = vpop.f32.mrb[0].mxu0
        %v6823 = vadd.f32 %v6630, %v6822
        %v6824 = vpop.f32.mrb[0].mxu0
        %v6825 = vadd.f32 %v6632, %v6824
        %6826 = vmatprep.mubr.bf16.mxu0 %v6384
        %6827 = vmatmul.mubr.bf16.gmra.mrb[0].mxu0 %v6383
        %v6828 = vpop.f32.mrb[0].mxu0
        %v6829 = vadd.f32 %v6636, %v6828
        %v6830 = vpop.f32.mrb[0].mxu0
        %v6831 = vadd.f32 %v6638, %v6830
        %v6832 = vpop.f32.mrb[0].mxu0
        %v6833 = vadd.f32 %v6640, %v6832
        %v6834 = vpop.f32.mrb[0].mxu0
        %v6835 = vadd.f32 %v6642, %v6834
        %6836 = vmatprep.mubr.bf16.mxu0 %v6390
        %6837 = vmatmul.mubr.bf16.gmra.mrb[0].mxu0 %v6389
        %v6838 = vpop.f32.mrb[0].mxu0
        %v6839 = vadd.f32 %v6646, %v6838
        %v6840 = vpop.f32.mrb[0].mxu0
        %v6841 = vadd.f32 %v6648, %v6840
        %v6842 = vpop.f32.mrb[0].mxu0
        %v6843 = vadd.f32 %v6650, %v6842
        %v6844 = vpop.f32.mrb[0].mxu0
        %v6845 = vadd.f32 %v6652, %v6844
        %6846 = vmatprep.mubr.bf16.mxu0 %v6396
        %6847 = vmatmul.mubr.bf16.gmra.mrb[0].mxu0 %v6395
        %v6848 = vpop.f32.mrb[0].mxu0
        %v6849 = vadd.f32 %v6656, %v6848
        %v6850 = vpop.f32.mrb[0].mxu0
        %v6851 = vadd.f32 %v6658, %v6850
        %v6852 = vpop.f32.mrb[0].mxu0
        %v6853 = vadd.f32 %v6660, %v6852
        %v6854 = vpop.f32.mrb[0].mxu0
        %v6855 = vadd.f32 %v6662, %v6854
        %6856 = vmatprep.mubr.bf16.mxu0 %v6402
        %6857 = vmatmul.mubr.bf16.gmra.mrb[0].mxu0 %v6401
        %v6858 = vpop.f32.mrb[0].mxu0
        %v6859 = vadd.f32 %v6666, %v6858
        %v6860 = vpop.f32.mrb[0].mxu0
        %v6861 = vadd.f32 %v6668, %v6860
        %v6862 = vpop.f32.mrb[0].mxu0
        %v6863 = vadd.f32 %v6670, %v6862
        %v6864 = vpop.f32.mrb[0].mxu0
        %v6865 = vadd.f32 %v6672, %v6864
        %6866 = vmatprep.mubr.bf16.mxu0 %v6408
        %6867 = vmatmul.mubr.bf16.gmra.mrb[0].mxu0 %v6407
        %v6868 = vpop.f32.mrb[0].mxu0
        %v6869 = vadd.f32 %v6676, %v6868
        %v6870 = vpop.f32.mrb[0].mxu0
        %v6871 = vadd.f32 %v6678, %v6870
        %v6872 = vpop.f32.mrb[0].mxu0
        %v6873 = vadd.f32 %v6680, %v6872
        %v6874 = vpop.f32.mrb[0].mxu0
        %v6875 = vadd.f32 %v6682, %v6874
        %6876 = vmatprep.mubr.bf16.mxu0 %v6414
        %6877 = vmatmul.mubr.bf16.gmra.mrb[0].mxu0 %v6413
        %v6878 = vpop.f32.mrb[0].mxu0
        %v6879 = vadd.f32 %v6686, %v6878
        %v6880 = vpop.f32.mrb[0].mxu0
        %v6881 = vadd.f32 %v6688, %v6880
        %v6882 = vpop.f32.mrb[0].mxu0
        %v6883 = vadd.f32 %v6690, %v6882
        %v6884 = vpop.f32.mrb[0].mxu0
        %v6885 = vadd.f32 %v6692, %v6884
        %6886 = vmatprep.mubr.bf16.mxu0 %v6420
        %6887 = vmatmul.mubr.bf16.gmra.mrb[0].mxu0 %v6419
        %v6888 = vpop.f32.mrb[0].mxu0
        %v6889 = vadd.f32 %v6696, %v6888
        %v6890 = vpop.f32.mrb[0].mxu0
        %v6891 = vadd.f32 %v6698, %v6890
        %v6892 = vpop.f32.mrb[0].mxu0
        %v6893 = vadd.f32 %v6700, %v6892
        %v6894 = vpop.f32.mrb[0].mxu0
        %v6895 = vadd.f32 %v6702, %v6894
        %6896 = vmatprep.mubr.bf16.mxu0 %v6426
        %6897 = vmatmul.mubr.bf16.gmra.mrb[0].mxu0 %v6425
        %v6898 = vpop.f32.mrb[0].mxu0
        %v6899 = vadd.f32 %v6706, %v6898
        %v6900 = vpop.f32.mrb[0].mxu0
        %v6901 = vadd.f32 %v6708, %v6900
        %v6902 = vpop.f32.mrb[0].mxu0
        %v6903 = vadd.f32 %v6710, %v6902
        %v6904 = vpop.f32.mrb[0].mxu0
        %v6905 = vadd.f32 %v6712, %v6904
        %6906 = vmatprep.mubr.bf16.mxu0 %v6432
        %6907 = vmatmul.mubr.bf16.gmra.mrb[0].mxu0 %v6431
        %v6908 = vpop.f32.mrb[0].mxu0
        %v6909 = vadd.f32 %v6716, %v6908
        %v6910 = vpop.f32.mrb[0].mxu0
        %v6911 = vadd.f32 %v6718, %v6910
        %v6912 = vpop.f32.mrb[0].mxu0
        %v6913 = vadd.f32 %v6720, %v6912
        %v6914 = vpop.f32.mrb[0].mxu0
        %v6915 = vadd.f32 %v6722, %v6914
        %6916 = vdwg.mxu0
        %6917 = vmatprep.subr.bf16.mxu0 %v6020
        %6918 = vmatpush1.bf16.msra.mxu0 %v6019
        %6919 = vmatprep.subr.bf16.mxu0 %v6022
        %6920 = vmatpush1.bf16.msra.mxu0 %v6021
        %6921 = vmatprep.subr.bf16.mxu0 %v6024
        %6922 = vmatpush1.bf16.msra.mxu0 %v6023
        %6923 = vmatprep.subr.bf16.mxu0 %v6026
        %6924 = vmatpush1.bf16.msra.mxu0 %v6025
        %6925 = vmatprep.subr.bf16.mxu0 %v6028
        %6926 = vmatpush1.bf16.msra.mxu0 %v6027
        %6927 = vmatprep.subr.bf16.mxu0 %v6030
        %6928 = vmatpush1.bf16.msra.mxu0 %v6029
        %6929 = vmatprep.subr.bf16.mxu0 %v6032
        %6930 = vmatpush1.bf16.msra.mxu0 %v6031
        %6931 = vmatprep.subr.bf16.mxu0 %v6034
        %6932 = vmatpush1.bf16.msra.mxu0 %v6033
        %6933 = vmatprep.subr.bf16.mxu0 %v6036
        %6934 = vmatpush1.bf16.msra.mxu0 %v6035
        %6935 = vmatprep.subr.bf16.mxu0 %v6038
        %6936 = vmatpush1.bf16.msra.mxu0 %v6037
        %6937 = vmatprep.subr.bf16.mxu0 %v6040
        %6938 = vmatpush1.bf16.msra.mxu0 %v6039
        %6939 = vmatprep.subr.bf16.mxu0 %v6042
        %6940 = vmatpush1.bf16.msra.mxu0 %v6041
        %6941 = vmatprep.subr.bf16.mxu0 %v6044
        %6942 = vmatpush1.bf16.msra.mxu0 %v6043
        %6943 = vmatprep.subr.bf16.mxu0 %v6046
        %6944 = vmatpush1.bf16.msra.mxu0 %v6045
        %6945 = vmatprep.subr.bf16.mxu0 %v6048
        %6946 = vmatpush1.bf16.msra.mxu0 %v6047
        %6947 = vmatprep.subr.bf16.mxu0 %v6050
        %6948 = vmatpush1.bf16.msra.mxu0 %v6049
        %6949 = vmatprep.mubr.bf16.mxu0 %v6344
        %6950 = vmatmul.mubr.bf16.gmra.mrb[0].mxu0 %v6343
        %v6951 = vpop.f32.mrb[0].mxu0
        %v6952 = vadd.f32 %v6759, %v6951
        %v6953 = vpop.f32.mrb[0].mxu0
        %v6954 = vadd.f32 %v6761, %v6953
        %v6955 = vpop.f32.mrb[0].mxu0
        %v6956 = vadd.f32 %v6763, %v6955
        %v6957 = vpop.f32.mrb[0].mxu0
        %v6958 = vadd.f32 %v6765, %v6957
        %6959 = vmatprep.mubr.bf16.mxu0 %v6350
        %6960 = vmatmul.mubr.bf16.gmra.mrb[0].mxu0 %v6349
        %v6961 = vpop.f32.mrb[0].mxu0
        %v6962 = vadd.f32 %v6769, %v6961
        %v6963 = vpop.f32.mrb[0].mxu0
        %v6964 = vadd.f32 %v6771, %v6963
        %v6965 = vpop.f32.mrb[0].mxu0
        %v6966 = vadd.f32 %v6773, %v6965
        %v6967 = vpop.f32.mrb[0].mxu0
        %v6968 = vadd.f32 %v6775, %v6967
        %6969 = vmatprep.mubr.bf16.mxu0 %v6356
        %6970 = vmatmul.mubr.bf16.gmra.mrb[0].mxu0 %v6355
        %v6971 = vpop.f32.mrb[0].mxu0
        %v6972 = vadd.f32 %v6779, %v6971
        %v6973 = vpop.f32.mrb[0].mxu0
        %v6974 = vadd.f32 %v6781, %v6973
        %v6975 = vpop.f32.mrb[0].mxu0
        %v6976 = vadd.f32 %v6783, %v6975
        %v6977 = vpop.f32.mrb[0].mxu0
        %v6978 = vadd.f32 %v6785, %v6977
        %6979 = vmatprep.mubr.bf16.mxu0 %v6362
        %6980 = vmatmul.mubr.bf16.gmra.mrb[0].mxu0 %v6361
        %v6981 = vpop.f32.mrb[0].mxu0
        %v6982 = vadd.f32 %v6789, %v6981
        %v6983 = vpop.f32.mrb[0].mxu0
        %v6984 = vadd.f32 %v6791, %v6983
        %v6985 = vpop.f32.mrb[0].mxu0
        %v6986 = vadd.f32 %v6793, %v6985
        %v6987 = vpop.f32.mrb[0].mxu0
        %v6988 = vadd.f32 %v6795, %v6987
        %6989 = vmatprep.mubr.bf16.mxu0 %v6368
        %6990 = vmatmul.mubr.bf16.gmra.mrb[0].mxu0 %v6367
        %v6991 = vpop.f32.mrb[0].mxu0
        %v6992 = vadd.f32 %v6799, %v6991
        %v6993 = vpop.f32.mrb[0].mxu0
        %v6994 = vadd.f32 %v6801, %v6993
        %v6995 = vpop.f32.mrb[0].mxu0
        %v6996 = vadd.f32 %v6803, %v6995
        %v6997 = vpop.f32.mrb[0].mxu0
        %v6998 = vadd.f32 %v6805, %v6997
        %6999 = vmatprep.mubr.bf16.mxu0 %v6374
        %7000 = vmatmul.mubr.bf16.gmra.mrb[0].mxu0 %v6373
        %v7001 = vpop.f32.mrb[0].mxu0
        %v7002 = vadd.f32 %v6809, %v7001
        %v7003 = vpop.f32.mrb[0].mxu0
        %v7004 = vadd.f32 %v6811, %v7003
        %v7005 = vpop.f32.mrb[0].mxu0
        %v7006 = vadd.f32 %v6813, %v7005
        %v7007 = vpop.f32.mrb[0].mxu0
        %v7008 = vadd.f32 %v6815, %v7007
        %7009 = vmatprep.mubr.bf16.mxu0 %v6380
        %7010 = vmatmul.mubr.bf16.gmra.mrb[0].mxu0 %v6379
        %v7011 = vpop.f32.mrb[0].mxu0
        %v7012 = vadd.f32 %v6819, %v7011
        %v7013 = vpop.f32.mrb[0].mxu0
        %v7014 = vadd.f32 %v6821, %v7013
        %v7015 = vpop.f32.mrb[0].mxu0
        %v7016 = vadd.f32 %v6823, %v7015
        %v7017 = vpop.f32.mrb[0].mxu0
        %v7018 = vadd.f32 %v6825, %v7017
        %7019 = vmatprep.mubr.bf16.mxu0 %v6386
        %7020 = vmatmul.mubr.bf16.gmra.mrb[0].mxu0 %v6385
        %v7021 = vpop.f32.mrb[0].mxu0
        %v7022 = vadd.f32 %v6829, %v7021
        %v7023 = vpop.f32.mrb[0].mxu0
        %v7024 = vadd.f32 %v6831, %v7023
        %v7025 = vpop.f32.mrb[0].mxu0
        %v7026 = vadd.f32 %v6833, %v7025
        %v7027 = vpop.f32.mrb[0].mxu0
        %v7028 = vadd.f32 %v6835, %v7027
        %7029 = vmatprep.mubr.bf16.mxu0 %v6392
        %7030 = vmatmul.mubr.bf16.gmra.mrb[0].mxu0 %v6391
        %v7031 = vpop.f32.mrb[0].mxu0
        %v7032 = vadd.f32 %v6839, %v7031
        %v7033 = vpop.f32.mrb[0].mxu0
        %v7034 = vadd.f32 %v6841, %v7033
        %v7035 = vpop.f32.mrb[0].mxu0
        %v7036 = vadd.f32 %v6843, %v7035
        %v7037 = vpop.f32.mrb[0].mxu0
        %v7038 = vadd.f32 %v6845, %v7037
        %7039 = vmatprep.mubr.bf16.mxu0 %v6398
        %7040 = vmatmul.mubr.bf16.gmra.mrb[0].mxu0 %v6397
        %v7041 = vpop.f32.mrb[0].mxu0
        %v7042 = vadd.f32 %v6849, %v7041
        %v7043 = vpop.f32.mrb[0].mxu0
        %v7044 = vadd.f32 %v6851, %v7043
        %v7045 = vpop.f32.mrb[0].mxu0
        %v7046 = vadd.f32 %v6853, %v7045
        %v7047 = vpop.f32.mrb[0].mxu0
        %v7048 = vadd.f32 %v6855, %v7047
        %7049 = vmatprep.mubr.bf16.mxu0 %v6404
        %7050 = vmatmul.mubr.bf16.gmra.mrb[0].mxu0 %v6403
        %v7051 = vpop.f32.mrb[0].mxu0
        %v7052 = vadd.f32 %v6859, %v7051
        %v7053 = vpop.f32.mrb[0].mxu0
        %v7054 = vadd.f32 %v6861, %v7053
        %v7055 = vpop.f32.mrb[0].mxu0
        %v7056 = vadd.f32 %v6863, %v7055
        %v7057 = vpop.f32.mrb[0].mxu0
        %v7058 = vadd.f32 %v6865, %v7057
        %7059 = vmatprep.mubr.bf16.mxu0 %v6410
        %7060 = vmatmul.mubr.bf16.gmra.mrb[0].mxu0 %v6409
        %v7061 = vpop.f32.mrb[0].mxu0
        %v7062 = vadd.f32 %v6869, %v7061
        %v7063 = vpop.f32.mrb[0].mxu0
        %v7064 = vadd.f32 %v6871, %v7063
        %v7065 = vpop.f32.mrb[0].mxu0
        %v7066 = vadd.f32 %v6873, %v7065
        %v7067 = vpop.f32.mrb[0].mxu0
        %v7068 = vadd.f32 %v6875, %v7067
        %7069 = vmatprep.mubr.bf16.mxu0 %v6416
        %7070 = vmatmul.mubr.bf16.gmra.mrb[0].mxu0 %v6415
        %v7071 = vpop.f32.mrb[0].mxu0
        %v7072 = vadd.f32 %v6879, %v7071
        %v7073 = vpop.f32.mrb[0].mxu0
        %v7074 = vadd.f32 %v6881, %v7073
        %v7075 = vpop.f32.mrb[0].mxu0
        %v7076 = vadd.f32 %v6883, %v7075
        %v7077 = vpop.f32.mrb[0].mxu0
        %v7078 = vadd.f32 %v6885, %v7077
        %7079 = vmatprep.mubr.bf16.mxu0 %v6422
        %7080 = vmatmul.mubr.bf16.gmra.mrb[0].mxu0 %v6421
        %v7081 = vpop.f32.mrb[0].mxu0
        %v7082 = vadd.f32 %v6889, %v7081
        %v7083 = vpop.f32.mrb[0].mxu0
        %v7084 = vadd.f32 %v6891, %v7083
        %v7085 = vpop.f32.mrb[0].mxu0
        %v7086 = vadd.f32 %v6893, %v7085
        %v7087 = vpop.f32.mrb[0].mxu0
        %v7088 = vadd.f32 %v6895, %v7087
        %7089 = vmatprep.mubr.bf16.mxu0 %v6428
        %7090 = vmatmul.mubr.bf16.gmra.mrb[0].mxu0 %v6427
        %v7091 = vpop.f32.mrb[0].mxu0
        %v7092 = vadd.f32 %v6899, %v7091
        %v7093 = vpop.f32.mrb[0].mxu0
        %v7094 = vadd.f32 %v6901, %v7093
        %v7095 = vpop.f32.mrb[0].mxu0
        %v7096 = vadd.f32 %v6903, %v7095
        %v7097 = vpop.f32.mrb[0].mxu0
        %v7098 = vadd.f32 %v6905, %v7097
        %7099 = vmatprep.mubr.bf16.mxu0 %v6434
        %7100 = vmatmul.mubr.bf16.gmra.mrb[0].mxu0 %v6433
        %v7101 = vpop.f32.mrb[0].mxu0
        %v7102 = vadd.f32 %v6909, %v7101
        %v7103 = vpop.f32.mrb[0].mxu0
        %v7104 = vadd.f32 %v6911, %v7103
        %v7105 = vpop.f32.mrb[0].mxu0
        %v7106 = vadd.f32 %v6913, %v7105
        %v7107 = vpop.f32.mrb[0].mxu0
        %v7108 = vadd.f32 %v6915, %v7107
        %7109 = vdwg.mxu0
        %v7110 = vadd.f32 %v5002, %v6952
        %v7111 = vadd.f32 %v5004, %v6954
        %v7112 = vadd.f32 %v5006, %v6956
        %v7113 = vadd.f32 %v5008, %v6958
        %v7114 = vadd.f32 %v5012, %v6962
        %v7115 = vadd.f32 %v5014, %v6964
        %v7116 = vadd.f32 %v5016, %v6966
        %v7117 = vadd.f32 %v5018, %v6968
        %v7118 = vadd.f32 %v5022, %v6972
        %v7119 = vadd.f32 %v5024, %v6974
        %v7120 = vadd.f32 %v5026, %v6976
        %v7121 = vadd.f32 %v5028, %v6978
        %v7122 = vadd.f32 %v5032, %v6982
        %v7123 = vadd.f32 %v5034, %v6984
        %v7124 = vadd.f32 %v5036, %v6986
        %v7125 = vadd.f32 %v5038, %v6988
        %v7126 = vadd.f32 %v5042, %v6992
        %v7127 = vadd.f32 %v5044, %v6994
        %v7128 = vadd.f32 %v5046, %v6996
        %v7129 = vadd.f32 %v5048, %v6998
        %v7130 = vadd.f32 %v5052, %v7002
        %v7131 = vadd.f32 %v5054, %v7004
        %v7132 = vadd.f32 %v5056, %v7006
        %v7133 = vadd.f32 %v5058, %v7008
        %v7134 = vadd.f32 %v5062, %v7012
        %v7135 = vadd.f32 %v5064, %v7014
        %v7136 = vadd.f32 %v5066, %v7016
        %v7137 = vadd.f32 %v5068, %v7018
        %v7138 = vadd.f32 %v5072, %v7022
        %v7139 = vadd.f32 %v5074, %v7024
        %v7140 = vadd.f32 %v5076, %v7026
        %v7141 = vadd.f32 %v5078, %v7028
        %v7142 = vadd.f32 %v5082, %v7032
        %v7143 = vadd.f32 %v5084, %v7034
        %v7144 = vadd.f32 %v5086, %v7036
        %v7145 = vadd.f32 %v5088, %v7038
        %v7146 = vadd.f32 %v5092, %v7042
        %v7147 = vadd.f32 %v5094, %v7044
        %v7148 = vadd.f32 %v5096, %v7046
        %v7149 = vadd.f32 %v5098, %v7048
        %v7150 = vadd.f32 %v5102, %v7052
        %v7151 = vadd.f32 %v5104, %v7054
        %v7152 = vadd.f32 %v5106, %v7056
        %v7153 = vadd.f32 %v5108, %v7058
        %v7154 = vadd.f32 %v5112, %v7062
        %v7155 = vadd.f32 %v5114, %v7064
        %v7156 = vadd.f32 %v5116, %v7066
        %v7157 = vadd.f32 %v5118, %v7068
        %v7158 = vadd.f32 %v5122, %v7072
        %v7159 = vadd.f32 %v5124, %v7074
        %v7160 = vadd.f32 %v5126, %v7076
        %v7161 = vadd.f32 %v5128, %v7078
        %v7162 = vadd.f32 %v5132, %v7082
        %v7163 = vadd.f32 %v5134, %v7084
        %v7164 = vadd.f32 %v5136, %v7086
        %v7165 = vadd.f32 %v5138, %v7088
        %v7166 = vadd.f32 %v5142, %v7092
        %v7167 = vadd.f32 %v5144, %v7094
        %v7168 = vadd.f32 %v5146, %v7096
        %v7169 = vadd.f32 %v5148, %v7098
        %v7170 = vadd.f32 %v5152, %v7102
        %v7171 = vadd.f32 %v5154, %v7104
        %v7172 = vadd.f32 %v5156, %v7106
        %v7173 = vadd.f32 %v5158, %v7108
        %v7174 = vld [vmem:[%s5] sm:$0xff]
        %v7175 = vld [vmem:[%s5 + $0x8] sm:$0xff]
        %v7176 = vld [vmem:[%s5 + $0x10] sm:$0xff]
        %v7177 = vld [vmem:[%s5 + $0x18] sm:$0xff]
        %v7178 = vld [vmem:[%s5 + $0x20] sm:$0xff]
        %v7179 = vld [vmem:[%s5 + $0x28] sm:$0xff]
        %v7180 = vld [vmem:[%s5 + $0x30] sm:$0xff]
        %v7181 = vld [vmem:[%s5 + $0x38] sm:$0xff]
        %v7182 = vld [vmem:[%s5 + $0x40] sm:$0xff]
        %v7183 = vld [vmem:[%s5 + $0x48] sm:$0xff]
        %v7184 = vld [vmem:[%s5 + $0x50] sm:$0xff]
        %v7185 = vld [vmem:[%s5 + $0x58] sm:$0xff]
        %v7186 = vld [vmem:[%s5 + $0x60] sm:$0xff]
        %v7187 = vld [vmem:[%s5 + $0x68] sm:$0xff]
        %v7188 = vld [vmem:[%s5 + $0x70] sm:$0xff]
        %v7189 = vld [vmem:[%s5 + $0x78] sm:$0xff]
        %v7190 = vld [vmem:[%s5 + $0x80] sm:$0xff]
        %v7191 = vld [vmem:[%s5 + $0x88] sm:$0xff]
        %v7192 = vld [vmem:[%s5 + $0x90] sm:$0xff]
        %v7193 = vld [vmem:[%s5 + $0x98] sm:$0xff]
        %v7194 = vld [vmem:[%s5 + $0xa0] sm:$0xff]
        %v7195 = vld [vmem:[%s5 + $0xa8] sm:$0xff]
        %v7196 = vld [vmem:[%s5 + $0xb0] sm:$0xff]
        %v7197 = vld [vmem:[%s5 + $0xb8] sm:$0xff]
        %v7198 = vld [vmem:[%s5 + $0xc0] sm:$0xff]
        %v7199 = vld [vmem:[%s5 + $0xc8] sm:$0xff]
        %v7200 = vld [vmem:[%s5 + $0xd0] sm:$0xff]
        %v7201 = vld [vmem:[%s5 + $0xd8] sm:$0xff]
        %v7202 = vld [vmem:[%s5 + $0xe0] sm:$0xff]
        %v7203 = vld [vmem:[%s5 + $0xe8] sm:$0xff]
        %v7204 = vld [vmem:[%s5 + $0xf0] sm:$0xff]
        %v7205 = vld [vmem:[%s5 + $0xf8] sm:$0xff]
        %7207 = vset.pattern.permute.xlu0 0
        %7208 = vperm.xlu0 %7207, %v7174
        %v7209 = vpop.permute.xlu0 %7208
        %7212 = vset.pattern.permute.xlu0 0
        %7213 = vperm.xlu0 %7212, %v7175
        %v7214 = vpop.permute.xlu0 %7213
        %7217 = vset.pattern.permute.xlu0 0
        %7218 = vperm.xlu0 %7217, %v7176
        %v7219 = vpop.permute.xlu0 %7218
        %7222 = vset.pattern.permute.xlu0 0
        %7223 = vperm.xlu0 %7222, %v7177
        %v7224 = vpop.permute.xlu0 %7223
        %7227 = vset.pattern.permute.xlu0 0
        %7228 = vperm.xlu0 %7227, %v7178
        %v7229 = vpop.permute.xlu0 %7228
        %7232 = vset.pattern.permute.xlu0 0
        %7233 = vperm.xlu0 %7232, %v7179
        %v7234 = vpop.permute.xlu0 %7233
        %7237 = vset.pattern.permute.xlu0 0
        %7238 = vperm.xlu0 %7237, %v7180
        %v7239 = vpop.permute.xlu0 %7238
        %7242 = vset.pattern.permute.xlu0 0
        %7243 = vperm.xlu0 %7242, %v7181
        %v7244 = vpop.permute.xlu0 %7243
        %7247 = vset.pattern.permute.xlu0 0
        %7248 = vperm.xlu0 %7247, %v7182
        %v7249 = vpop.permute.xlu0 %7248
        %7252 = vset.pattern.permute.xlu0 0
        %7253 = vperm.xlu0 %7252, %v7183
        %v7254 = vpop.permute.xlu0 %7253
        %7257 = vset.pattern.permute.xlu0 0
        %7258 = vperm.xlu0 %7257, %v7184
        %v7259 = vpop.permute.xlu0 %7258
        %7262 = vset.pattern.permute.xlu0 0
        %7263 = vperm.xlu0 %7262, %v7185
        %v7264 = vpop.permute.xlu0 %7263
        %7267 = vset.pattern.permute.xlu0 0
        %7268 = vperm.xlu0 %7267, %v7186
        %v7269 = vpop.permute.xlu0 %7268
        %7272 = vset.pattern.permute.xlu0 0
        %7273 = vperm.xlu0 %7272, %v7187
        %v7274 = vpop.permute.xlu0 %7273
        %7277 = vset.pattern.permute.xlu0 0
        %7278 = vperm.xlu0 %7277, %v7188
        %v7279 = vpop.permute.xlu0 %7278
        %7282 = vset.pattern.permute.xlu0 0
        %7283 = vperm.xlu0 %7282, %v7189
        %v7284 = vpop.permute.xlu0 %7283
        %7287 = vset.pattern.permute.xlu0 0
        %7288 = vperm.xlu0 %7287, %v7190
        %v7289 = vpop.permute.xlu0 %7288
        %7292 = vset.pattern.permute.xlu0 0
        %7293 = vperm.xlu0 %7292, %v7191
        %v7294 = vpop.permute.xlu0 %7293
        %7297 = vset.pattern.permute.xlu0 0
        %7298 = vperm.xlu0 %7297, %v7192
        %v7299 = vpop.permute.xlu0 %7298
        %7302 = vset.pattern.permute.xlu0 0
        %7303 = vperm.xlu0 %7302, %v7193
        %v7304 = vpop.permute.xlu0 %7303
        %7307 = vset.pattern.permute.xlu0 0
        %7308 = vperm.xlu0 %7307, %v7194
        %v7309 = vpop.permute.xlu0 %7308
        %7312 = vset.pattern.permute.xlu0 0
        %7313 = vperm.xlu0 %7312, %v7195
        %v7314 = vpop.permute.xlu0 %7313
        %7317 = vset.pattern.permute.xlu0 0
        %7318 = vperm.xlu0 %7317, %v7196
        %v7319 = vpop.permute.xlu0 %7318
        %7322 = vset.pattern.permute.xlu0 0
        %7323 = vperm.xlu0 %7322, %v7197
        %v7324 = vpop.permute.xlu0 %7323
        %7327 = vset.pattern.permute.xlu0 0
        %7328 = vperm.xlu0 %7327, %v7198
        %v7329 = vpop.permute.xlu0 %7328
        %7332 = vset.pattern.permute.xlu0 0
        %7333 = vperm.xlu0 %7332, %v7199
        %v7334 = vpop.permute.xlu0 %7333
        %7337 = vset.pattern.permute.xlu0 0
        %7338 = vperm.xlu0 %7337, %v7200
        %v7339 = vpop.permute.xlu0 %7338
        %7342 = vset.pattern.permute.xlu0 0
        %7343 = vperm.xlu0 %7342, %v7201
        %v7344 = vpop.permute.xlu0 %7343
        %7347 = vset.pattern.permute.xlu0 0
        %7348 = vperm.xlu0 %7347, %v7202
        %v7349 = vpop.permute.xlu0 %7348
        %7352 = vset.pattern.permute.xlu0 0
        %7353 = vperm.xlu0 %7352, %v7203
        %v7354 = vpop.permute.xlu0 %7353
        %7357 = vset.pattern.permute.xlu0 0
        %7358 = vperm.xlu0 %7357, %v7204
        %v7359 = vpop.permute.xlu0 %7358
        %7362 = vset.pattern.permute.xlu0 0
        %7363 = vperm.xlu0 %7362, %v7205
        %v7364 = vpop.permute.xlu0 %7363
        %v7366 = vadd.f32 %v7110, %v7209
        %v7367 = vadd.f32 %v7111, %v7209
        %v7368 = vadd.f32 %v7112, %v7214
        %v7369 = vadd.f32 %v7113, %v7214
        %v7370 = vadd.f32 %v7114, %v7219
        %v7371 = vadd.f32 %v7115, %v7219
        %v7372 = vadd.f32 %v7116, %v7224
        %v7373 = vadd.f32 %v7117, %v7224
        %v7374 = vadd.f32 %v7118, %v7229
        %v7375 = vadd.f32 %v7119, %v7229
        %v7376 = vadd.f32 %v7120, %v7234
        %v7377 = vadd.f32 %v7121, %v7234
        %v7378 = vadd.f32 %v7122, %v7239
        %v7379 = vadd.f32 %v7123, %v7239
        %v7380 = vadd.f32 %v7124, %v7244
        %v7381 = vadd.f32 %v7125, %v7244
        %v7382 = vadd.f32 %v7126, %v7249
        %v7383 = vadd.f32 %v7127, %v7249
        %v7384 = vadd.f32 %v7128, %v7254
        %v7385 = vadd.f32 %v7129, %v7254
        %v7386 = vadd.f32 %v7130, %v7259
        %v7387 = vadd.f32 %v7131, %v7259
        %v7388 = vadd.f32 %v7132, %v7264
        %v7389 = vadd.f32 %v7133, %v7264
        %v7390 = vadd.f32 %v7134, %v7269
        %v7391 = vadd.f32 %v7135, %v7269
        %v7392 = vadd.f32 %v7136, %v7274
        %v7393 = vadd.f32 %v7137, %v7274
        %v7394 = vadd.f32 %v7138, %v7279
        %v7395 = vadd.f32 %v7139, %v7279
        %v7396 = vadd.f32 %v7140, %v7284
        %v7397 = vadd.f32 %v7141, %v7284
        %v7398 = vadd.f32 %v7142, %v7289
        %v7399 = vadd.f32 %v7143, %v7289
        %v7400 = vadd.f32 %v7144, %v7294
        %v7401 = vadd.f32 %v7145, %v7294
        %v7402 = vadd.f32 %v7146, %v7299
        %v7403 = vadd.f32 %v7147, %v7299
        %v7404 = vadd.f32 %v7148, %v7304
        %v7405 = vadd.f32 %v7149, %v7304
        %v7406 = vadd.f32 %v7150, %v7309
        %v7407 = vadd.f32 %v7151, %v7309
        %v7408 = vadd.f32 %v7152, %v7314
        %v7409 = vadd.f32 %v7153, %v7314
        %v7410 = vadd.f32 %v7154, %v7319
        %v7411 = vadd.f32 %v7155, %v7319
        %v7412 = vadd.f32 %v7156, %v7324
        %v7413 = vadd.f32 %v7157, %v7324
        %v7414 = vadd.f32 %v7158, %v7329
        %v7415 = vadd.f32 %v7159, %v7329
        %v7416 = vadd.f32 %v7160, %v7334
        %v7417 = vadd.f32 %v7161, %v7334
        %v7418 = vadd.f32 %v7162, %v7339
        %v7419 = vadd.f32 %v7163, %v7339
        %v7420 = vadd.f32 %v7164, %v7344
        %v7421 = vadd.f32 %v7165, %v7344
        %v7422 = vadd.f32 %v7166, %v7349
        %v7423 = vadd.f32 %v7167, %v7349
        %v7424 = vadd.f32 %v7168, %v7354
        %v7425 = vadd.f32 %v7169, %v7354
        %v7426 = vadd.f32 %v7170, %v7359
        %v7427 = vadd.f32 %v7171, %v7359
        %v7428 = vadd.f32 %v7172, %v7364
        %v7429 = vadd.f32 %v7173, %v7364
        %v7430 = vmax.f32 %v7366, 0.0
        %v7431 = vmax.f32 %v7367, 0.0
        %v7432 = vmax.f32 %v7368, 0.0
        %v7433 = vmax.f32 %v7369, 0.0
        %v7434 = vmax.f32 %v7370, 0.0
        %v7435 = vmax.f32 %v7371, 0.0
        %v7436 = vmax.f32 %v7372, 0.0
        %v7437 = vmax.f32 %v7373, 0.0
        %v7438 = vmax.f32 %v7374, 0.0
        %v7439 = vmax.f32 %v7375, 0.0
        %v7440 = vmax.f32 %v7376, 0.0
        %v7441 = vmax.f32 %v7377, 0.0
        %v7442 = vmax.f32 %v7378, 0.0
        %v7443 = vmax.f32 %v7379, 0.0
        %v7444 = vmax.f32 %v7380, 0.0
        %v7445 = vmax.f32 %v7381, 0.0
        %v7446 = vmax.f32 %v7382, 0.0
        %v7447 = vmax.f32 %v7383, 0.0
        %v7448 = vmax.f32 %v7384, 0.0
        %v7449 = vmax.f32 %v7385, 0.0
        %v7450 = vmax.f32 %v7386, 0.0
        %v7451 = vmax.f32 %v7387, 0.0
        %v7452 = vmax.f32 %v7388, 0.0
        %v7453 = vmax.f32 %v7389, 0.0
        %v7454 = vmax.f32 %v7390, 0.0
        %v7455 = vmax.f32 %v7391, 0.0
        %v7456 = vmax.f32 %v7392, 0.0
        %v7457 = vmax.f32 %v7393, 0.0
        %v7458 = vmax.f32 %v7394, 0.0
        %v7459 = vmax.f32 %v7395, 0.0
        %v7460 = vmax.f32 %v7396, 0.0
        %v7461 = vmax.f32 %v7397, 0.0
        %v7462 = vmax.f32 %v7398, 0.0
        %v7463 = vmax.f32 %v7399, 0.0
        %v7464 = vmax.f32 %v7400, 0.0
        %v7465 = vmax.f32 %v7401, 0.0
        %v7466 = vmax.f32 %v7402, 0.0
        %v7467 = vmax.f32 %v7403, 0.0
        %v7468 = vmax.f32 %v7404, 0.0
        %v7469 = vmax.f32 %v7405, 0.0
        %v7470 = vmax.f32 %v7406, 0.0
        %v7471 = vmax.f32 %v7407, 0.0
        %v7472 = vmax.f32 %v7408, 0.0
        %v7473 = vmax.f32 %v7409, 0.0
        %v7474 = vmax.f32 %v7410, 0.0
        %v7475 = vmax.f32 %v7411, 0.0
        %v7476 = vmax.f32 %v7412, 0.0
        %v7477 = vmax.f32 %v7413, 0.0
        %v7478 = vmax.f32 %v7414, 0.0
        %v7479 = vmax.f32 %v7415, 0.0
        %v7480 = vmax.f32 %v7416, 0.0
        %v7481 = vmax.f32 %v7417, 0.0
        %v7482 = vmax.f32 %v7418, 0.0
        %v7483 = vmax.f32 %v7419, 0.0
        %v7484 = vmax.f32 %v7420, 0.0
        %v7485 = vmax.f32 %v7421, 0.0
        %v7486 = vmax.f32 %v7422, 0.0
        %v7487 = vmax.f32 %v7423, 0.0
        %v7488 = vmax.f32 %v7424, 0.0
        %v7489 = vmax.f32 %v7425, 0.0
        %v7490 = vmax.f32 %v7426, 0.0
        %v7491 = vmax.f32 %v7427, 0.0
        %v7492 = vmax.f32 %v7428, 0.0
        %v7493 = vmax.f32 %v7429, 0.0
        %v7494 = vld [vmem:[#allocation11] sm:$0xff]
        %v7495 = vld [vmem:[#allocation11 + $0x8] sm:$0xff]
        %v7496 = vpack.c.bf16 %v7432, %v7430
        %v7497 = vpack.c.bf16 %v7433, %v7431
        %v7498 = vpack.c.bf16 %v7436, %v7434
        %v7499 = vpack.c.bf16 %v7437, %v7435
        %v7500 = vpack.c.bf16 %v7440, %v7438
        %v7501 = vpack.c.bf16 %v7441, %v7439
        %v7502 = vpack.c.bf16 %v7444, %v7442
        %v7503 = vpack.c.bf16 %v7445, %v7443
        %v7504 = vpack.c.bf16 %v7448, %v7446
        %v7505 = vpack.c.bf16 %v7449, %v7447
        %v7506 = vpack.c.bf16 %v7452, %v7450
        %v7507 = vpack.c.bf16 %v7453, %v7451
        %v7508 = vpack.c.bf16 %v7456, %v7454
        %v7509 = vpack.c.bf16 %v7457, %v7455
        %v7510 = vpack.c.bf16 %v7460, %v7458
        %v7511 = vpack.c.bf16 %v7461, %v7459
        %v7512 = vpack.c.bf16 %v7464, %v7462
        %v7513 = vpack.c.bf16 %v7465, %v7463
        %v7514 = vpack.c.bf16 %v7468, %v7466
        %v7515 = vpack.c.bf16 %v7469, %v7467
        %v7516 = vpack.c.bf16 %v7472, %v7470
        %v7517 = vpack.c.bf16 %v7473, %v7471
        %v7518 = vpack.c.bf16 %v7476, %v7474
        %v7519 = vpack.c.bf16 %v7477, %v7475
        %v7520 = vpack.c.bf16 %v7480, %v7478
        %v7521 = vpack.c.bf16 %v7481, %v7479
        %v7522 = vpack.c.bf16 %v7484, %v7482
        %v7523 = vpack.c.bf16 %v7485, %v7483
        %v7524 = vpack.c.bf16 %v7488, %v7486
        %v7525 = vpack.c.bf16 %v7489, %v7487
        %v7526 = vpack.c.bf16 %v7492, %v7490
        %v7527 = vpack.c.bf16 %v7493, %v7491
        %v7530 = vunpack.c.l.b16 %v7494
        %v7531 = vunpack.c.h.b16 %v7494
        %v7532 = vunpack.c.l.b16 %v7495
        %v7533 = vunpack.c.h.b16 %v7495
        %v7534 = vpack.c.b16 %v7532, %v7530
        %v7535 = vpack.c.b16 %v7533, %v7531
        %7538 = vmatprep.subr.bf16.mxu0 %v7497
        %7539 = vmatpush1.bf16.msra.mxu0 %v7496
        %7540 = vmatprep.subr.bf16.mxu0 %v7499
        %7541 = vmatpush1.bf16.msra.mxu0 %v7498
        %7542 = vmatprep.subr.bf16.mxu0 %v7501
        %7543 = vmatpush1.bf16.msra.mxu0 %v7500
        %7544 = vmatprep.subr.bf16.mxu0 %v7503
        %7545 = vmatpush1.bf16.msra.mxu0 %v7502
        %7546 = vmatprep.subr.bf16.mxu0 %v7505
        %7547 = vmatpush1.bf16.msra.mxu0 %v7504
        %7548 = vmatprep.subr.bf16.mxu0 %v7507
        %7549 = vmatpush1.bf16.msra.mxu0 %v7506
        %7550 = vmatprep.subr.bf16.mxu0 %v7509
        %7551 = vmatpush1.bf16.msra.mxu0 %v7508
        %7552 = vmatprep.subr.bf16.mxu0 %v7511
        %7553 = vmatpush1.bf16.msra.mxu0 %v7510
        %7554 = vmatprep.subr.bf16.mxu0 %v7513
        %7555 = vmatpush1.bf16.msra.mxu0 %v7512
        %7556 = vmatprep.subr.bf16.mxu0 %v7515
        %7557 = vmatpush1.bf16.msra.mxu0 %v7514
        %7558 = vmatprep.subr.bf16.mxu0 %v7517
        %7559 = vmatpush1.bf16.msra.mxu0 %v7516
        %7560 = vmatprep.subr.bf16.mxu0 %v7519
        %7561 = vmatpush1.bf16.msra.mxu0 %v7518
        %7562 = vmatprep.subr.bf16.mxu0 %v7521
        %7563 = vmatpush1.bf16.msra.mxu0 %v7520
        %7564 = vmatprep.subr.bf16.mxu0 %v7523
        %7565 = vmatpush1.bf16.msra.mxu0 %v7522
        %7566 = vmatprep.subr.bf16.mxu0 %v7525
        %7567 = vmatpush1.bf16.msra.mxu0 %v7524
        %7568 = vmatprep.subr.bf16.mxu0 %v7527
        %7569 = vmatpush1.bf16.msra.mxu0 %v7526
        %7570 = vmatprep.mubr.bf16.mxu0 %v7535
        %7571 = vmatmul.mubr.bf16.gmra.mrb[0].mxu0 %v7534
        %v7572 = vpop.f32.mrb[0].mxu0
        %v7573 = vadd.f32 0.0, %v7572
        %v7574 = vpop.f32.mrb[0].mxu0
        %v7575 = vadd.f32 0.0, %v7574
        %v7576 = vpop.f32.mrb[0].mxu0
        %v7577 = vadd.f32 0.0, %v7576
        %v7578 = vpop.f32.mrb[0].mxu0
        %v7579 = vadd.f32 0.0, %v7578
        %7580 = vdwg.mxu0
        %v7581 = vld [vmem:[#allocation4] sm:$0x1]
        %7583 = vset.pattern.permute.xlu0 0
        %7584 = vperm.xlu0 %7583, %v7581
        %v7585 = vpop.permute.xlu0 %7584
        %v7587 = vlaneseq
        %v7588 = vshrl.u32 %v7587, 7
        %v7589 = vsub.s32 0, %v7588
        %v7590 = vrot.slane %v7585, %v7589
        %7592 = vrot.lane.b32.xlu0 %v7575, 29
        %v7593 = vpop.permute.xlu0 %7592
        %7596 = vrot.lane.b32.xlu0 %v7573, 29
        %v7597 = vpop.permute.xlu0 %7596
        %v7598 = vsel %vm391, %v7597, %v7593
        %v7601 = vsel %vm391, %v7593, %v7597
        %v7602 = vmul.f32 %v7601, %v368
        %v7603 = vmul.f32 %v7598, %v369
        %v7604 = vadd.f32 %v7590, %v7602
        %v7605 = vadd.f32 %v7590, %v7603
        %7606 = vrot.lane.b32.xlu0 %v7575, 28
        %v7607 = vpop.permute.xlu0 %7606
        %7609 = vrot.lane.b32.xlu0 %v7573, 28
        %v7610 = vpop.permute.xlu0 %7609
        %v7611 = vsel %vm427, %v7610, %v7607
        %v7614 = vsel %vm427, %v7607, %v7610
        %v7615 = vmul.f32 %v7614, %v368
        %v7616 = vmul.f32 %v7611, %v369
        %v7619 = vrot.slane %v7615, 1
        %v7620 = vrot.slane %v7616, 1
        %v7623 = vadd.f32 %v7604, %v7619
        %v7624 = vadd.f32 %v7605, %v7620
        %7625 = vrot.lane.b32.xlu0 %v7575, 27
        %v7626 = vpop.permute.xlu0 %7625
        %7628 = vrot.lane.b32.xlu0 %v7573, 27
        %v7629 = vpop.permute.xlu0 %7628
        %v7630 = vsel %vm466, %v7629, %v7626
        %v7633 = vsel %vm466, %v7626, %v7629
        %v7634 = vmul.f32 %v7633, %v368
        %v7635 = vmul.f32 %v7630, %v369
        %v7638 = vrot.slane %v7634, 2
        %v7639 = vrot.slane %v7635, 2
        %v7642 = vadd.f32 %v7623, %v7638
        %v7643 = vadd.f32 %v7624, %v7639
        %7644 = vrot.lane.b32.xlu0 %v7575, 1
        %v7645 = vpop.permute.xlu0 %7644
        %7647 = vrot.lane.b32.xlu0 %v7573, 1
        %v7648 = vpop.permute.xlu0 %7647
        %v7649 = vsel %vm503, %v7648, %v7645
        %v7652 = vsel %vm503, %v7645, %v7648
        %v7653 = vmul.f32 %v7652, %v368
        %v7654 = vmul.f32 %v7649, %v369
        %v7657 = vrot.slane %v7653, 3
        %v7658 = vrot.slane %v7654, 3
        %v7661 = vadd.f32 %v7642, %v7657
        %v7662 = vadd.f32 %v7643, %v7658
        %v7663 = vmul.f32 %v7573, %v368
        %v7664 = vmul.f32 %v7575, %v369
        %v7667 = vrot.slane %v7663, 4
        %v7668 = vrot.slane %v7664, 4
        %v7671 = vadd.f32 %v7661, %v7667
        %v7672 = vadd.f32 %v7662, %v7668
        %7673 = vrot.lane.b32.xlu0 %v7573, 127
        %v7674 = vpop.permute.xlu0 %7673
        %7675 = vrot.lane.b32.xlu0 %v7575, 127
        %v7676 = vpop.permute.xlu0 %7675
        %v7677 = vsel %vm559, %v7674, %v7676
        %v7681 = vsel %vm559, %v7676, %v7674
        %v7682 = vmul.f32 %v7677, %v368
        %v7683 = vmul.f32 %v7681, %v369
        %v7686 = vrot.slane %v7682, 5
        %v7687 = vrot.slane %v7683, 5
        %v7690 = vadd.f32 %v7671, %v7686
        %v7691 = vadd.f32 %v7672, %v7687
        %7692 = vrot.lane.b32.xlu0 %v7573, 101
        %v7693 = vpop.permute.xlu0 %7692
        %7694 = vrot.lane.b32.xlu0 %v7575, 101
        %v7695 = vpop.permute.xlu0 %7694
        %v7696 = vsel %vm596, %v7693, %v7695
        %v7700 = vsel %vm596, %v7695, %v7693
        %v7701 = vmul.f32 %v7696, %v368
        %v7702 = vmul.f32 %v7700, %v369
        %v7705 = vrot.slane %v7701, 6
        %v7706 = vrot.slane %v7702, 6
        %v7709 = vadd.f32 %v7690, %v7705
        %v7710 = vadd.f32 %v7691, %v7706
        %7711 = vrot.lane.b32.xlu0 %v7573, 100
        %v7712 = vpop.permute.xlu0 %7711
        %7713 = vrot.lane.b32.xlu0 %v7575, 100
        %v7714 = vpop.permute.xlu0 %7713
        %v7715 = vsel %vm633, %v7712, %v7714
        %v7719 = vsel %vm633, %v7714, %v7712
        %v7720 = vmul.f32 %v7715, %v368
        %v7721 = vmul.f32 %v7719, %v369
        %v7724 = vrot.slane %v7720, 7
        %v7725 = vrot.slane %v7721, 7
        %v7728 = vadd.f32 %v7709, %v7724
        %v7729 = vadd.f32 %v7710, %v7725
        %7732 = vrot.lane.b32.xlu0 %v7577, 99
        %v7733 = vpop.permute.xlu0 %7732
        %7734 = vrot.lane.b32.xlu0 %v7579, 99
        %v7735 = vpop.permute.xlu0 %7734
        %v7736 = vsel %vm670, %v7733, %v7735
        %v7740 = vsel %vm670, %v7735, %v7733
        %v7741 = vmul.f32 %v7736, %v370
        %v7742 = vmul.f32 %v7740, %v371
        %v7743 = vadd.f32 %v7728, %v7741
        %v7744 = vadd.f32 %v7729, %v7742
        %v7747 = vcombine.low %v7743, %v7744
        %v7749 = vunpack.c.l.s4 1966171168
        %v7750 = vunpack.c.0.s8 %v7749
        %v7751 = vlaneseq
        %v7752 = vshrl.u32 %v7751, 7
        %v7753 = vsub.s32 %v7750, %v7752
        %v7754 = vrot.slane %v7747, %v7753
        %v7756 = vunpack.c.l.s4 1966171168
        %v7757 = vunpack.c.0.s8 %v7756
        %v7758 = vlaneseq
        %v7759 = vshrl.u32 %v7758, 7
        %v7760 = vsub.s32 %v7757, %v7759
        %v7761 = vrot.slane %v7754, %v7760
        %7763 = vst.msk [vmem:[%s367] sm:$0x3] %vm419, %v7761
        %s7764 = sand.u32 %s210, 1
        %s7765 = scalar_lea.sflag [#allocation7], %s7764
        %s7766 = sand.u32 %s210, 1
        %s7767 = smul.addr %s7766, 2
        %s7768 = scalar_lea.vmem [#allocation13], %s7767
        // Predicated region
        $region69: #{tpu_custom_call.1} parent=51 // pred_check
          %p7769 = pneg %p220
        $region70: #{tpu_custom_call.1} parent=51 // pred_check_branch
          %7771 = sbr.rel (%p7769) target = $region72
        $region71: #{tpu_custom_call.1} parent=51 // pred_region
          %s7773 = ssub.s32 32, 32
          %7774 = vsyncadd %s7765, %s7773
          %s7775 = smul.addr %s29, 2
          %s7776 = smul.addr %s7775, 16
          %s7777 = scalar_lea.hbm %s8, %s7776
          %s7779 = sshll.u32 %s7768, 4
          %s7780 = int_to_ptr.vmem [resolvable:$true] %s7779
          %7782 = dma.vmem_to_hbm [thread:$0]  %s7780, 32, %s7777, %s7765
        $region72: #{tpu_custom_call.1} parent=51 // pred_fallthru
          _
      $region52: #{tpu_custom_call.1} parent=5 // pred_fallthru
        _
      %p7783 = scmp.le.s32.totalorder 2, %s24
      // Predicated region
      $region73: #{tpu_custom_call.1} parent=5 // pred_check
        %p7784 = pneg %p7783
      $region74: #{tpu_custom_call.1} parent=5 // pred_check_branch
        %7786 = sbr.rel (%p7784) target = $region76
      $region75: #{tpu_custom_call.1} parent=5 // pred_region
        %s7787 = ssub.s32 %s24, 2
        // Predicated region
        $region77: #{tpu_custom_call.1} parent=75 // pred_check
          %p7788 = pneg %p226
        $region78: #{tpu_custom_call.1} parent=75 // pred_check_branch
          %7790 = sbr.rel (%p7788) target = $region80
        $region79: #{tpu_custom_call.1} parent=75 // pred_region
          %s7791 = sand.u32 %s211, 1
          %s7792 = scalar_lea.sflag [#allocation7], %s7791
          %s7793 = sand.u32 %s211, 1
          %s7794 = smul.addr %s7793, 2
          %s7795 = scalar_lea.vmem [#allocation13], %s7794
          %7796 = dma.done %s7792, 32
        $region80: #{tpu_custom_call.1} parent=75 // pred_fallthru
          _
      $region76: #{tpu_custom_call.1} parent=5 // pred_fallthru
        _
    $region6: #{tpu_custom_call.1} parent=1 // loop_footer
      %s28 = sadd.s32 1, %s24
    $region7: #{tpu_custom_call.1} parent=1 // loop_footer_branch
      %23 = sbr.rel target = $region3
    $region8: #{tpu_custom_call.1} parent=1 // loop_exit
      _
    %7797 = vsyncpa [#allocation6], 1
    %s7798 = scalar_lea.sflag [#allocation6], 1
    %7799 = vsyncpa %s7798, 1
    %7800 = vsyncpa [#allocation9], 1
    %7801 = vsyncpa [#allocation12], 1
    %7802 = vsyncpa [#allocation7], 1
    %s7803 = scalar_lea.sflag [#allocation7], 1
    %7804 = vsyncpa %s7803, 1

</llo_original>
